<compile_context>
chip_gen: v7x
topology: tpu7x:2x2x1
jax: 0.10.0
libtpu: 0.0.40
codegen_flags: <defaults>
</compile_context>

<pallas_src>
import functools

import jax
import jax.numpy as jnp
from jax.experimental import pallas as pl
from jax.experimental.pallas import tpu as pltpu

# ----------------------- small synthetic configuration -----------------------
BATCH = 2
IN_CHANS = 3
IMG_H, IMG_W = 32, 32
PATCH = 8
EMBED_DIM = 32
DEPTH = 2
NUM_HEADS = 4
HEAD_DIM = EMBED_DIM // NUM_HEADS
MLP_RATIO = 4
MLP_DIM = EMBED_DIM * MLP_RATIO
DECONV_FILTERS = (16, 16)          # num_deconv_filters
DECONV_KERNEL = 4                  # num_deconv_kernels -> k=4, stride=2, pad=1
OUT_CHANNELS = 5                   # keypoint heatmap channels
HP, WP = IMG_H // PATCH, IMG_W // PATCH
NUM_PATCHES = HP * WP

LN_EPS = 1e-6
BN_EPS = 1e-5


# ------------------------------ in-kernel helpers -----------------------------
def _erf(x):
    # float32-accurate erf (Abramowitz & Stegun 7.1.26, |err| < 1.5e-7) used to
    # implement PyTorch's exact (approximate='none') nn.GELU in-kernel.
    # (At production sizes, swap for a native EUP transcendental.)
    p = 0.3275911
    a1, a2, a3, a4, a5 = (0.254829592, -0.284496736, 1.421413741,
                          -1.453152027, 1.061405429)
    ax = jnp.abs(x)
    t = 1.0 / (1.0 + p * ax)
    poly = ((((a5 * t + a4) * t + a3) * t + a2) * t + a1) * t
    y = 1.0 - poly * jnp.exp(-ax * ax)
    return jnp.where(x >= 0, y, -y)


def _ln(x, w, b):
    mu = jnp.mean(x, axis=-1, keepdims=True)
    var = jnp.mean(jnp.square(x - mu), axis=-1, keepdims=True)
    return (x - mu) * jax.lax.rsqrt(var + LN_EPS) * w + b


# ----------------------- fused ViT backbone (one kernel) ----------------------
def _backbone_kernel(patches_ref, pew_ref, peb_ref, pos_ref,
                     ln1w_ref, ln1b_ref, wqkv_ref, bqkv_ref,
                     wproj_ref, bproj_ref, ln2w_ref, ln2b_ref,
                     fc1w_ref, fc1b_ref, fc2w_ref, fc2b_ref,
                     lnfw_ref, lnfb_ref,
                     o_ref, attn_sc,
                     *, depth, num_heads, head_dim, batch, num_tokens):
    d_model = num_heads * head_dim
    scale = float(head_dim) ** -0.5

    # patch-embed conv (as matmul) + bias + positional embedding
    x = jnp.dot(patches_ref[...], pew_ref[...], preferred_element_type=jnp.float32)
    x = x + peb_ref[...] + pos_ref[...]                         # (B*N, D)

    for layer in range(depth):                                   # static unroll (DEPTH=2)
        # ---- LayerNorm 1 + fused QKV projection ----
        xn = _ln(x, ln1w_ref[layer], ln1b_ref[layer])
        qkv = jnp.dot(xn, wqkv_ref[layer],
                      preferred_element_type=jnp.float32) + bqkv_ref[layer]
        q = qkv[:, :d_model]
        k = qkv[:, d_model:2 * d_model]
        v = qkv[:, 2 * d_model:]

        # ---- attention cores (per batch element / head, all VMEM resident) ----
        for b in range(batch):
            r0 = b * num_tokens
            for h in range(num_heads):
                c0 = h * head_dim
                qh = q[r0:r0 + num_tokens, c0:c0 + head_dim]
                kh = k[r0:r0 + num_tokens, c0:c0 + head_dim]
                vh = v[r0:r0 + num_tokens, c0:c0 + head_dim]
                s = jax.lax.dot_general(qh, kh, (((1,), (1,)), ((), ())),
                                        preferred_element_type=jnp.float32) * scale
                s = s - jnp.max(s, axis=-1, keepdims=True)
                p = jnp.exp(s)
                p = p * pl.reciprocal(jnp.sum(p, axis=-1, keepdims=True), approx=True)
                attn_sc[r0:r0 + num_tokens, c0:c0 + head_dim] = jnp.dot(
                    p, vh, preferred_element_type=jnp.float32)

        # ---- single fused output projection over concatenated heads ----
        attn = jnp.dot(attn_sc[...], wproj_ref[layer],
                       preferred_element_type=jnp.float32) + bproj_ref[layer]
        # TODO(synk): drop_path (stochastic depth, rate=0.3) is identity in eval mode.
        x = x + attn

        # ---- LayerNorm 2 + MLP (exact GELU) ----
        xn2 = _ln(x, ln2w_ref[layer], ln2b_ref[layer])
        h1 = jnp.dot(xn2, fc1w_ref[layer],
                     preferred_element_type=jnp.float32) + fc1b_ref[layer]
        h1 = 0.5 * h1 * (1.0 + _erf(h1 * 0.7071067811865476))
        h2 = jnp.dot(h1, fc2w_ref[layer],
                     preferred_element_type=jnp.float32) + fc2b_ref[layer]
        x = x + h2

    # ---- final LayerNorm ----
    o_ref[...] = _ln(x, lnfw_ref[...], lnfb_ref[...])


def vit_backbone_fused(patches, pe_w2d, pe_b, pos_bn, p):
    m = patches.shape[0]                                         # B*N
    kernel = functools.partial(
        _backbone_kernel, depth=DEPTH, num_heads=NUM_HEADS, head_dim=HEAD_DIM,
        batch=BATCH, num_tokens=NUM_PATCHES)
    return pl.pallas_call(
        kernel,
        out_shape=jax.ShapeDtypeStruct((m, EMBED_DIM), jnp.float32),
        scratch_shapes=[pltpu.VMEM((m, EMBED_DIM), jnp.float32)],
    )(patches, pe_w2d, pe_b, pos_bn,
      p["ln1_w"], p["ln1_b"], p["wqkv"], p["bqkv"], p["wproj"], p["bproj"],
      p["ln2_w"], p["ln2_b"], p["fc1_w"], p["fc1_b"], p["fc2_w"], p["fc2_b"],
      p["lnf_w"], p["lnf_b"])


# ----------------------------- keypoint-head kernels ---------------------------
# All head math runs in transposed layout (Cout rows, B*Ho*Wo lanes) so stores are
# lane-dense (last dims 128 / 512, multiples of 128).
def _deconv_bn_relu_kernel(wT_ref, cols_ref, g_ref, b_ref, m_ref, v_ref, o_ref):
    y = jnp.dot(wT_ref[...], cols_ref[...], preferred_element_type=jnp.float32)
    inv = g_ref[...] * jax.lax.rsqrt(v_ref[...] + BN_EPS)
    o_ref[...] = jnp.maximum((y - m_ref[...]) * inv + b_ref[...], 0.0)


def deconv_bn_relu(wT, cols, gamma, beta, rmean, rvar):
    cout = wT.shape[0]
    m = cols.shape[1]
    return pl.pallas_call(
        _deconv_bn_relu_kernel,
        out_shape=jax.ShapeDtypeStruct((cout, m), jnp.float32),
    )(wT, cols, gamma, beta, rmean, rvar)


def _deconv_bn_relu_final_kernel(wT_ref, cols_ref, g_ref, b_ref, m_ref, v_ref,
                                 wf_ref, bf_ref, o_ref):
    # deconv2 (matmul) -> BN -> ReLU -> final 1x1 conv + bias, all fused.
    y = jnp.dot(wT_ref[...], cols_ref[...], preferred_element_type=jnp.float32)
    inv = g_ref[...] * jax.lax.rsqrt(v_ref[...] + BN_EPS)
    y = jnp.maximum((y - m_ref[...]) * inv + b_ref[...], 0.0)
    o_ref[...] = jnp.dot(wf_ref[...], y,
                         preferred_element_type=jnp.float32) + bf_ref[...]


def deconv_bn_relu_final(wT, cols, gamma, beta, rmean, rvar, wf, bf):
    m = cols.shape[1]
    return pl.pallas_call(
        _deconv_bn_relu_final_kernel,
        out_shape=jax.ShapeDtypeStruct((OUT_CHANNELS, m), jnp.float32),
    )(wT, cols, gamma, beta, rmean, rvar, wf, bf)


# ------------------------------- XLA-side glue ---------------------------------
def _im2col_deconv(x):
    # ConvTranspose2d(k=4, s=2, p=1) == zero-insert + pad 2 + conv with flipped
    # kernel. Produces columns in transposed (K, M) layout: (Cin*16, B*Ho*Wo).
    bsz, cin, hh, ww = x.shape
    z = jnp.zeros((bsz, cin, 2 * hh - 1, 2 * ww - 1), x.dtype)
    z = z.at[:, :, ::2, ::2].set(x)
    z = jnp.pad(z, ((0, 0), (0, 0), (2, 2), (2, 2)))
    ho, wo = 2 * hh, 2 * ww
    cols = jnp.stack(
        [z[:, :, kh:kh + ho, kw:kw + wo] for kh in range(4) for kw in range(4)],
        axis=2)                                                  # (B, Cin, 16, Ho, Wo)
    cols = cols.transpose(1, 2, 0, 3, 4).reshape(cin * 16, bsz * ho * wo)
    return cols, (ho, wo)


def _deconv_weight_T(w_t):
    # PyTorch ConvTranspose2d weight (Cin, Cout, 4, 4) -> (Cout, Cin*16), flipped.
    cin, cout = w_t.shape[0], w_t.shape[1]
    w_flip = w_t[:, :, ::-1, ::-1]
    return w_flip.transpose(1, 0, 2, 3).reshape(cout, cin * 16)


# ------------------------------------ model ------------------------------------
def vitpose_forward(x, params):
    bsz = x.shape[0]

    # Patchify (Conv2d(kernel=stride=PATCH) as non-overlapping patch extraction).
    patches = x.reshape(bsz, IN_CHANS, HP, PATCH, WP, PATCH)
    patches = patches.transpose(0, 2, 4, 1, 3, 5).reshape(
        bsz * HP * WP, IN_CHANS * PATCH * PATCH)
    pe_w2d = params["pe_w"].reshape(EMBED_DIM, -1).T             # (C*P*P, D)
    pe_b = params["pe_b"].reshape(1, EMBED_DIM)
    pos = params["pos_embed"]
    pos_tok = pos[0, 1:] + pos[0, :1]                            # ViTPose pos-embed add
    pos_bn = jnp.tile(pos_tok, (bsz, 1))                         # (B*N, D)

    tokens = vit_backbone_fused(patches, pe_w2d, pe_b, pos_bn, params)   # (B*N, D)
    feat = tokens.reshape(bsz, HP * WP, EMBED_DIM).transpose(0, 2, 1)
    feat = feat.reshape(bsz, EMBED_DIM, HP, WP)

    # Deconv 1 + BN + ReLU (transposed, lane-dense layout).
    cols1, (h1, w1) = _im2col_deconv(feat)
    w1T = _deconv_weight_T(params["deconv_w"][0])
    # TODO(synk): BatchNorm implemented in inference mode (running stats), not train-mode batch stats.
    y1 = deconv_bn_relu(w1T, cols1, *params["bn"][0])            # (C1, B*h1*w1)
    f1 = y1.reshape(DECONV_FILTERS[0], bsz, h1, w1).transpose(1, 0, 2, 3)

    # Deconv 2 + BN + ReLU + final 1x1 conv (+bias), fused in one kernel.
    cols2, (h2, w2) = _im2col_deconv(f1)
    w2T = _deconv_weight_T(params["deconv_w"][1])
    wf = params["final_w"].reshape(OUT_CHANNELS, DECONV_FILTERS[-1])
    bf = params["final_b"].reshape(OUT_CHANNELS, 1)
    heat = deconv_bn_relu_final(w2T, cols2, *params["bn"][1], wf, bf)    # (5, B*h2*w2)
    return heat.reshape(OUT_CHANNELS, bsz, h2, w2).transpose(1, 0, 2, 3)


# ------------------------------ parameter init ----------------------------------
def init_params(key):
    keys = iter(jax.random.split(key, 64))

    def nrm(shape, scale=0.02):
        return scale * jax.random.normal(next(keys), shape, jnp.float32)

    params = {
        "pe_w": nrm((EMBED_DIM, IN_CHANS, PATCH, PATCH)),
        "pe_b": nrm((EMBED_DIM,)),
        "pos_embed": nrm((1, NUM_PATCHES + 1, EMBED_DIM)),
        "lnf_w": jnp.ones((1, EMBED_DIM), jnp.float32),
        "lnf_b": jnp.zeros((1, EMBED_DIM), jnp.float32),
        # transformer block weights, stacked along a leading depth axis
        "ln1_w": jnp.ones((DEPTH, 1, EMBED_DIM), jnp.float32),
        "ln1_b": jnp.zeros((DEPTH, 1, EMBED_DIM), jnp.float32),
        "wqkv": nrm((DEPTH, EMBED_DIM, 3 * EMBED_DIM)),
        "bqkv": nrm((DEPTH, 1, 3 * EMBED_DIM)),
        "wproj": nrm((DEPTH, EMBED_DIM, EMBED_DIM)),
        "bproj": nrm((DEPTH, 1, EMBED_DIM)),
        "ln2_w": jnp.ones((DEPTH, 1, EMBED_DIM), jnp.float32),
        "ln2_b": jnp.zeros((DEPTH, 1, EMBED_DIM), jnp.float32),
        "fc1_w": nrm((DEPTH, EMBED_DIM, MLP_DIM)),
        "fc1_b": nrm((DEPTH, 1, MLP_DIM)),
        "fc2_w": nrm((DEPTH, MLP_DIM, EMBED_DIM)),
        "fc2_b": nrm((DEPTH, 1, EMBED_DIM)),
    }

    dws, bns = [], []
    cin = EMBED_DIM
    for f in DECONV_FILTERS:
        dws.append(nrm((cin, f, DECONV_KERNEL, DECONV_KERNEL), scale=0.05))
        gamma = 1.0 + 0.1 * jax.random.normal(next(keys), (f, 1), jnp.float32)
        beta = 0.1 * jax.random.normal(next(keys), (f, 1), jnp.float32)
        rmean = 0.1 * jax.random.normal(next(keys), (f, 1), jnp.float32)
        rvar = 1.0 + 0.1 * jnp.abs(jax.random.normal(next(keys), (f, 1), jnp.float32))
        bns.append((gamma, beta, rmean, rvar))
        cin = f
    params["deconv_w"] = dws
    params["bn"] = bns
    params["final_w"] = nrm((OUT_CHANNELS, DECONV_FILTERS[-1], 1, 1))
    params["final_b"] = nrm((OUT_CHANNELS,))
    return params


# ------------------------------------ main ---------------------------------------
if __name__ == "__main__":
    key = jax.random.PRNGKey(0)
    pkey, xkey = jax.random.split(key)
    params = init_params(pkey)
    x = jax.random.normal(xkey, (BATCH, IN_CHANS, IMG_H, IMG_W), jnp.float32)

    out = jax.jit(vitpose_forward)(x, params)
    out = jax.block_until_ready(out)

    expected = (BATCH, OUT_CHANNELS, 4 * HP, 4 * WP)
    assert out.shape == expected, (out.shape, expected)
    assert bool(jnp.all(jnp.isfinite(out)))
    print("KERNEL_OK")
</pallas_src>

<mosaic_0001>
module attributes {stable_mosaic.version = 11 : i64} {
  func.func @_backbone_kernel(%arg0: memref<32x192xf32, #tpu.memory_space<vmem>>, %arg1: memref<192x32xf32, #tpu.memory_space<vmem>>, %arg2: memref<1x32xf32, #tpu.memory_space<vmem>>, %arg3: memref<32x32xf32, #tpu.memory_space<vmem>>, %arg4: memref<2x1x32xf32, #tpu.memory_space<vmem>>, %arg5: memref<2x1x32xf32, #tpu.memory_space<vmem>>, %arg6: memref<2x32x96xf32, #tpu.memory_space<vmem>>, %arg7: memref<2x1x96xf32, #tpu.memory_space<vmem>>, %arg8: memref<2x32x32xf32, #tpu.memory_space<vmem>>, %arg9: memref<2x1x32xf32, #tpu.memory_space<vmem>>, %arg10: memref<2x1x32xf32, #tpu.memory_space<vmem>>, %arg11: memref<2x1x32xf32, #tpu.memory_space<vmem>>, %arg12: memref<2x32x128xf32, #tpu.memory_space<vmem>>, %arg13: memref<2x1x128xf32, #tpu.memory_space<vmem>>, %arg14: memref<2x128x32xf32, #tpu.memory_space<vmem>>, %arg15: memref<2x1x32xf32, #tpu.memory_space<vmem>>, %arg16: memref<1x32xf32, #tpu.memory_space<vmem>>, %arg17: memref<1x32xf32, #tpu.memory_space<vmem>>, %arg18: memref<32x32xf32, #tpu.memory_space<vmem>>, %arg19: memref<32x32xf32, #tpu.memory_space<vmem>>) attributes {dimension_semantics = [], scalar_prefetch = 0 : i64, scratch_operands = 1 : i64, tpu.core_type = #tpu.core_type<tc>} {
    %c0 = arith.constant 0 : index
    %c0_0 = arith.constant 0 : index
    %0 = vector.load %arg0[%c0, %c0_0] : memref<32x192xf32, #tpu.memory_space<vmem>>, vector<32x192xf32>
    %c0_1 = arith.constant 0 : index
    %c0_2 = arith.constant 0 : index
    %1 = vector.load %arg1[%c0_1, %c0_2] : memref<192x32xf32, #tpu.memory_space<vmem>>, vector<192x32xf32>
    %cst = arith.constant dense<0.000000e+00> : vector<32x32xf32>
    %2 = tpu.matmul %0, %1, %cst {dimension_numbers = #tpu.dot_dimension_numbers<[1], [0], [0], [1], [0, 0, 1, 1], [], []>} : vector<32x192xf32>, vector<192x32xf32>, vector<32x32xf32> -> vector<32x32xf32>
    %c0_3 = arith.constant 0 : index
    %c0_4 = arith.constant 0 : index
    %3 = vector.load %arg2[%c0_3, %c0_4] : memref<1x32xf32, #tpu.memory_space<vmem>>, vector<1x32xf32>
    %4 = vector.broadcast %3 : vector<1x32xf32> to vector<32x32xf32>
    %5 = arith.addf %2, %4 : vector<32x32xf32>
    %c0_5 = arith.constant 0 : index
    %c0_6 = arith.constant 0 : index
    %6 = vector.load %arg3[%c0_5, %c0_6] : memref<32x32xf32, #tpu.memory_space<vmem>>, vector<32x32xf32>
    %7 = arith.addf %5, %6 : vector<32x32xf32>
    %c0_7 = arith.constant 0 : index
    %c0_8 = arith.constant 0 : index
    %c0_9 = arith.constant 0 : index
    %8 = vector.load %arg4[%c0_7, %c0_8, %c0_9] : memref<2x1x32xf32, #tpu.memory_space<vmem>>, vector<1x1x32xf32>
    %9 = vector.shape_cast %8 : vector<1x1x32xf32> to vector<1x32xf32>
    %c0_10 = arith.constant 0 : index
    %c0_11 = arith.constant 0 : index
    %c0_12 = arith.constant 0 : index
    %10 = vector.load %arg5[%c0_10, %c0_11, %c0_12] : memref<2x1x32xf32, #tpu.memory_space<vmem>>, vector<1x1x32xf32>
    %11 = vector.shape_cast %10 : vector<1x1x32xf32> to vector<1x32xf32>
    %cst_13 = arith.constant dense<0.000000e+00> : vector<32xf32>
    %12 = vector.multi_reduction <add>, %7, %cst_13 [1] : vector<32x32xf32> to vector<32xf32>
    %13 = vector.shape_cast %12 : vector<32xf32> to vector<32x1xf32>
    %cst_14 = arith.constant 3.200000e+01 : f32
    %14 = vector.broadcast %cst_14 : f32 to vector<32x1xf32>
    %15 = arith.divf %13, %14 : vector<32x1xf32>
    %16 = vector.broadcast %15 : vector<32x1xf32> to vector<32x32xf32>
    %17 = arith.subf %7, %16 : vector<32x32xf32>
    %18 = arith.mulf %17, %17 : vector<32x32xf32>
    %cst_15 = arith.constant dense<0.000000e+00> : vector<32xf32>
    %19 = vector.multi_reduction <add>, %18, %cst_15 [1] : vector<32x32xf32> to vector<32xf32>
    %20 = vector.shape_cast %19 : vector<32xf32> to vector<32x1xf32>
    %cst_16 = arith.constant 3.200000e+01 : f32
    %21 = vector.broadcast %cst_16 : f32 to vector<32x1xf32>
    %22 = arith.divf %20, %21 : vector<32x1xf32>
    %23 = vector.broadcast %15 : vector<32x1xf32> to vector<32x32xf32>
    %24 = arith.subf %7, %23 : vector<32x32xf32>
    %cst_17 = arith.constant 9.99999997E-7 : f32
    %25 = vector.broadcast %cst_17 : f32 to vector<32x1xf32>
    %26 = arith.addf %22, %25 : vector<32x1xf32>
    %27 = math.rsqrt %26 : vector<32x1xf32>
    %28 = vector.broadcast %27 : vector<32x1xf32> to vector<32x32xf32>
    %29 = arith.mulf %24, %28 : vector<32x32xf32>
    %30 = vector.broadcast %9 : vector<1x32xf32> to vector<32x32xf32>
    %31 = arith.mulf %29, %30 : vector<32x32xf32>
    %32 = vector.broadcast %11 : vector<1x32xf32> to vector<32x32xf32>
    %33 = arith.addf %31, %32 : vector<32x32xf32>
    %c0_18 = arith.constant 0 : index
    %c0_19 = arith.constant 0 : index
    %c0_20 = arith.constant 0 : index
    %34 = vector.load %arg6[%c0_18, %c0_19, %c0_20] : memref<2x32x96xf32, #tpu.memory_space<vmem>>, vector<1x32x96xf32>
    %35 = vector.shape_cast %34 : vector<1x32x96xf32> to vector<32x96xf32>
    %cst_21 = arith.constant dense<0.000000e+00> : vector<32x96xf32>
    %36 = tpu.matmul %33, %35, %cst_21 {dimension_numbers = #tpu.dot_dimension_numbers<[1], [0], [0], [1], [0, 0, 1, 1], [], []>} : vector<32x32xf32>, vector<32x96xf32>, vector<32x96xf32> -> vector<32x96xf32>
    %c0_22 = arith.constant 0 : index
    %c0_23 = arith.constant 0 : index
    %c0_24 = arith.constant 0 : index
    %37 = vector.load %arg7[%c0_22, %c0_23, %c0_24] : memref<2x1x96xf32, #tpu.memory_space<vmem>>, vector<1x1x96xf32>
    %38 = vector.shape_cast %37 : vector<1x1x96xf32> to vector<1x96xf32>
    %39 = vector.broadcast %38 : vector<1x96xf32> to vector<32x96xf32>
    %40 = arith.addf %36, %39 : vector<32x96xf32>
    %41 = vector.extract_strided_slice %40 {offsets = [0, 0], sizes = [32, 32], strides = [1, 1]} : vector<32x96xf32> to vector<32x32xf32>
    %42 = vector.extract_strided_slice %40 {offsets = [0, 32], sizes = [32, 32], strides = [1, 1]} : vector<32x96xf32> to vector<32x32xf32>
    %43 = vector.extract_strided_slice %40 {offsets = [0, 64], sizes = [32, 32], strides = [1, 1]} : vector<32x96xf32> to vector<32x32xf32>
    %44 = vector.extract_strided_slice %41 {offsets = [0, 0], sizes = [16, 8], strides = [1, 1]} : vector<32x32xf32> to vector<16x8xf32>
    %45 = vector.extract_strided_slice %42 {offsets = [0, 0], sizes = [16, 8], strides = [1, 1]} : vector<32x32xf32> to vector<16x8xf32>
    %46 = vector.extract_strided_slice %43 {offsets = [0, 0], sizes = [16, 8], strides = [1, 1]} : vector<32x32xf32> to vector<16x8xf32>
    %cst_25 = arith.constant dense<0.000000e+00> : vector<16x16xf32>
    %47 = tpu.matmul %44, %45, %cst_25 {dimension_numbers = #tpu.dot_dimension_numbers<[1], [1], [0], [0], [0, 0, 1, 0], [], []>} : vector<16x8xf32>, vector<16x8xf32>, vector<16x16xf32> -> vector<16x16xf32>
    %cst_26 = arith.constant 0.353553385 : f32
    %48 = vector.broadcast %cst_26 : f32 to vector<16x16xf32>
    %49 = arith.mulf %47, %48 : vector<16x16xf32>
    %cst_27 = arith.constant dense<0xFF800000> : vector<16xf32>
    %50 = vector.multi_reduction <maximumf>, %49, %cst_27 [1] : vector<16x16xf32> to vector<16xf32>
    %51 = vector.shape_cast %50 : vector<16xf32> to vector<16x1xf32>
    %52 = vector.broadcast %51 : vector<16x1xf32> to vector<16x16xf32>
    %53 = arith.subf %49, %52 : vector<16x16xf32>
    %54 = math.exp %53 : vector<16x16xf32>
    %cst_28 = arith.constant dense<0.000000e+00> : vector<16xf32>
    %55 = vector.multi_reduction <add>, %54, %cst_28 [1] : vector<16x16xf32> to vector<16xf32>
    %56 = vector.shape_cast %55 : vector<16xf32> to vector<16x1xf32>
    %57 = tpu.reciprocal %56 {approx = true} : vector<16x1xf32> -> vector<16x1xf32>
    %58 = vector.broadcast %57 : vector<16x1xf32> to vector<16x16xf32>
    %59 = arith.mulf %54, %58 : vector<16x16xf32>
    %cst_29 = arith.constant dense<0.000000e+00> : vector<16x8xf32>
    %60 = tpu.matmul %59, %46, %cst_29 {dimension_numbers = #tpu.dot_dimension_numbers<[1], [0], [0], [1], [0, 0, 1, 1], [], []>} : vector<16x16xf32>, vector<16x8xf32>, vector<16x8xf32> -> vector<16x8xf32>
    %c0_30 = arith.constant 0 : index
    %c0_31 = arith.constant 0 : index
    %61 = vector.load %arg19[%c0_30, %c0_31] : memref<32x32xf32, #tpu.memory_space<vmem>>, vector<16x8xf32>
    tpu.vector_store %arg19[%c0_30, %c0_31], %60 {strides = array<i32>} : memref<32x32xf32, #tpu.memory_space<vmem>>, vector<16x8xf32>,
    %62 = vector.extract_strided_slice %41 {offsets = [0, 8], sizes = [16, 8], strides = [1, 1]} : vector<32x32xf32> to vector<16x8xf32>
    %63 = vector.extract_strided_slice %42 {offsets = [0, 8], sizes = [16, 8], strides = [1, 1]} : vector<32x32xf32> to vector<16x8xf32>
    %64 = vector.extract_strided_slice %43 {offsets = [0, 8], sizes = [16, 8], strides = [1, 1]} : vector<32x32xf32> to vector<16x8xf32>
    %cst_32 = arith.constant dense<0.000000e+00> : vector<16x16xf32>
    %65 = tpu.matmul %62, %63, %cst_32 {dimension_numbers = #tpu.dot_dimension_numbers<[1], [1], [0], [0], [0, 0, 1, 0], [], []>} : vector<16x8xf32>, vector<16x8xf32>, vector<16x16xf32> -> vector<16x16xf32>
    %cst_33 = arith.constant 0.353553385 : f32
    %66 = vector.broadcast %cst_33 : f32 to vector<16x16xf32>
    %67 = arith.mulf %65, %66 : vector<16x16xf32>
    %cst_34 = arith.constant dense<0xFF800000> : vector<16xf32>
    %68 = vector.multi_reduction <maximumf>, %67, %cst_34 [1] : vector<16x16xf32> to vector<16xf32>
    %69 = vector.shape_cast %68 : vector<16xf32> to vector<16x1xf32>
    %70 = vector.broadcast %69 : vector<16x1xf32> to vector<16x16xf32>
    %71 = arith.subf %67, %70 : vector<16x16xf32>
    %72 = math.exp %71 : vector<16x16xf32>
    %cst_35 = arith.constant dense<0.000000e+00> : vector<16xf32>
    %73 = vector.multi_reduction <add>, %72, %cst_35 [1] : vector<16x16xf32> to vector<16xf32>
    %74 = vector.shape_cast %73 : vector<16xf32> to vector<16x1xf32>
    %75 = tpu.reciprocal %74 {approx = true} : vector<16x1xf32> -> vector<16x1xf32>
    %76 = vector.broadcast %75 : vector<16x1xf32> to vector<16x16xf32>
    %77 = arith.mulf %72, %76 : vector<16x16xf32>
    %cst_36 = arith.constant dense<0.000000e+00> : vector<16x8xf32>
    %78 = tpu.matmul %77, %64, %cst_36 {dimension_numbers = #tpu.dot_dimension_numbers<[1], [0], [0], [1], [0, 0, 1, 1], [], []>} : vector<16x16xf32>, vector<16x8xf32>, vector<16x8xf32> -> vector<16x8xf32>
    %c0_37 = arith.constant 0 : index
    %c8 = arith.constant 8 : index
    %79 = vector.load %arg19[%c0_37, %c8] : memref<32x32xf32, #tpu.memory_space<vmem>>, vector<16x8xf32>
    tpu.vector_store %arg19[%c0_37, %c8], %78 {strides = array<i32>} : memref<32x32xf32, #tpu.memory_space<vmem>>, vector<16x8xf32>,
    %80 = vector.extract_strided_slice %41 {offsets = [0, 16], sizes = [16, 8], strides = [1, 1]} : vector<32x32xf32> to vector<16x8xf32>
    %81 = vector.extract_strided_slice %42 {offsets = [0, 16], sizes = [16, 8], strides = [1, 1]} : vector<32x32xf32> to vector<16x8xf32>
    %82 = vector.extract_strided_slice %43 {offsets = [0, 16], sizes = [16, 8], strides = [1, 1]} : vector<32x32xf32> to vector<16x8xf32>
    %cst_38 = arith.constant dense<0.000000e+00> : vector<16x16xf32>
    %83 = tpu.matmul %80, %81, %cst_38 {dimension_numbers = #tpu.dot_dimension_numbers<[1], [1], [0], [0], [0, 0, 1, 0], [], []>} : vector<16x8xf32>, vector<16x8xf32>, vector<16x16xf32> -> vector<16x16xf32>
    %cst_39 = arith.constant 0.353553385 : f32
    %84 = vector.broadcast %cst_39 : f32 to vector<16x16xf32>
    %85 = arith.mulf %83, %84 : vector<16x16xf32>
    %cst_40 = arith.constant dense<0xFF800000> : vector<16xf32>
    %86 = vector.multi_reduction <maximumf>, %85, %cst_40 [1] : vector<16x16xf32> to vector<16xf32>
    %87 = vector.shape_cast %86 : vector<16xf32> to vector<16x1xf32>
    %88 = vector.broadcast %87 : vector<16x1xf32> to vector<16x16xf32>
    %89 = arith.subf %85, %88 : vector<16x16xf32>
    %90 = math.exp %89 : vector<16x16xf32>
    %cst_41 = arith.constant dense<0.000000e+00> : vector<16xf32>
    %91 = vector.multi_reduction <add>, %90, %cst_41 [1] : vector<16x16xf32> to vector<16xf32>
    %92 = vector.shape_cast %91 : vector<16xf32> to vector<16x1xf32>
    %93 = tpu.reciprocal %92 {approx = true} : vector<16x1xf32> -> vector<16x1xf32>
    %94 = vector.broadcast %93 : vector<16x1xf32> to vector<16x16xf32>
    %95 = arith.mulf %90, %94 : vector<16x16xf32>
    %cst_42 = arith.constant dense<0.000000e+00> : vector<16x8xf32>
    %96 = tpu.matmul %95, %82, %cst_42 {dimension_numbers = #tpu.dot_dimension_numbers<[1], [0], [0], [1], [0, 0, 1, 1], [], []>} : vector<16x16xf32>, vector<16x8xf32>, vector<16x8xf32> -> vector<16x8xf32>
    %c0_43 = arith.constant 0 : index
    %c16 = arith.constant 16 : index
    %97 = vector.load %arg19[%c0_43, %c16] : memref<32x32xf32, #tpu.memory_space<vmem>>, vector<16x8xf32>
    tpu.vector_store %arg19[%c0_43, %c16], %96 {strides = array<i32>} : memref<32x32xf32, #tpu.memory_space<vmem>>, vector<16x8xf32>,
    %98 = vector.extract_strided_slice %41 {offsets = [0, 24], sizes = [16, 8], strides = [1, 1]} : vector<32x32xf32> to vector<16x8xf32>
    %99 = vector.extract_strided_slice %42 {offsets = [0, 24], sizes = [16, 8], strides = [1, 1]} : vector<32x32xf32> to vector<16x8xf32>
    %100 = vector.extract_strided_slice %43 {offsets = [0, 24], sizes = [16, 8], strides = [1, 1]} : vector<32x32xf32> to vector<16x8xf32>
    %cst_44 = arith.constant dense<0.000000e+00> : vector<16x16xf32>
    %101 = tpu.matmul %98, %99, %cst_44 {dimension_numbers = #tpu.dot_dimension_numbers<[1], [1], [0], [0], [0, 0, 1, 0], [], []>} : vector<16x8xf32>, vector<16x8xf32>, vector<16x16xf32> -> vector<16x16xf32>
    %cst_45 = arith.constant 0.353553385 : f32
    %102 = vector.broadcast %cst_45 : f32 to vector<16x16xf32>
    %103 = arith.mulf %101, %102 : vector<16x16xf32>
    %cst_46 = arith.constant dense<0xFF800000> : vector<16xf32>
    %104 = vector.multi_reduction <maximumf>, %103, %cst_46 [1] : vector<16x16xf32> to vector<16xf32>
    %105 = vector.shape_cast %104 : vector<16xf32> to vector<16x1xf32>
    %106 = vector.broadcast %105 : vector<16x1xf32> to vector<16x16xf32>
    %107 = arith.subf %103, %106 : vector<16x16xf32>
    %108 = math.exp %107 : vector<16x16xf32>
    %cst_47 = arith.constant dense<0.000000e+00> : vector<16xf32>
    %109 = vector.multi_reduction <add>, %108, %cst_47 [1] : vector<16x16xf32> to vector<16xf32>
    %110 = vector.shape_cast %109 : vector<16xf32> to vector<16x1xf32>
    %111 = tpu.reciprocal %110 {approx = true} : vector<16x1xf32> -> vector<16x1xf32>
    %112 = vector.broadcast %111 : vector<16x1xf32> to vector<16x16xf32>
    %113 = arith.mulf %108, %112 : vector<16x16xf32>
    %cst_48 = arith.constant dense<0.000000e+00> : vector<16x8xf32>
    %114 = tpu.matmul %113, %100, %cst_48 {dimension_numbers = #tpu.dot_dimension_numbers<[1], [0], [0], [1], [0, 0, 1, 1], [], []>} : vector<16x16xf32>, vector<16x8xf32>, vector<16x8xf32> -> vector<16x8xf32>
    %c0_49 = arith.constant 0 : index
    %c24 = arith.constant 24 : index
    %115 = vector.load %arg19[%c0_49, %c24] : memref<32x32xf32, #tpu.memory_space<vmem>>, vector<16x8xf32>
    tpu.vector_store %arg19[%c0_49, %c24], %114 {strides = array<i32>} : memref<32x32xf32, #tpu.memory_space<vmem>>, vector<16x8xf32>,
    %116 = vector.extract_strided_slice %41 {offsets = [16, 0], sizes = [16, 8], strides = [1, 1]} : vector<32x32xf32> to vector<16x8xf32>
    %117 = vector.extract_strided_slice %42 {offsets = [16, 0], sizes = [16, 8], strides = [1, 1]} : vector<32x32xf32> to vector<16x8xf32>
    %118 = vector.extract_strided_slice %43 {offsets = [16, 0], sizes = [16, 8], strides = [1, 1]} : vector<32x32xf32> to vector<16x8xf32>
    %cst_50 = arith.constant dense<0.000000e+00> : vector<16x16xf32>
    %119 = tpu.matmul %116, %117, %cst_50 {dimension_numbers = #tpu.dot_dimension_numbers<[1], [1], [0], [0], [0, 0, 1, 0], [], []>} : vector<16x8xf32>, vector<16x8xf32>, vector<16x16xf32> -> vector<16x16xf32>
    %cst_51 = arith.constant 0.353553385 : f32
    %120 = vector.broadcast %cst_51 : f32 to vector<16x16xf32>
    %121 = arith.mulf %119, %120 : vector<16x16xf32>
    %cst_52 = arith.constant dense<0xFF800000> : vector<16xf32>
    %122 = vector.multi_reduction <maximumf>, %121, %cst_52 [1] : vector<16x16xf32> to vector<16xf32>
    %123 = vector.shape_cast %122 : vector<16xf32> to vector<16x1xf32>
    %124 = vector.broadcast %123 : vector<16x1xf32> to vector<16x16xf32>
    %125 = arith.subf %121, %124 : vector<16x16xf32>
    %126 = math.exp %125 : vector<16x16xf32>
    %cst_53 = arith.constant dense<0.000000e+00> : vector<16xf32>
    %127 = vector.multi_reduction <add>, %126, %cst_53 [1] : vector<16x16xf32> to vector<16xf32>
    %128 = vector.shape_cast %127 : vector<16xf32> to vector<16x1xf32>
    %129 = tpu.reciprocal %128 {approx = true} : vector<16x1xf32> -> vector<16x1xf32>
    %130 = vector.broadcast %129 : vector<16x1xf32> to vector<16x16xf32>
    %131 = arith.mulf %126, %130 : vector<16x16xf32>
    %cst_54 = arith.constant dense<0.000000e+00> : vector<16x8xf32>
    %132 = tpu.matmul %131, %118, %cst_54 {dimension_numbers = #tpu.dot_dimension_numbers<[1], [0], [0], [1], [0, 0, 1, 1], [], []>} : vector<16x16xf32>, vector<16x8xf32>, vector<16x8xf32> -> vector<16x8xf32>
    %c16_55 = arith.constant 16 : index
    %c0_56 = arith.constant 0 : index
    %133 = vector.load %arg19[%c16_55, %c0_56] : memref<32x32xf32, #tpu.memory_space<vmem>>, vector<16x8xf32>
    tpu.vector_store %arg19[%c16_55, %c0_56], %132 {strides = array<i32>} : memref<32x32xf32, #tpu.memory_space<vmem>>, vector<16x8xf32>,
    %134 = vector.extract_strided_slice %41 {offsets = [16, 8], sizes = [16, 8], strides = [1, 1]} : vector<32x32xf32> to vector<16x8xf32>
    %135 = vector.extract_strided_slice %42 {offsets = [16, 8], sizes = [16, 8], strides = [1, 1]} : vector<32x32xf32> to vector<16x8xf32>
    %136 = vector.extract_strided_slice %43 {offsets = [16, 8], sizes = [16, 8], strides = [1, 1]} : vector<32x32xf32> to vector<16x8xf32>
    %cst_57 = arith.constant dense<0.000000e+00> : vector<16x16xf32>
    %137 = tpu.matmul %134, %135, %cst_57 {dimension_numbers = #tpu.dot_dimension_numbers<[1], [1], [0], [0], [0, 0, 1, 0], [], []>} : vector<16x8xf32>, vector<16x8xf32>, vector<16x16xf32> -> vector<16x16xf32>
    %cst_58 = arith.constant 0.353553385 : f32
    %138 = vector.broadcast %cst_58 : f32 to vector<16x16xf32>
    %139 = arith.mulf %137, %138 : vector<16x16xf32>
    %cst_59 = arith.constant dense<0xFF800000> : vector<16xf32>
    %140 = vector.multi_reduction <maximumf>, %139, %cst_59 [1] : vector<16x16xf32> to vector<16xf32>
    %141 = vector.shape_cast %140 : vector<16xf32> to vector<16x1xf32>
    %142 = vector.broadcast %141 : vector<16x1xf32> to vector<16x16xf32>
    %143 = arith.subf %139, %142 : vector<16x16xf32>
    %144 = math.exp %143 : vector<16x16xf32>
    %cst_60 = arith.constant dense<0.000000e+00> : vector<16xf32>
    %145 = vector.multi_reduction <add>, %144, %cst_60 [1] : vector<16x16xf32> to vector<16xf32>
    %146 = vector.shape_cast %145 : vector<16xf32> to vector<16x1xf32>
    %147 = tpu.reciprocal %146 {approx = true} : vector<16x1xf32> -> vector<16x1xf32>
    %148 = vector.broadcast %147 : vector<16x1xf32> to vector<16x16xf32>
    %149 = arith.mulf %144, %148 : vector<16x16xf32>
    %cst_61 = arith.constant dense<0.000000e+00> : vector<16x8xf32>
    %150 = tpu.matmul %149, %136, %cst_61 {dimension_numbers = #tpu.dot_dimension_numbers<[1], [0], [0], [1], [0, 0, 1, 1], [], []>} : vector<16x16xf32>, vector<16x8xf32>, vector<16x8xf32> -> vector<16x8xf32>
    %c16_62 = arith.constant 16 : index
    %c8_63 = arith.constant 8 : index
    %151 = vector.load %arg19[%c16_62, %c8_63] : memref<32x32xf32, #tpu.memory_space<vmem>>, vector<16x8xf32>
    tpu.vector_store %arg19[%c16_62, %c8_63], %150 {strides = array<i32>} : memref<32x32xf32, #tpu.memory_space<vmem>>, vector<16x8xf32>,
    %152 = vector.extract_strided_slice %41 {offsets = [16, 16], sizes = [16, 8], strides = [1, 1]} : vector<32x32xf32> to vector<16x8xf32>
    %153 = vector.extract_strided_slice %42 {offsets = [16, 16], sizes = [16, 8], strides = [1, 1]} : vector<32x32xf32> to vector<16x8xf32>
    %154 = vector.extract_strided_slice %43 {offsets = [16, 16], sizes = [16, 8], strides = [1, 1]} : vector<32x32xf32> to vector<16x8xf32>
    %cst_64 = arith.constant dense<0.000000e+00> : vector<16x16xf32>
    %155 = tpu.matmul %152, %153, %cst_64 {dimension_numbers = #tpu.dot_dimension_numbers<[1], [1], [0], [0], [0, 0, 1, 0], [], []>} : vector<16x8xf32>, vector<16x8xf32>, vector<16x16xf32> -> vector<16x16xf32>
    %cst_65 = arith.constant 0.353553385 : f32
    %156 = vector.broadcast %cst_65 : f32 to vector<16x16xf32>
    %157 = arith.mulf %155, %156 : vector<16x16xf32>
    %cst_66 = arith.constant dense<0xFF800000> : vector<16xf32>
    %158 = vector.multi_reduction <maximumf>, %157, %cst_66 [1] : vector<16x16xf32> to vector<16xf32>
    %159 = vector.shape_cast %158 : vector<16xf32> to vector<16x1xf32>
    %160 = vector.broadcast %159 : vector<16x1xf32> to vector<16x16xf32>
    %161 = arith.subf %157, %160 : vector<16x16xf32>
    %162 = math.exp %161 : vector<16x16xf32>
    %cst_67 = arith.constant dense<0.000000e+00> : vector<16xf32>
    %163 = vector.multi_reduction <add>, %162, %cst_67 [1] : vector<16x16xf32> to vector<16xf32>
    %164 = vector.shape_cast %163 : vector<16xf32> to vector<16x1xf32>
    %165 = tpu.reciprocal %164 {approx = true} : vector<16x1xf32> -> vector<16x1xf32>
    %166 = vector.broadcast %165 : vector<16x1xf32> to vector<16x16xf32>
    %167 = arith.mulf %162, %166 : vector<16x16xf32>
    %cst_68 = arith.constant dense<0.000000e+00> : vector<16x8xf32>
    %168 = tpu.matmul %167, %154, %cst_68 {dimension_numbers = #tpu.dot_dimension_numbers<[1], [0], [0], [1], [0, 0, 1, 1], [], []>} : vector<16x16xf32>, vector<16x8xf32>, vector<16x8xf32> -> vector<16x8xf32>
    %c16_69 = arith.constant 16 : index
    %c16_70 = arith.constant 16 : index
    %169 = vector.load %arg19[%c16_69, %c16_70] : memref<32x32xf32, #tpu.memory_space<vmem>>, vector<16x8xf32>
    tpu.vector_store %arg19[%c16_69, %c16_70], %168 {strides = array<i32>} : memref<32x32xf32, #tpu.memory_space<vmem>>, vector<16x8xf32>,
    %170 = vector.extract_strided_slice %41 {offsets = [16, 24], sizes = [16, 8], strides = [1, 1]} : vector<32x32xf32> to vector<16x8xf32>
    %171 = vector.extract_strided_slice %42 {offsets = [16, 24], sizes = [16, 8], strides = [1, 1]} : vector<32x32xf32> to vector<16x8xf32>
    %172 = vector.extract_strided_slice %43 {offsets = [16, 24], sizes = [16, 8], strides = [1, 1]} : vector<32x32xf32> to vector<16x8xf32>
    %cst_71 = arith.constant dense<0.000000e+00> : vector<16x16xf32>
    %173 = tpu.matmul %170, %171, %cst_71 {dimension_numbers = #tpu.dot_dimension_numbers<[1], [1], [0], [0], [0, 0, 1, 0], [], []>} : vector<16x8xf32>, vector<16x8xf32>, vector<16x16xf32> -> vector<16x16xf32>
    %cst_72 = arith.constant 0.353553385 : f32
    %174 = vector.broadcast %cst_72 : f32 to vector<16x16xf32>
    %175 = arith.mulf %173, %174 : vector<16x16xf32>
    %cst_73 = arith.constant dense<0xFF800000> : vector<16xf32>
    %176 = vector.multi_reduction <maximumf>, %175, %cst_73 [1] : vector<16x16xf32> to vector<16xf32>
    %177 = vector.shape_cast %176 : vector<16xf32> to vector<16x1xf32>
    %178 = vector.broadcast %177 : vector<16x1xf32> to vector<16x16xf32>
    %179 = arith.subf %175, %178 : vector<16x16xf32>
    %180 = math.exp %179 : vector<16x16xf32>
    %cst_74 = arith.constant dense<0.000000e+00> : vector<16xf32>
    %181 = vector.multi_reduction <add>, %180, %cst_74 [1] : vector<16x16xf32> to vector<16xf32>
    %182 = vector.shape_cast %181 : vector<16xf32> to vector<16x1xf32>
    %183 = tpu.reciprocal %182 {approx = true} : vector<16x1xf32> -> vector<16x1xf32>
    %184 = vector.broadcast %183 : vector<16x1xf32> to vector<16x16xf32>
    %185 = arith.mulf %180, %184 : vector<16x16xf32>
    %cst_75 = arith.constant dense<0.000000e+00> : vector<16x8xf32>
    %186 = tpu.matmul %185, %172, %cst_75 {dimension_numbers = #tpu.dot_dimension_numbers<[1], [0], [0], [1], [0, 0, 1, 1], [], []>} : vector<16x16xf32>, vector<16x8xf32>, vector<16x8xf32> -> vector<16x8xf32>
    %c16_76 = arith.constant 16 : index
    %c24_77 = arith.constant 24 : index
    %187 = vector.load %arg19[%c16_76, %c24_77] : memref<32x32xf32, #tpu.memory_space<vmem>>, vector<16x8xf32>
    tpu.vector_store %arg19[%c16_76, %c24_77], %186 {strides = array<i32>} : memref<32x32xf32, #tpu.memory_space<vmem>>, vector<16x8xf32>,
    %c0_78 = arith.constant 0 : index
    %c0_79 = arith.constant 0 : index
    %188 = vector.load %arg19[%c0_78, %c0_79] : memref<32x32xf32, #tpu.memory_space<vmem>>, vector<32x32xf32>
    %c0_80 = arith.constant 0 : index
    %c0_81 = arith.constant 0 : index
    %c0_82 = arith.constant 0 : index
    %189 = vector.load %arg8[%c0_80, %c0_81, %c0_82] : memref<2x32x32xf32, #tpu.memory_space<vmem>>, vector<1x32x32xf32>
    %190 = vector.shape_cast %189 : vector<1x32x32xf32> to vector<32x32xf32>
    %cst_83 = arith.constant dense<0.000000e+00> : vector<32x32xf32>
    %191 = tpu.matmul %188, %190, %cst_83 {dimension_numbers = #tpu.dot_dimension_numbers<[1], [0], [0], [1], [0, 0, 1, 1], [], []>} : vector<32x32xf32>, vector<32x32xf32>, vector<32x32xf32> -> vector<32x32xf32>
    %c0_84 = arith.constant 0 : index
    %c0_85 = arith.constant 0 : index
    %c0_86 = arith.constant 0 : index
    %192 = vector.load %arg9[%c0_84, %c0_85, %c0_86] : memref<2x1x32xf32, #tpu.memory_space<vmem>>, vector<1x1x32xf32>
    %193 = vector.shape_cast %192 : vector<1x1x32xf32> to vector<1x32xf32>
    %194 = vector.broadcast %193 : vector<1x32xf32> to vector<32x32xf32>
    %195 = arith.addf %191, %194 : vector<32x32xf32>
    %196 = arith.addf %7, %195 : vector<32x32xf32>
    %c0_87 = arith.constant 0 : index
    %c0_88 = arith.constant 0 : index
    %c0_89 = arith.constant 0 : index
    %197 = vector.load %arg10[%c0_87, %c0_88, %c0_89] : memref<2x1x32xf32, #tpu.memory_space<vmem>>, vector<1x1x32xf32>
    %198 = vector.shape_cast %197 : vector<1x1x32xf32> to vector<1x32xf32>
    %c0_90 = arith.constant 0 : index
    %c0_91 = arith.constant 0 : index
    %c0_92 = arith.constant 0 : index
    %199 = vector.load %arg11[%c0_90, %c0_91, %c0_92] : memref<2x1x32xf32, #tpu.memory_space<vmem>>, vector<1x1x32xf32>
    %200 = vector.shape_cast %199 : vector<1x1x32xf32> to vector<1x32xf32>
    %cst_93 = arith.constant dense<0.000000e+00> : vector<32xf32>
    %201 = vector.multi_reduction <add>, %196, %cst_93 [1] : vector<32x32xf32> to vector<32xf32>
    %202 = vector.shape_cast %201 : vector<32xf32> to vector<32x1xf32>
    %cst_94 = arith.constant 3.200000e+01 : f32
    %203 = vector.broadcast %cst_94 : f32 to vector<32x1xf32>
    %204 = arith.divf %202, %203 : vector<32x1xf32>
    %205 = vector.broadcast %204 : vector<32x1xf32> to vector<32x32xf32>
    %206 = arith.subf %196, %205 : vector<32x32xf32>
    %207 = arith.mulf %206, %206 : vector<32x32xf32>
    %cst_95 = arith.constant dense<0.000000e+00> : vector<32xf32>
    %208 = vector.multi_reduction <add>, %207, %cst_95 [1] : vector<32x32xf32> to vector<32xf32>
    %209 = vector.shape_cast %208 : vector<32xf32> to vector<32x1xf32>
    %cst_96 = arith.constant 3.200000e+01 : f32
    %210 = vector.broadcast %cst_96 : f32 to vector<32x1xf32>
    %211 = arith.divf %209, %210 : vector<32x1xf32>
    %212 = vector.broadcast %204 : vector<32x1xf32> to vector<32x32xf32>
    %213 = arith.subf %196, %212 : vector<32x32xf32>
    %cst_97 = arith.constant 9.99999997E-7 : f32
    %214 = vector.broadcast %cst_97 : f32 to vector<32x1xf32>
    %215 = arith.addf %211, %214 : vector<32x1xf32>
    %216 = math.rsqrt %215 : vector<32x1xf32>
    %217 = vector.broadcast %216 : vector<32x1xf32> to vector<32x32xf32>
    %218 = arith.mulf %213, %217 : vector<32x32xf32>
    %219 = vector.broadcast %198 : vector<1x32xf32> to vector<32x32xf32>
    %220 = arith.mulf %218, %219 : vector<32x32xf32>
    %221 = vector.broadcast %200 : vector<1x32xf32> to vector<32x32xf32>
    %222 = arith.addf %220, %221 : vector<32x32xf32>
    %c0_98 = arith.constant 0 : index
    %c0_99 = arith.constant 0 : index
    %c0_100 = arith.constant 0 : index
    %223 = vector.load %arg12[%c0_98, %c0_99, %c0_100] : memref<2x32x128xf32, #tpu.memory_space<vmem>>, vector<1x32x128xf32>
    %224 = vector.shape_cast %223 : vector<1x32x128xf32> to vector<32x128xf32>
    %cst_101 = arith.constant dense<0.000000e+00> : vector<32x128xf32>
    %225 = tpu.matmul %222, %224, %cst_101 {dimension_numbers = #tpu.dot_dimension_numbers<[1], [0], [0], [1], [0, 0, 1, 1], [], []>} : vector<32x32xf32>, vector<32x128xf32>, vector<32x128xf32> -> vector<32x128xf32>
    %c0_102 = arith.constant 0 : index
    %c0_103 = arith.constant 0 : index
    %c0_104 = arith.constant 0 : index
    %226 = vector.load %arg13[%c0_102, %c0_103, %c0_104] : memref<2x1x128xf32, #tpu.memory_space<vmem>>, vector<1x1x128xf32>
    %227 = vector.shape_cast %226 : vector<1x1x128xf32> to vector<1x128xf32>
    %228 = vector.broadcast %227 : vector<1x128xf32> to vector<32x128xf32>
    %229 = arith.addf %225, %228 : vector<32x128xf32>
    %cst_105 = arith.constant 5.000000e-01 : f32
    %230 = vector.broadcast %cst_105 : f32 to vector<32x128xf32>
    %231 = arith.mulf %230, %229 : vector<32x128xf32>
    %cst_106 = arith.constant 0.707106769 : f32
    %232 = vector.broadcast %cst_106 : f32 to vector<32x128xf32>
    %233 = arith.mulf %229, %232 : vector<32x128xf32>
    %234 = math.absf %233 : vector<32x128xf32>
    %cst_107 = arith.constant 0.327591091 : f32
    %235 = vector.broadcast %cst_107 : f32 to vector<32x128xf32>
    %236 = arith.mulf %235, %234 : vector<32x128xf32>
    %cst_108 = arith.constant 1.000000e+00 : f32
    %237 = vector.broadcast %cst_108 : f32 to vector<32x128xf32>
    %238 = arith.addf %237, %236 : vector<32x128xf32>
    %cst_109 = arith.constant 1.000000e+00 : f32
    %239 = vector.broadcast %cst_109 : f32 to vector<32x128xf32>
    %240 = arith.divf %239, %238 : vector<32x128xf32>
    %cst_110 = arith.constant 1.06140542 : f32
    %241 = vector.broadcast %cst_110 : f32 to vector<32x128xf32>
    %242 = arith.mulf %241, %240 : vector<32x128xf32>
    %cst_111 = arith.constant -1.45315206 : f32
    %243 = vector.broadcast %cst_111 : f32 to vector<32x128xf32>
    %244 = arith.addf %242, %243 : vector<32x128xf32>
    %245 = arith.mulf %244, %240 : vector<32x128xf32>
    %cst_112 = arith.constant 1.42141378 : f32
    %246 = vector.broadcast %cst_112 : f32 to vector<32x128xf32>
    %247 = arith.addf %245, %246 : vector<32x128xf32>
    %248 = arith.mulf %247, %240 : vector<32x128xf32>
    %cst_113 = arith.constant -0.284496725 : f32
    %249 = vector.broadcast %cst_113 : f32 to vector<32x128xf32>
    %250 = arith.addf %248, %249 : vector<32x128xf32>
    %251 = arith.mulf %250, %240 : vector<32x128xf32>
    %cst_114 = arith.constant 0.254829586 : f32
    %252 = vector.broadcast %cst_114 : f32 to vector<32x128xf32>
    %253 = arith.addf %251, %252 : vector<32x128xf32>
    %254 = arith.mulf %253, %240 : vector<32x128xf32>
    %cst_115 = arith.constant 0.000000e+00 : f32
    %255 = vector.broadcast %cst_115 : f32 to vector<32x128xf32>
    %256 = arith.subf %255, %234 : vector<32x128xf32>
    %257 = arith.mulf %256, %234 : vector<32x128xf32>
    %258 = math.exp %257 : vector<32x128xf32>
    %259 = arith.mulf %254, %258 : vector<32x128xf32>
    %cst_116 = arith.constant 1.000000e+00 : f32
    %260 = vector.broadcast %cst_116 : f32 to vector<32x128xf32>
    %261 = arith.subf %260, %259 : vector<32x128xf32>
    %cst_117 = arith.constant 0.000000e+00 : f32
    %262 = vector.broadcast %cst_117 : f32 to vector<32x128xf32>
    %263 = arith.cmpf oge, %233, %262 : vector<32x128xf32>
    %cst_118 = arith.constant 0.000000e+00 : f32
    %264 = vector.broadcast %cst_118 : f32 to vector<32x128xf32>
    %265 = arith.subf %264, %261 : vector<32x128xf32>
    %266 = arith.select %263, %261, %265 : vector<32x128xi1>, vector<32x128xf32>
    %cst_119 = arith.constant 1.000000e+00 : f32
    %267 = vector.broadcast %cst_119 : f32 to vector<32x128xf32>
    %268 = arith.addf %267, %266 : vector<32x128xf32>
    %269 = arith.mulf %231, %268 : vector<32x128xf32>
    %c0_120 = arith.constant 0 : index
    %c0_121 = arith.constant 0 : index
    %c0_122 = arith.constant 0 : index
    %270 = vector.load %arg14[%c0_120, %c0_121, %c0_122] : memref<2x128x32xf32, #tpu.memory_space<vmem>>, vector<1x128x32xf32>
    %271 = vector.shape_cast %270 : vector<1x128x32xf32> to vector<128x32xf32>
    %cst_123 = arith.constant dense<0.000000e+00> : vector<32x32xf32>
    %272 = tpu.matmul %269, %271, %cst_123 {dimension_numbers = #tpu.dot_dimension_numbers<[1], [0], [0], [1], [0, 0, 1, 1], [], []>} : vector<32x128xf32>, vector<128x32xf32>, vector<32x32xf32> -> vector<32x32xf32>
    %c0_124 = arith.constant 0 : index
    %c0_125 = arith.constant 0 : index
    %c0_126 = arith.constant 0 : index
    %273 = vector.load %arg15[%c0_124, %c0_125, %c0_126] : memref<2x1x32xf32, #tpu.memory_space<vmem>>, vector<1x1x32xf32>
    %274 = vector.shape_cast %273 : vector<1x1x32xf32> to vector<1x32xf32>
    %275 = vector.broadcast %274 : vector<1x32xf32> to vector<32x32xf32>
    %276 = arith.addf %272, %275 : vector<32x32xf32>
    %277 = arith.addf %196, %276 : vector<32x32xf32>
    %c1 = arith.constant 1 : index
    %c0_127 = arith.constant 0 : index
    %c0_128 = arith.constant 0 : index
    %278 = vector.load %arg4[%c1, %c0_127, %c0_128] : memref<2x1x32xf32, #tpu.memory_space<vmem>>, vector<1x1x32xf32>
    %279 = vector.shape_cast %278 : vector<1x1x32xf32> to vector<1x32xf32>
    %c1_129 = arith.constant 1 : index
    %c0_130 = arith.constant 0 : index
    %c0_131 = arith.constant 0 : index
    %280 = vector.load %arg5[%c1_129, %c0_130, %c0_131] : memref<2x1x32xf32, #tpu.memory_space<vmem>>, vector<1x1x32xf32>
    %281 = vector.shape_cast %280 : vector<1x1x32xf32> to vector<1x32xf32>
    %cst_132 = arith.constant dense<0.000000e+00> : vector<32xf32>
    %282 = vector.multi_reduction <add>, %277, %cst_132 [1] : vector<32x32xf32> to vector<32xf32>
    %283 = vector.shape_cast %282 : vector<32xf32> to vector<32x1xf32>
    %cst_133 = arith.constant 3.200000e+01 : f32
    %284 = vector.broadcast %cst_133 : f32 to vector<32x1xf32>
    %285 = arith.divf %283, %284 : vector<32x1xf32>
    %286 = vector.broadcast %285 : vector<32x1xf32> to vector<32x32xf32>
    %287 = arith.subf %277, %286 : vector<32x32xf32>
    %288 = arith.mulf %287, %287 : vector<32x32xf32>
    %cst_134 = arith.constant dense<0.000000e+00> : vector<32xf32>
    %289 = vector.multi_reduction <add>, %288, %cst_134 [1] : vector<32x32xf32> to vector<32xf32>
    %290 = vector.shape_cast %289 : vector<32xf32> to vector<32x1xf32>
    %cst_135 = arith.constant 3.200000e+01 : f32
    %291 = vector.broadcast %cst_135 : f32 to vector<32x1xf32>
    %292 = arith.divf %290, %291 : vector<32x1xf32>
    %293 = vector.broadcast %285 : vector<32x1xf32> to vector<32x32xf32>
    %294 = arith.subf %277, %293 : vector<32x32xf32>
    %cst_136 = arith.constant 9.99999997E-7 : f32
    %295 = vector.broadcast %cst_136 : f32 to vector<32x1xf32>
    %296 = arith.addf %292, %295 : vector<32x1xf32>
    %297 = math.rsqrt %296 : vector<32x1xf32>
    %298 = vector.broadcast %297 : vector<32x1xf32> to vector<32x32xf32>
    %299 = arith.mulf %294, %298 : vector<32x32xf32>
    %300 = vector.broadcast %279 : vector<1x32xf32> to vector<32x32xf32>
    %301 = arith.mulf %299, %300 : vector<32x32xf32>
    %302 = vector.broadcast %281 : vector<1x32xf32> to vector<32x32xf32>
    %303 = arith.addf %301, %302 : vector<32x32xf32>
    %c1_137 = arith.constant 1 : index
    %c0_138 = arith.constant 0 : index
    %c0_139 = arith.constant 0 : index
    %304 = vector.load %arg6[%c1_137, %c0_138, %c0_139] : memref<2x32x96xf32, #tpu.memory_space<vmem>>, vector<1x32x96xf32>
    %305 = vector.shape_cast %304 : vector<1x32x96xf32> to vector<32x96xf32>
    %cst_140 = arith.constant dense<0.000000e+00> : vector<32x96xf32>
    %306 = tpu.matmul %303, %305, %cst_140 {dimension_numbers = #tpu.dot_dimension_numbers<[1], [0], [0], [1], [0, 0, 1, 1], [], []>} : vector<32x32xf32>, vector<32x96xf32>, vector<32x96xf32> -> vector<32x96xf32>
    %c1_141 = arith.constant 1 : index
    %c0_142 = arith.constant 0 : index
    %c0_143 = arith.constant 0 : index
    %307 = vector.load %arg7[%c1_141, %c0_142, %c0_143] : memref<2x1x96xf32, #tpu.memory_space<vmem>>, vector<1x1x96xf32>
    %308 = vector.shape_cast %307 : vector<1x1x96xf32> to vector<1x96xf32>
    %309 = vector.broadcast %308 : vector<1x96xf32> to vector<32x96xf32>
    %310 = arith.addf %306, %309 : vector<32x96xf32>
    %311 = vector.extract_strided_slice %310 {offsets = [0, 0], sizes = [32, 32], strides = [1, 1]} : vector<32x96xf32> to vector<32x32xf32>
    %312 = vector.extract_strided_slice %310 {offsets = [0, 32], sizes = [32, 32], strides = [1, 1]} : vector<32x96xf32> to vector<32x32xf32>
    %313 = vector.extract_strided_slice %310 {offsets = [0, 64], sizes = [32, 32], strides = [1, 1]} : vector<32x96xf32> to vector<32x32xf32>
    %314 = vector.extract_strided_slice %311 {offsets = [0, 0], sizes = [16, 8], strides = [1, 1]} : vector<32x32xf32> to vector<16x8xf32>
    %315 = vector.extract_strided_slice %312 {offsets = [0, 0], sizes = [16, 8], strides = [1, 1]} : vector<32x32xf32> to vector<16x8xf32>
    %316 = vector.extract_strided_slice %313 {offsets = [0, 0], sizes = [16, 8], strides = [1, 1]} : vector<32x32xf32> to vector<16x8xf32>
    %cst_144 = arith.constant dense<0.000000e+00> : vector<16x16xf32>
    %317 = tpu.matmul %314, %315, %cst_144 {dimension_numbers = #tpu.dot_dimension_numbers<[1], [1], [0], [0], [0, 0, 1, 0], [], []>} : vector<16x8xf32>, vector<16x8xf32>, vector<16x16xf32> -> vector<16x16xf32>
    %cst_145 = arith.constant 0.353553385 : f32
    %318 = vector.broadcast %cst_145 : f32 to vector<16x16xf32>
    %319 = arith.mulf %317, %318 : vector<16x16xf32>
    %cst_146 = arith.constant dense<0xFF800000> : vector<16xf32>
    %320 = vector.multi_reduction <maximumf>, %319, %cst_146 [1] : vector<16x16xf32> to vector<16xf32>
    %321 = vector.shape_cast %320 : vector<16xf32> to vector<16x1xf32>
    %322 = vector.broadcast %321 : vector<16x1xf32> to vector<16x16xf32>
    %323 = arith.subf %319, %322 : vector<16x16xf32>
    %324 = math.exp %323 : vector<16x16xf32>
    %cst_147 = arith.constant dense<0.000000e+00> : vector<16xf32>
    %325 = vector.multi_reduction <add>, %324, %cst_147 [1] : vector<16x16xf32> to vector<16xf32>
    %326 = vector.shape_cast %325 : vector<16xf32> to vector<16x1xf32>
    %327 = tpu.reciprocal %326 {approx = true} : vector<16x1xf32> -> vector<16x1xf32>
    %328 = vector.broadcast %327 : vector<16x1xf32> to vector<16x16xf32>
    %329 = arith.mulf %324, %328 : vector<16x16xf32>
    %cst_148 = arith.constant dense<0.000000e+00> : vector<16x8xf32>
    %330 = tpu.matmul %329, %316, %cst_148 {dimension_numbers = #tpu.dot_dimension_numbers<[1], [0], [0], [1], [0, 0, 1, 1], [], []>} : vector<16x16xf32>, vector<16x8xf32>, vector<16x8xf32> -> vector<16x8xf32>
    %c0_149 = arith.constant 0 : index
    %c0_150 = arith.constant 0 : index
    %331 = vector.load %arg19[%c0_149, %c0_150] : memref<32x32xf32, #tpu.memory_space<vmem>>, vector<16x8xf32>
    tpu.vector_store %arg19[%c0_149, %c0_150], %330 {strides = array<i32>} : memref<32x32xf32, #tpu.memory_space<vmem>>, vector<16x8xf32>,
    %332 = vector.extract_strided_slice %311 {offsets = [0, 8], sizes = [16, 8], strides = [1, 1]} : vector<32x32xf32> to vector<16x8xf32>
    %333 = vector.extract_strided_slice %312 {offsets = [0, 8], sizes = [16, 8], strides = [1, 1]} : vector<32x32xf32> to vector<16x8xf32>
    %334 = vector.extract_strided_slice %313 {offsets = [0, 8], sizes = [16, 8], strides = [1, 1]} : vector<32x32xf32> to vector<16x8xf32>
    %cst_151 = arith.constant dense<0.000000e+00> : vector<16x16xf32>
    %335 = tpu.matmul %332, %333, %cst_151 {dimension_numbers = #tpu.dot_dimension_numbers<[1], [1], [0], [0], [0, 0, 1, 0], [], []>} : vector<16x8xf32>, vector<16x8xf32>, vector<16x16xf32> -> vector<16x16xf32>
    %cst_152 = arith.constant 0.353553385 : f32
    %336 = vector.broadcast %cst_152 : f32 to vector<16x16xf32>
    %337 = arith.mulf %335, %336 : vector<16x16xf32>
    %cst_153 = arith.constant dense<0xFF800000> : vector<16xf32>
    %338 = vector.multi_reduction <maximumf>, %337, %cst_153 [1] : vector<16x16xf32> to vector<16xf32>
    %339 = vector.shape_cast %338 : vector<16xf32> to vector<16x1xf32>
    %340 = vector.broadcast %339 : vector<16x1xf32> to vector<16x16xf32>
    %341 = arith.subf %337, %340 : vector<16x16xf32>
    %342 = math.exp %341 : vector<16x16xf32>
    %cst_154 = arith.constant dense<0.000000e+00> : vector<16xf32>
    %343 = vector.multi_reduction <add>, %342, %cst_154 [1] : vector<16x16xf32> to vector<16xf32>
    %344 = vector.shape_cast %343 : vector<16xf32> to vector<16x1xf32>
    %345 = tpu.reciprocal %344 {approx = true} : vector<16x1xf32> -> vector<16x1xf32>
    %346 = vector.broadcast %345 : vector<16x1xf32> to vector<16x16xf32>
    %347 = arith.mulf %342, %346 : vector<16x16xf32>
    %cst_155 = arith.constant dense<0.000000e+00> : vector<16x8xf32>
    %348 = tpu.matmul %347, %334, %cst_155 {dimension_numbers = #tpu.dot_dimension_numbers<[1], [0], [0], [1], [0, 0, 1, 1], [], []>} : vector<16x16xf32>, vector<16x8xf32>, vector<16x8xf32> -> vector<16x8xf32>
    %c0_156 = arith.constant 0 : index
    %c8_157 = arith.constant 8 : index
    %349 = vector.load %arg19[%c0_156, %c8_157] : memref<32x32xf32, #tpu.memory_space<vmem>>, vector<16x8xf32>
    tpu.vector_store %arg19[%c0_156, %c8_157], %348 {strides = array<i32>} : memref<32x32xf32, #tpu.memory_space<vmem>>, vector<16x8xf32>,
    %350 = vector.extract_strided_slice %311 {offsets = [0, 16], sizes = [16, 8], strides = [1, 1]} : vector<32x32xf32> to vector<16x8xf32>
    %351 = vector.extract_strided_slice %312 {offsets = [0, 16], sizes = [16, 8], strides = [1, 1]} : vector<32x32xf32> to vector<16x8xf32>
    %352 = vector.extract_strided_slice %313 {offsets = [0, 16], sizes = [16, 8], strides = [1, 1]} : vector<32x32xf32> to vector<16x8xf32>
    %cst_158 = arith.constant dense<0.000000e+00> : vector<16x16xf32>
    %353 = tpu.matmul %350, %351, %cst_158 {dimension_numbers = #tpu.dot_dimension_numbers<[1], [1], [0], [0], [0, 0, 1, 0], [], []>} : vector<16x8xf32>, vector<16x8xf32>, vector<16x16xf32> -> vector<16x16xf32>
    %cst_159 = arith.constant 0.353553385 : f32
    %354 = vector.broadcast %cst_159 : f32 to vector<16x16xf32>
    %355 = arith.mulf %353, %354 : vector<16x16xf32>
    %cst_160 = arith.constant dense<0xFF800000> : vector<16xf32>
    %356 = vector.multi_reduction <maximumf>, %355, %cst_160 [1] : vector<16x16xf32> to vector<16xf32>
    %357 = vector.shape_cast %356 : vector<16xf32> to vector<16x1xf32>
    %358 = vector.broadcast %357 : vector<16x1xf32> to vector<16x16xf32>
    %359 = arith.subf %355, %358 : vector<16x16xf32>
    %360 = math.exp %359 : vector<16x16xf32>
    %cst_161 = arith.constant dense<0.000000e+00> : vector<16xf32>
    %361 = vector.multi_reduction <add>, %360, %cst_161 [1] : vector<16x16xf32> to vector<16xf32>
    %362 = vector.shape_cast %361 : vector<16xf32> to vector<16x1xf32>
    %363 = tpu.reciprocal %362 {approx = true} : vector<16x1xf32> -> vector<16x1xf32>
    %364 = vector.broadcast %363 : vector<16x1xf32> to vector<16x16xf32>
    %365 = arith.mulf %360, %364 : vector<16x16xf32>
    %cst_162 = arith.constant dense<0.000000e+00> : vector<16x8xf32>
    %366 = tpu.matmul %365, %352, %cst_162 {dimension_numbers = #tpu.dot_dimension_numbers<[1], [0], [0], [1], [0, 0, 1, 1], [], []>} : vector<16x16xf32>, vector<16x8xf32>, vector<16x8xf32> -> vector<16x8xf32>
    %c0_163 = arith.constant 0 : index
    %c16_164 = arith.constant 16 : index
    %367 = vector.load %arg19[%c0_163, %c16_164] : memref<32x32xf32, #tpu.memory_space<vmem>>, vector<16x8xf32>
    tpu.vector_store %arg19[%c0_163, %c16_164], %366 {strides = array<i32>} : memref<32x32xf32, #tpu.memory_space<vmem>>, vector<16x8xf32>,
    %368 = vector.extract_strided_slice %311 {offsets = [0, 24], sizes = [16, 8], strides = [1, 1]} : vector<32x32xf32> to vector<16x8xf32>
    %369 = vector.extract_strided_slice %312 {offsets = [0, 24], sizes = [16, 8], strides = [1, 1]} : vector<32x32xf32> to vector<16x8xf32>
    %370 = vector.extract_strided_slice %313 {offsets = [0, 24], sizes = [16, 8], strides = [1, 1]} : vector<32x32xf32> to vector<16x8xf32>
    %cst_165 = arith.constant dense<0.000000e+00> : vector<16x16xf32>
    %371 = tpu.matmul %368, %369, %cst_165 {dimension_numbers = #tpu.dot_dimension_numbers<[1], [1], [0], [0], [0, 0, 1, 0], [], []>} : vector<16x8xf32>, vector<16x8xf32>, vector<16x16xf32> -> vector<16x16xf32>
    %cst_166 = arith.constant 0.353553385 : f32
    %372 = vector.broadcast %cst_166 : f32 to vector<16x16xf32>
    %373 = arith.mulf %371, %372 : vector<16x16xf32>
    %cst_167 = arith.constant dense<0xFF800000> : vector<16xf32>
    %374 = vector.multi_reduction <maximumf>, %373, %cst_167 [1] : vector<16x16xf32> to vector<16xf32>
    %375 = vector.shape_cast %374 : vector<16xf32> to vector<16x1xf32>
    %376 = vector.broadcast %375 : vector<16x1xf32> to vector<16x16xf32>
    %377 = arith.subf %373, %376 : vector<16x16xf32>
    %378 = math.exp %377 : vector<16x16xf32>
    %cst_168 = arith.constant dense<0.000000e+00> : vector<16xf32>
    %379 = vector.multi_reduction <add>, %378, %cst_168 [1] : vector<16x16xf32> to vector<16xf32>
    %380 = vector.shape_cast %379 : vector<16xf32> to vector<16x1xf32>
    %381 = tpu.reciprocal %380 {approx = true} : vector<16x1xf32> -> vector<16x1xf32>
    %382 = vector.broadcast %381 : vector<16x1xf32> to vector<16x16xf32>
    %383 = arith.mulf %378, %382 : vector<16x16xf32>
    %cst_169 = arith.constant dense<0.000000e+00> : vector<16x8xf32>
    %384 = tpu.matmul %383, %370, %cst_169 {dimension_numbers = #tpu.dot_dimension_numbers<[1], [0], [0], [1], [0, 0, 1, 1], [], []>} : vector<16x16xf32>, vector<16x8xf32>, vector<16x8xf32> -> vector<16x8xf32>
    %c0_170 = arith.constant 0 : index
    %c24_171 = arith.constant 24 : index
    %385 = vector.load %arg19[%c0_170, %c24_171] : memref<32x32xf32, #tpu.memory_space<vmem>>, vector<16x8xf32>
    tpu.vector_store %arg19[%c0_170, %c24_171], %384 {strides = array<i32>} : memref<32x32xf32, #tpu.memory_space<vmem>>, vector<16x8xf32>,
    %386 = vector.extract_strided_slice %311 {offsets = [16, 0], sizes = [16, 8], strides = [1, 1]} : vector<32x32xf32> to vector<16x8xf32>
    %387 = vector.extract_strided_slice %312 {offsets = [16, 0], sizes = [16, 8], strides = [1, 1]} : vector<32x32xf32> to vector<16x8xf32>
    %388 = vector.extract_strided_slice %313 {offsets = [16, 0], sizes = [16, 8], strides = [1, 1]} : vector<32x32xf32> to vector<16x8xf32>
    %cst_172 = arith.constant dense<0.000000e+00> : vector<16x16xf32>
    %389 = tpu.matmul %386, %387, %cst_172 {dimension_numbers = #tpu.dot_dimension_numbers<[1], [1], [0], [0], [0, 0, 1, 0], [], []>} : vector<16x8xf32>, vector<16x8xf32>, vector<16x16xf32> -> vector<16x16xf32>
    %cst_173 = arith.constant 0.353553385 : f32
    %390 = vector.broadcast %cst_173 : f32 to vector<16x16xf32>
    %391 = arith.mulf %389, %390 : vector<16x16xf32>
    %cst_174 = arith.constant dense<0xFF800000> : vector<16xf32>
    %392 = vector.multi_reduction <maximumf>, %391, %cst_174 [1] : vector<16x16xf32> to vector<16xf32>
    %393 = vector.shape_cast %392 : vector<16xf32> to vector<16x1xf32>
    %394 = vector.broadcast %393 : vector<16x1xf32> to vector<16x16xf32>
    %395 = arith.subf %391, %394 : vector<16x16xf32>
    %396 = math.exp %395 : vector<16x16xf32>
    %cst_175 = arith.constant dense<0.000000e+00> : vector<16xf32>
    %397 = vector.multi_reduction <add>, %396, %cst_175 [1] : vector<16x16xf32> to vector<16xf32>
    %398 = vector.shape_cast %397 : vector<16xf32> to vector<16x1xf32>
    %399 = tpu.reciprocal %398 {approx = true} : vector<16x1xf32> -> vector<16x1xf32>
    %400 = vector.broadcast %399 : vector<16x1xf32> to vector<16x16xf32>
    %401 = arith.mulf %396, %400 : vector<16x16xf32>
    %cst_176 = arith.constant dense<0.000000e+00> : vector<16x8xf32>
    %402 = tpu.matmul %401, %388, %cst_176 {dimension_numbers = #tpu.dot_dimension_numbers<[1], [0], [0], [1], [0, 0, 1, 1], [], []>} : vector<16x16xf32>, vector<16x8xf32>, vector<16x8xf32> -> vector<16x8xf32>
    %c16_177 = arith.constant 16 : index
    %c0_178 = arith.constant 0 : index
    %403 = vector.load %arg19[%c16_177, %c0_178] : memref<32x32xf32, #tpu.memory_space<vmem>>, vector<16x8xf32>
    tpu.vector_store %arg19[%c16_177, %c0_178], %402 {strides = array<i32>} : memref<32x32xf32, #tpu.memory_space<vmem>>, vector<16x8xf32>,
    %404 = vector.extract_strided_slice %311 {offsets = [16, 8], sizes = [16, 8], strides = [1, 1]} : vector<32x32xf32> to vector<16x8xf32>
    %405 = vector.extract_strided_slice %312 {offsets = [16, 8], sizes = [16, 8], strides = [1, 1]} : vector<32x32xf32> to vector<16x8xf32>
    %406 = vector.extract_strided_slice %313 {offsets = [16, 8], sizes = [16, 8], strides = [1, 1]} : vector<32x32xf32> to vector<16x8xf32>
    %cst_179 = arith.constant dense<0.000000e+00> : vector<16x16xf32>
    %407 = tpu.matmul %404, %405, %cst_179 {dimension_numbers = #tpu.dot_dimension_numbers<[1], [1], [0], [0], [0, 0, 1, 0], [], []>} : vector<16x8xf32>, vector<16x8xf32>, vector<16x16xf32> -> vector<16x16xf32>
    %cst_180 = arith.constant 0.353553385 : f32
    %408 = vector.broadcast %cst_180 : f32 to vector<16x16xf32>
    %409 = arith.mulf %407, %408 : vector<16x16xf32>
    %cst_181 = arith.constant dense<0xFF800000> : vector<16xf32>
    %410 = vector.multi_reduction <maximumf>, %409, %cst_181 [1] : vector<16x16xf32> to vector<16xf32>
    %411 = vector.shape_cast %410 : vector<16xf32> to vector<16x1xf32>
    %412 = vector.broadcast %411 : vector<16x1xf32> to vector<16x16xf32>
    %413 = arith.subf %409, %412 : vector<16x16xf32>
    %414 = math.exp %413 : vector<16x16xf32>
    %cst_182 = arith.constant dense<0.000000e+00> : vector<16xf32>
    %415 = vector.multi_reduction <add>, %414, %cst_182 [1] : vector<16x16xf32> to vector<16xf32>
    %416 = vector.shape_cast %415 : vector<16xf32> to vector<16x1xf32>
    %417 = tpu.reciprocal %416 {approx = true} : vector<16x1xf32> -> vector<16x1xf32>
    %418 = vector.broadcast %417 : vector<16x1xf32> to vector<16x16xf32>
    %419 = arith.mulf %414, %418 : vector<16x16xf32>
    %cst_183 = arith.constant dense<0.000000e+00> : vector<16x8xf32>
    %420 = tpu.matmul %419, %406, %cst_183 {dimension_numbers = #tpu.dot_dimension_numbers<[1], [0], [0], [1], [0, 0, 1, 1], [], []>} : vector<16x16xf32>, vector<16x8xf32>, vector<16x8xf32> -> vector<16x8xf32>
    %c16_184 = arith.constant 16 : index
    %c8_185 = arith.constant 8 : index
    %421 = vector.load %arg19[%c16_184, %c8_185] : memref<32x32xf32, #tpu.memory_space<vmem>>, vector<16x8xf32>
    tpu.vector_store %arg19[%c16_184, %c8_185], %420 {strides = array<i32>} : memref<32x32xf32, #tpu.memory_space<vmem>>, vector<16x8xf32>,
    %422 = vector.extract_strided_slice %311 {offsets = [16, 16], sizes = [16, 8], strides = [1, 1]} : vector<32x32xf32> to vector<16x8xf32>
    %423 = vector.extract_strided_slice %312 {offsets = [16, 16], sizes = [16, 8], strides = [1, 1]} : vector<32x32xf32> to vector<16x8xf32>
    %424 = vector.extract_strided_slice %313 {offsets = [16, 16], sizes = [16, 8], strides = [1, 1]} : vector<32x32xf32> to vector<16x8xf32>
    %cst_186 = arith.constant dense<0.000000e+00> : vector<16x16xf32>
    %425 = tpu.matmul %422, %423, %cst_186 {dimension_numbers = #tpu.dot_dimension_numbers<[1], [1], [0], [0], [0, 0, 1, 0], [], []>} : vector<16x8xf32>, vector<16x8xf32>, vector<16x16xf32> -> vector<16x16xf32>
    %cst_187 = arith.constant 0.353553385 : f32
    %426 = vector.broadcast %cst_187 : f32 to vector<16x16xf32>
    %427 = arith.mulf %425, %426 : vector<16x16xf32>
    %cst_188 = arith.constant dense<0xFF800000> : vector<16xf32>
    %428 = vector.multi_reduction <maximumf>, %427, %cst_188 [1] : vector<16x16xf32> to vector<16xf32>
    %429 = vector.shape_cast %428 : vector<16xf32> to vector<16x1xf32>
    %430 = vector.broadcast %429 : vector<16x1xf32> to vector<16x16xf32>
    %431 = arith.subf %427, %430 : vector<16x16xf32>
    %432 = math.exp %431 : vector<16x16xf32>
    %cst_189 = arith.constant dense<0.000000e+00> : vector<16xf32>
    %433 = vector.multi_reduction <add>, %432, %cst_189 [1] : vector<16x16xf32> to vector<16xf32>
    %434 = vector.shape_cast %433 : vector<16xf32> to vector<16x1xf32>
    %435 = tpu.reciprocal %434 {approx = true} : vector<16x1xf32> -> vector<16x1xf32>
    %436 = vector.broadcast %435 : vector<16x1xf32> to vector<16x16xf32>
    %437 = arith.mulf %432, %436 : vector<16x16xf32>
    %cst_190 = arith.constant dense<0.000000e+00> : vector<16x8xf32>
    %438 = tpu.matmul %437, %424, %cst_190 {dimension_numbers = #tpu.dot_dimension_numbers<[1], [0], [0], [1], [0, 0, 1, 1], [], []>} : vector<16x16xf32>, vector<16x8xf32>, vector<16x8xf32> -> vector<16x8xf32>
    %c16_191 = arith.constant 16 : index
    %c16_192 = arith.constant 16 : index
    %439 = vector.load %arg19[%c16_191, %c16_192] : memref<32x32xf32, #tpu.memory_space<vmem>>, vector<16x8xf32>
    tpu.vector_store %arg19[%c16_191, %c16_192], %438 {strides = array<i32>} : memref<32x32xf32, #tpu.memory_space<vmem>>, vector<16x8xf32>,
    %440 = vector.extract_strided_slice %311 {offsets = [16, 24], sizes = [16, 8], strides = [1, 1]} : vector<32x32xf32> to vector<16x8xf32>
    %441 = vector.extract_strided_slice %312 {offsets = [16, 24], sizes = [16, 8], strides = [1, 1]} : vector<32x32xf32> to vector<16x8xf32>
    %442 = vector.extract_strided_slice %313 {offsets = [16, 24], sizes = [16, 8], strides = [1, 1]} : vector<32x32xf32> to vector<16x8xf32>
    %cst_193 = arith.constant dense<0.000000e+00> : vector<16x16xf32>
    %443 = tpu.matmul %440, %441, %cst_193 {dimension_numbers = #tpu.dot_dimension_numbers<[1], [1], [0], [0], [0, 0, 1, 0], [], []>} : vector<16x8xf32>, vector<16x8xf32>, vector<16x16xf32> -> vector<16x16xf32>
    %cst_194 = arith.constant 0.353553385 : f32
    %444 = vector.broadcast %cst_194 : f32 to vector<16x16xf32>
    %445 = arith.mulf %443, %444 : vector<16x16xf32>
    %cst_195 = arith.constant dense<0xFF800000> : vector<16xf32>
    %446 = vector.multi_reduction <maximumf>, %445, %cst_195 [1] : vector<16x16xf32> to vector<16xf32>
    %447 = vector.shape_cast %446 : vector<16xf32> to vector<16x1xf32>
    %448 = vector.broadcast %447 : vector<16x1xf32> to vector<16x16xf32>
    %449 = arith.subf %445, %448 : vector<16x16xf32>
    %450 = math.exp %449 : vector<16x16xf32>
    %cst_196 = arith.constant dense<0.000000e+00> : vector<16xf32>
    %451 = vector.multi_reduction <add>, %450, %cst_196 [1] : vector<16x16xf32> to vector<16xf32>
    %452 = vector.shape_cast %451 : vector<16xf32> to vector<16x1xf32>
    %453 = tpu.reciprocal %452 {approx = true} : vector<16x1xf32> -> vector<16x1xf32>
    %454 = vector.broadcast %453 : vector<16x1xf32> to vector<16x16xf32>
    %455 = arith.mulf %450, %454 : vector<16x16xf32>
    %cst_197 = arith.constant dense<0.000000e+00> : vector<16x8xf32>
    %456 = tpu.matmul %455, %442, %cst_197 {dimension_numbers = #tpu.dot_dimension_numbers<[1], [0], [0], [1], [0, 0, 1, 1], [], []>} : vector<16x16xf32>, vector<16x8xf32>, vector<16x8xf32> -> vector<16x8xf32>
    %c16_198 = arith.constant 16 : index
    %c24_199 = arith.constant 24 : index
    %457 = vector.load %arg19[%c16_198, %c24_199] : memref<32x32xf32, #tpu.memory_space<vmem>>, vector<16x8xf32>
    tpu.vector_store %arg19[%c16_198, %c24_199], %456 {strides = array<i32>} : memref<32x32xf32, #tpu.memory_space<vmem>>, vector<16x8xf32>,
    %c0_200 = arith.constant 0 : index
    %c0_201 = arith.constant 0 : index
    %458 = vector.load %arg19[%c0_200, %c0_201] : memref<32x32xf32, #tpu.memory_space<vmem>>, vector<32x32xf32>
    %c1_202 = arith.constant 1 : index
    %c0_203 = arith.constant 0 : index
    %c0_204 = arith.constant 0 : index
    %459 = vector.load %arg8[%c1_202, %c0_203, %c0_204] : memref<2x32x32xf32, #tpu.memory_space<vmem>>, vector<1x32x32xf32>
    %460 = vector.shape_cast %459 : vector<1x32x32xf32> to vector<32x32xf32>
    %cst_205 = arith.constant dense<0.000000e+00> : vector<32x32xf32>
    %461 = tpu.matmul %458, %460, %cst_205 {dimension_numbers = #tpu.dot_dimension_numbers<[1], [0], [0], [1], [0, 0, 1, 1], [], []>} : vector<32x32xf32>, vector<32x32xf32>, vector<32x32xf32> -> vector<32x32xf32>
    %c1_206 = arith.constant 1 : index
    %c0_207 = arith.constant 0 : index
    %c0_208 = arith.constant 0 : index
    %462 = vector.load %arg9[%c1_206, %c0_207, %c0_208] : memref<2x1x32xf32, #tpu.memory_space<vmem>>, vector<1x1x32xf32>
    %463 = vector.shape_cast %462 : vector<1x1x32xf32> to vector<1x32xf32>
    %464 = vector.broadcast %463 : vector<1x32xf32> to vector<32x32xf32>
    %465 = arith.addf %461, %464 : vector<32x32xf32>
    %466 = arith.addf %277, %465 : vector<32x32xf32>
    %c1_209 = arith.constant 1 : index
    %c0_210 = arith.constant 0 : index
    %c0_211 = arith.constant 0 : index
    %467 = vector.load %arg10[%c1_209, %c0_210, %c0_211] : memref<2x1x32xf32, #tpu.memory_space<vmem>>, vector<1x1x32xf32>
    %468 = vector.shape_cast %467 : vector<1x1x32xf32> to vector<1x32xf32>
    %c1_212 = arith.constant 1 : index
    %c0_213 = arith.constant 0 : index
    %c0_214 = arith.constant 0 : index
    %469 = vector.load %arg11[%c1_212, %c0_213, %c0_214] : memref<2x1x32xf32, #tpu.memory_space<vmem>>, vector<1x1x32xf32>
    %470 = vector.shape_cast %469 : vector<1x1x32xf32> to vector<1x32xf32>
    %cst_215 = arith.constant dense<0.000000e+00> : vector<32xf32>
    %471 = vector.multi_reduction <add>, %466, %cst_215 [1] : vector<32x32xf32> to vector<32xf32>
    %472 = vector.shape_cast %471 : vector<32xf32> to vector<32x1xf32>
    %cst_216 = arith.constant 3.200000e+01 : f32
    %473 = vector.broadcast %cst_216 : f32 to vector<32x1xf32>
    %474 = arith.divf %472, %473 : vector<32x1xf32>
    %475 = vector.broadcast %474 : vector<32x1xf32> to vector<32x32xf32>
    %476 = arith.subf %466, %475 : vector<32x32xf32>
    %477 = arith.mulf %476, %476 : vector<32x32xf32>
    %cst_217 = arith.constant dense<0.000000e+00> : vector<32xf32>
    %478 = vector.multi_reduction <add>, %477, %cst_217 [1] : vector<32x32xf32> to vector<32xf32>
    %479 = vector.shape_cast %478 : vector<32xf32> to vector<32x1xf32>
    %cst_218 = arith.constant 3.200000e+01 : f32
    %480 = vector.broadcast %cst_218 : f32 to vector<32x1xf32>
    %481 = arith.divf %479, %480 : vector<32x1xf32>
    %482 = vector.broadcast %474 : vector<32x1xf32> to vector<32x32xf32>
    %483 = arith.subf %466, %482 : vector<32x32xf32>
    %cst_219 = arith.constant 9.99999997E-7 : f32
    %484 = vector.broadcast %cst_219 : f32 to vector<32x1xf32>
    %485 = arith.addf %481, %484 : vector<32x1xf32>
    %486 = math.rsqrt %485 : vector<32x1xf32>
    %487 = vector.broadcast %486 : vector<32x1xf32> to vector<32x32xf32>
    %488 = arith.mulf %483, %487 : vector<32x32xf32>
    %489 = vector.broadcast %468 : vector<1x32xf32> to vector<32x32xf32>
    %490 = arith.mulf %488, %489 : vector<32x32xf32>
    %491 = vector.broadcast %470 : vector<1x32xf32> to vector<32x32xf32>
    %492 = arith.addf %490, %491 : vector<32x32xf32>
    %c1_220 = arith.constant 1 : index
    %c0_221 = arith.constant 0 : index
    %c0_222 = arith.constant 0 : index
    %493 = vector.load %arg12[%c1_220, %c0_221, %c0_222] : memref<2x32x128xf32, #tpu.memory_space<vmem>>, vector<1x32x128xf32>
    %494 = vector.shape_cast %493 : vector<1x32x128xf32> to vector<32x128xf32>
    %cst_223 = arith.constant dense<0.000000e+00> : vector<32x128xf32>
    %495 = tpu.matmul %492, %494, %cst_223 {dimension_numbers = #tpu.dot_dimension_numbers<[1], [0], [0], [1], [0, 0, 1, 1], [], []>} : vector<32x32xf32>, vector<32x128xf32>, vector<32x128xf32> -> vector<32x128xf32>
    %c1_224 = arith.constant 1 : index
    %c0_225 = arith.constant 0 : index
    %c0_226 = arith.constant 0 : index
    %496 = vector.load %arg13[%c1_224, %c0_225, %c0_226] : memref<2x1x128xf32, #tpu.memory_space<vmem>>, vector<1x1x128xf32>
    %497 = vector.shape_cast %496 : vector<1x1x128xf32> to vector<1x128xf32>
    %498 = vector.broadcast %497 : vector<1x128xf32> to vector<32x128xf32>
    %499 = arith.addf %495, %498 : vector<32x128xf32>
    %cst_227 = arith.constant 5.000000e-01 : f32
    %500 = vector.broadcast %cst_227 : f32 to vector<32x128xf32>
    %501 = arith.mulf %500, %499 : vector<32x128xf32>
    %cst_228 = arith.constant 0.707106769 : f32
    %502 = vector.broadcast %cst_228 : f32 to vector<32x128xf32>
    %503 = arith.mulf %499, %502 : vector<32x128xf32>
    %504 = math.absf %503 : vector<32x128xf32>
    %cst_229 = arith.constant 0.327591091 : f32
    %505 = vector.broadcast %cst_229 : f32 to vector<32x128xf32>
    %506 = arith.mulf %505, %504 : vector<32x128xf32>
    %cst_230 = arith.constant 1.000000e+00 : f32
    %507 = vector.broadcast %cst_230 : f32 to vector<32x128xf32>
    %508 = arith.addf %507, %506 : vector<32x128xf32>
    %cst_231 = arith.constant 1.000000e+00 : f32
    %509 = vector.broadcast %cst_231 : f32 to vector<32x128xf32>
    %510 = arith.divf %509, %508 : vector<32x128xf32>
    %cst_232 = arith.constant 1.06140542 : f32
    %511 = vector.broadcast %cst_232 : f32 to vector<32x128xf32>
    %512 = arith.mulf %511, %510 : vector<32x128xf32>
    %cst_233 = arith.constant -1.45315206 : f32
    %513 = vector.broadcast %cst_233 : f32 to vector<32x128xf32>
    %514 = arith.addf %512, %513 : vector<32x128xf32>
    %515 = arith.mulf %514, %510 : vector<32x128xf32>
    %cst_234 = arith.constant 1.42141378 : f32
    %516 = vector.broadcast %cst_234 : f32 to vector<32x128xf32>
    %517 = arith.addf %515, %516 : vector<32x128xf32>
    %518 = arith.mulf %517, %510 : vector<32x128xf32>
    %cst_235 = arith.constant -0.284496725 : f32
    %519 = vector.broadcast %cst_235 : f32 to vector<32x128xf32>
    %520 = arith.addf %518, %519 : vector<32x128xf32>
    %521 = arith.mulf %520, %510 : vector<32x128xf32>
    %cst_236 = arith.constant 0.254829586 : f32
    %522 = vector.broadcast %cst_236 : f32 to vector<32x128xf32>
    %523 = arith.addf %521, %522 : vector<32x128xf32>
    %524 = arith.mulf %523, %510 : vector<32x128xf32>
    %cst_237 = arith.constant 0.000000e+00 : f32
    %525 = vector.broadcast %cst_237 : f32 to vector<32x128xf32>
    %526 = arith.subf %525, %504 : vector<32x128xf32>
    %527 = arith.mulf %526, %504 : vector<32x128xf32>
    %528 = math.exp %527 : vector<32x128xf32>
    %529 = arith.mulf %524, %528 : vector<32x128xf32>
    %cst_238 = arith.constant 1.000000e+00 : f32
    %530 = vector.broadcast %cst_238 : f32 to vector<32x128xf32>
    %531 = arith.subf %530, %529 : vector<32x128xf32>
    %cst_239 = arith.constant 0.000000e+00 : f32
    %532 = vector.broadcast %cst_239 : f32 to vector<32x128xf32>
    %533 = arith.cmpf oge, %503, %532 : vector<32x128xf32>
    %cst_240 = arith.constant 0.000000e+00 : f32
    %534 = vector.broadcast %cst_240 : f32 to vector<32x128xf32>
    %535 = arith.subf %534, %531 : vector<32x128xf32>
    %536 = arith.select %533, %531, %535 : vector<32x128xi1>, vector<32x128xf32>
    %cst_241 = arith.constant 1.000000e+00 : f32
    %537 = vector.broadcast %cst_241 : f32 to vector<32x128xf32>
    %538 = arith.addf %537, %536 : vector<32x128xf32>
    %539 = arith.mulf %501, %538 : vector<32x128xf32>
    %c1_242 = arith.constant 1 : index
    %c0_243 = arith.constant 0 : index
    %c0_244 = arith.constant 0 : index
    %540 = vector.load %arg14[%c1_242, %c0_243, %c0_244] : memref<2x128x32xf32, #tpu.memory_space<vmem>>, vector<1x128x32xf32>
    %541 = vector.shape_cast %540 : vector<1x128x32xf32> to vector<128x32xf32>
    %cst_245 = arith.constant dense<0.000000e+00> : vector<32x32xf32>
    %542 = tpu.matmul %539, %541, %cst_245 {dimension_numbers = #tpu.dot_dimension_numbers<[1], [0], [0], [1], [0, 0, 1, 1], [], []>} : vector<32x128xf32>, vector<128x32xf32>, vector<32x32xf32> -> vector<32x32xf32>
    %c1_246 = arith.constant 1 : index
    %c0_247 = arith.constant 0 : index
    %c0_248 = arith.constant 0 : index
    %543 = vector.load %arg15[%c1_246, %c0_247, %c0_248] : memref<2x1x32xf32, #tpu.memory_space<vmem>>, vector<1x1x32xf32>
    %544 = vector.shape_cast %543 : vector<1x1x32xf32> to vector<1x32xf32>
    %545 = vector.broadcast %544 : vector<1x32xf32> to vector<32x32xf32>
    %546 = arith.addf %542, %545 : vector<32x32xf32>
    %547 = arith.addf %466, %546 : vector<32x32xf32>
    %c0_249 = arith.constant 0 : index
    %c0_250 = arith.constant 0 : index
    %548 = vector.load %arg16[%c0_249, %c0_250] : memref<1x32xf32, #tpu.memory_space<vmem>>, vector<1x32xf32>
    %c0_251 = arith.constant 0 : index
    %c0_252 = arith.constant 0 : index
    %549 = vector.load %arg17[%c0_251, %c0_252] : memref<1x32xf32, #tpu.memory_space<vmem>>, vector<1x32xf32>
    %cst_253 = arith.constant dense<0.000000e+00> : vector<32xf32>
    %550 = vector.multi_reduction <add>, %547, %cst_253 [1] : vector<32x32xf32> to vector<32xf32>
    %551 = vector.shape_cast %550 : vector<32xf32> to vector<32x1xf32>
    %cst_254 = arith.constant 3.200000e+01 : f32
    %552 = vector.broadcast %cst_254 : f32 to vector<32x1xf32>
    %553 = arith.divf %551, %552 : vector<32x1xf32>
    %554 = vector.broadcast %553 : vector<32x1xf32> to vector<32x32xf32>
    %555 = arith.subf %547, %554 : vector<32x32xf32>
    %556 = arith.mulf %555, %555 : vector<32x32xf32>
    %cst_255 = arith.constant dense<0.000000e+00> : vector<32xf32>
    %557 = vector.multi_reduction <add>, %556, %cst_255 [1] : vector<32x32xf32> to vector<32xf32>
    %558 = vector.shape_cast %557 : vector<32xf32> to vector<32x1xf32>
    %cst_256 = arith.constant 3.200000e+01 : f32
    %559 = vector.broadcast %cst_256 : f32 to vector<32x1xf32>
    %560 = arith.divf %558, %559 : vector<32x1xf32>
    %561 = vector.broadcast %553 : vector<32x1xf32> to vector<32x32xf32>
    %562 = arith.subf %547, %561 : vector<32x32xf32>
    %cst_257 = arith.constant 9.99999997E-7 : f32
    %563 = vector.broadcast %cst_257 : f32 to vector<32x1xf32>
    %564 = arith.addf %560, %563 : vector<32x1xf32>
    %565 = math.rsqrt %564 : vector<32x1xf32>
    %566 = vector.broadcast %565 : vector<32x1xf32> to vector<32x32xf32>
    %567 = arith.mulf %562, %566 : vector<32x32xf32>
    %568 = vector.broadcast %548 : vector<1x32xf32> to vector<32x32xf32>
    %569 = arith.mulf %567, %568 : vector<32x32xf32>
    %570 = vector.broadcast %549 : vector<1x32xf32> to vector<32x32xf32>
    %571 = arith.addf %569, %570 : vector<32x32xf32>
    %c0_258 = arith.constant 0 : index
    %c0_259 = arith.constant 0 : index
    %572 = vector.load %arg18[%c0_258, %c0_259] : memref<32x32xf32, #tpu.memory_space<vmem>>, vector<32x32xf32>
    tpu.vector_store %arg18[%c0_258, %c0_259], %571 {strides = array<i32>} : memref<32x32xf32, #tpu.memory_space<vmem>>, vector<32x32xf32>,
    return
  }
}

module attributes {stable_mosaic.version = 11 : i64} {
  func.func @_deconv_bn_relu_kernel(%arg0: memref<16x512xf32, #tpu.memory_space<vmem>>, %arg1: memref<512x128xf32, #tpu.memory_space<vmem>>, %arg2: memref<16x1xf32, #tpu.memory_space<vmem>>, %arg3: memref<16x1xf32, #tpu.memory_space<vmem>>, %arg4: memref<16x1xf32, #tpu.memory_space<vmem>>, %arg5: memref<16x1xf32, #tpu.memory_space<vmem>>, %arg6: memref<16x128xf32, #tpu.memory_space<vmem>>) attributes {dimension_semantics = [], scalar_prefetch = 0 : i64, scratch_operands = 0 : i64, tpu.core_type = #tpu.core_type<tc>} {
    %c0 = arith.constant 0 : index
    %c0_0 = arith.constant 0 : index
    %0 = vector.load %arg0[%c0, %c0_0] : memref<16x512xf32, #tpu.memory_space<vmem>>, vector<16x512xf32>
    %c0_1 = arith.constant 0 : index
    %c0_2 = arith.constant 0 : index
    %1 = vector.load %arg1[%c0_1, %c0_2] : memref<512x128xf32, #tpu.memory_space<vmem>>, vector<512x128xf32>
    %cst = arith.constant dense<0.000000e+00> : vector<16x128xf32>
    %2 = tpu.matmul %0, %1, %cst {dimension_numbers = #tpu.dot_dimension_numbers<[1], [0], [0], [1], [0, 0, 1, 1], [], []>} : vector<16x512xf32>, vector<512x128xf32>, vector<16x128xf32> -> vector<16x128xf32>
    %c0_3 = arith.constant 0 : index
    %c0_4 = arith.constant 0 : index
    %3 = vector.load %arg2[%c0_3, %c0_4] : memref<16x1xf32, #tpu.memory_space<vmem>>, vector<16x1xf32>
    %c0_5 = arith.constant 0 : index
    %c0_6 = arith.constant 0 : index
    %4 = vector.load %arg5[%c0_5, %c0_6] : memref<16x1xf32, #tpu.memory_space<vmem>>, vector<16x1xf32>
    %cst_7 = arith.constant 9.99999974E-6 : f32
    %5 = vector.broadcast %cst_7 : f32 to vector<16x1xf32>
    %6 = arith.addf %4, %5 : vector<16x1xf32>
    %7 = math.rsqrt %6 : vector<16x1xf32>
    %8 = arith.mulf %3, %7 : vector<16x1xf32>
    %c0_8 = arith.constant 0 : index
    %c0_9 = arith.constant 0 : index
    %9 = vector.load %arg4[%c0_8, %c0_9] : memref<16x1xf32, #tpu.memory_space<vmem>>, vector<16x1xf32>
    %10 = vector.broadcast %9 : vector<16x1xf32> to vector<16x128xf32>
    %11 = arith.subf %2, %10 : vector<16x128xf32>
    %12 = vector.broadcast %8 : vector<16x1xf32> to vector<16x128xf32>
    %13 = arith.mulf %11, %12 : vector<16x128xf32>
    %c0_10 = arith.constant 0 : index
    %c0_11 = arith.constant 0 : index
    %14 = vector.load %arg3[%c0_10, %c0_11] : memref<16x1xf32, #tpu.memory_space<vmem>>, vector<16x1xf32>
    %15 = vector.broadcast %14 : vector<16x1xf32> to vector<16x128xf32>
    %16 = arith.addf %13, %15 : vector<16x128xf32>
    %cst_12 = arith.constant 0.000000e+00 : f32
    %17 = vector.broadcast %cst_12 : f32 to vector<16x128xf32>
    %18 = arith.maximumf %16, %17 : vector<16x128xf32>
    %c0_13 = arith.constant 0 : index
    %c0_14 = arith.constant 0 : index
    %19 = vector.load %arg6[%c0_13, %c0_14] : memref<16x128xf32, #tpu.memory_space<vmem>>, vector<16x128xf32>
    tpu.vector_store %arg6[%c0_13, %c0_14], %18 {strides = array<i32>} : memref<16x128xf32, #tpu.memory_space<vmem>>, vector<16x128xf32>,
    return
  }
}

module attributes {stable_mosaic.version = 11 : i64} {
  func.func @_deconv_bn_relu_final_kernel(%arg0: memref<16x256xf32, #tpu.memory_space<vmem>>, %arg1: memref<256x512xf32, #tpu.memory_space<vmem>>, %arg2: memref<16x1xf32, #tpu.memory_space<vmem>>, %arg3: memref<16x1xf32, #tpu.memory_space<vmem>>, %arg4: memref<16x1xf32, #tpu.memory_space<vmem>>, %arg5: memref<16x1xf32, #tpu.memory_space<vmem>>, %arg6: memref<5x16xf32, #tpu.memory_space<vmem>>, %arg7: memref<5x1xf32, #tpu.memory_space<vmem>>, %arg8: memref<5x512xf32, #tpu.memory_space<vmem>>) attributes {dimension_semantics = [], scalar_prefetch = 0 : i64, scratch_operands = 0 : i64, tpu.core_type = #tpu.core_type<tc>} {
    %c0 = arith.constant 0 : index
    %c0_0 = arith.constant 0 : index
    %0 = vector.load %arg0[%c0, %c0_0] : memref<16x256xf32, #tpu.memory_space<vmem>>, vector<16x256xf32>
    %c0_1 = arith.constant 0 : index
    %c0_2 = arith.constant 0 : index
    %1 = vector.load %arg1[%c0_1, %c0_2] : memref<256x512xf32, #tpu.memory_space<vmem>>, vector<256x512xf32>
    %cst = arith.constant dense<0.000000e+00> : vector<16x512xf32>
    %2 = tpu.matmul %0, %1, %cst {dimension_numbers = #tpu.dot_dimension_numbers<[1], [0], [0], [1], [0, 0, 1, 1], [], []>} : vector<16x256xf32>, vector<256x512xf32>, vector<16x512xf32> -> vector<16x512xf32>
    %c0_3 = arith.constant 0 : index
    %c0_4 = arith.constant 0 : index
    %3 = vector.load %arg2[%c0_3, %c0_4] : memref<16x1xf32, #tpu.memory_space<vmem>>, vector<16x1xf32>
    %c0_5 = arith.constant 0 : index
    %c0_6 = arith.constant 0 : index
    %4 = vector.load %arg5[%c0_5, %c0_6] : memref<16x1xf32, #tpu.memory_space<vmem>>, vector<16x1xf32>
    %cst_7 = arith.constant 9.99999974E-6 : f32
    %5 = vector.broadcast %cst_7 : f32 to vector<16x1xf32>
    %6 = arith.addf %4, %5 : vector<16x1xf32>
    %7 = math.rsqrt %6 : vector<16x1xf32>
    %8 = arith.mulf %3, %7 : vector<16x1xf32>
    %c0_8 = arith.constant 0 : index
    %c0_9 = arith.constant 0 : index
    %9 = vector.load %arg4[%c0_8, %c0_9] : memref<16x1xf32, #tpu.memory_space<vmem>>, vector<16x1xf32>
    %10 = vector.broadcast %9 : vector<16x1xf32> to vector<16x512xf32>
    %11 = arith.subf %2, %10 : vector<16x512xf32>
    %12 = vector.broadcast %8 : vector<16x1xf32> to vector<16x512xf32>
    %13 = arith.mulf %11, %12 : vector<16x512xf32>
    %c0_10 = arith.constant 0 : index
    %c0_11 = arith.constant 0 : index
    %14 = vector.load %arg3[%c0_10, %c0_11] : memref<16x1xf32, #tpu.memory_space<vmem>>, vector<16x1xf32>
    %15 = vector.broadcast %14 : vector<16x1xf32> to vector<16x512xf32>
    %16 = arith.addf %13, %15 : vector<16x512xf32>
    %cst_12 = arith.constant 0.000000e+00 : f32
    %17 = vector.broadcast %cst_12 : f32 to vector<16x512xf32>
    %18 = arith.maximumf %16, %17 : vector<16x512xf32>
    %c0_13 = arith.constant 0 : index
    %c0_14 = arith.constant 0 : index
    %19 = vector.load %arg6[%c0_13, %c0_14] : memref<5x16xf32, #tpu.memory_space<vmem>>, vector<5x16xf32>
    %cst_15 = arith.constant dense<0.000000e+00> : vector<5x512xf32>
    %20 = tpu.matmul %19, %18, %cst_15 {dimension_numbers = #tpu.dot_dimension_numbers<[1], [0], [0], [1], [0, 0, 1, 1], [], []>} : vector<5x16xf32>, vector<16x512xf32>, vector<5x512xf32> -> vector<5x512xf32>
    %c0_16 = arith.constant 0 : index
    %c0_17 = arith.constant 0 : index
    %21 = vector.load %arg7[%c0_16, %c0_17] : memref<5x1xf32, #tpu.memory_space<vmem>>, vector<5x1xf32>
    %22 = vector.broadcast %21 : vector<5x1xf32> to vector<5x512xf32>
    %23 = arith.addf %20, %22 : vector<5x512xf32>
    %c0_18 = arith.constant 0 : index
    %c0_19 = arith.constant 0 : index
    %24 = vector.load %arg8[%c0_18, %c0_19] : memref<5x512xf32, #tpu.memory_space<vmem>>, vector<5x512xf32>
    tpu.vector_store %arg8[%c0_18, %c0_19], %23 {strides = array<i32>} : memref<5x512xf32, #tpu.memory_space<vmem>>, vector<5x512xf32>,
    return
  }
}

</mosaic_0001>

<llo_original>
// kernel: vitpose_forward.3
$region0: #{vitpose_forward.3}
  #allocation0 [shape = 'u32[]', space=smem, size = 0x4, offset = 0x4, fixed_abs, tag = 'smem constant byte address 0x4 - core index']
  #allocation1 [shape = 'u32[144,128]{1,0:T(1,128)}', space=vmem, size = 0x12000, scoped, tag = 'internal scratch']
  #allocation2 [shape = 'f32[32,32]{1,0:T(8,128)}', space=vmem, size = 0x4000, scoped, tag = 'scratch operand']
  %s0 = inlined_call_operand.vmem [shape: f32[32,192], index: 0, kind: input, shape index: {}]
  %s1 = inlined_call_operand.hbm [shape: f32[192,32], index: 1, kind: input, shape index: {}]
  %s2 = inlined_call_operand.hbm [shape: f32[1,32], index: 2, kind: input, shape index: {}]
  %s3 = inlined_call_operand.vmem [shape: f32[32,32], index: 3, kind: input, shape index: {}]
  %s4 = inlined_call_operand.hbm [shape: f32[2,1,32], index: 4, kind: input, shape index: {}]
  %s5 = inlined_call_operand.hbm [shape: f32[2,1,32], index: 5, kind: input, shape index: {}]
  %s6 = inlined_call_operand.hbm [shape: f32[2,32,96], index: 6, kind: input, shape index: {}]
  %s7 = inlined_call_operand.hbm [shape: f32[2,1,96], index: 7, kind: input, shape index: {}]
  %s8 = inlined_call_operand.hbm [shape: f32[2,32,32], index: 8, kind: input, shape index: {}]
  %s9 = inlined_call_operand.hbm [shape: f32[2,1,32], index: 9, kind: input, shape index: {}]
  %s10 = inlined_call_operand.hbm [shape: f32[2,1,32], index: 10, kind: input, shape index: {}]
  %s11 = inlined_call_operand.hbm [shape: f32[2,1,32], index: 11, kind: input, shape index: {}]
  %s12 = inlined_call_operand.hbm [shape: f32[2,32,128], index: 12, kind: input, shape index: {}]
  %s13 = inlined_call_operand.hbm [shape: f32[2,1,128], index: 13, kind: input, shape index: {}]
  %s14 = inlined_call_operand.vmem [shape: f32[2,128,32], index: 14, kind: input, shape index: {}]
  %s15 = inlined_call_operand.hbm [shape: f32[2,1,32], index: 15, kind: input, shape index: {}]
  %s16 = inlined_call_operand.hbm [shape: f32[1,32], index: 16, kind: input, shape index: {}]
  %s17 = inlined_call_operand.hbm [shape: f32[1,32], index: 17, kind: input, shape index: {}]
  %s18 = inlined_call_operand.vmem [shape: f32[32,32], index: 18, kind: output, shape index: {}]
  %s19 = sld [smem:[#allocation0]]
  $region142: #{vitpose_forward.3} parent=0
    _
  %s21 = ssub.s32 1, %s19
  %s22 = scalar_select 0, %s21, %s19
  $region1: #{vitpose_forward.3} parent=0
    #allocation3 [shape = 'u8[98304]{0}', space=vmem, size = 0x18000, scoped, tag = 'input window, operand 1, single buffered']
    #allocation4 [shape = 's32[1]{0}', space=sflag, size = 0x4, scoped, tag = 'scoped memory for vitpose_forward.3']
    #allocation5 [shape = 'u8[512]{0}', space=vmem, size = 0x400, scoped, tag = 'input window, operand 2, single buffered']
    #allocation6 [shape = 's32[1]{0}', space=sflag, size = 0x4, scoped, tag = 'scoped memory for vitpose_forward.3']
    #allocation7 [shape = 'u8[1024]{0}', space=vmem, size = 0x400, scoped, tag = 'input window, operand 4, single buffered']
    #allocation8 [shape = 'u8[1024]{0}', space=vmem, size = 0x400, scoped, tag = 'input window, operand 5, single buffered']
    #allocation9 [shape = 's32[1]{0}', space=sflag, size = 0x4, scoped, tag = 'scoped memory for vitpose_forward.3']
    #allocation10 [shape = 'u8[32768]{0}', space=vmem, size = 0x8000, scoped, tag = 'input window, operand 6, single buffered']
    #allocation11 [shape = 'u8[1024]{0}', space=vmem, size = 0x400, scoped, tag = 'input window, operand 7, single buffered']
    #allocation12 [shape = 's32[1]{0}', space=sflag, size = 0x4, scoped, tag = 'scoped memory for vitpose_forward.3']
    #allocation13 [shape = 'u8[32768]{0}', space=vmem, size = 0x8000, scoped, tag = 'input window, operand 8, single buffered']
    #allocation14 [shape = 'u8[1024]{0}', space=vmem, size = 0x400, scoped, tag = 'input window, operand 9, single buffered']
    #allocation15 [shape = 's32[1]{0}', space=sflag, size = 0x4, scoped, tag = 'scoped memory for vitpose_forward.3']
    #allocation16 [shape = 'u8[1024]{0}', space=vmem, size = 0x400, scoped, tag = 'input window, operand 10, single buffered']
    #allocation17 [shape = 'u8[1024]{0}', space=vmem, size = 0x400, scoped, tag = 'input window, operand 11, single buffered']
    #allocation18 [shape = 's32[1]{0}', space=sflag, size = 0x4, scoped, tag = 'scoped memory for vitpose_forward.3']
    #allocation19 [shape = 'u8[32768]{0}', space=vmem, size = 0x8000, scoped, tag = 'input window, operand 12, single buffered']
    #allocation20 [shape = 'u8[1024]{0}', space=vmem, size = 0x400, scoped, tag = 'input window, operand 13, single buffered']
    #allocation21 [shape = 's32[1]{0}', space=sflag, size = 0x4, scoped, tag = 'scoped memory for vitpose_forward.3']
    #allocation22 [shape = 'u8[1024]{0}', space=vmem, size = 0x400, scoped, tag = 'input window, operand 15, single buffered']
    #allocation23 [shape = 'u8[512]{0}', space=vmem, size = 0x400, scoped, tag = 'input window, operand 16, single buffered']
    #allocation24 [shape = 's32[1]{0}', space=sflag, size = 0x4, scoped, tag = 'scoped memory for vitpose_forward.3']
    #allocation25 [shape = 'u8[512]{0}', space=vmem, size = 0x400, scoped, tag = 'input window, operand 17, single buffered']
    %23 = vsyncpa [#allocation4], 0
    %24 = vsyncpa [#allocation6], 0
    %25 = vsyncpa [#allocation9], 0
    %26 = vsyncpa [#allocation12], 0
    %27 = vsyncpa [#allocation15], 0
    %28 = vsyncpa [#allocation18], 0
    %29 = vsyncpa [#allocation21], 0
    %30 = vsyncpa [#allocation24], 0
    // Predicated region
    $region2: #{vitpose_forward.3} parent=1 // pred_check
      _
    $region3: #{vitpose_forward.3} parent=1 // pred_check_branch
      %32 = sbr.rel (0) target = $region5
    $region4: #{vitpose_forward.3} parent=1 // pred_region
      _
    $region5: #{vitpose_forward.3} parent=1 // pred_fallthru
      _
    // Predicated region
    $region6: #{vitpose_forward.3} parent=1 // pred_check
      _
    $region7: #{vitpose_forward.3} parent=1 // pred_check_branch
      %34 = sbr.rel (0) target = $region9
    $region8: #{vitpose_forward.3} parent=1 // pred_region
      %s36 = ssub.s32 3072, 3072
      %37 = vsyncadd [#allocation4], %s36
      %s38 = sshll.u32 [#allocation3], 4
      %s39 = int_to_ptr.vmem [resolvable:$true] %s38
      %44 = dma.hbm_to_vmem [thread:$0]  %s1, 3072, %s39, [#allocation4], 128, 128, 8
    $region9: #{vitpose_forward.3} parent=1 // pred_fallthru
      _
    // Predicated region
    $region10: #{vitpose_forward.3} parent=1 // pred_check
      _
    $region11: #{vitpose_forward.3} parent=1 // pred_check_branch
      %46 = sbr.rel (0) target = $region13
    $region12: #{vitpose_forward.3} parent=1 // pred_region
      %s48 = ssub.s32 16, 16
      %49 = vsyncadd [#allocation6], %s48
      %s51 = sshll.u32 [#allocation5], 4
      %s52 = int_to_ptr.vmem [resolvable:$true] %s51
      %54 = dma.hbm_to_vmem [thread:$0]  %s2, 16, %s52, [#allocation6]
    $region13: #{vitpose_forward.3} parent=1 // pred_fallthru
      _
    // Predicated region
    $region14: #{vitpose_forward.3} parent=1 // pred_check
      _
    $region15: #{vitpose_forward.3} parent=1 // pred_check_branch
      %56 = sbr.rel (0) target = $region17
    $region16: #{vitpose_forward.3} parent=1 // pred_region
      _
    $region17: #{vitpose_forward.3} parent=1 // pred_fallthru
      _
    // Predicated region
    $region18: #{vitpose_forward.3} parent=1 // pred_check
      _
    $region19: #{vitpose_forward.3} parent=1 // pred_check_branch
      %58 = sbr.rel (0) target = $region21
    $region20: #{vitpose_forward.3} parent=1 // pred_region
      %s60 = ssub.s32 32, 32
      %61 = vsyncadd [#allocation6], %s60
      %s62 = sshll.u32 [#allocation7], 4
      %s63 = int_to_ptr.vmem [resolvable:$true] %s62
      %68 = dma.hbm_to_vmem [thread:$0]  %s4, 32, %s63, [#allocation6], 16, 16, 1
    $region21: #{vitpose_forward.3} parent=1 // pred_fallthru
      _
    // Predicated region
    $region22: #{vitpose_forward.3} parent=1 // pred_check
      _
    $region23: #{vitpose_forward.3} parent=1 // pred_check_branch
      %70 = sbr.rel (0) target = $region25
    $region24: #{vitpose_forward.3} parent=1 // pred_region
      %s72 = ssub.s32 32, 32
      %73 = vsyncadd [#allocation9], %s72
      %s74 = sshll.u32 [#allocation8], 4
      %s75 = int_to_ptr.vmem [resolvable:$true] %s74
      %80 = dma.hbm_to_vmem [thread:$0]  %s5, 32, %s75, [#allocation9], 16, 16, 1
    $region25: #{vitpose_forward.3} parent=1 // pred_fallthru
      _
    // Predicated region
    $region26: #{vitpose_forward.3} parent=1 // pred_check
      _
    $region27: #{vitpose_forward.3} parent=1 // pred_check_branch
      %82 = sbr.rel (0) target = $region29
    $region28: #{vitpose_forward.3} parent=1 // pred_region
      %s84 = ssub.s32 1024, 1024
      %85 = vsyncadd [#allocation9], %s84
      %s86 = sshll.u32 [#allocation10], 4
      %s87 = int_to_ptr.vmem [resolvable:$true] %s86
      %92 = dma.hbm_to_vmem [thread:$0]  %s6, 1024, %s87, [#allocation9], 128, 128, 8
    $region29: #{vitpose_forward.3} parent=1 // pred_fallthru
      _
    // Predicated region
    $region30: #{vitpose_forward.3} parent=1 // pred_check
      _
    $region31: #{vitpose_forward.3} parent=1 // pred_check_branch
      %94 = sbr.rel (0) target = $region33
    $region32: #{vitpose_forward.3} parent=1 // pred_region
      %s96 = ssub.s32 32, 32
      %97 = vsyncadd [#allocation12], %s96
      %s98 = sshll.u32 [#allocation11], 4
      %s99 = int_to_ptr.vmem [resolvable:$true] %s98
      %104 = dma.hbm_to_vmem [thread:$0]  %s7, 32, %s99, [#allocation12], 16, 16, 1
    $region33: #{vitpose_forward.3} parent=1 // pred_fallthru
      _
    // Predicated region
    $region34: #{vitpose_forward.3} parent=1 // pred_check
      _
    $region35: #{vitpose_forward.3} parent=1 // pred_check_branch
      %106 = sbr.rel (0) target = $region37
    $region36: #{vitpose_forward.3} parent=1 // pred_region
      %s108 = ssub.s32 1024, 1024
      %109 = vsyncadd [#allocation12], %s108
      %s110 = sshll.u32 [#allocation13], 4
      %s111 = int_to_ptr.vmem [resolvable:$true] %s110
      %116 = dma.hbm_to_vmem [thread:$0]  %s8, 1024, %s111, [#allocation12], 128, 128, 8
    $region37: #{vitpose_forward.3} parent=1 // pred_fallthru
      _
    // Predicated region
    $region38: #{vitpose_forward.3} parent=1 // pred_check
      _
    $region39: #{vitpose_forward.3} parent=1 // pred_check_branch
      %118 = sbr.rel (0) target = $region41
    $region40: #{vitpose_forward.3} parent=1 // pred_region
      %s120 = ssub.s32 32, 32
      %121 = vsyncadd [#allocation15], %s120
      %s122 = sshll.u32 [#allocation14], 4
      %s123 = int_to_ptr.vmem [resolvable:$true] %s122
      %128 = dma.hbm_to_vmem [thread:$0]  %s9, 32, %s123, [#allocation15], 16, 16, 1
    $region41: #{vitpose_forward.3} parent=1 // pred_fallthru
      _
    // Predicated region
    $region42: #{vitpose_forward.3} parent=1 // pred_check
      _
    $region43: #{vitpose_forward.3} parent=1 // pred_check_branch
      %130 = sbr.rel (0) target = $region45
    $region44: #{vitpose_forward.3} parent=1 // pred_region
      %s132 = ssub.s32 32, 32
      %133 = vsyncadd [#allocation15], %s132
      %s134 = sshll.u32 [#allocation16], 4
      %s135 = int_to_ptr.vmem [resolvable:$true] %s134
      %140 = dma.hbm_to_vmem [thread:$0]  %s10, 32, %s135, [#allocation15], 16, 16, 1
    $region45: #{vitpose_forward.3} parent=1 // pred_fallthru
      _
    // Predicated region
    $region46: #{vitpose_forward.3} parent=1 // pred_check
      _
    $region47: #{vitpose_forward.3} parent=1 // pred_check_branch
      %142 = sbr.rel (0) target = $region49
    $region48: #{vitpose_forward.3} parent=1 // pred_region
      %s144 = ssub.s32 32, 32
      %145 = vsyncadd [#allocation18], %s144
      %s146 = sshll.u32 [#allocation17], 4
      %s147 = int_to_ptr.vmem [resolvable:$true] %s146
      %152 = dma.hbm_to_vmem [thread:$0]  %s11, 32, %s147, [#allocation18], 16, 16, 1
    $region49: #{vitpose_forward.3} parent=1 // pred_fallthru
      _
    // Predicated region
    $region50: #{vitpose_forward.3} parent=1 // pred_check
      _
    $region51: #{vitpose_forward.3} parent=1 // pred_check_branch
      %154 = sbr.rel (0) target = $region53
    $region52: #{vitpose_forward.3} parent=1 // pred_region
      %s156 = ssub.s32 1024, 1024
      %157 = vsyncadd [#allocation18], %s156
      %s158 = sshll.u32 [#allocation19], 4
      %s159 = int_to_ptr.vmem [resolvable:$true] %s158
      %164 = dma.hbm_to_vmem [thread:$0]  %s12, 1024, %s159, [#allocation18], 128, 128, 8
    $region53: #{vitpose_forward.3} parent=1 // pred_fallthru
      _
    // Predicated region
    $region54: #{vitpose_forward.3} parent=1 // pred_check
      _
    $region55: #{vitpose_forward.3} parent=1 // pred_check_branch
      %166 = sbr.rel (0) target = $region57
    $region56: #{vitpose_forward.3} parent=1 // pred_region
      %s168 = ssub.s32 32, 32
      %169 = vsyncadd [#allocation21], %s168
      %s170 = sshll.u32 [#allocation20], 4
      %s171 = int_to_ptr.vmem [resolvable:$true] %s170
      %176 = dma.hbm_to_vmem [thread:$0]  %s13, 32, %s171, [#allocation21], 16, 16, 1
    $region57: #{vitpose_forward.3} parent=1 // pred_fallthru
      _
    // Predicated region
    $region58: #{vitpose_forward.3} parent=1 // pred_check
      _
    $region59: #{vitpose_forward.3} parent=1 // pred_check_branch
      %178 = sbr.rel (0) target = $region61
    $region60: #{vitpose_forward.3} parent=1 // pred_region
      _
    $region61: #{vitpose_forward.3} parent=1 // pred_fallthru
      _
    // Predicated region
    $region62: #{vitpose_forward.3} parent=1 // pred_check
      _
    $region63: #{vitpose_forward.3} parent=1 // pred_check_branch
      %180 = sbr.rel (0) target = $region65
    $region64: #{vitpose_forward.3} parent=1 // pred_region
      %s182 = ssub.s32 32, 32
      %183 = vsyncadd [#allocation21], %s182
      %s184 = sshll.u32 [#allocation22], 4
      %s185 = int_to_ptr.vmem [resolvable:$true] %s184
      %190 = dma.hbm_to_vmem [thread:$0]  %s15, 32, %s185, [#allocation21], 16, 16, 1
    $region65: #{vitpose_forward.3} parent=1 // pred_fallthru
      _
    // Predicated region
    $region66: #{vitpose_forward.3} parent=1 // pred_check
      _
    $region67: #{vitpose_forward.3} parent=1 // pred_check_branch
      %192 = sbr.rel (0) target = $region69
    $region68: #{vitpose_forward.3} parent=1 // pred_region
      %s194 = ssub.s32 16, 16
      %195 = vsyncadd [#allocation24], %s194
      %s197 = sshll.u32 [#allocation23], 4
      %s198 = int_to_ptr.vmem [resolvable:$true] %s197
      %200 = dma.hbm_to_vmem [thread:$0]  %s16, 16, %s198, [#allocation24]
    $region69: #{vitpose_forward.3} parent=1 // pred_fallthru
      _
    // Predicated region
    $region70: #{vitpose_forward.3} parent=1 // pred_check
      _
    $region71: #{vitpose_forward.3} parent=1 // pred_check_branch
      %202 = sbr.rel (0) target = $region73
    $region72: #{vitpose_forward.3} parent=1 // pred_region
      %s204 = ssub.s32 16, 16
      %205 = vsyncadd [#allocation24], %s204
      %s207 = sshll.u32 [#allocation25], 4
      %s208 = int_to_ptr.vmem [resolvable:$true] %s207
      %210 = dma.hbm_to_vmem [thread:$0]  %s17, 16, %s208, [#allocation24]
    $region73: #{vitpose_forward.3} parent=1 // pred_fallthru
      _
    // Predicated region
    $region74: #{vitpose_forward.3} parent=1 // pred_check
      _
    $region75: #{vitpose_forward.3} parent=1 // pred_check_branch
      %212 = sbr.rel (0) target = $region77
    $region76: #{vitpose_forward.3} parent=1 // pred_region
      %213 = dma.done [#allocation4], 3072
    $region77: #{vitpose_forward.3} parent=1 // pred_fallthru
      _
    // Predicated region
    $region78: #{vitpose_forward.3} parent=1 // pred_check
      _
    $region79: #{vitpose_forward.3} parent=1 // pred_check_branch
      %215 = sbr.rel (0) target = $region81
    $region80: #{vitpose_forward.3} parent=1 // pred_region
      %216 = dma.done [#allocation6], 16
    $region81: #{vitpose_forward.3} parent=1 // pred_fallthru
      _
    // Predicated region
    $region82: #{vitpose_forward.3} parent=1 // pred_check
      _
    $region83: #{vitpose_forward.3} parent=1 // pred_check_branch
      %218 = sbr.rel (0) target = $region85
    $region84: #{vitpose_forward.3} parent=1 // pred_region
      %219 = dma.done [#allocation6], 32
    $region85: #{vitpose_forward.3} parent=1 // pred_fallthru
      _
    // Predicated region
    $region86: #{vitpose_forward.3} parent=1 // pred_check
      _
    $region87: #{vitpose_forward.3} parent=1 // pred_check_branch
      %221 = sbr.rel (0) target = $region89
    $region88: #{vitpose_forward.3} parent=1 // pred_region
      %222 = dma.done [#allocation9], 32
    $region89: #{vitpose_forward.3} parent=1 // pred_fallthru
      _
    // Predicated region
    $region90: #{vitpose_forward.3} parent=1 // pred_check
      _
    $region91: #{vitpose_forward.3} parent=1 // pred_check_branch
      %224 = sbr.rel (0) target = $region93
    $region92: #{vitpose_forward.3} parent=1 // pred_region
      %225 = dma.done [#allocation9], 1024
    $region93: #{vitpose_forward.3} parent=1 // pred_fallthru
      _
    // Predicated region
    $region94: #{vitpose_forward.3} parent=1 // pred_check
      _
    $region95: #{vitpose_forward.3} parent=1 // pred_check_branch
      %227 = sbr.rel (0) target = $region97
    $region96: #{vitpose_forward.3} parent=1 // pred_region
      %228 = dma.done [#allocation12], 32
    $region97: #{vitpose_forward.3} parent=1 // pred_fallthru
      _
    // Predicated region
    $region98: #{vitpose_forward.3} parent=1 // pred_check
      _
    $region99: #{vitpose_forward.3} parent=1 // pred_check_branch
      %230 = sbr.rel (0) target = $region101
    $region100: #{vitpose_forward.3} parent=1 // pred_region
      %231 = dma.done [#allocation12], 1024
    $region101: #{vitpose_forward.3} parent=1 // pred_fallthru
      _
    // Predicated region
    $region102: #{vitpose_forward.3} parent=1 // pred_check
      _
    $region103: #{vitpose_forward.3} parent=1 // pred_check_branch
      %233 = sbr.rel (0) target = $region105
    $region104: #{vitpose_forward.3} parent=1 // pred_region
      %234 = dma.done [#allocation15], 32
    $region105: #{vitpose_forward.3} parent=1 // pred_fallthru
      _
    // Predicated region
    $region106: #{vitpose_forward.3} parent=1 // pred_check
      _
    $region107: #{vitpose_forward.3} parent=1 // pred_check_branch
      %236 = sbr.rel (0) target = $region109
    $region108: #{vitpose_forward.3} parent=1 // pred_region
      %237 = dma.done [#allocation15], 32
    $region109: #{vitpose_forward.3} parent=1 // pred_fallthru
      _
    // Predicated region
    $region110: #{vitpose_forward.3} parent=1 // pred_check
      _
    $region111: #{vitpose_forward.3} parent=1 // pred_check_branch
      %239 = sbr.rel (0) target = $region113
    $region112: #{vitpose_forward.3} parent=1 // pred_region
      %240 = dma.done [#allocation18], 32
    $region113: #{vitpose_forward.3} parent=1 // pred_fallthru
      _
    // Predicated region
    $region114: #{vitpose_forward.3} parent=1 // pred_check
      _
    $region115: #{vitpose_forward.3} parent=1 // pred_check_branch
      %242 = sbr.rel (0) target = $region117
    $region116: #{vitpose_forward.3} parent=1 // pred_region
      %243 = dma.done [#allocation18], 1024
    $region117: #{vitpose_forward.3} parent=1 // pred_fallthru
      _
    // Predicated region
    $region118: #{vitpose_forward.3} parent=1 // pred_check
      _
    $region119: #{vitpose_forward.3} parent=1 // pred_check_branch
      %245 = sbr.rel (0) target = $region121
    $region120: #{vitpose_forward.3} parent=1 // pred_region
      %246 = dma.done [#allocation21], 32
    $region121: #{vitpose_forward.3} parent=1 // pred_fallthru
      _
    // Predicated region
    $region122: #{vitpose_forward.3} parent=1 // pred_check
      _
    $region123: #{vitpose_forward.3} parent=1 // pred_check_branch
      %248 = sbr.rel (0) target = $region125
    $region124: #{vitpose_forward.3} parent=1 // pred_region
      %249 = dma.done [#allocation21], 32
    $region125: #{vitpose_forward.3} parent=1 // pred_fallthru
      _
    // Predicated region
    $region126: #{vitpose_forward.3} parent=1 // pred_check
      _
    $region127: #{vitpose_forward.3} parent=1 // pred_check_branch
      %251 = sbr.rel (0) target = $region129
    $region128: #{vitpose_forward.3} parent=1 // pred_region
      %252 = dma.done [#allocation24], 16
    $region129: #{vitpose_forward.3} parent=1 // pred_fallthru
      _
    // Predicated region
    $region130: #{vitpose_forward.3} parent=1 // pred_check
      _
    $region131: #{vitpose_forward.3} parent=1 // pred_check_branch
      %254 = sbr.rel (0) target = $region133
    $region132: #{vitpose_forward.3} parent=1 // pred_region
      %255 = dma.done [#allocation24], 16
    $region133: #{vitpose_forward.3} parent=1 // pred_fallthru
      _
    %v256 = vld [vmem:[%s0] sm:$0xff]
    %v257 = vld [vmem:[%s0 + $0x8] sm:$0xff]
    %v258 = vld [vmem:[%s0 + $0x10] sm:$0xff]
    %v259 = vld [vmem:[%s0 + $0x18] sm:$0xff]
    %v260 = vld [vmem:[%s0 + $0x20] sm:$0xff]
    %v261 = vld [vmem:[%s0 + $0x28] sm:$0xff]
    %v262 = vld [vmem:[%s0 + $0x30] sm:$0xff]
    %v263 = vld [vmem:[%s0 + $0x38] sm:$0xff]
    %v264 = vld [vmem:[#allocation3] sm:$0xff]
    %v265 = vld [vmem:[#allocation3 + $0x8] sm:$0xff]
    %v266 = vld [vmem:[#allocation3 + $0x10] sm:$0xff]
    %v267 = vld [vmem:[#allocation3 + $0x18] sm:$0xff]
    %v268 = vld [vmem:[#allocation3 + $0x20] sm:$0xff]
    %v269 = vld [vmem:[#allocation3 + $0x28] sm:$0xff]
    %v270 = vld [vmem:[#allocation3 + $0x30] sm:$0xff]
    %v271 = vld [vmem:[#allocation3 + $0x38] sm:$0xff]
    %v272 = vld [vmem:[#allocation3 + $0x40] sm:$0xff]
    %v273 = vld [vmem:[#allocation3 + $0x48] sm:$0xff]
    %v274 = vld [vmem:[#allocation3 + $0x50] sm:$0xff]
    %v275 = vld [vmem:[#allocation3 + $0x58] sm:$0xff]
    %v276 = vld [vmem:[#allocation3 + $0x60] sm:$0xff]
    %v277 = vld [vmem:[#allocation3 + $0x68] sm:$0xff]
    %v278 = vld [vmem:[#allocation3 + $0x70] sm:$0xff]
    %v279 = vld [vmem:[#allocation3 + $0x78] sm:$0xff]
    %v280 = vld [vmem:[#allocation3 + $0x80] sm:$0xff]
    %v281 = vld [vmem:[#allocation3 + $0x88] sm:$0xff]
    %v282 = vld [vmem:[#allocation3 + $0x90] sm:$0xff]
    %v283 = vld [vmem:[#allocation3 + $0x98] sm:$0xff]
    %v284 = vld [vmem:[#allocation3 + $0xa0] sm:$0xff]
    %v285 = vld [vmem:[#allocation3 + $0xa8] sm:$0xff]
    %v286 = vld [vmem:[#allocation3 + $0xb0] sm:$0xff]
    %v287 = vld [vmem:[#allocation3 + $0xb8] sm:$0xff]
    %v288 = vld [vmem:[#allocation5] sm:$0x1]
    %v290 = vlaneseq
    %v291 = vshrl.u32 %v290, 7
    %v292 = vsub.s32 0, %v291
    %v293 = vrot.slane %v288, %v292
    %vm295 = vcmask 523264
    %v297 = vsel %vm295, %v257, 0
    %v300 = vsel %vm295, %v259, 0
    %v303 = vsel %vm295, %v261, 0
    %v306 = vsel %vm295, %v263, 0
    %308 = vmatprep.subr.mxu0 0.0
    %309 = vmatpush1.msra.mxu0 %v264
    %310 = vmatprep.subr.mxu0 0.0
    %311 = vmatpush1.msra.mxu0 %v265
    %312 = vmatprep.subr.mxu0 0.0
    %313 = vmatpush1.msra.mxu0 %v266
    %314 = vmatprep.subr.mxu0 0.0
    %315 = vmatpush1.msra.mxu0 %v267
    %316 = vmatprep.subr.mxu0 0.0
    %317 = vmatpush1.msra.mxu0 %v268
    %318 = vmatprep.subr.mxu0 0.0
    %319 = vmatpush1.msra.mxu0 %v269
    %320 = vmatprep.subr.mxu0 0.0
    %321 = vmatpush1.msra.mxu0 %v270
    %322 = vmatprep.subr.mxu0 0.0
    %323 = vmatpush1.msra.mxu0 %v271
    %324 = vmatprep.subr.mxu0 0.0
    %325 = vmatpush1.msra.mxu0 %v272
    %326 = vmatprep.subr.mxu0 0.0
    %327 = vmatpush1.msra.mxu0 %v273
    %328 = vmatprep.subr.mxu0 0.0
    %329 = vmatpush1.msra.mxu0 %v274
    %330 = vmatprep.subr.mxu0 0.0
    %331 = vmatpush1.msra.mxu0 %v275
    %332 = vmatprep.subr.mxu0 0.0
    %333 = vmatpush1.msra.mxu0 %v276
    %334 = vmatprep.subr.mxu0 0.0
    %335 = vmatpush1.msra.mxu0 %v277
    %336 = vmatprep.subr.mxu0 0.0
    %337 = vmatpush1.msra.mxu0 %v278
    %338 = vmatprep.subr.mxu0 0.0
    %339 = vmatpush1.msra.mxu0 %v279
    %340 = vmatprep.subr.mxu0 0.0
    %341 = vmatpush1.msra.mxu0 %v280
    %342 = vmatprep.subr.mxu0 0.0
    %343 = vmatpush1.msra.mxu0 %v281
    %344 = vmatprep.subr.mxu0 0.0
    %345 = vmatpush1.msra.mxu0 %v282
    %346 = vmatprep.subr.mxu0 0.0
    %347 = vmatpush1.msra.mxu0 %v283
    %348 = vmatprep.subr.mxu0 0.0
    %349 = vmatpush1.msra.mxu0 %v284
    %350 = vmatprep.subr.mxu0 0.0
    %351 = vmatpush1.msra.mxu0 %v285
    %352 = vmatprep.subr.mxu0 0.0
    %353 = vmatpush1.msra.mxu0 %v286
    %354 = vmatprep.subr.mxu0 0.0
    %355 = vmatpush1.msra.mxu0 %v287
    %356 = vmatprep.subr.mxu0 0.0
    %357 = vmatpush1.msra.mxu0 0.0
    %358 = vmatprep.subr.mxu0 0.0
    %359 = vmatpush1.msra.mxu0 0.0
    %360 = vmatprep.subr.mxu0 0.0
    %361 = vmatpush1.msra.mxu0 0.0
    %362 = vmatprep.subr.mxu0 0.0
    %363 = vmatpush1.msra.mxu0 0.0
    %364 = vmatprep.subr.mxu0 0.0
    %365 = vmatpush1.msra.mxu0 0.0
    %366 = vmatprep.subr.mxu0 0.0
    %367 = vmatpush1.msra.mxu0 0.0
    %368 = vmatprep.subr.mxu0 0.0
    %369 = vmatpush1.msra.mxu0 0.0
    %370 = vmatprep.subr.mxu0 0.0
    %371 = vmatpush1.msra.mxu0 0.0
    %372 = vmatprep.mubr.f32.mxu0 %v297
    %373 = vmatmul.mubr.f32.gmra.mrb[0].mxu0 %v256
    %v374 = vpop.f32.mrb[0].mxu0
    %v375 = vadd.f32 %v293, %v374
    %v376 = vpop.f32.mrb[0].mxu0
    %377 = vmatprep.mubr.f32.mxu0 %v300
    %378 = vmatmul.mubr.f32.gmra.mrb[0].mxu0 %v258
    %v379 = vpop.f32.mrb[0].mxu0
    %v380 = vadd.f32 %v293, %v379
    %v381 = vpop.f32.mrb[0].mxu0
    %382 = vmatprep.mubr.f32.mxu0 %v303
    %383 = vmatmul.mubr.f32.gmra.mrb[0].mxu0 %v260
    %v384 = vpop.f32.mrb[0].mxu0
    %v385 = vadd.f32 %v293, %v384
    %v386 = vpop.f32.mrb[0].mxu0
    %387 = vmatprep.mubr.f32.mxu0 %v306
    %388 = vmatmul.mubr.f32.gmra.mrb[0].mxu0 %v262
    %v389 = vpop.f32.mrb[0].mxu0
    %v390 = vadd.f32 %v293, %v389
    %v391 = vpop.f32.mrb[0].mxu0
    %392 = vdwg.mxu0
    %v393 = vld [vmem:[%s3] sm:$0xff]
    %v394 = vld [vmem:[%s3 + $0x8] sm:$0xff]
    %v395 = vld [vmem:[%s3 + $0x10] sm:$0xff]
    %v396 = vld [vmem:[%s3 + $0x18] sm:$0xff]
    %v397 = vadd.f32 %v375, %v393
    %v398 = vadd.f32 %v380, %v394
    %v399 = vadd.f32 %v385, %v395
    %v400 = vadd.f32 %v390, %v396
    %v401 = vld [vmem:[#allocation7] sm:$0x1]
    %v402 = vld [vmem:[#allocation8] sm:$0x1]
    %vm403 = vcmask 261120
    %v404 = vsel %vm403, %v397, 0.0
    %405 = vadd.xlane.f32.xlu0 %v404
    %v406 = vpop.xlane.xlu0 %405
    %v407 = vsel %vm403, %v398, 0.0
    %408 = vadd.xlane.f32.xlu0 %v407
    %v409 = vpop.xlane.xlu0 %408
    %v410 = vsel %vm403, %v399, 0.0
    %411 = vadd.xlane.f32.xlu0 %v410
    %v412 = vpop.xlane.xlu0 %411
    %v413 = vsel %vm403, %v400, 0.0
    %414 = vadd.xlane.f32.xlu0 %v413
    %v415 = vpop.xlane.xlu0 %414
    %v416 = vrcp.pop 32.0
    %v417 = vmul.f32 %v406, %v416
    %v418 = vmul.f32 %v409, %v416
    %v419 = vmul.f32 %v412, %v416
    %v420 = vmul.f32 %v415, %v416
    %v421 = vsub.f32 %v397, %v417
    %v422 = vsub.f32 %v398, %v418
    %v423 = vsub.f32 %v399, %v419
    %v424 = vsub.f32 %v400, %v420
    %v425 = vmul.f32 %v421, %v421
    %v426 = vmul.f32 %v422, %v422
    %v427 = vmul.f32 %v423, %v423
    %v428 = vmul.f32 %v424, %v424
    %v429 = vsel %vm403, %v425, 0.0
    %430 = vadd.xlane.f32.xlu0 %v429
    %v431 = vpop.xlane.xlu0 %430
    %v432 = vsel %vm403, %v426, 0.0
    %433 = vadd.xlane.f32.xlu0 %v432
    %v434 = vpop.xlane.xlu0 %433
    %v435 = vsel %vm403, %v427, 0.0
    %436 = vadd.xlane.f32.xlu0 %v435
    %v437 = vpop.xlane.xlu0 %436
    %v438 = vsel %vm403, %v428, 0.0
    %439 = vadd.xlane.f32.xlu0 %v438
    %v440 = vpop.xlane.xlu0 %439
    %v441 = vmul.f32 %v431, %v416
    %v442 = vmul.f32 %v434, %v416
    %v443 = vmul.f32 %v437, %v416
    %v444 = vmul.f32 %v440, %v416
    %v445 = vadd.f32 %v441, 1e-06
    %v446 = vadd.f32 %v442, 1e-06
    %v447 = vadd.f32 %v443, 1e-06
    %v448 = vadd.f32 %v444, 1e-06
    %v449 = vrsqrt.pop %v445
    %v450 = vrsqrt.pop %v446
    %v451 = vrsqrt.pop %v447
    %v452 = vrsqrt.pop %v448
    %v453 = vmul.f32 %v421, %v449
    %v454 = vmul.f32 %v422, %v450
    %v455 = vmul.f32 %v423, %v451
    %v456 = vmul.f32 %v424, %v452
    %v458 = vlaneseq
    %v459 = vshrl.u32 %v458, 7
    %v460 = vsub.s32 0, %v459
    %v461 = vrot.slane %v401, %v460
    %v463 = vmul.f32 %v453, %v461
    %v464 = vmul.f32 %v454, %v461
    %v465 = vmul.f32 %v455, %v461
    %v466 = vmul.f32 %v456, %v461
    %v468 = vlaneseq
    %v469 = vshrl.u32 %v468, 7
    %v470 = vsub.s32 0, %v469
    %v471 = vrot.slane %v402, %v470
    %v473 = vadd.f32 %v463, %v471
    %v474 = vadd.f32 %v464, %v471
    %v475 = vadd.f32 %v465, %v471
    %v476 = vadd.f32 %v466, %v471
    %v477 = vld [vmem:[#allocation10] sm:$0xff]
    %v478 = vld [vmem:[#allocation10 + $0x8] sm:$0xff]
    %v479 = vld [vmem:[#allocation10 + $0x10] sm:$0xff]
    %v480 = vld [vmem:[#allocation10 + $0x18] sm:$0xff]
    %v481 = vld [vmem:[#allocation11] sm:$0x1]
    %v483 = vlaneseq
    %v484 = vshrl.u32 %v483, 7
    %v485 = vsub.s32 0, %v484
    %v486 = vrot.slane %v481, %v485
    %v489 = vsel %vm403, %v473, 0
    %v492 = vsel %vm403, %v474, 0
    %v495 = vsel %vm403, %v475, 0
    %v498 = vsel %vm403, %v476, 0
    %500 = vmatprep.subr.mxu0 0.0
    %501 = vmatpush1.msra.mxu0 %v477
    %502 = vmatprep.subr.mxu0 0.0
    %503 = vmatpush1.msra.mxu0 %v478
    %504 = vmatprep.subr.mxu0 0.0
    %505 = vmatpush1.msra.mxu0 %v479
    %506 = vmatprep.subr.mxu0 0.0
    %507 = vmatpush1.msra.mxu0 %v480
    %508 = vmatprep.subr.mxu0 0.0
    %509 = vmatpush1.msra.mxu0 0.0
    %510 = vmatprep.subr.mxu0 0.0
    %511 = vmatpush1.msra.mxu0 0.0
    %512 = vmatprep.subr.mxu0 0.0
    %513 = vmatpush1.msra.mxu0 0.0
    %514 = vmatprep.subr.mxu0 0.0
    %515 = vmatpush1.msra.mxu0 0.0
    %516 = vmatprep.subr.mxu0 0.0
    %517 = vmatpush1.msra.mxu0 0.0
    %518 = vmatprep.subr.mxu0 0.0
    %519 = vmatpush1.msra.mxu0 0.0
    %520 = vmatprep.subr.mxu0 0.0
    %521 = vmatpush1.msra.mxu0 0.0
    %522 = vmatprep.subr.mxu0 0.0
    %523 = vmatpush1.msra.mxu0 0.0
    %524 = vmatprep.subr.mxu0 0.0
    %525 = vmatpush1.msra.mxu0 0.0
    %526 = vmatprep.subr.mxu0 0.0
    %527 = vmatpush1.msra.mxu0 0.0
    %528 = vmatprep.subr.mxu0 0.0
    %529 = vmatpush1.msra.mxu0 0.0
    %530 = vmatprep.subr.mxu0 0.0
    %531 = vmatpush1.msra.mxu0 0.0
    %532 = vmatprep.subr.mxu0 0.0
    %533 = vmatpush1.msra.mxu0 0.0
    %534 = vmatprep.subr.mxu0 0.0
    %535 = vmatpush1.msra.mxu0 0.0
    %536 = vmatprep.subr.mxu0 0.0
    %537 = vmatpush1.msra.mxu0 0.0
    %538 = vmatprep.subr.mxu0 0.0
    %539 = vmatpush1.msra.mxu0 0.0
    %540 = vmatprep.subr.mxu0 0.0
    %541 = vmatpush1.msra.mxu0 0.0
    %542 = vmatprep.subr.mxu0 0.0
    %543 = vmatpush1.msra.mxu0 0.0
    %544 = vmatprep.subr.mxu0 0.0
    %545 = vmatpush1.msra.mxu0 0.0
    %546 = vmatprep.subr.mxu0 0.0
    %547 = vmatpush1.msra.mxu0 0.0
    %548 = vmatprep.subr.mxu0 0.0
    %549 = vmatpush1.msra.mxu0 0.0
    %550 = vmatprep.subr.mxu0 0.0
    %551 = vmatpush1.msra.mxu0 0.0
    %552 = vmatprep.subr.mxu0 0.0
    %553 = vmatpush1.msra.mxu0 0.0
    %554 = vmatprep.subr.mxu0 0.0
    %555 = vmatpush1.msra.mxu0 0.0
    %556 = vmatprep.subr.mxu0 0.0
    %557 = vmatpush1.msra.mxu0 0.0
    %558 = vmatprep.subr.mxu0 0.0
    %559 = vmatpush1.msra.mxu0 0.0
    %560 = vmatprep.subr.mxu0 0.0
    %561 = vmatpush1.msra.mxu0 0.0
    %562 = vmatprep.subr.mxu0 0.0
    %563 = vmatpush1.msra.mxu0 0.0
    %564 = vmatprep.mubr.f32.mxu0 0.0
    %565 = vmatmul.mubr.f32.gmra.mrb[0].mxu0 %v489
    %v566 = vpop.f32.mrb[0].mxu0
    %v567 = vadd.f32 %v486, %v566
    %v568 = vpop.f32.mrb[0].mxu0
    %569 = vmatprep.mubr.f32.mxu0 0.0
    %570 = vmatmul.mubr.f32.gmra.mrb[0].mxu0 %v492
    %v571 = vpop.f32.mrb[0].mxu0
    %v572 = vadd.f32 %v486, %v571
    %v573 = vpop.f32.mrb[0].mxu0
    %574 = vmatprep.mubr.f32.mxu0 0.0
    %575 = vmatmul.mubr.f32.gmra.mrb[0].mxu0 %v495
    %v576 = vpop.f32.mrb[0].mxu0
    %v577 = vadd.f32 %v486, %v576
    %v578 = vpop.f32.mrb[0].mxu0
    %579 = vmatprep.mubr.f32.mxu0 0.0
    %580 = vmatmul.mubr.f32.gmra.mrb[0].mxu0 %v498
    %v581 = vpop.f32.mrb[0].mxu0
    %v582 = vadd.f32 %v486, %v581
    %v583 = vpop.f32.mrb[0].mxu0
    %584 = vdwg.mxu0
    %587 = vrot.lane.b32.xlu0 %v567, 96
    %v588 = vpop.permute.xlu0 %587
    %589 = vrot.lane.b32.xlu0 %v572, 96
    %v590 = vpop.permute.xlu0 %589
    %vm591 = vcmask 64512
    %v592 = vsel %vm591, %v567, 0
    %v594 = vsel %vm591, %v572, 0
    %v596 = vsel %vm591, %v588, 0
    %v598 = vsel %vm591, %v590, 0
    %600 = vmatprep.subr.mxu0 0.0
    %601 = vmatpush1.xpose.msra.mxu0 %v596
    %602 = vmatprep.subr.mxu0 0.0
    %603 = vmatpush1.xpose.msra.mxu0 %v598
    %604 = vmatprep.subr.mxu0 0.0
    %605 = vmatpush1.xpose.msra.mxu0 0.0
    %606 = vmatprep.subr.mxu0 0.0
    %607 = vmatpush1.xpose.msra.mxu0 0.0
    %608 = vmatprep.subr.mxu0 0.0
    %609 = vmatpush1.xpose.msra.mxu0 0.0
    %610 = vmatprep.subr.mxu0 0.0
    %611 = vmatpush1.xpose.msra.mxu0 0.0
    %612 = vmatprep.subr.mxu0 0.0
    %613 = vmatpush1.xpose.msra.mxu0 0.0
    %614 = vmatprep.subr.mxu0 0.0
    %615 = vmatpush1.xpose.msra.mxu0 0.0
    %616 = vmatprep.subr.mxu0 0.0
    %617 = vmatpush1.xpose.msra.mxu0 0.0
    %618 = vmatprep.subr.mxu0 0.0
    %619 = vmatpush1.xpose.msra.mxu0 0.0
    %620 = vmatprep.subr.mxu0 0.0
    %621 = vmatpush1.xpose.msra.mxu0 0.0
    %622 = vmatprep.subr.mxu0 0.0
    %623 = vmatpush1.xpose.msra.mxu0 0.0
    %624 = vmatprep.subr.mxu0 0.0
    %625 = vmatpush1.xpose.msra.mxu0 0.0
    %626 = vmatprep.subr.mxu0 0.0
    %627 = vmatpush1.xpose.msra.mxu0 0.0
    %628 = vmatprep.subr.mxu0 0.0
    %629 = vmatpush1.xpose.msra.mxu0 0.0
    %630 = vmatprep.subr.mxu0 0.0
    %631 = vmatpush1.xpose.msra.mxu0 0.0
    %632 = vmatprep.subr.mxu0 0.0
    %633 = vmatpush1.xpose.msra.mxu0 0.0
    %634 = vmatprep.subr.mxu0 0.0
    %635 = vmatpush1.xpose.msra.mxu0 0.0
    %636 = vmatprep.subr.mxu0 0.0
    %637 = vmatpush1.xpose.msra.mxu0 0.0
    %638 = vmatprep.subr.mxu0 0.0
    %639 = vmatpush1.xpose.msra.mxu0 0.0
    %640 = vmatprep.subr.mxu0 0.0
    %641 = vmatpush1.xpose.msra.mxu0 0.0
    %642 = vmatprep.subr.mxu0 0.0
    %643 = vmatpush1.xpose.msra.mxu0 0.0
    %644 = vmatprep.subr.mxu0 0.0
    %645 = vmatpush1.xpose.msra.mxu0 0.0
    %646 = vmatprep.subr.mxu0 0.0
    %647 = vmatpush1.xpose.msra.mxu0 0.0
    %648 = vmatprep.subr.mxu0 0.0
    %649 = vmatpush1.xpose.msra.mxu0 0.0
    %650 = vmatprep.subr.mxu0 0.0
    %651 = vmatpush1.xpose.msra.mxu0 0.0
    %652 = vmatprep.subr.mxu0 0.0
    %653 = vmatpush1.xpose.msra.mxu0 0.0
    %654 = vmatprep.subr.mxu0 0.0
    %655 = vmatpush1.xpose.msra.mxu0 0.0
    %656 = vmatprep.subr.mxu0 0.0
    %657 = vmatpush1.xpose.msra.mxu0 0.0
    %658 = vmatprep.subr.mxu0 0.0
    %659 = vmatpush1.xpose.msra.mxu0 0.0
    %660 = vmatprep.subr.mxu0 0.0
    %661 = vmatpush1.xpose.msra.mxu0 0.0
    %662 = vmatprep.subr.mxu0 0.0
    %663 = vmatpush1.xpose.msra.mxu0 0.0
    %664 = vmatprep.mubr.f32.mxu0 0.0
    %665 = vmatmul.mubr.f32.gmra.mrb[0].mxu0 %v592
    %v666 = vpop.f32.mrb[0].mxu0
    %v667 = vadd.f32 0.0, %v666
    %v668 = vpop.f32.mrb[0].mxu0
    %669 = vmatprep.mubr.f32.mxu0 0.0
    %670 = vmatmul.mubr.f32.gmra.mrb[0].mxu0 %v594
    %v671 = vpop.f32.mrb[0].mxu0
    %v672 = vadd.f32 0.0, %v671
    %v673 = vpop.f32.mrb[0].mxu0
    %674 = vdwg.mxu0
    %v675 = vmul.f32 %v667, 0.35355338
    %v676 = vmul.f32 %v672, 0.35355338
    %vm677 = vcmask 130048
    %v678 = vsel %vm677, %v675, -inf
    %679 = vmax.xlane.f32.xlu0 %v678
    %v680 = vpop.xlane.xlu0 %679
    %v681 = vsel %vm677, %v676, -inf
    %682 = vmax.xlane.f32.xlu0 %v681
    %v683 = vpop.xlane.xlu0 %682
    %v684 = vsub.f32 %v675, %v680
    %v685 = vsub.f32 %v676, %v683
    %v686 = vmul.f32 %v684, 1.442695
    %v687 = vpow.pop %v686
    %v688 = vmul.f32 %v685, 1.442695
    %v689 = vpow.pop %v688
    %v690 = vsel %vm677, %v687, 0.0
    %691 = vadd.xlane.f32.xlu0 %v690
    %v692 = vpop.xlane.xlu0 %691
    %v693 = vsel %vm677, %v689, 0.0
    %694 = vadd.xlane.f32.xlu0 %v693
    %v695 = vpop.xlane.xlu0 %694
    %v696 = vrcp.pop %v692
    %v697 = vrcp.pop %v695
    %v698 = vmul.f32 %v687, %v696
    %v699 = vmul.f32 %v689, %v697
    %700 = vrot.lane.b32.xlu0 %v567, 64
    %v701 = vpop.permute.xlu0 %700
    %702 = vrot.lane.b32.xlu0 %v572, 64
    %v703 = vpop.permute.xlu0 %702
    %v707 = vsel %vm677, %v698, 0
    %v710 = vsel %vm677, %v699, 0
    %712 = vmatprep.subr.mxu0 0.0
    %713 = vmatpush1.msra.mxu0 %v701
    %714 = vmatprep.subr.mxu0 0.0
    %715 = vmatpush1.msra.mxu0 %v703
    %716 = vmatprep.subr.mxu0 0.0
    %717 = vmatpush1.msra.mxu0 0.0
    %718 = vmatprep.subr.mxu0 0.0
    %719 = vmatpush1.msra.mxu0 0.0
    %720 = vmatprep.subr.mxu0 0.0
    %721 = vmatpush1.msra.mxu0 0.0
    %722 = vmatprep.subr.mxu0 0.0
    %723 = vmatpush1.msra.mxu0 0.0
    %724 = vmatprep.subr.mxu0 0.0
    %725 = vmatpush1.msra.mxu0 0.0
    %726 = vmatprep.subr.mxu0 0.0
    %727 = vmatpush1.msra.mxu0 0.0
    %728 = vmatprep.subr.mxu0 0.0
    %729 = vmatpush1.msra.mxu0 0.0
    %730 = vmatprep.subr.mxu0 0.0
    %731 = vmatpush1.msra.mxu0 0.0
    %732 = vmatprep.subr.mxu0 0.0
    %733 = vmatpush1.msra.mxu0 0.0
    %734 = vmatprep.subr.mxu0 0.0
    %735 = vmatpush1.msra.mxu0 0.0
    %736 = vmatprep.subr.mxu0 0.0
    %737 = vmatpush1.msra.mxu0 0.0
    %738 = vmatprep.subr.mxu0 0.0
    %739 = vmatpush1.msra.mxu0 0.0
    %740 = vmatprep.subr.mxu0 0.0
    %741 = vmatpush1.msra.mxu0 0.0
    %742 = vmatprep.subr.mxu0 0.0
    %743 = vmatpush1.msra.mxu0 0.0
    %744 = vmatprep.subr.mxu0 0.0
    %745 = vmatpush1.msra.mxu0 0.0
    %746 = vmatprep.subr.mxu0 0.0
    %747 = vmatpush1.msra.mxu0 0.0
    %748 = vmatprep.subr.mxu0 0.0
    %749 = vmatpush1.msra.mxu0 0.0
    %750 = vmatprep.subr.mxu0 0.0
    %751 = vmatpush1.msra.mxu0 0.0
    %752 = vmatprep.subr.mxu0 0.0
    %753 = vmatpush1.msra.mxu0 0.0
    %754 = vmatprep.subr.mxu0 0.0
    %755 = vmatpush1.msra.mxu0 0.0
    %756 = vmatprep.subr.mxu0 0.0
    %757 = vmatpush1.msra.mxu0 0.0
    %758 = vmatprep.subr.mxu0 0.0
    %759 = vmatpush1.msra.mxu0 0.0
    %760 = vmatprep.subr.mxu0 0.0
    %761 = vmatpush1.msra.mxu0 0.0
    %762 = vmatprep.subr.mxu0 0.0
    %763 = vmatpush1.msra.mxu0 0.0
    %764 = vmatprep.subr.mxu0 0.0
    %765 = vmatpush1.msra.mxu0 0.0
    %766 = vmatprep.subr.mxu0 0.0
    %767 = vmatpush1.msra.mxu0 0.0
    %768 = vmatprep.subr.mxu0 0.0
    %769 = vmatpush1.msra.mxu0 0.0
    %770 = vmatprep.subr.mxu0 0.0
    %771 = vmatpush1.msra.mxu0 0.0
    %772 = vmatprep.subr.mxu0 0.0
    %773 = vmatpush1.msra.mxu0 0.0
    %774 = vmatprep.subr.mxu0 0.0
    %775 = vmatpush1.msra.mxu0 0.0
    %776 = vmatprep.mubr.f32.mxu0 0.0
    %777 = vmatmul.mubr.f32.gmra.mrb[0].mxu0 %v707
    %v778 = vpop.f32.mrb[0].mxu0
    %v779 = vadd.f32 0.0, %v778
    %v780 = vpop.f32.mrb[0].mxu0
    %781 = vmatprep.mubr.f32.mxu0 0.0
    %782 = vmatmul.mubr.f32.gmra.mrb[0].mxu0 %v710
    %v783 = vpop.f32.mrb[0].mxu0
    %v784 = vadd.f32 0.0, %v783
    %v785 = vpop.f32.mrb[0].mxu0
    %786 = vdwg.mxu0
    %787 = vst.msk [vmem:[#allocation2] sm:$0xff] %vm591, %v779
    %788 = vst.msk [vmem:[#allocation2 + $0x8] sm:$0xff] %vm591, %v784
    %789 = vrot.lane.b32.xlu0 %v567, 120
    %v790 = vpop.permute.xlu0 %789
    %791 = vrot.lane.b32.xlu0 %v572, 120
    %v792 = vpop.permute.xlu0 %791
    %793 = vrot.lane.b32.xlu0 %v567, 88
    %v794 = vpop.permute.xlu0 %793
    %795 = vrot.lane.b32.xlu0 %v572, 88
    %v796 = vpop.permute.xlu0 %795
    %v797 = vsel %vm591, %v790, 0
    %v799 = vsel %vm591, %v792, 0
    %v801 = vsel %vm591, %v794, 0
    %v803 = vsel %vm591, %v796, 0
    %805 = vmatprep.subr.mxu0 0.0
    %806 = vmatpush1.xpose.msra.mxu0 %v801
    %807 = vmatprep.subr.mxu0 0.0
    %808 = vmatpush1.xpose.msra.mxu0 %v803
    %809 = vmatprep.subr.mxu0 0.0
    %810 = vmatpush1.xpose.msra.mxu0 0.0
    %811 = vmatprep.subr.mxu0 0.0
    %812 = vmatpush1.xpose.msra.mxu0 0.0
    %813 = vmatprep.subr.mxu0 0.0
    %814 = vmatpush1.xpose.msra.mxu0 0.0
    %815 = vmatprep.subr.mxu0 0.0
    %816 = vmatpush1.xpose.msra.mxu0 0.0
    %817 = vmatprep.subr.mxu0 0.0
    %818 = vmatpush1.xpose.msra.mxu0 0.0
    %819 = vmatprep.subr.mxu0 0.0
    %820 = vmatpush1.xpose.msra.mxu0 0.0
    %821 = vmatprep.subr.mxu0 0.0
    %822 = vmatpush1.xpose.msra.mxu0 0.0
    %823 = vmatprep.subr.mxu0 0.0
    %824 = vmatpush1.xpose.msra.mxu0 0.0
    %825 = vmatprep.subr.mxu0 0.0
    %826 = vmatpush1.xpose.msra.mxu0 0.0
    %827 = vmatprep.subr.mxu0 0.0
    %828 = vmatpush1.xpose.msra.mxu0 0.0
    %829 = vmatprep.subr.mxu0 0.0
    %830 = vmatpush1.xpose.msra.mxu0 0.0
    %831 = vmatprep.subr.mxu0 0.0
    %832 = vmatpush1.xpose.msra.mxu0 0.0
    %833 = vmatprep.subr.mxu0 0.0
    %834 = vmatpush1.xpose.msra.mxu0 0.0
    %835 = vmatprep.subr.mxu0 0.0
    %836 = vmatpush1.xpose.msra.mxu0 0.0
    %837 = vmatprep.subr.mxu0 0.0
    %838 = vmatpush1.xpose.msra.mxu0 0.0
    %839 = vmatprep.subr.mxu0 0.0
    %840 = vmatpush1.xpose.msra.mxu0 0.0
    %841 = vmatprep.subr.mxu0 0.0
    %842 = vmatpush1.xpose.msra.mxu0 0.0
    %843 = vmatprep.subr.mxu0 0.0
    %844 = vmatpush1.xpose.msra.mxu0 0.0
    %845 = vmatprep.subr.mxu0 0.0
    %846 = vmatpush1.xpose.msra.mxu0 0.0
    %847 = vmatprep.subr.mxu0 0.0
    %848 = vmatpush1.xpose.msra.mxu0 0.0
    %849 = vmatprep.subr.mxu0 0.0
    %850 = vmatpush1.xpose.msra.mxu0 0.0
    %851 = vmatprep.subr.mxu0 0.0
    %852 = vmatpush1.xpose.msra.mxu0 0.0
    %853 = vmatprep.subr.mxu0 0.0
    %854 = vmatpush1.xpose.msra.mxu0 0.0
    %855 = vmatprep.subr.mxu0 0.0
    %856 = vmatpush1.xpose.msra.mxu0 0.0
    %857 = vmatprep.subr.mxu0 0.0
    %858 = vmatpush1.xpose.msra.mxu0 0.0
    %859 = vmatprep.subr.mxu0 0.0
    %860 = vmatpush1.xpose.msra.mxu0 0.0
    %861 = vmatprep.subr.mxu0 0.0
    %862 = vmatpush1.xpose.msra.mxu0 0.0
    %863 = vmatprep.subr.mxu0 0.0
    %864 = vmatpush1.xpose.msra.mxu0 0.0
    %865 = vmatprep.subr.mxu0 0.0
    %866 = vmatpush1.xpose.msra.mxu0 0.0
    %867 = vmatprep.subr.mxu0 0.0
    %868 = vmatpush1.xpose.msra.mxu0 0.0
    %869 = vmatprep.mubr.f32.mxu0 0.0
    %870 = vmatmul.mubr.f32.gmra.mrb[0].mxu0 %v797
    %v871 = vpop.f32.mrb[0].mxu0
    %v872 = vadd.f32 0.0, %v871
    %v873 = vpop.f32.mrb[0].mxu0
    %874 = vmatprep.mubr.f32.mxu0 0.0
    %875 = vmatmul.mubr.f32.gmra.mrb[0].mxu0 %v799
    %v876 = vpop.f32.mrb[0].mxu0
    %v877 = vadd.f32 0.0, %v876
    %v878 = vpop.f32.mrb[0].mxu0
    %879 = vdwg.mxu0
    %v880 = vmul.f32 %v872, 0.35355338
    %v881 = vmul.f32 %v877, 0.35355338
    %v882 = vsel %vm677, %v880, -inf
    %883 = vmax.xlane.f32.xlu0 %v882
    %v884 = vpop.xlane.xlu0 %883
    %v885 = vsel %vm677, %v881, -inf
    %886 = vmax.xlane.f32.xlu0 %v885
    %v887 = vpop.xlane.xlu0 %886
    %v888 = vsub.f32 %v880, %v884
    %v889 = vsub.f32 %v881, %v887
    %v890 = vmul.f32 %v888, 1.442695
    %v891 = vpow.pop %v890
    %v892 = vmul.f32 %v889, 1.442695
    %v893 = vpow.pop %v892
    %v894 = vsel %vm677, %v891, 0.0
    %895 = vadd.xlane.f32.xlu0 %v894
    %v896 = vpop.xlane.xlu0 %895
    %v897 = vsel %vm677, %v893, 0.0
    %898 = vadd.xlane.f32.xlu0 %v897
    %v899 = vpop.xlane.xlu0 %898
    %v900 = vrcp.pop %v896
    %v901 = vrcp.pop %v899
    %v902 = vmul.f32 %v891, %v900
    %v903 = vmul.f32 %v893, %v901
    %904 = vrot.lane.b32.xlu0 %v567, 56
    %v905 = vpop.permute.xlu0 %904
    %906 = vrot.lane.b32.xlu0 %v572, 56
    %v907 = vpop.permute.xlu0 %906
    %v911 = vsel %vm677, %v902, 0
    %v914 = vsel %vm677, %v903, 0
    %916 = vmatprep.subr.mxu0 0.0
    %917 = vmatpush1.msra.mxu0 %v905
    %918 = vmatprep.subr.mxu0 0.0
    %919 = vmatpush1.msra.mxu0 %v907
    %920 = vmatprep.subr.mxu0 0.0
    %921 = vmatpush1.msra.mxu0 0.0
    %922 = vmatprep.subr.mxu0 0.0
    %923 = vmatpush1.msra.mxu0 0.0
    %924 = vmatprep.subr.mxu0 0.0
    %925 = vmatpush1.msra.mxu0 0.0
    %926 = vmatprep.subr.mxu0 0.0
    %927 = vmatpush1.msra.mxu0 0.0
    %928 = vmatprep.subr.mxu0 0.0
    %929 = vmatpush1.msra.mxu0 0.0
    %930 = vmatprep.subr.mxu0 0.0
    %931 = vmatpush1.msra.mxu0 0.0
    %932 = vmatprep.subr.mxu0 0.0
    %933 = vmatpush1.msra.mxu0 0.0
    %934 = vmatprep.subr.mxu0 0.0
    %935 = vmatpush1.msra.mxu0 0.0
    %936 = vmatprep.subr.mxu0 0.0
    %937 = vmatpush1.msra.mxu0 0.0
    %938 = vmatprep.subr.mxu0 0.0
    %939 = vmatpush1.msra.mxu0 0.0
    %940 = vmatprep.subr.mxu0 0.0
    %941 = vmatpush1.msra.mxu0 0.0
    %942 = vmatprep.subr.mxu0 0.0
    %943 = vmatpush1.msra.mxu0 0.0
    %944 = vmatprep.subr.mxu0 0.0
    %945 = vmatpush1.msra.mxu0 0.0
    %946 = vmatprep.subr.mxu0 0.0
    %947 = vmatpush1.msra.mxu0 0.0
    %948 = vmatprep.subr.mxu0 0.0
    %949 = vmatpush1.msra.mxu0 0.0
    %950 = vmatprep.subr.mxu0 0.0
    %951 = vmatpush1.msra.mxu0 0.0
    %952 = vmatprep.subr.mxu0 0.0
    %953 = vmatpush1.msra.mxu0 0.0
    %954 = vmatprep.subr.mxu0 0.0
    %955 = vmatpush1.msra.mxu0 0.0
    %956 = vmatprep.subr.mxu0 0.0
    %957 = vmatpush1.msra.mxu0 0.0
    %958 = vmatprep.subr.mxu0 0.0
    %959 = vmatpush1.msra.mxu0 0.0
    %960 = vmatprep.subr.mxu0 0.0
    %961 = vmatpush1.msra.mxu0 0.0
    %962 = vmatprep.subr.mxu0 0.0
    %963 = vmatpush1.msra.mxu0 0.0
    %964 = vmatprep.subr.mxu0 0.0
    %965 = vmatpush1.msra.mxu0 0.0
    %966 = vmatprep.subr.mxu0 0.0
    %967 = vmatpush1.msra.mxu0 0.0
    %968 = vmatprep.subr.mxu0 0.0
    %969 = vmatpush1.msra.mxu0 0.0
    %970 = vmatprep.subr.mxu0 0.0
    %971 = vmatpush1.msra.mxu0 0.0
    %972 = vmatprep.subr.mxu0 0.0
    %973 = vmatpush1.msra.mxu0 0.0
    %974 = vmatprep.subr.mxu0 0.0
    %975 = vmatpush1.msra.mxu0 0.0
    %976 = vmatprep.subr.mxu0 0.0
    %977 = vmatpush1.msra.mxu0 0.0
    %978 = vmatprep.subr.mxu0 0.0
    %979 = vmatpush1.msra.mxu0 0.0
    %980 = vmatprep.mubr.f32.mxu0 0.0
    %981 = vmatmul.mubr.f32.gmra.mrb[0].mxu0 %v911
    %v982 = vpop.f32.mrb[0].mxu0
    %v983 = vadd.f32 0.0, %v982
    %v984 = vpop.f32.mrb[0].mxu0
    %985 = vmatprep.mubr.f32.mxu0 0.0
    %986 = vmatmul.mubr.f32.gmra.mrb[0].mxu0 %v914
    %v987 = vpop.f32.mrb[0].mxu0
    %v988 = vadd.f32 0.0, %v987
    %v989 = vpop.f32.mrb[0].mxu0
    %990 = vdwg.mxu0
    %993 = vrot.lane.b32.xlu0 %v983, 8
    %v994 = vpop.permute.xlu0 %993
    %995 = vrot.lane.b32.xlu0 %v988, 8
    %v996 = vpop.permute.xlu0 %995
    %vm999 = vcmask 130112
    %1000 = vst.msk [vmem:[#allocation2] sm:$0xff] %vm999, %v994
    %1001 = vst.msk [vmem:[#allocation2 + $0x8] sm:$0xff] %vm999, %v996
    %1002 = vrot.lane.b32.xlu0 %v567, 112
    %v1003 = vpop.permute.xlu0 %1002
    %1004 = vrot.lane.b32.xlu0 %v572, 112
    %v1005 = vpop.permute.xlu0 %1004
    %1006 = vrot.lane.b32.xlu0 %v567, 80
    %v1007 = vpop.permute.xlu0 %1006
    %1008 = vrot.lane.b32.xlu0 %v572, 80
    %v1009 = vpop.permute.xlu0 %1008
    %v1010 = vsel %vm591, %v1003, 0
    %v1012 = vsel %vm591, %v1005, 0
    %v1014 = vsel %vm591, %v1007, 0
    %v1016 = vsel %vm591, %v1009, 0
    %1018 = vmatprep.subr.mxu0 0.0
    %1019 = vmatpush1.xpose.msra.mxu0 %v1014
    %1020 = vmatprep.subr.mxu0 0.0
    %1021 = vmatpush1.xpose.msra.mxu0 %v1016
    %1022 = vmatprep.subr.mxu0 0.0
    %1023 = vmatpush1.xpose.msra.mxu0 0.0
    %1024 = vmatprep.subr.mxu0 0.0
    %1025 = vmatpush1.xpose.msra.mxu0 0.0
    %1026 = vmatprep.subr.mxu0 0.0
    %1027 = vmatpush1.xpose.msra.mxu0 0.0
    %1028 = vmatprep.subr.mxu0 0.0
    %1029 = vmatpush1.xpose.msra.mxu0 0.0
    %1030 = vmatprep.subr.mxu0 0.0
    %1031 = vmatpush1.xpose.msra.mxu0 0.0
    %1032 = vmatprep.subr.mxu0 0.0
    %1033 = vmatpush1.xpose.msra.mxu0 0.0
    %1034 = vmatprep.subr.mxu0 0.0
    %1035 = vmatpush1.xpose.msra.mxu0 0.0
    %1036 = vmatprep.subr.mxu0 0.0
    %1037 = vmatpush1.xpose.msra.mxu0 0.0
    %1038 = vmatprep.subr.mxu0 0.0
    %1039 = vmatpush1.xpose.msra.mxu0 0.0
    %1040 = vmatprep.subr.mxu0 0.0
    %1041 = vmatpush1.xpose.msra.mxu0 0.0
    %1042 = vmatprep.subr.mxu0 0.0
    %1043 = vmatpush1.xpose.msra.mxu0 0.0
    %1044 = vmatprep.subr.mxu0 0.0
    %1045 = vmatpush1.xpose.msra.mxu0 0.0
    %1046 = vmatprep.subr.mxu0 0.0
    %1047 = vmatpush1.xpose.msra.mxu0 0.0
    %1048 = vmatprep.subr.mxu0 0.0
    %1049 = vmatpush1.xpose.msra.mxu0 0.0
    %1050 = vmatprep.subr.mxu0 0.0
    %1051 = vmatpush1.xpose.msra.mxu0 0.0
    %1052 = vmatprep.subr.mxu0 0.0
    %1053 = vmatpush1.xpose.msra.mxu0 0.0
    %1054 = vmatprep.subr.mxu0 0.0
    %1055 = vmatpush1.xpose.msra.mxu0 0.0
    %1056 = vmatprep.subr.mxu0 0.0
    %1057 = vmatpush1.xpose.msra.mxu0 0.0
    %1058 = vmatprep.subr.mxu0 0.0
    %1059 = vmatpush1.xpose.msra.mxu0 0.0
    %1060 = vmatprep.subr.mxu0 0.0
    %1061 = vmatpush1.xpose.msra.mxu0 0.0
    %1062 = vmatprep.subr.mxu0 0.0
    %1063 = vmatpush1.xpose.msra.mxu0 0.0
    %1064 = vmatprep.subr.mxu0 0.0
    %1065 = vmatpush1.xpose.msra.mxu0 0.0
    %1066 = vmatprep.subr.mxu0 0.0
    %1067 = vmatpush1.xpose.msra.mxu0 0.0
    %1068 = vmatprep.subr.mxu0 0.0
    %1069 = vmatpush1.xpose.msra.mxu0 0.0
    %1070 = vmatprep.subr.mxu0 0.0
    %1071 = vmatpush1.xpose.msra.mxu0 0.0
    %1072 = vmatprep.subr.mxu0 0.0
    %1073 = vmatpush1.xpose.msra.mxu0 0.0
    %1074 = vmatprep.subr.mxu0 0.0
    %1075 = vmatpush1.xpose.msra.mxu0 0.0
    %1076 = vmatprep.subr.mxu0 0.0
    %1077 = vmatpush1.xpose.msra.mxu0 0.0
    %1078 = vmatprep.subr.mxu0 0.0
    %1079 = vmatpush1.xpose.msra.mxu0 0.0
    %1080 = vmatprep.subr.mxu0 0.0
    %1081 = vmatpush1.xpose.msra.mxu0 0.0
    %1082 = vmatprep.mubr.f32.mxu0 0.0
    %1083 = vmatmul.mubr.f32.gmra.mrb[0].mxu0 %v1010
    %v1084 = vpop.f32.mrb[0].mxu0
    %v1085 = vadd.f32 0.0, %v1084
    %v1086 = vpop.f32.mrb[0].mxu0
    %1087 = vmatprep.mubr.f32.mxu0 0.0
    %1088 = vmatmul.mubr.f32.gmra.mrb[0].mxu0 %v1012
    %v1089 = vpop.f32.mrb[0].mxu0
    %v1090 = vadd.f32 0.0, %v1089
    %v1091 = vpop.f32.mrb[0].mxu0
    %1092 = vdwg.mxu0
    %v1093 = vmul.f32 %v1085, 0.35355338
    %v1094 = vmul.f32 %v1090, 0.35355338
    %v1095 = vsel %vm677, %v1093, -inf
    %1096 = vmax.xlane.f32.xlu0 %v1095
    %v1097 = vpop.xlane.xlu0 %1096
    %v1098 = vsel %vm677, %v1094, -inf
    %1099 = vmax.xlane.f32.xlu0 %v1098
    %v1100 = vpop.xlane.xlu0 %1099
    %v1101 = vsub.f32 %v1093, %v1097
    %v1102 = vsub.f32 %v1094, %v1100
    %v1103 = vmul.f32 %v1101, 1.442695
    %v1104 = vpow.pop %v1103
    %v1105 = vmul.f32 %v1102, 1.442695
    %v1106 = vpow.pop %v1105
    %v1107 = vsel %vm677, %v1104, 0.0
    %1108 = vadd.xlane.f32.xlu0 %v1107
    %v1109 = vpop.xlane.xlu0 %1108
    %v1110 = vsel %vm677, %v1106, 0.0
    %1111 = vadd.xlane.f32.xlu0 %v1110
    %v1112 = vpop.xlane.xlu0 %1111
    %v1113 = vrcp.pop %v1109
    %v1114 = vrcp.pop %v1112
    %v1115 = vmul.f32 %v1104, %v1113
    %v1116 = vmul.f32 %v1106, %v1114
    %1117 = vrot.lane.b32.xlu0 %v567, 48
    %v1118 = vpop.permute.xlu0 %1117
    %1119 = vrot.lane.b32.xlu0 %v572, 48
    %v1120 = vpop.permute.xlu0 %1119
    %v1124 = vsel %vm677, %v1115, 0
    %v1127 = vsel %vm677, %v1116, 0
    %1129 = vmatprep.subr.mxu0 0.0
    %1130 = vmatpush1.msra.mxu0 %v1118
    %1131 = vmatprep.subr.mxu0 0.0
    %1132 = vmatpush1.msra.mxu0 %v1120
    %1133 = vmatprep.subr.mxu0 0.0
    %1134 = vmatpush1.msra.mxu0 0.0
    %1135 = vmatprep.subr.mxu0 0.0
    %1136 = vmatpush1.msra.mxu0 0.0
    %1137 = vmatprep.subr.mxu0 0.0
    %1138 = vmatpush1.msra.mxu0 0.0
    %1139 = vmatprep.subr.mxu0 0.0
    %1140 = vmatpush1.msra.mxu0 0.0
    %1141 = vmatprep.subr.mxu0 0.0
    %1142 = vmatpush1.msra.mxu0 0.0
    %1143 = vmatprep.subr.mxu0 0.0
    %1144 = vmatpush1.msra.mxu0 0.0
    %1145 = vmatprep.subr.mxu0 0.0
    %1146 = vmatpush1.msra.mxu0 0.0
    %1147 = vmatprep.subr.mxu0 0.0
    %1148 = vmatpush1.msra.mxu0 0.0
    %1149 = vmatprep.subr.mxu0 0.0
    %1150 = vmatpush1.msra.mxu0 0.0
    %1151 = vmatprep.subr.mxu0 0.0
    %1152 = vmatpush1.msra.mxu0 0.0
    %1153 = vmatprep.subr.mxu0 0.0
    %1154 = vmatpush1.msra.mxu0 0.0
    %1155 = vmatprep.subr.mxu0 0.0
    %1156 = vmatpush1.msra.mxu0 0.0
    %1157 = vmatprep.subr.mxu0 0.0
    %1158 = vmatpush1.msra.mxu0 0.0
    %1159 = vmatprep.subr.mxu0 0.0
    %1160 = vmatpush1.msra.mxu0 0.0
    %1161 = vmatprep.subr.mxu0 0.0
    %1162 = vmatpush1.msra.mxu0 0.0
    %1163 = vmatprep.subr.mxu0 0.0
    %1164 = vmatpush1.msra.mxu0 0.0
    %1165 = vmatprep.subr.mxu0 0.0
    %1166 = vmatpush1.msra.mxu0 0.0
    %1167 = vmatprep.subr.mxu0 0.0
    %1168 = vmatpush1.msra.mxu0 0.0
    %1169 = vmatprep.subr.mxu0 0.0
    %1170 = vmatpush1.msra.mxu0 0.0
    %1171 = vmatprep.subr.mxu0 0.0
    %1172 = vmatpush1.msra.mxu0 0.0
    %1173 = vmatprep.subr.mxu0 0.0
    %1174 = vmatpush1.msra.mxu0 0.0
    %1175 = vmatprep.subr.mxu0 0.0
    %1176 = vmatpush1.msra.mxu0 0.0
    %1177 = vmatprep.subr.mxu0 0.0
    %1178 = vmatpush1.msra.mxu0 0.0
    %1179 = vmatprep.subr.mxu0 0.0
    %1180 = vmatpush1.msra.mxu0 0.0
    %1181 = vmatprep.subr.mxu0 0.0
    %1182 = vmatpush1.msra.mxu0 0.0
    %1183 = vmatprep.subr.mxu0 0.0
    %1184 = vmatpush1.msra.mxu0 0.0
    %1185 = vmatprep.subr.mxu0 0.0
    %1186 = vmatpush1.msra.mxu0 0.0
    %1187 = vmatprep.subr.mxu0 0.0
    %1188 = vmatpush1.msra.mxu0 0.0
    %1189 = vmatprep.subr.mxu0 0.0
    %1190 = vmatpush1.msra.mxu0 0.0
    %1191 = vmatprep.subr.mxu0 0.0
    %1192 = vmatpush1.msra.mxu0 0.0
    %1193 = vmatprep.mubr.f32.mxu0 0.0
    %1194 = vmatmul.mubr.f32.gmra.mrb[0].mxu0 %v1124
    %v1195 = vpop.f32.mrb[0].mxu0
    %v1196 = vadd.f32 0.0, %v1195
    %v1197 = vpop.f32.mrb[0].mxu0
    %1198 = vmatprep.mubr.f32.mxu0 0.0
    %1199 = vmatmul.mubr.f32.gmra.mrb[0].mxu0 %v1127
    %v1200 = vpop.f32.mrb[0].mxu0
    %v1201 = vadd.f32 0.0, %v1200
    %v1202 = vpop.f32.mrb[0].mxu0
    %1203 = vdwg.mxu0
    %1206 = vrot.lane.b32.xlu0 %v1196, 16
    %v1207 = vpop.permute.xlu0 %1206
    %1208 = vrot.lane.b32.xlu0 %v1201, 16
    %v1209 = vpop.permute.xlu0 %1208
    %vm1212 = vcmask 195712
    %1213 = vst.msk [vmem:[#allocation2] sm:$0xff] %vm1212, %v1207
    %1214 = vst.msk [vmem:[#allocation2 + $0x8] sm:$0xff] %vm1212, %v1209
    %1215 = vrot.lane.b32.xlu0 %v567, 104
    %v1216 = vpop.permute.xlu0 %1215
    %1217 = vrot.lane.b32.xlu0 %v572, 104
    %v1218 = vpop.permute.xlu0 %1217
    %1219 = vrot.lane.b32.xlu0 %v567, 72
    %v1220 = vpop.permute.xlu0 %1219
    %1221 = vrot.lane.b32.xlu0 %v572, 72
    %v1222 = vpop.permute.xlu0 %1221
    %v1223 = vsel %vm591, %v1216, 0
    %v1225 = vsel %vm591, %v1218, 0
    %v1227 = vsel %vm591, %v1220, 0
    %v1229 = vsel %vm591, %v1222, 0
    %1231 = vmatprep.subr.mxu0 0.0
    %1232 = vmatpush1.xpose.msra.mxu0 %v1227
    %1233 = vmatprep.subr.mxu0 0.0
    %1234 = vmatpush1.xpose.msra.mxu0 %v1229
    %1235 = vmatprep.subr.mxu0 0.0
    %1236 = vmatpush1.xpose.msra.mxu0 0.0
    %1237 = vmatprep.subr.mxu0 0.0
    %1238 = vmatpush1.xpose.msra.mxu0 0.0
    %1239 = vmatprep.subr.mxu0 0.0
    %1240 = vmatpush1.xpose.msra.mxu0 0.0
    %1241 = vmatprep.subr.mxu0 0.0
    %1242 = vmatpush1.xpose.msra.mxu0 0.0
    %1243 = vmatprep.subr.mxu0 0.0
    %1244 = vmatpush1.xpose.msra.mxu0 0.0
    %1245 = vmatprep.subr.mxu0 0.0
    %1246 = vmatpush1.xpose.msra.mxu0 0.0
    %1247 = vmatprep.subr.mxu0 0.0
    %1248 = vmatpush1.xpose.msra.mxu0 0.0
    %1249 = vmatprep.subr.mxu0 0.0
    %1250 = vmatpush1.xpose.msra.mxu0 0.0
    %1251 = vmatprep.subr.mxu0 0.0
    %1252 = vmatpush1.xpose.msra.mxu0 0.0
    %1253 = vmatprep.subr.mxu0 0.0
    %1254 = vmatpush1.xpose.msra.mxu0 0.0
    %1255 = vmatprep.subr.mxu0 0.0
    %1256 = vmatpush1.xpose.msra.mxu0 0.0
    %1257 = vmatprep.subr.mxu0 0.0
    %1258 = vmatpush1.xpose.msra.mxu0 0.0
    %1259 = vmatprep.subr.mxu0 0.0
    %1260 = vmatpush1.xpose.msra.mxu0 0.0
    %1261 = vmatprep.subr.mxu0 0.0
    %1262 = vmatpush1.xpose.msra.mxu0 0.0
    %1263 = vmatprep.subr.mxu0 0.0
    %1264 = vmatpush1.xpose.msra.mxu0 0.0
    %1265 = vmatprep.subr.mxu0 0.0
    %1266 = vmatpush1.xpose.msra.mxu0 0.0
    %1267 = vmatprep.subr.mxu0 0.0
    %1268 = vmatpush1.xpose.msra.mxu0 0.0
    %1269 = vmatprep.subr.mxu0 0.0
    %1270 = vmatpush1.xpose.msra.mxu0 0.0
    %1271 = vmatprep.subr.mxu0 0.0
    %1272 = vmatpush1.xpose.msra.mxu0 0.0
    %1273 = vmatprep.subr.mxu0 0.0
    %1274 = vmatpush1.xpose.msra.mxu0 0.0
    %1275 = vmatprep.subr.mxu0 0.0
    %1276 = vmatpush1.xpose.msra.mxu0 0.0
    %1277 = vmatprep.subr.mxu0 0.0
    %1278 = vmatpush1.xpose.msra.mxu0 0.0
    %1279 = vmatprep.subr.mxu0 0.0
    %1280 = vmatpush1.xpose.msra.mxu0 0.0
    %1281 = vmatprep.subr.mxu0 0.0
    %1282 = vmatpush1.xpose.msra.mxu0 0.0
    %1283 = vmatprep.subr.mxu0 0.0
    %1284 = vmatpush1.xpose.msra.mxu0 0.0
    %1285 = vmatprep.subr.mxu0 0.0
    %1286 = vmatpush1.xpose.msra.mxu0 0.0
    %1287 = vmatprep.subr.mxu0 0.0
    %1288 = vmatpush1.xpose.msra.mxu0 0.0
    %1289 = vmatprep.subr.mxu0 0.0
    %1290 = vmatpush1.xpose.msra.mxu0 0.0
    %1291 = vmatprep.subr.mxu0 0.0
    %1292 = vmatpush1.xpose.msra.mxu0 0.0
    %1293 = vmatprep.subr.mxu0 0.0
    %1294 = vmatpush1.xpose.msra.mxu0 0.0
    %1295 = vmatprep.mubr.f32.mxu0 0.0
    %1296 = vmatmul.mubr.f32.gmra.mrb[0].mxu0 %v1223
    %v1297 = vpop.f32.mrb[0].mxu0
    %v1298 = vadd.f32 0.0, %v1297
    %v1299 = vpop.f32.mrb[0].mxu0
    %1300 = vmatprep.mubr.f32.mxu0 0.0
    %1301 = vmatmul.mubr.f32.gmra.mrb[0].mxu0 %v1225
    %v1302 = vpop.f32.mrb[0].mxu0
    %v1303 = vadd.f32 0.0, %v1302
    %v1304 = vpop.f32.mrb[0].mxu0
    %1305 = vdwg.mxu0
    %v1306 = vmul.f32 %v1298, 0.35355338
    %v1307 = vmul.f32 %v1303, 0.35355338
    %v1308 = vsel %vm677, %v1306, -inf
    %1309 = vmax.xlane.f32.xlu0 %v1308
    %v1310 = vpop.xlane.xlu0 %1309
    %v1311 = vsel %vm677, %v1307, -inf
    %1312 = vmax.xlane.f32.xlu0 %v1311
    %v1313 = vpop.xlane.xlu0 %1312
    %v1314 = vsub.f32 %v1306, %v1310
    %v1315 = vsub.f32 %v1307, %v1313
    %v1316 = vmul.f32 %v1314, 1.442695
    %v1317 = vpow.pop %v1316
    %v1318 = vmul.f32 %v1315, 1.442695
    %v1319 = vpow.pop %v1318
    %v1320 = vsel %vm677, %v1317, 0.0
    %1321 = vadd.xlane.f32.xlu0 %v1320
    %v1322 = vpop.xlane.xlu0 %1321
    %v1323 = vsel %vm677, %v1319, 0.0
    %1324 = vadd.xlane.f32.xlu0 %v1323
    %v1325 = vpop.xlane.xlu0 %1324
    %v1326 = vrcp.pop %v1322
    %v1327 = vrcp.pop %v1325
    %v1328 = vmul.f32 %v1317, %v1326
    %v1329 = vmul.f32 %v1319, %v1327
    %1330 = vrot.lane.b32.xlu0 %v567, 40
    %v1331 = vpop.permute.xlu0 %1330
    %1332 = vrot.lane.b32.xlu0 %v572, 40
    %v1333 = vpop.permute.xlu0 %1332
    %v1337 = vsel %vm677, %v1328, 0
    %v1340 = vsel %vm677, %v1329, 0
    %1342 = vmatprep.subr.mxu0 0.0
    %1343 = vmatpush1.msra.mxu0 %v1331
    %1344 = vmatprep.subr.mxu0 0.0
    %1345 = vmatpush1.msra.mxu0 %v1333
    %1346 = vmatprep.subr.mxu0 0.0
    %1347 = vmatpush1.msra.mxu0 0.0
    %1348 = vmatprep.subr.mxu0 0.0
    %1349 = vmatpush1.msra.mxu0 0.0
    %1350 = vmatprep.subr.mxu0 0.0
    %1351 = vmatpush1.msra.mxu0 0.0
    %1352 = vmatprep.subr.mxu0 0.0
    %1353 = vmatpush1.msra.mxu0 0.0
    %1354 = vmatprep.subr.mxu0 0.0
    %1355 = vmatpush1.msra.mxu0 0.0
    %1356 = vmatprep.subr.mxu0 0.0
    %1357 = vmatpush1.msra.mxu0 0.0
    %1358 = vmatprep.subr.mxu0 0.0
    %1359 = vmatpush1.msra.mxu0 0.0
    %1360 = vmatprep.subr.mxu0 0.0
    %1361 = vmatpush1.msra.mxu0 0.0
    %1362 = vmatprep.subr.mxu0 0.0
    %1363 = vmatpush1.msra.mxu0 0.0
    %1364 = vmatprep.subr.mxu0 0.0
    %1365 = vmatpush1.msra.mxu0 0.0
    %1366 = vmatprep.subr.mxu0 0.0
    %1367 = vmatpush1.msra.mxu0 0.0
    %1368 = vmatprep.subr.mxu0 0.0
    %1369 = vmatpush1.msra.mxu0 0.0
    %1370 = vmatprep.subr.mxu0 0.0
    %1371 = vmatpush1.msra.mxu0 0.0
    %1372 = vmatprep.subr.mxu0 0.0
    %1373 = vmatpush1.msra.mxu0 0.0
    %1374 = vmatprep.subr.mxu0 0.0
    %1375 = vmatpush1.msra.mxu0 0.0
    %1376 = vmatprep.subr.mxu0 0.0
    %1377 = vmatpush1.msra.mxu0 0.0
    %1378 = vmatprep.subr.mxu0 0.0
    %1379 = vmatpush1.msra.mxu0 0.0
    %1380 = vmatprep.subr.mxu0 0.0
    %1381 = vmatpush1.msra.mxu0 0.0
    %1382 = vmatprep.subr.mxu0 0.0
    %1383 = vmatpush1.msra.mxu0 0.0
    %1384 = vmatprep.subr.mxu0 0.0
    %1385 = vmatpush1.msra.mxu0 0.0
    %1386 = vmatprep.subr.mxu0 0.0
    %1387 = vmatpush1.msra.mxu0 0.0
    %1388 = vmatprep.subr.mxu0 0.0
    %1389 = vmatpush1.msra.mxu0 0.0
    %1390 = vmatprep.subr.mxu0 0.0
    %1391 = vmatpush1.msra.mxu0 0.0
    %1392 = vmatprep.subr.mxu0 0.0
    %1393 = vmatpush1.msra.mxu0 0.0
    %1394 = vmatprep.subr.mxu0 0.0
    %1395 = vmatpush1.msra.mxu0 0.0
    %1396 = vmatprep.subr.mxu0 0.0
    %1397 = vmatpush1.msra.mxu0 0.0
    %1398 = vmatprep.subr.mxu0 0.0
    %1399 = vmatpush1.msra.mxu0 0.0
    %1400 = vmatprep.subr.mxu0 0.0
    %1401 = vmatpush1.msra.mxu0 0.0
    %1402 = vmatprep.subr.mxu0 0.0
    %1403 = vmatpush1.msra.mxu0 0.0
    %1404 = vmatprep.subr.mxu0 0.0
    %1405 = vmatpush1.msra.mxu0 0.0
    %1406 = vmatprep.mubr.f32.mxu0 0.0
    %1407 = vmatmul.mubr.f32.gmra.mrb[0].mxu0 %v1337
    %v1408 = vpop.f32.mrb[0].mxu0
    %v1409 = vadd.f32 0.0, %v1408
    %v1410 = vpop.f32.mrb[0].mxu0
    %1411 = vmatprep.mubr.f32.mxu0 0.0
    %1412 = vmatmul.mubr.f32.gmra.mrb[0].mxu0 %v1340
    %v1413 = vpop.f32.mrb[0].mxu0
    %v1414 = vadd.f32 0.0, %v1413
    %v1415 = vpop.f32.mrb[0].mxu0
    %1416 = vdwg.mxu0
    %1419 = vrot.lane.b32.xlu0 %v1409, 24
    %v1420 = vpop.permute.xlu0 %1419
    %1421 = vrot.lane.b32.xlu0 %v1414, 24
    %v1422 = vpop.permute.xlu0 %1421
    %vm1425 = vcmask 261312
    %1426 = vst.msk [vmem:[#allocation2] sm:$0xff] %vm1425, %v1420
    %1427 = vst.msk [vmem:[#allocation2 + $0x8] sm:$0xff] %vm1425, %v1422
    %1430 = vrot.lane.b32.xlu0 %v577, 96
    %v1431 = vpop.permute.xlu0 %1430
    %1432 = vrot.lane.b32.xlu0 %v582, 96
    %v1433 = vpop.permute.xlu0 %1432
    %v1434 = vsel %vm591, %v577, 0
    %v1436 = vsel %vm591, %v582, 0
    %v1438 = vsel %vm591, %v1431, 0
    %v1440 = vsel %vm591, %v1433, 0
    %1442 = vmatprep.subr.mxu0 0.0
    %1443 = vmatpush1.xpose.msra.mxu0 %v1438
    %1444 = vmatprep.subr.mxu0 0.0
    %1445 = vmatpush1.xpose.msra.mxu0 %v1440
    %1446 = vmatprep.subr.mxu0 0.0
    %1447 = vmatpush1.xpose.msra.mxu0 0.0
    %1448 = vmatprep.subr.mxu0 0.0
    %1449 = vmatpush1.xpose.msra.mxu0 0.0
    %1450 = vmatprep.subr.mxu0 0.0
    %1451 = vmatpush1.xpose.msra.mxu0 0.0
    %1452 = vmatprep.subr.mxu0 0.0
    %1453 = vmatpush1.xpose.msra.mxu0 0.0
    %1454 = vmatprep.subr.mxu0 0.0
    %1455 = vmatpush1.xpose.msra.mxu0 0.0
    %1456 = vmatprep.subr.mxu0 0.0
    %1457 = vmatpush1.xpose.msra.mxu0 0.0
    %1458 = vmatprep.subr.mxu0 0.0
    %1459 = vmatpush1.xpose.msra.mxu0 0.0
    %1460 = vmatprep.subr.mxu0 0.0
    %1461 = vmatpush1.xpose.msra.mxu0 0.0
    %1462 = vmatprep.subr.mxu0 0.0
    %1463 = vmatpush1.xpose.msra.mxu0 0.0
    %1464 = vmatprep.subr.mxu0 0.0
    %1465 = vmatpush1.xpose.msra.mxu0 0.0
    %1466 = vmatprep.subr.mxu0 0.0
    %1467 = vmatpush1.xpose.msra.mxu0 0.0
    %1468 = vmatprep.subr.mxu0 0.0
    %1469 = vmatpush1.xpose.msra.mxu0 0.0
    %1470 = vmatprep.subr.mxu0 0.0
    %1471 = vmatpush1.xpose.msra.mxu0 0.0
    %1472 = vmatprep.subr.mxu0 0.0
    %1473 = vmatpush1.xpose.msra.mxu0 0.0
    %1474 = vmatprep.subr.mxu0 0.0
    %1475 = vmatpush1.xpose.msra.mxu0 0.0
    %1476 = vmatprep.subr.mxu0 0.0
    %1477 = vmatpush1.xpose.msra.mxu0 0.0
    %1478 = vmatprep.subr.mxu0 0.0
    %1479 = vmatpush1.xpose.msra.mxu0 0.0
    %1480 = vmatprep.subr.mxu0 0.0
    %1481 = vmatpush1.xpose.msra.mxu0 0.0
    %1482 = vmatprep.subr.mxu0 0.0
    %1483 = vmatpush1.xpose.msra.mxu0 0.0
    %1484 = vmatprep.subr.mxu0 0.0
    %1485 = vmatpush1.xpose.msra.mxu0 0.0
    %1486 = vmatprep.subr.mxu0 0.0
    %1487 = vmatpush1.xpose.msra.mxu0 0.0
    %1488 = vmatprep.subr.mxu0 0.0
    %1489 = vmatpush1.xpose.msra.mxu0 0.0
    %1490 = vmatprep.subr.mxu0 0.0
    %1491 = vmatpush1.xpose.msra.mxu0 0.0
    %1492 = vmatprep.subr.mxu0 0.0
    %1493 = vmatpush1.xpose.msra.mxu0 0.0
    %1494 = vmatprep.subr.mxu0 0.0
    %1495 = vmatpush1.xpose.msra.mxu0 0.0
    %1496 = vmatprep.subr.mxu0 0.0
    %1497 = vmatpush1.xpose.msra.mxu0 0.0
    %1498 = vmatprep.subr.mxu0 0.0
    %1499 = vmatpush1.xpose.msra.mxu0 0.0
    %1500 = vmatprep.subr.mxu0 0.0
    %1501 = vmatpush1.xpose.msra.mxu0 0.0
    %1502 = vmatprep.subr.mxu0 0.0
    %1503 = vmatpush1.xpose.msra.mxu0 0.0
    %1504 = vmatprep.subr.mxu0 0.0
    %1505 = vmatpush1.xpose.msra.mxu0 0.0
    %1506 = vmatprep.mubr.f32.mxu0 0.0
    %1507 = vmatmul.mubr.f32.gmra.mrb[0].mxu0 %v1434
    %v1508 = vpop.f32.mrb[0].mxu0
    %v1509 = vadd.f32 0.0, %v1508
    %v1510 = vpop.f32.mrb[0].mxu0
    %1511 = vmatprep.mubr.f32.mxu0 0.0
    %1512 = vmatmul.mubr.f32.gmra.mrb[0].mxu0 %v1436
    %v1513 = vpop.f32.mrb[0].mxu0
    %v1514 = vadd.f32 0.0, %v1513
    %v1515 = vpop.f32.mrb[0].mxu0
    %1516 = vdwg.mxu0
    %v1517 = vmul.f32 %v1509, 0.35355338
    %v1518 = vmul.f32 %v1514, 0.35355338
    %v1519 = vsel %vm677, %v1517, -inf
    %1520 = vmax.xlane.f32.xlu0 %v1519
    %v1521 = vpop.xlane.xlu0 %1520
    %v1522 = vsel %vm677, %v1518, -inf
    %1523 = vmax.xlane.f32.xlu0 %v1522
    %v1524 = vpop.xlane.xlu0 %1523
    %v1525 = vsub.f32 %v1517, %v1521
    %v1526 = vsub.f32 %v1518, %v1524
    %v1527 = vmul.f32 %v1525, 1.442695
    %v1528 = vpow.pop %v1527
    %v1529 = vmul.f32 %v1526, 1.442695
    %v1530 = vpow.pop %v1529
    %v1531 = vsel %vm677, %v1528, 0.0
    %1532 = vadd.xlane.f32.xlu0 %v1531
    %v1533 = vpop.xlane.xlu0 %1532
    %v1534 = vsel %vm677, %v1530, 0.0
    %1535 = vadd.xlane.f32.xlu0 %v1534
    %v1536 = vpop.xlane.xlu0 %1535
    %v1537 = vrcp.pop %v1533
    %v1538 = vrcp.pop %v1536
    %v1539 = vmul.f32 %v1528, %v1537
    %v1540 = vmul.f32 %v1530, %v1538
    %1541 = vrot.lane.b32.xlu0 %v577, 64
    %v1542 = vpop.permute.xlu0 %1541
    %1543 = vrot.lane.b32.xlu0 %v582, 64
    %v1544 = vpop.permute.xlu0 %1543
    %v1548 = vsel %vm677, %v1539, 0
    %v1551 = vsel %vm677, %v1540, 0
    %1553 = vmatprep.subr.mxu0 0.0
    %1554 = vmatpush1.msra.mxu0 %v1542
    %1555 = vmatprep.subr.mxu0 0.0
    %1556 = vmatpush1.msra.mxu0 %v1544
    %1557 = vmatprep.subr.mxu0 0.0
    %1558 = vmatpush1.msra.mxu0 0.0
    %1559 = vmatprep.subr.mxu0 0.0
    %1560 = vmatpush1.msra.mxu0 0.0
    %1561 = vmatprep.subr.mxu0 0.0
    %1562 = vmatpush1.msra.mxu0 0.0
    %1563 = vmatprep.subr.mxu0 0.0
    %1564 = vmatpush1.msra.mxu0 0.0
    %1565 = vmatprep.subr.mxu0 0.0
    %1566 = vmatpush1.msra.mxu0 0.0
    %1567 = vmatprep.subr.mxu0 0.0
    %1568 = vmatpush1.msra.mxu0 0.0
    %1569 = vmatprep.subr.mxu0 0.0
    %1570 = vmatpush1.msra.mxu0 0.0
    %1571 = vmatprep.subr.mxu0 0.0
    %1572 = vmatpush1.msra.mxu0 0.0
    %1573 = vmatprep.subr.mxu0 0.0
    %1574 = vmatpush1.msra.mxu0 0.0
    %1575 = vmatprep.subr.mxu0 0.0
    %1576 = vmatpush1.msra.mxu0 0.0
    %1577 = vmatprep.subr.mxu0 0.0
    %1578 = vmatpush1.msra.mxu0 0.0
    %1579 = vmatprep.subr.mxu0 0.0
    %1580 = vmatpush1.msra.mxu0 0.0
    %1581 = vmatprep.subr.mxu0 0.0
    %1582 = vmatpush1.msra.mxu0 0.0
    %1583 = vmatprep.subr.mxu0 0.0
    %1584 = vmatpush1.msra.mxu0 0.0
    %1585 = vmatprep.subr.mxu0 0.0
    %1586 = vmatpush1.msra.mxu0 0.0
    %1587 = vmatprep.subr.mxu0 0.0
    %1588 = vmatpush1.msra.mxu0 0.0
    %1589 = vmatprep.subr.mxu0 0.0
    %1590 = vmatpush1.msra.mxu0 0.0
    %1591 = vmatprep.subr.mxu0 0.0
    %1592 = vmatpush1.msra.mxu0 0.0
    %1593 = vmatprep.subr.mxu0 0.0
    %1594 = vmatpush1.msra.mxu0 0.0
    %1595 = vmatprep.subr.mxu0 0.0
    %1596 = vmatpush1.msra.mxu0 0.0
    %1597 = vmatprep.subr.mxu0 0.0
    %1598 = vmatpush1.msra.mxu0 0.0
    %1599 = vmatprep.subr.mxu0 0.0
    %1600 = vmatpush1.msra.mxu0 0.0
    %1601 = vmatprep.subr.mxu0 0.0
    %1602 = vmatpush1.msra.mxu0 0.0
    %1603 = vmatprep.subr.mxu0 0.0
    %1604 = vmatpush1.msra.mxu0 0.0
    %1605 = vmatprep.subr.mxu0 0.0
    %1606 = vmatpush1.msra.mxu0 0.0
    %1607 = vmatprep.subr.mxu0 0.0
    %1608 = vmatpush1.msra.mxu0 0.0
    %1609 = vmatprep.subr.mxu0 0.0
    %1610 = vmatpush1.msra.mxu0 0.0
    %1611 = vmatprep.subr.mxu0 0.0
    %1612 = vmatpush1.msra.mxu0 0.0
    %1613 = vmatprep.subr.mxu0 0.0
    %1614 = vmatpush1.msra.mxu0 0.0
    %1615 = vmatprep.subr.mxu0 0.0
    %1616 = vmatpush1.msra.mxu0 0.0
    %1617 = vmatprep.mubr.f32.mxu0 0.0
    %1618 = vmatmul.mubr.f32.gmra.mrb[0].mxu0 %v1548
    %v1619 = vpop.f32.mrb[0].mxu0
    %v1620 = vadd.f32 0.0, %v1619
    %v1621 = vpop.f32.mrb[0].mxu0
    %1622 = vmatprep.mubr.f32.mxu0 0.0
    %1623 = vmatmul.mubr.f32.gmra.mrb[0].mxu0 %v1551
    %v1624 = vpop.f32.mrb[0].mxu0
    %v1625 = vadd.f32 0.0, %v1624
    %v1626 = vpop.f32.mrb[0].mxu0
    %1627 = vdwg.mxu0
    %1628 = vst.msk [vmem:[#allocation2 + $0x10] sm:$0xff] %vm591, %v1620
    %1629 = vst.msk [vmem:[#allocation2 + $0x18] sm:$0xff] %vm591, %v1625
    %1630 = vrot.lane.b32.xlu0 %v577, 120
    %v1631 = vpop.permute.xlu0 %1630
    %1632 = vrot.lane.b32.xlu0 %v582, 120
    %v1633 = vpop.permute.xlu0 %1632
    %1634 = vrot.lane.b32.xlu0 %v577, 88
    %v1635 = vpop.permute.xlu0 %1634
    %1636 = vrot.lane.b32.xlu0 %v582, 88
    %v1637 = vpop.permute.xlu0 %1636
    %v1638 = vsel %vm591, %v1631, 0
    %v1640 = vsel %vm591, %v1633, 0
    %v1642 = vsel %vm591, %v1635, 0
    %v1644 = vsel %vm591, %v1637, 0
    %1646 = vmatprep.subr.mxu0 0.0
    %1647 = vmatpush1.xpose.msra.mxu0 %v1642
    %1648 = vmatprep.subr.mxu0 0.0
    %1649 = vmatpush1.xpose.msra.mxu0 %v1644
    %1650 = vmatprep.subr.mxu0 0.0
    %1651 = vmatpush1.xpose.msra.mxu0 0.0
    %1652 = vmatprep.subr.mxu0 0.0
    %1653 = vmatpush1.xpose.msra.mxu0 0.0
    %1654 = vmatprep.subr.mxu0 0.0
    %1655 = vmatpush1.xpose.msra.mxu0 0.0
    %1656 = vmatprep.subr.mxu0 0.0
    %1657 = vmatpush1.xpose.msra.mxu0 0.0
    %1658 = vmatprep.subr.mxu0 0.0
    %1659 = vmatpush1.xpose.msra.mxu0 0.0
    %1660 = vmatprep.subr.mxu0 0.0
    %1661 = vmatpush1.xpose.msra.mxu0 0.0
    %1662 = vmatprep.subr.mxu0 0.0
    %1663 = vmatpush1.xpose.msra.mxu0 0.0
    %1664 = vmatprep.subr.mxu0 0.0
    %1665 = vmatpush1.xpose.msra.mxu0 0.0
    %1666 = vmatprep.subr.mxu0 0.0
    %1667 = vmatpush1.xpose.msra.mxu0 0.0
    %1668 = vmatprep.subr.mxu0 0.0
    %1669 = vmatpush1.xpose.msra.mxu0 0.0
    %1670 = vmatprep.subr.mxu0 0.0
    %1671 = vmatpush1.xpose.msra.mxu0 0.0
    %1672 = vmatprep.subr.mxu0 0.0
    %1673 = vmatpush1.xpose.msra.mxu0 0.0
    %1674 = vmatprep.subr.mxu0 0.0
    %1675 = vmatpush1.xpose.msra.mxu0 0.0
    %1676 = vmatprep.subr.mxu0 0.0
    %1677 = vmatpush1.xpose.msra.mxu0 0.0
    %1678 = vmatprep.subr.mxu0 0.0
    %1679 = vmatpush1.xpose.msra.mxu0 0.0
    %1680 = vmatprep.subr.mxu0 0.0
    %1681 = vmatpush1.xpose.msra.mxu0 0.0
    %1682 = vmatprep.subr.mxu0 0.0
    %1683 = vmatpush1.xpose.msra.mxu0 0.0
    %1684 = vmatprep.subr.mxu0 0.0
    %1685 = vmatpush1.xpose.msra.mxu0 0.0
    %1686 = vmatprep.subr.mxu0 0.0
    %1687 = vmatpush1.xpose.msra.mxu0 0.0
    %1688 = vmatprep.subr.mxu0 0.0
    %1689 = vmatpush1.xpose.msra.mxu0 0.0
    %1690 = vmatprep.subr.mxu0 0.0
    %1691 = vmatpush1.xpose.msra.mxu0 0.0
    %1692 = vmatprep.subr.mxu0 0.0
    %1693 = vmatpush1.xpose.msra.mxu0 0.0
    %1694 = vmatprep.subr.mxu0 0.0
    %1695 = vmatpush1.xpose.msra.mxu0 0.0
    %1696 = vmatprep.subr.mxu0 0.0
    %1697 = vmatpush1.xpose.msra.mxu0 0.0
    %1698 = vmatprep.subr.mxu0 0.0
    %1699 = vmatpush1.xpose.msra.mxu0 0.0
    %1700 = vmatprep.subr.mxu0 0.0
    %1701 = vmatpush1.xpose.msra.mxu0 0.0
    %1702 = vmatprep.subr.mxu0 0.0
    %1703 = vmatpush1.xpose.msra.mxu0 0.0
    %1704 = vmatprep.subr.mxu0 0.0
    %1705 = vmatpush1.xpose.msra.mxu0 0.0
    %1706 = vmatprep.subr.mxu0 0.0
    %1707 = vmatpush1.xpose.msra.mxu0 0.0
    %1708 = vmatprep.subr.mxu0 0.0
    %1709 = vmatpush1.xpose.msra.mxu0 0.0
    %1710 = vmatprep.mubr.f32.mxu0 0.0
    %1711 = vmatmul.mubr.f32.gmra.mrb[0].mxu0 %v1638
    %v1712 = vpop.f32.mrb[0].mxu0
    %v1713 = vadd.f32 0.0, %v1712
    %v1714 = vpop.f32.mrb[0].mxu0
    %1715 = vmatprep.mubr.f32.mxu0 0.0
    %1716 = vmatmul.mubr.f32.gmra.mrb[0].mxu0 %v1640
    %v1717 = vpop.f32.mrb[0].mxu0
    %v1718 = vadd.f32 0.0, %v1717
    %v1719 = vpop.f32.mrb[0].mxu0
    %1720 = vdwg.mxu0
    %v1721 = vmul.f32 %v1713, 0.35355338
    %v1722 = vmul.f32 %v1718, 0.35355338
    %v1723 = vsel %vm677, %v1721, -inf
    %1724 = vmax.xlane.f32.xlu0 %v1723
    %v1725 = vpop.xlane.xlu0 %1724
    %v1726 = vsel %vm677, %v1722, -inf
    %1727 = vmax.xlane.f32.xlu0 %v1726
    %v1728 = vpop.xlane.xlu0 %1727
    %v1729 = vsub.f32 %v1721, %v1725
    %v1730 = vsub.f32 %v1722, %v1728
    %v1731 = vmul.f32 %v1729, 1.442695
    %v1732 = vpow.pop %v1731
    %v1733 = vmul.f32 %v1730, 1.442695
    %v1734 = vpow.pop %v1733
    %v1735 = vsel %vm677, %v1732, 0.0
    %1736 = vadd.xlane.f32.xlu0 %v1735
    %v1737 = vpop.xlane.xlu0 %1736
    %v1738 = vsel %vm677, %v1734, 0.0
    %1739 = vadd.xlane.f32.xlu0 %v1738
    %v1740 = vpop.xlane.xlu0 %1739
    %v1741 = vrcp.pop %v1737
    %v1742 = vrcp.pop %v1740
    %v1743 = vmul.f32 %v1732, %v1741
    %v1744 = vmul.f32 %v1734, %v1742
    %1745 = vrot.lane.b32.xlu0 %v577, 56
    %v1746 = vpop.permute.xlu0 %1745
    %1747 = vrot.lane.b32.xlu0 %v582, 56
    %v1748 = vpop.permute.xlu0 %1747
    %v1752 = vsel %vm677, %v1743, 0
    %v1755 = vsel %vm677, %v1744, 0
    %1757 = vmatprep.subr.mxu0 0.0
    %1758 = vmatpush1.msra.mxu0 %v1746
    %1759 = vmatprep.subr.mxu0 0.0
    %1760 = vmatpush1.msra.mxu0 %v1748
    %1761 = vmatprep.subr.mxu0 0.0
    %1762 = vmatpush1.msra.mxu0 0.0
    %1763 = vmatprep.subr.mxu0 0.0
    %1764 = vmatpush1.msra.mxu0 0.0
    %1765 = vmatprep.subr.mxu0 0.0
    %1766 = vmatpush1.msra.mxu0 0.0
    %1767 = vmatprep.subr.mxu0 0.0
    %1768 = vmatpush1.msra.mxu0 0.0
    %1769 = vmatprep.subr.mxu0 0.0
    %1770 = vmatpush1.msra.mxu0 0.0
    %1771 = vmatprep.subr.mxu0 0.0
    %1772 = vmatpush1.msra.mxu0 0.0
    %1773 = vmatprep.subr.mxu0 0.0
    %1774 = vmatpush1.msra.mxu0 0.0
    %1775 = vmatprep.subr.mxu0 0.0
    %1776 = vmatpush1.msra.mxu0 0.0
    %1777 = vmatprep.subr.mxu0 0.0
    %1778 = vmatpush1.msra.mxu0 0.0
    %1779 = vmatprep.subr.mxu0 0.0
    %1780 = vmatpush1.msra.mxu0 0.0
    %1781 = vmatprep.subr.mxu0 0.0
    %1782 = vmatpush1.msra.mxu0 0.0
    %1783 = vmatprep.subr.mxu0 0.0
    %1784 = vmatpush1.msra.mxu0 0.0
    %1785 = vmatprep.subr.mxu0 0.0
    %1786 = vmatpush1.msra.mxu0 0.0
    %1787 = vmatprep.subr.mxu0 0.0
    %1788 = vmatpush1.msra.mxu0 0.0
    %1789 = vmatprep.subr.mxu0 0.0
    %1790 = vmatpush1.msra.mxu0 0.0
    %1791 = vmatprep.subr.mxu0 0.0
    %1792 = vmatpush1.msra.mxu0 0.0
    %1793 = vmatprep.subr.mxu0 0.0
    %1794 = vmatpush1.msra.mxu0 0.0
    %1795 = vmatprep.subr.mxu0 0.0
    %1796 = vmatpush1.msra.mxu0 0.0
    %1797 = vmatprep.subr.mxu0 0.0
    %1798 = vmatpush1.msra.mxu0 0.0
    %1799 = vmatprep.subr.mxu0 0.0
    %1800 = vmatpush1.msra.mxu0 0.0
    %1801 = vmatprep.subr.mxu0 0.0
    %1802 = vmatpush1.msra.mxu0 0.0
    %1803 = vmatprep.subr.mxu0 0.0
    %1804 = vmatpush1.msra.mxu0 0.0
    %1805 = vmatprep.subr.mxu0 0.0
    %1806 = vmatpush1.msra.mxu0 0.0
    %1807 = vmatprep.subr.mxu0 0.0
    %1808 = vmatpush1.msra.mxu0 0.0
    %1809 = vmatprep.subr.mxu0 0.0
    %1810 = vmatpush1.msra.mxu0 0.0
    %1811 = vmatprep.subr.mxu0 0.0
    %1812 = vmatpush1.msra.mxu0 0.0
    %1813 = vmatprep.subr.mxu0 0.0
    %1814 = vmatpush1.msra.mxu0 0.0
    %1815 = vmatprep.subr.mxu0 0.0
    %1816 = vmatpush1.msra.mxu0 0.0
    %1817 = vmatprep.subr.mxu0 0.0
    %1818 = vmatpush1.msra.mxu0 0.0
    %1819 = vmatprep.subr.mxu0 0.0
    %1820 = vmatpush1.msra.mxu0 0.0
    %1821 = vmatprep.mubr.f32.mxu0 0.0
    %1822 = vmatmul.mubr.f32.gmra.mrb[0].mxu0 %v1752
    %v1823 = vpop.f32.mrb[0].mxu0
    %v1824 = vadd.f32 0.0, %v1823
    %v1825 = vpop.f32.mrb[0].mxu0
    %1826 = vmatprep.mubr.f32.mxu0 0.0
    %1827 = vmatmul.mubr.f32.gmra.mrb[0].mxu0 %v1755
    %v1828 = vpop.f32.mrb[0].mxu0
    %v1829 = vadd.f32 0.0, %v1828
    %v1830 = vpop.f32.mrb[0].mxu0
    %1831 = vdwg.mxu0
    %1834 = vrot.lane.b32.xlu0 %v1824, 8
    %v1835 = vpop.permute.xlu0 %1834
    %1836 = vrot.lane.b32.xlu0 %v1829, 8
    %v1837 = vpop.permute.xlu0 %1836
    %1840 = vst.msk [vmem:[#allocation2 + $0x10] sm:$0xff] %vm999, %v1835
    %1841 = vst.msk [vmem:[#allocation2 + $0x18] sm:$0xff] %vm999, %v1837
    %1842 = vrot.lane.b32.xlu0 %v577, 112
    %v1843 = vpop.permute.xlu0 %1842
    %1844 = vrot.lane.b32.xlu0 %v582, 112
    %v1845 = vpop.permute.xlu0 %1844
    %1846 = vrot.lane.b32.xlu0 %v577, 80
    %v1847 = vpop.permute.xlu0 %1846
    %1848 = vrot.lane.b32.xlu0 %v582, 80
    %v1849 = vpop.permute.xlu0 %1848
    %v1850 = vsel %vm591, %v1843, 0
    %v1852 = vsel %vm591, %v1845, 0
    %v1854 = vsel %vm591, %v1847, 0
    %v1856 = vsel %vm591, %v1849, 0
    %1858 = vmatprep.subr.mxu0 0.0
    %1859 = vmatpush1.xpose.msra.mxu0 %v1854
    %1860 = vmatprep.subr.mxu0 0.0
    %1861 = vmatpush1.xpose.msra.mxu0 %v1856
    %1862 = vmatprep.subr.mxu0 0.0
    %1863 = vmatpush1.xpose.msra.mxu0 0.0
    %1864 = vmatprep.subr.mxu0 0.0
    %1865 = vmatpush1.xpose.msra.mxu0 0.0
    %1866 = vmatprep.subr.mxu0 0.0
    %1867 = vmatpush1.xpose.msra.mxu0 0.0
    %1868 = vmatprep.subr.mxu0 0.0
    %1869 = vmatpush1.xpose.msra.mxu0 0.0
    %1870 = vmatprep.subr.mxu0 0.0
    %1871 = vmatpush1.xpose.msra.mxu0 0.0
    %1872 = vmatprep.subr.mxu0 0.0
    %1873 = vmatpush1.xpose.msra.mxu0 0.0
    %1874 = vmatprep.subr.mxu0 0.0
    %1875 = vmatpush1.xpose.msra.mxu0 0.0
    %1876 = vmatprep.subr.mxu0 0.0
    %1877 = vmatpush1.xpose.msra.mxu0 0.0
    %1878 = vmatprep.subr.mxu0 0.0
    %1879 = vmatpush1.xpose.msra.mxu0 0.0
    %1880 = vmatprep.subr.mxu0 0.0
    %1881 = vmatpush1.xpose.msra.mxu0 0.0
    %1882 = vmatprep.subr.mxu0 0.0
    %1883 = vmatpush1.xpose.msra.mxu0 0.0
    %1884 = vmatprep.subr.mxu0 0.0
    %1885 = vmatpush1.xpose.msra.mxu0 0.0
    %1886 = vmatprep.subr.mxu0 0.0
    %1887 = vmatpush1.xpose.msra.mxu0 0.0
    %1888 = vmatprep.subr.mxu0 0.0
    %1889 = vmatpush1.xpose.msra.mxu0 0.0
    %1890 = vmatprep.subr.mxu0 0.0
    %1891 = vmatpush1.xpose.msra.mxu0 0.0
    %1892 = vmatprep.subr.mxu0 0.0
    %1893 = vmatpush1.xpose.msra.mxu0 0.0
    %1894 = vmatprep.subr.mxu0 0.0
    %1895 = vmatpush1.xpose.msra.mxu0 0.0
    %1896 = vmatprep.subr.mxu0 0.0
    %1897 = vmatpush1.xpose.msra.mxu0 0.0
    %1898 = vmatprep.subr.mxu0 0.0
    %1899 = vmatpush1.xpose.msra.mxu0 0.0
    %1900 = vmatprep.subr.mxu0 0.0
    %1901 = vmatpush1.xpose.msra.mxu0 0.0
    %1902 = vmatprep.subr.mxu0 0.0
    %1903 = vmatpush1.xpose.msra.mxu0 0.0
    %1904 = vmatprep.subr.mxu0 0.0
    %1905 = vmatpush1.xpose.msra.mxu0 0.0
    %1906 = vmatprep.subr.mxu0 0.0
    %1907 = vmatpush1.xpose.msra.mxu0 0.0
    %1908 = vmatprep.subr.mxu0 0.0
    %1909 = vmatpush1.xpose.msra.mxu0 0.0
    %1910 = vmatprep.subr.mxu0 0.0
    %1911 = vmatpush1.xpose.msra.mxu0 0.0
    %1912 = vmatprep.subr.mxu0 0.0
    %1913 = vmatpush1.xpose.msra.mxu0 0.0
    %1914 = vmatprep.subr.mxu0 0.0
    %1915 = vmatpush1.xpose.msra.mxu0 0.0
    %1916 = vmatprep.subr.mxu0 0.0
    %1917 = vmatpush1.xpose.msra.mxu0 0.0
    %1918 = vmatprep.subr.mxu0 0.0
    %1919 = vmatpush1.xpose.msra.mxu0 0.0
    %1920 = vmatprep.subr.mxu0 0.0
    %1921 = vmatpush1.xpose.msra.mxu0 0.0
    %1922 = vmatprep.mubr.f32.mxu0 0.0
    %1923 = vmatmul.mubr.f32.gmra.mrb[0].mxu0 %v1850
    %v1924 = vpop.f32.mrb[0].mxu0
    %v1925 = vadd.f32 0.0, %v1924
    %v1926 = vpop.f32.mrb[0].mxu0
    %1927 = vmatprep.mubr.f32.mxu0 0.0
    %1928 = vmatmul.mubr.f32.gmra.mrb[0].mxu0 %v1852
    %v1929 = vpop.f32.mrb[0].mxu0
    %v1930 = vadd.f32 0.0, %v1929
    %v1931 = vpop.f32.mrb[0].mxu0
    %1932 = vdwg.mxu0
    %v1933 = vmul.f32 %v1925, 0.35355338
    %v1934 = vmul.f32 %v1930, 0.35355338
    %v1935 = vsel %vm677, %v1933, -inf
    %1936 = vmax.xlane.f32.xlu0 %v1935
    %v1937 = vpop.xlane.xlu0 %1936
    %v1938 = vsel %vm677, %v1934, -inf
    %1939 = vmax.xlane.f32.xlu0 %v1938
    %v1940 = vpop.xlane.xlu0 %1939
    %v1941 = vsub.f32 %v1933, %v1937
    %v1942 = vsub.f32 %v1934, %v1940
    %v1943 = vmul.f32 %v1941, 1.442695
    %v1944 = vpow.pop %v1943
    %v1945 = vmul.f32 %v1942, 1.442695
    %v1946 = vpow.pop %v1945
    %v1947 = vsel %vm677, %v1944, 0.0
    %1948 = vadd.xlane.f32.xlu0 %v1947
    %v1949 = vpop.xlane.xlu0 %1948
    %v1950 = vsel %vm677, %v1946, 0.0
    %1951 = vadd.xlane.f32.xlu0 %v1950
    %v1952 = vpop.xlane.xlu0 %1951
    %v1953 = vrcp.pop %v1949
    %v1954 = vrcp.pop %v1952
    %v1955 = vmul.f32 %v1944, %v1953
    %v1956 = vmul.f32 %v1946, %v1954
    %1957 = vrot.lane.b32.xlu0 %v577, 48
    %v1958 = vpop.permute.xlu0 %1957
    %1959 = vrot.lane.b32.xlu0 %v582, 48
    %v1960 = vpop.permute.xlu0 %1959
    %v1964 = vsel %vm677, %v1955, 0
    %v1967 = vsel %vm677, %v1956, 0
    %1969 = vmatprep.subr.mxu0 0.0
    %1970 = vmatpush1.msra.mxu0 %v1958
    %1971 = vmatprep.subr.mxu0 0.0
    %1972 = vmatpush1.msra.mxu0 %v1960
    %1973 = vmatprep.subr.mxu0 0.0
    %1974 = vmatpush1.msra.mxu0 0.0
    %1975 = vmatprep.subr.mxu0 0.0
    %1976 = vmatpush1.msra.mxu0 0.0
    %1977 = vmatprep.subr.mxu0 0.0
    %1978 = vmatpush1.msra.mxu0 0.0
    %1979 = vmatprep.subr.mxu0 0.0
    %1980 = vmatpush1.msra.mxu0 0.0
    %1981 = vmatprep.subr.mxu0 0.0
    %1982 = vmatpush1.msra.mxu0 0.0
    %1983 = vmatprep.subr.mxu0 0.0
    %1984 = vmatpush1.msra.mxu0 0.0
    %1985 = vmatprep.subr.mxu0 0.0
    %1986 = vmatpush1.msra.mxu0 0.0
    %1987 = vmatprep.subr.mxu0 0.0
    %1988 = vmatpush1.msra.mxu0 0.0
    %1989 = vmatprep.subr.mxu0 0.0
    %1990 = vmatpush1.msra.mxu0 0.0
    %1991 = vmatprep.subr.mxu0 0.0
    %1992 = vmatpush1.msra.mxu0 0.0
    %1993 = vmatprep.subr.mxu0 0.0
    %1994 = vmatpush1.msra.mxu0 0.0
    %1995 = vmatprep.subr.mxu0 0.0
    %1996 = vmatpush1.msra.mxu0 0.0
    %1997 = vmatprep.subr.mxu0 0.0
    %1998 = vmatpush1.msra.mxu0 0.0
    %1999 = vmatprep.subr.mxu0 0.0
    %2000 = vmatpush1.msra.mxu0 0.0
    %2001 = vmatprep.subr.mxu0 0.0
    %2002 = vmatpush1.msra.mxu0 0.0
    %2003 = vmatprep.subr.mxu0 0.0
    %2004 = vmatpush1.msra.mxu0 0.0
    %2005 = vmatprep.subr.mxu0 0.0
    %2006 = vmatpush1.msra.mxu0 0.0
    %2007 = vmatprep.subr.mxu0 0.0
    %2008 = vmatpush1.msra.mxu0 0.0
    %2009 = vmatprep.subr.mxu0 0.0
    %2010 = vmatpush1.msra.mxu0 0.0
    %2011 = vmatprep.subr.mxu0 0.0
    %2012 = vmatpush1.msra.mxu0 0.0
    %2013 = vmatprep.subr.mxu0 0.0
    %2014 = vmatpush1.msra.mxu0 0.0
    %2015 = vmatprep.subr.mxu0 0.0
    %2016 = vmatpush1.msra.mxu0 0.0
    %2017 = vmatprep.subr.mxu0 0.0
    %2018 = vmatpush1.msra.mxu0 0.0
    %2019 = vmatprep.subr.mxu0 0.0
    %2020 = vmatpush1.msra.mxu0 0.0
    %2021 = vmatprep.subr.mxu0 0.0
    %2022 = vmatpush1.msra.mxu0 0.0
    %2023 = vmatprep.subr.mxu0 0.0
    %2024 = vmatpush1.msra.mxu0 0.0
    %2025 = vmatprep.subr.mxu0 0.0
    %2026 = vmatpush1.msra.mxu0 0.0
    %2027 = vmatprep.subr.mxu0 0.0
    %2028 = vmatpush1.msra.mxu0 0.0
    %2029 = vmatprep.subr.mxu0 0.0
    %2030 = vmatpush1.msra.mxu0 0.0
    %2031 = vmatprep.subr.mxu0 0.0
    %2032 = vmatpush1.msra.mxu0 0.0
    %2033 = vmatprep.mubr.f32.mxu0 0.0
    %2034 = vmatmul.mubr.f32.gmra.mrb[0].mxu0 %v1964
    %v2035 = vpop.f32.mrb[0].mxu0
    %v2036 = vadd.f32 0.0, %v2035
    %v2037 = vpop.f32.mrb[0].mxu0
    %2038 = vmatprep.mubr.f32.mxu0 0.0
    %2039 = vmatmul.mubr.f32.gmra.mrb[0].mxu0 %v1967
    %v2040 = vpop.f32.mrb[0].mxu0
    %v2041 = vadd.f32 0.0, %v2040
    %v2042 = vpop.f32.mrb[0].mxu0
    %2043 = vdwg.mxu0
    %2046 = vrot.lane.b32.xlu0 %v2036, 16
    %v2047 = vpop.permute.xlu0 %2046
    %2048 = vrot.lane.b32.xlu0 %v2041, 16
    %v2049 = vpop.permute.xlu0 %2048
    %2052 = vst.msk [vmem:[#allocation2 + $0x10] sm:$0xff] %vm1212, %v2047
    %2053 = vst.msk [vmem:[#allocation2 + $0x18] sm:$0xff] %vm1212, %v2049
    %2054 = vrot.lane.b32.xlu0 %v577, 104
    %v2055 = vpop.permute.xlu0 %2054
    %2056 = vrot.lane.b32.xlu0 %v582, 104
    %v2057 = vpop.permute.xlu0 %2056
    %2058 = vrot.lane.b32.xlu0 %v577, 72
    %v2059 = vpop.permute.xlu0 %2058
    %2060 = vrot.lane.b32.xlu0 %v582, 72
    %v2061 = vpop.permute.xlu0 %2060
    %v2062 = vsel %vm591, %v2055, 0
    %v2064 = vsel %vm591, %v2057, 0
    %v2066 = vsel %vm591, %v2059, 0
    %v2068 = vsel %vm591, %v2061, 0
    %2070 = vmatprep.subr.mxu0 0.0
    %2071 = vmatpush1.xpose.msra.mxu0 %v2066
    %2072 = vmatprep.subr.mxu0 0.0
    %2073 = vmatpush1.xpose.msra.mxu0 %v2068
    %2074 = vmatprep.subr.mxu0 0.0
    %2075 = vmatpush1.xpose.msra.mxu0 0.0
    %2076 = vmatprep.subr.mxu0 0.0
    %2077 = vmatpush1.xpose.msra.mxu0 0.0
    %2078 = vmatprep.subr.mxu0 0.0
    %2079 = vmatpush1.xpose.msra.mxu0 0.0
    %2080 = vmatprep.subr.mxu0 0.0
    %2081 = vmatpush1.xpose.msra.mxu0 0.0
    %2082 = vmatprep.subr.mxu0 0.0
    %2083 = vmatpush1.xpose.msra.mxu0 0.0
    %2084 = vmatprep.subr.mxu0 0.0
    %2085 = vmatpush1.xpose.msra.mxu0 0.0
    %2086 = vmatprep.subr.mxu0 0.0
    %2087 = vmatpush1.xpose.msra.mxu0 0.0
    %2088 = vmatprep.subr.mxu0 0.0
    %2089 = vmatpush1.xpose.msra.mxu0 0.0
    %2090 = vmatprep.subr.mxu0 0.0
    %2091 = vmatpush1.xpose.msra.mxu0 0.0
    %2092 = vmatprep.subr.mxu0 0.0
    %2093 = vmatpush1.xpose.msra.mxu0 0.0
    %2094 = vmatprep.subr.mxu0 0.0
    %2095 = vmatpush1.xpose.msra.mxu0 0.0
    %2096 = vmatprep.subr.mxu0 0.0
    %2097 = vmatpush1.xpose.msra.mxu0 0.0
    %2098 = vmatprep.subr.mxu0 0.0
    %2099 = vmatpush1.xpose.msra.mxu0 0.0
    %2100 = vmatprep.subr.mxu0 0.0
    %2101 = vmatpush1.xpose.msra.mxu0 0.0
    %2102 = vmatprep.subr.mxu0 0.0
    %2103 = vmatpush1.xpose.msra.mxu0 0.0
    %2104 = vmatprep.subr.mxu0 0.0
    %2105 = vmatpush1.xpose.msra.mxu0 0.0
    %2106 = vmatprep.subr.mxu0 0.0
    %2107 = vmatpush1.xpose.msra.mxu0 0.0
    %2108 = vmatprep.subr.mxu0 0.0
    %2109 = vmatpush1.xpose.msra.mxu0 0.0
    %2110 = vmatprep.subr.mxu0 0.0
    %2111 = vmatpush1.xpose.msra.mxu0 0.0
    %2112 = vmatprep.subr.mxu0 0.0
    %2113 = vmatpush1.xpose.msra.mxu0 0.0
    %2114 = vmatprep.subr.mxu0 0.0
    %2115 = vmatpush1.xpose.msra.mxu0 0.0
    %2116 = vmatprep.subr.mxu0 0.0
    %2117 = vmatpush1.xpose.msra.mxu0 0.0
    %2118 = vmatprep.subr.mxu0 0.0
    %2119 = vmatpush1.xpose.msra.mxu0 0.0
    %2120 = vmatprep.subr.mxu0 0.0
    %2121 = vmatpush1.xpose.msra.mxu0 0.0
    %2122 = vmatprep.subr.mxu0 0.0
    %2123 = vmatpush1.xpose.msra.mxu0 0.0
    %2124 = vmatprep.subr.mxu0 0.0
    %2125 = vmatpush1.xpose.msra.mxu0 0.0
    %2126 = vmatprep.subr.mxu0 0.0
    %2127 = vmatpush1.xpose.msra.mxu0 0.0
    %2128 = vmatprep.subr.mxu0 0.0
    %2129 = vmatpush1.xpose.msra.mxu0 0.0
    %2130 = vmatprep.subr.mxu0 0.0
    %2131 = vmatpush1.xpose.msra.mxu0 0.0
    %2132 = vmatprep.subr.mxu0 0.0
    %2133 = vmatpush1.xpose.msra.mxu0 0.0
    %2134 = vmatprep.mubr.f32.mxu0 0.0
    %2135 = vmatmul.mubr.f32.gmra.mrb[0].mxu0 %v2062
    %v2136 = vpop.f32.mrb[0].mxu0
    %v2137 = vadd.f32 0.0, %v2136
    %v2138 = vpop.f32.mrb[0].mxu0
    %2139 = vmatprep.mubr.f32.mxu0 0.0
    %2140 = vmatmul.mubr.f32.gmra.mrb[0].mxu0 %v2064
    %v2141 = vpop.f32.mrb[0].mxu0
    %v2142 = vadd.f32 0.0, %v2141
    %v2143 = vpop.f32.mrb[0].mxu0
    %2144 = vdwg.mxu0
    %v2145 = vmul.f32 %v2137, 0.35355338
    %v2146 = vmul.f32 %v2142, 0.35355338
    %v2147 = vsel %vm677, %v2145, -inf
    %2148 = vmax.xlane.f32.xlu0 %v2147
    %v2149 = vpop.xlane.xlu0 %2148
    %v2150 = vsel %vm677, %v2146, -inf
    %2151 = vmax.xlane.f32.xlu0 %v2150
    %v2152 = vpop.xlane.xlu0 %2151
    %v2153 = vsub.f32 %v2145, %v2149
    %v2154 = vsub.f32 %v2146, %v2152
    %v2155 = vmul.f32 %v2153, 1.442695
    %v2156 = vpow.pop %v2155
    %v2157 = vmul.f32 %v2154, 1.442695
    %v2158 = vpow.pop %v2157
    %v2159 = vsel %vm677, %v2156, 0.0
    %2160 = vadd.xlane.f32.xlu0 %v2159
    %v2161 = vpop.xlane.xlu0 %2160
    %v2162 = vsel %vm677, %v2158, 0.0
    %2163 = vadd.xlane.f32.xlu0 %v2162
    %v2164 = vpop.xlane.xlu0 %2163
    %v2165 = vrcp.pop %v2161
    %v2166 = vrcp.pop %v2164
    %v2167 = vmul.f32 %v2156, %v2165
    %v2168 = vmul.f32 %v2158, %v2166
    %2169 = vrot.lane.b32.xlu0 %v577, 40
    %v2170 = vpop.permute.xlu0 %2169
    %2171 = vrot.lane.b32.xlu0 %v582, 40
    %v2172 = vpop.permute.xlu0 %2171
    %v2176 = vsel %vm677, %v2167, 0
    %v2179 = vsel %vm677, %v2168, 0
    %2181 = vmatprep.subr.mxu0 0.0
    %2182 = vmatpush1.msra.mxu0 %v2170
    %2183 = vmatprep.subr.mxu0 0.0
    %2184 = vmatpush1.msra.mxu0 %v2172
    %2185 = vmatprep.subr.mxu0 0.0
    %2186 = vmatpush1.msra.mxu0 0.0
    %2187 = vmatprep.subr.mxu0 0.0
    %2188 = vmatpush1.msra.mxu0 0.0
    %2189 = vmatprep.subr.mxu0 0.0
    %2190 = vmatpush1.msra.mxu0 0.0
    %2191 = vmatprep.subr.mxu0 0.0
    %2192 = vmatpush1.msra.mxu0 0.0
    %2193 = vmatprep.subr.mxu0 0.0
    %2194 = vmatpush1.msra.mxu0 0.0
    %2195 = vmatprep.subr.mxu0 0.0
    %2196 = vmatpush1.msra.mxu0 0.0
    %2197 = vmatprep.subr.mxu0 0.0
    %2198 = vmatpush1.msra.mxu0 0.0
    %2199 = vmatprep.subr.mxu0 0.0
    %2200 = vmatpush1.msra.mxu0 0.0
    %2201 = vmatprep.subr.mxu0 0.0
    %2202 = vmatpush1.msra.mxu0 0.0
    %2203 = vmatprep.subr.mxu0 0.0
    %2204 = vmatpush1.msra.mxu0 0.0
    %2205 = vmatprep.subr.mxu0 0.0
    %2206 = vmatpush1.msra.mxu0 0.0
    %2207 = vmatprep.subr.mxu0 0.0
    %2208 = vmatpush1.msra.mxu0 0.0
    %2209 = vmatprep.subr.mxu0 0.0
    %2210 = vmatpush1.msra.mxu0 0.0
    %2211 = vmatprep.subr.mxu0 0.0
    %2212 = vmatpush1.msra.mxu0 0.0
    %2213 = vmatprep.subr.mxu0 0.0
    %2214 = vmatpush1.msra.mxu0 0.0
    %2215 = vmatprep.subr.mxu0 0.0
    %2216 = vmatpush1.msra.mxu0 0.0
    %2217 = vmatprep.subr.mxu0 0.0
    %2218 = vmatpush1.msra.mxu0 0.0
    %2219 = vmatprep.subr.mxu0 0.0
    %2220 = vmatpush1.msra.mxu0 0.0
    %2221 = vmatprep.subr.mxu0 0.0
    %2222 = vmatpush1.msra.mxu0 0.0
    %2223 = vmatprep.subr.mxu0 0.0
    %2224 = vmatpush1.msra.mxu0 0.0
    %2225 = vmatprep.subr.mxu0 0.0
    %2226 = vmatpush1.msra.mxu0 0.0
    %2227 = vmatprep.subr.mxu0 0.0
    %2228 = vmatpush1.msra.mxu0 0.0
    %2229 = vmatprep.subr.mxu0 0.0
    %2230 = vmatpush1.msra.mxu0 0.0
    %2231 = vmatprep.subr.mxu0 0.0
    %2232 = vmatpush1.msra.mxu0 0.0
    %2233 = vmatprep.subr.mxu0 0.0
    %2234 = vmatpush1.msra.mxu0 0.0
    %2235 = vmatprep.subr.mxu0 0.0
    %2236 = vmatpush1.msra.mxu0 0.0
    %2237 = vmatprep.subr.mxu0 0.0
    %2238 = vmatpush1.msra.mxu0 0.0
    %2239 = vmatprep.subr.mxu0 0.0
    %2240 = vmatpush1.msra.mxu0 0.0
    %2241 = vmatprep.subr.mxu0 0.0
    %2242 = vmatpush1.msra.mxu0 0.0
    %2243 = vmatprep.subr.mxu0 0.0
    %2244 = vmatpush1.msra.mxu0 0.0
    %2245 = vmatprep.mubr.f32.mxu0 0.0
    %2246 = vmatmul.mubr.f32.gmra.mrb[0].mxu0 %v2176
    %v2247 = vpop.f32.mrb[0].mxu0
    %v2248 = vadd.f32 0.0, %v2247
    %v2249 = vpop.f32.mrb[0].mxu0
    %2250 = vmatprep.mubr.f32.mxu0 0.0
    %2251 = vmatmul.mubr.f32.gmra.mrb[0].mxu0 %v2179
    %v2252 = vpop.f32.mrb[0].mxu0
    %v2253 = vadd.f32 0.0, %v2252
    %v2254 = vpop.f32.mrb[0].mxu0
    %2255 = vdwg.mxu0
    %2258 = vrot.lane.b32.xlu0 %v2248, 24
    %v2259 = vpop.permute.xlu0 %2258
    %2260 = vrot.lane.b32.xlu0 %v2253, 24
    %v2261 = vpop.permute.xlu0 %2260
    %2264 = vst.msk [vmem:[#allocation2 + $0x10] sm:$0xff] %vm1425, %v2259
    %2265 = vst.msk [vmem:[#allocation2 + $0x18] sm:$0xff] %vm1425, %v2261
    %v2266 = vld [vmem:[#allocation2] sm:$0xff]
    %v2267 = vld [vmem:[#allocation2 + $0x8] sm:$0xff]
    %v2268 = vld [vmem:[#allocation2 + $0x10] sm:$0xff]
    %v2269 = vld [vmem:[#allocation2 + $0x18] sm:$0xff]
    %v2270 = vld [vmem:[#allocation13] sm:$0xff]
    %v2271 = vld [vmem:[#allocation13 + $0x8] sm:$0xff]
    %v2272 = vld [vmem:[#allocation13 + $0x10] sm:$0xff]
    %v2273 = vld [vmem:[#allocation13 + $0x18] sm:$0xff]
    %v2274 = vld [vmem:[#allocation14] sm:$0x1]
    %v2276 = vlaneseq
    %v2277 = vshrl.u32 %v2276, 7
    %v2278 = vsub.s32 0, %v2277
    %v2279 = vrot.slane %v2274, %v2278
    %v2282 = vsel %vm403, %v2266, 0
    %v2285 = vsel %vm403, %v2267, 0
    %v2288 = vsel %vm403, %v2268, 0
    %v2291 = vsel %vm403, %v2269, 0
    %2293 = vmatprep.subr.mxu0 0.0
    %2294 = vmatpush1.msra.mxu0 %v2270
    %2295 = vmatprep.subr.mxu0 0.0
    %2296 = vmatpush1.msra.mxu0 %v2271
    %2297 = vmatprep.subr.mxu0 0.0
    %2298 = vmatpush1.msra.mxu0 %v2272
    %2299 = vmatprep.subr.mxu0 0.0
    %2300 = vmatpush1.msra.mxu0 %v2273
    %2301 = vmatprep.subr.mxu0 0.0
    %2302 = vmatpush1.msra.mxu0 0.0
    %2303 = vmatprep.subr.mxu0 0.0
    %2304 = vmatpush1.msra.mxu0 0.0
    %2305 = vmatprep.subr.mxu0 0.0
    %2306 = vmatpush1.msra.mxu0 0.0
    %2307 = vmatprep.subr.mxu0 0.0
    %2308 = vmatpush1.msra.mxu0 0.0
    %2309 = vmatprep.subr.mxu0 0.0
    %2310 = vmatpush1.msra.mxu0 0.0
    %2311 = vmatprep.subr.mxu0 0.0
    %2312 = vmatpush1.msra.mxu0 0.0
    %2313 = vmatprep.subr.mxu0 0.0
    %2314 = vmatpush1.msra.mxu0 0.0
    %2315 = vmatprep.subr.mxu0 0.0
    %2316 = vmatpush1.msra.mxu0 0.0
    %2317 = vmatprep.subr.mxu0 0.0
    %2318 = vmatpush1.msra.mxu0 0.0
    %2319 = vmatprep.subr.mxu0 0.0
    %2320 = vmatpush1.msra.mxu0 0.0
    %2321 = vmatprep.subr.mxu0 0.0
    %2322 = vmatpush1.msra.mxu0 0.0
    %2323 = vmatprep.subr.mxu0 0.0
    %2324 = vmatpush1.msra.mxu0 0.0
    %2325 = vmatprep.subr.mxu0 0.0
    %2326 = vmatpush1.msra.mxu0 0.0
    %2327 = vmatprep.subr.mxu0 0.0
    %2328 = vmatpush1.msra.mxu0 0.0
    %2329 = vmatprep.subr.mxu0 0.0
    %2330 = vmatpush1.msra.mxu0 0.0
    %2331 = vmatprep.subr.mxu0 0.0
    %2332 = vmatpush1.msra.mxu0 0.0
    %2333 = vmatprep.subr.mxu0 0.0
    %2334 = vmatpush1.msra.mxu0 0.0
    %2335 = vmatprep.subr.mxu0 0.0
    %2336 = vmatpush1.msra.mxu0 0.0
    %2337 = vmatprep.subr.mxu0 0.0
    %2338 = vmatpush1.msra.mxu0 0.0
    %2339 = vmatprep.subr.mxu0 0.0
    %2340 = vmatpush1.msra.mxu0 0.0
    %2341 = vmatprep.subr.mxu0 0.0
    %2342 = vmatpush1.msra.mxu0 0.0
    %2343 = vmatprep.subr.mxu0 0.0
    %2344 = vmatpush1.msra.mxu0 0.0
    %2345 = vmatprep.subr.mxu0 0.0
    %2346 = vmatpush1.msra.mxu0 0.0
    %2347 = vmatprep.subr.mxu0 0.0
    %2348 = vmatpush1.msra.mxu0 0.0
    %2349 = vmatprep.subr.mxu0 0.0
    %2350 = vmatpush1.msra.mxu0 0.0
    %2351 = vmatprep.subr.mxu0 0.0
    %2352 = vmatpush1.msra.mxu0 0.0
    %2353 = vmatprep.subr.mxu0 0.0
    %2354 = vmatpush1.msra.mxu0 0.0
    %2355 = vmatprep.subr.mxu0 0.0
    %2356 = vmatpush1.msra.mxu0 0.0
    %2357 = vmatprep.mubr.f32.mxu0 0.0
    %2358 = vmatmul.mubr.f32.gmra.mrb[0].mxu0 %v2282
    %v2359 = vpop.f32.mrb[0].mxu0
    %v2360 = vadd.f32 %v2279, %v2359
    %v2361 = vpop.f32.mrb[0].mxu0
    %2362 = vmatprep.mubr.f32.mxu0 0.0
    %2363 = vmatmul.mubr.f32.gmra.mrb[0].mxu0 %v2285
    %v2364 = vpop.f32.mrb[0].mxu0
    %v2365 = vadd.f32 %v2279, %v2364
    %v2366 = vpop.f32.mrb[0].mxu0
    %2367 = vmatprep.mubr.f32.mxu0 0.0
    %2368 = vmatmul.mubr.f32.gmra.mrb[0].mxu0 %v2288
    %v2369 = vpop.f32.mrb[0].mxu0
    %v2370 = vadd.f32 %v2279, %v2369
    %v2371 = vpop.f32.mrb[0].mxu0
    %2372 = vmatprep.mubr.f32.mxu0 0.0
    %2373 = vmatmul.mubr.f32.gmra.mrb[0].mxu0 %v2291
    %v2374 = vpop.f32.mrb[0].mxu0
    %v2375 = vadd.f32 %v2279, %v2374
    %v2376 = vpop.f32.mrb[0].mxu0
    %2377 = vdwg.mxu0
    %v2378 = vadd.f32 %v397, %v2360
    %v2379 = vadd.f32 %v398, %v2365
    %v2380 = vadd.f32 %v399, %v2370
    %v2381 = vadd.f32 %v400, %v2375
    %v2382 = vld [vmem:[#allocation16] sm:$0x1]
    %v2383 = vld [vmem:[#allocation17] sm:$0x1]
    %v2384 = vsel %vm403, %v2378, 0.0
    %2385 = vadd.xlane.f32.xlu0 %v2384
    %v2386 = vpop.xlane.xlu0 %2385
    %v2387 = vsel %vm403, %v2379, 0.0
    %2388 = vadd.xlane.f32.xlu0 %v2387
    %v2389 = vpop.xlane.xlu0 %2388
    %v2390 = vsel %vm403, %v2380, 0.0
    %2391 = vadd.xlane.f32.xlu0 %v2390
    %v2392 = vpop.xlane.xlu0 %2391
    %v2393 = vsel %vm403, %v2381, 0.0
    %2394 = vadd.xlane.f32.xlu0 %v2393
    %v2395 = vpop.xlane.xlu0 %2394
    %v2396 = vmul.f32 %v2386, %v416
    %v2397 = vmul.f32 %v2389, %v416
    %v2398 = vmul.f32 %v2392, %v416
    %v2399 = vmul.f32 %v2395, %v416
    %v2400 = vsub.f32 %v2378, %v2396
    %v2401 = vsub.f32 %v2379, %v2397
    %v2402 = vsub.f32 %v2380, %v2398
    %v2403 = vsub.f32 %v2381, %v2399
    %v2404 = vmul.f32 %v2400, %v2400
    %v2405 = vmul.f32 %v2401, %v2401
    %v2406 = vmul.f32 %v2402, %v2402
    %v2407 = vmul.f32 %v2403, %v2403
    %v2408 = vsel %vm403, %v2404, 0.0
    %2409 = vadd.xlane.f32.xlu0 %v2408
    %v2410 = vpop.xlane.xlu0 %2409
    %v2411 = vsel %vm403, %v2405, 0.0
    %2412 = vadd.xlane.f32.xlu0 %v2411
    %v2413 = vpop.xlane.xlu0 %2412
    %v2414 = vsel %vm403, %v2406, 0.0
    %2415 = vadd.xlane.f32.xlu0 %v2414
    %v2416 = vpop.xlane.xlu0 %2415
    %v2417 = vsel %vm403, %v2407, 0.0
    %2418 = vadd.xlane.f32.xlu0 %v2417
    %v2419 = vpop.xlane.xlu0 %2418
    %v2420 = vmul.f32 %v2410, %v416
    %v2421 = vmul.f32 %v2413, %v416
    %v2422 = vmul.f32 %v2416, %v416
    %v2423 = vmul.f32 %v2419, %v416
    %v2424 = vadd.f32 %v2420, 1e-06
    %v2425 = vadd.f32 %v2421, 1e-06
    %v2426 = vadd.f32 %v2422, 1e-06
    %v2427 = vadd.f32 %v2423, 1e-06
    %v2428 = vrsqrt.pop %v2424
    %v2429 = vrsqrt.pop %v2425
    %v2430 = vrsqrt.pop %v2426
    %v2431 = vrsqrt.pop %v2427
    %v2432 = vmul.f32 %v2400, %v2428
    %v2433 = vmul.f32 %v2401, %v2429
    %v2434 = vmul.f32 %v2402, %v2430
    %v2435 = vmul.f32 %v2403, %v2431
    %v2437 = vlaneseq
    %v2438 = vshrl.u32 %v2437, 7
    %v2439 = vsub.s32 0, %v2438
    %v2440 = vrot.slane %v2382, %v2439
    %v2442 = vmul.f32 %v2432, %v2440
    %v2443 = vmul.f32 %v2433, %v2440
    %v2444 = vmul.f32 %v2434, %v2440
    %v2445 = vmul.f32 %v2435, %v2440
    %v2447 = vlaneseq
    %v2448 = vshrl.u32 %v2447, 7
    %v2449 = vsub.s32 0, %v2448
    %v2450 = vrot.slane %v2383, %v2449
    %v2452 = vadd.f32 %v2442, %v2450
    %v2453 = vadd.f32 %v2443, %v2450
    %v2454 = vadd.f32 %v2444, %v2450
    %v2455 = vadd.f32 %v2445, %v2450
    %v2456 = vld [vmem:[#allocation19] sm:$0xff]
    %v2457 = vld [vmem:[#allocation19 + $0x8] sm:$0xff]
    %v2458 = vld [vmem:[#allocation19 + $0x10] sm:$0xff]
    %v2459 = vld [vmem:[#allocation19 + $0x18] sm:$0xff]
    %v2460 = vld [vmem:[#allocation20] sm:$0x1]
    %v2462 = vlaneseq
    %v2463 = vshrl.u32 %v2462, 7
    %v2464 = vsub.s32 0, %v2463
    %v2465 = vrot.slane %v2460, %v2464
    %v2468 = vsel %vm403, %v2452, 0
    %v2471 = vsel %vm403, %v2453, 0
    %v2474 = vsel %vm403, %v2454, 0
    %v2477 = vsel %vm403, %v2455, 0
    %2479 = vmatprep.subr.mxu0 0.0
    %2480 = vmatpush1.msra.mxu0 %v2456
    %2481 = vmatprep.subr.mxu0 0.0
    %2482 = vmatpush1.msra.mxu0 %v2457
    %2483 = vmatprep.subr.mxu0 0.0
    %2484 = vmatpush1.msra.mxu0 %v2458
    %2485 = vmatprep.subr.mxu0 0.0
    %2486 = vmatpush1.msra.mxu0 %v2459
    %2487 = vmatprep.subr.mxu0 0.0
    %2488 = vmatpush1.msra.mxu0 0.0
    %2489 = vmatprep.subr.mxu0 0.0
    %2490 = vmatpush1.msra.mxu0 0.0
    %2491 = vmatprep.subr.mxu0 0.0
    %2492 = vmatpush1.msra.mxu0 0.0
    %2493 = vmatprep.subr.mxu0 0.0
    %2494 = vmatpush1.msra.mxu0 0.0
    %2495 = vmatprep.subr.mxu0 0.0
    %2496 = vmatpush1.msra.mxu0 0.0
    %2497 = vmatprep.subr.mxu0 0.0
    %2498 = vmatpush1.msra.mxu0 0.0
    %2499 = vmatprep.subr.mxu0 0.0
    %2500 = vmatpush1.msra.mxu0 0.0
    %2501 = vmatprep.subr.mxu0 0.0
    %2502 = vmatpush1.msra.mxu0 0.0
    %2503 = vmatprep.subr.mxu0 0.0
    %2504 = vmatpush1.msra.mxu0 0.0
    %2505 = vmatprep.subr.mxu0 0.0
    %2506 = vmatpush1.msra.mxu0 0.0
    %2507 = vmatprep.subr.mxu0 0.0
    %2508 = vmatpush1.msra.mxu0 0.0
    %2509 = vmatprep.subr.mxu0 0.0
    %2510 = vmatpush1.msra.mxu0 0.0
    %2511 = vmatprep.subr.mxu0 0.0
    %2512 = vmatpush1.msra.mxu0 0.0
    %2513 = vmatprep.subr.mxu0 0.0
    %2514 = vmatpush1.msra.mxu0 0.0
    %2515 = vmatprep.subr.mxu0 0.0
    %2516 = vmatpush1.msra.mxu0 0.0
    %2517 = vmatprep.subr.mxu0 0.0
    %2518 = vmatpush1.msra.mxu0 0.0
    %2519 = vmatprep.subr.mxu0 0.0
    %2520 = vmatpush1.msra.mxu0 0.0
    %2521 = vmatprep.subr.mxu0 0.0
    %2522 = vmatpush1.msra.mxu0 0.0
    %2523 = vmatprep.subr.mxu0 0.0
    %2524 = vmatpush1.msra.mxu0 0.0
    %2525 = vmatprep.subr.mxu0 0.0
    %2526 = vmatpush1.msra.mxu0 0.0
    %2527 = vmatprep.subr.mxu0 0.0
    %2528 = vmatpush1.msra.mxu0 0.0
    %2529 = vmatprep.subr.mxu0 0.0
    %2530 = vmatpush1.msra.mxu0 0.0
    %2531 = vmatprep.subr.mxu0 0.0
    %2532 = vmatpush1.msra.mxu0 0.0
    %2533 = vmatprep.subr.mxu0 0.0
    %2534 = vmatpush1.msra.mxu0 0.0
    %2535 = vmatprep.subr.mxu0 0.0
    %2536 = vmatpush1.msra.mxu0 0.0
    %2537 = vmatprep.subr.mxu0 0.0
    %2538 = vmatpush1.msra.mxu0 0.0
    %2539 = vmatprep.subr.mxu0 0.0
    %2540 = vmatpush1.msra.mxu0 0.0
    %2541 = vmatprep.subr.mxu0 0.0
    %2542 = vmatpush1.msra.mxu0 0.0
    %2543 = vmatprep.mubr.f32.mxu0 0.0
    %2544 = vmatmul.mubr.f32.gmra.mrb[0].mxu0 %v2468
    %v2545 = vpop.f32.mrb[0].mxu0
    %v2546 = vadd.f32 %v2465, %v2545
    %v2547 = vpop.f32.mrb[0].mxu0
    %2548 = vmatprep.mubr.f32.mxu0 0.0
    %2549 = vmatmul.mubr.f32.gmra.mrb[0].mxu0 %v2471
    %v2550 = vpop.f32.mrb[0].mxu0
    %v2551 = vadd.f32 %v2465, %v2550
    %v2552 = vpop.f32.mrb[0].mxu0
    %2553 = vmatprep.mubr.f32.mxu0 0.0
    %2554 = vmatmul.mubr.f32.gmra.mrb[0].mxu0 %v2474
    %v2555 = vpop.f32.mrb[0].mxu0
    %v2556 = vadd.f32 %v2465, %v2555
    %v2557 = vpop.f32.mrb[0].mxu0
    %2558 = vmatprep.mubr.f32.mxu0 0.0
    %2559 = vmatmul.mubr.f32.gmra.mrb[0].mxu0 %v2477
    %v2560 = vpop.f32.mrb[0].mxu0
    %v2561 = vadd.f32 %v2465, %v2560
    %v2562 = vpop.f32.mrb[0].mxu0
    %2563 = vdwg.mxu0
    %v2564 = vmul.f32 %v2546, 0.5
    %v2565 = vmul.f32 %v2551, 0.5
    %v2566 = vmul.f32 %v2556, 0.5
    %v2567 = vmul.f32 %v2561, 0.5
    %v2568 = vmul.f32 %v2546, 0.70710677
    %v2569 = vmul.f32 %v2551, 0.70710677
    %v2570 = vmul.f32 %v2556, 0.70710677
    %v2571 = vmul.f32 %v2561, 0.70710677
    %v2572 = vand.u32 2147483647, %v2568
    %v2573 = vand.u32 2147483647, %v2569
    %v2574 = vand.u32 2147483647, %v2570
    %v2575 = vand.u32 2147483647, %v2571
    %v2576 = vmul.f32 %v2572, 0.3275911
    %v2577 = vmul.f32 %v2573, 0.3275911
    %v2578 = vmul.f32 %v2574, 0.3275911
    %v2579 = vmul.f32 %v2575, 0.3275911
    %v2580 = vadd.f32 %v2576, 1.0
    %v2581 = vadd.f32 %v2577, 1.0
    %v2582 = vadd.f32 %v2578, 1.0
    %v2583 = vadd.f32 %v2579, 1.0
    %v2584 = vrcp.pop %v2580
    %v2585 = vmul.f32 1.0, %v2584
    %v2586 = vrcp.pop %v2581
    %v2587 = vmul.f32 1.0, %v2586
    %v2588 = vrcp.pop %v2582
    %v2589 = vmul.f32 1.0, %v2588
    %v2590 = vrcp.pop %v2583
    %v2591 = vmul.f32 1.0, %v2590
    %v2592 = vmul.f32 %v2585, 1.0614054
    %v2593 = vmul.f32 %v2587, 1.0614054
    %v2594 = vmul.f32 %v2589, 1.0614054
    %v2595 = vmul.f32 %v2591, 1.0614054
    %v2596 = vadd.f32 %v2592, -1.4531521
    %v2597 = vadd.f32 %v2593, -1.4531521
    %v2598 = vadd.f32 %v2594, -1.4531521
    %v2599 = vadd.f32 %v2595, -1.4531521
    %v2600 = vmul.f32 %v2596, %v2585
    %v2601 = vmul.f32 %v2597, %v2587
    %v2602 = vmul.f32 %v2598, %v2589
    %v2603 = vmul.f32 %v2599, %v2591
    %v2604 = vadd.f32 %v2600, 1.4214138
    %v2605 = vadd.f32 %v2601, 1.4214138
    %v2606 = vadd.f32 %v2602, 1.4214138
    %v2607 = vadd.f32 %v2603, 1.4214138
    %v2608 = vmul.f32 %v2604, %v2585
    %v2609 = vmul.f32 %v2605, %v2587
    %v2610 = vmul.f32 %v2606, %v2589
    %v2611 = vmul.f32 %v2607, %v2591
    %v2612 = vadd.f32 %v2608, -0.28449672
    %v2613 = vadd.f32 %v2609, -0.28449672
    %v2614 = vadd.f32 %v2610, -0.28449672
    %v2615 = vadd.f32 %v2611, -0.28449672
    %v2616 = vmul.f32 %v2612, %v2585
    %v2617 = vmul.f32 %v2613, %v2587
    %v2618 = vmul.f32 %v2614, %v2589
    %v2619 = vmul.f32 %v2615, %v2591
    %v2620 = vadd.f32 %v2616, 0.2548296
    %v2621 = vadd.f32 %v2617, 0.2548296
    %v2622 = vadd.f32 %v2618, 0.2548296
    %v2623 = vadd.f32 %v2619, 0.2548296
    %v2624 = vmul.f32 %v2620, %v2585
    %v2625 = vmul.f32 %v2621, %v2587
    %v2626 = vmul.f32 %v2622, %v2589
    %v2627 = vmul.f32 %v2623, %v2591
    %v2628 = vsub.f32 0.0, %v2572
    %v2629 = vsub.f32 0.0, %v2573
    %v2630 = vsub.f32 0.0, %v2574
    %v2631 = vsub.f32 0.0, %v2575
    %v2632 = vmul.f32 %v2628, %v2572
    %v2633 = vmul.f32 %v2629, %v2573
    %v2634 = vmul.f32 %v2630, %v2574
    %v2635 = vmul.f32 %v2631, %v2575
    %v2636 = vmul.f32 %v2632, 1.442695
    %v2637 = vpow.pop %v2636
    %v2638 = vmul.f32 %v2633, 1.442695
    %v2639 = vpow.pop %v2638
    %v2640 = vmul.f32 %v2634, 1.442695
    %v2641 = vpow.pop %v2640
    %v2642 = vmul.f32 %v2635, 1.442695
    %v2643 = vpow.pop %v2642
    %v2644 = vmul.f32 %v2624, %v2637
    %v2645 = vmul.f32 %v2625, %v2639
    %v2646 = vmul.f32 %v2626, %v2641
    %v2647 = vmul.f32 %v2627, %v2643
    %v2648 = vsub.f32 1.0, %v2644
    %v2649 = vsub.f32 1.0, %v2645
    %v2650 = vsub.f32 1.0, %v2646
    %v2651 = vsub.f32 1.0, %v2647
    %vm2652 = vcmp.ge.f32.partialorder %v2568, 0.0
    %vm2653 = vcmp.ge.f32.partialorder %v2569, 0.0
    %vm2654 = vcmp.ge.f32.partialorder %v2570, 0.0
    %vm2655 = vcmp.ge.f32.partialorder %v2571, 0.0
    %v2656 = vsub.f32 0.0, %v2648
    %v2657 = vsub.f32 0.0, %v2649
    %v2658 = vsub.f32 0.0, %v2650
    %v2659 = vsub.f32 0.0, %v2651
    %v2660 = vsel %vm2652, %v2648, %v2656
    %v2661 = vsel %vm2653, %v2649, %v2657
    %v2662 = vsel %vm2654, %v2650, %v2658
    %v2663 = vsel %vm2655, %v2651, %v2659
    %v2664 = vadd.f32 %v2660, 1.0
    %v2665 = vadd.f32 %v2661, 1.0
    %v2666 = vadd.f32 %v2662, 1.0
    %v2667 = vadd.f32 %v2663, 1.0
    %v2668 = vmul.f32 %v2564, %v2664
    %v2669 = vmul.f32 %v2565, %v2665
    %v2670 = vmul.f32 %v2566, %v2666
    %v2671 = vmul.f32 %v2567, %v2667
    %v2672 = vld [vmem:[%s14] sm:$0xff]
    %v2673 = vld [vmem:[%s14 + $0x8] sm:$0xff]
    %v2674 = vld [vmem:[%s14 + $0x10] sm:$0xff]
    %v2675 = vld [vmem:[%s14 + $0x18] sm:$0xff]
    %v2676 = vld [vmem:[%s14 + $0x20] sm:$0xff]
    %v2677 = vld [vmem:[%s14 + $0x28] sm:$0xff]
    %v2678 = vld [vmem:[%s14 + $0x30] sm:$0xff]
    %v2679 = vld [vmem:[%s14 + $0x38] sm:$0xff]
    %v2680 = vld [vmem:[%s14 + $0x40] sm:$0xff]
    %v2681 = vld [vmem:[%s14 + $0x48] sm:$0xff]
    %v2682 = vld [vmem:[%s14 + $0x50] sm:$0xff]
    %v2683 = vld [vmem:[%s14 + $0x58] sm:$0xff]
    %v2684 = vld [vmem:[%s14 + $0x60] sm:$0xff]
    %v2685 = vld [vmem:[%s14 + $0x68] sm:$0xff]
    %v2686 = vld [vmem:[%s14 + $0x70] sm:$0xff]
    %v2687 = vld [vmem:[%s14 + $0x78] sm:$0xff]
    %v2688 = vld [vmem:[#allocation22] sm:$0x1]
    %v2690 = vlaneseq
    %v2691 = vshrl.u32 %v2690, 7
    %v2692 = vsub.s32 0, %v2691
    %v2693 = vrot.slane %v2688, %v2692
    %2695 = vmatprep.subr.mxu0 0.0
    %2696 = vmatpush1.msra.mxu0 %v2672
    %2697 = vmatprep.subr.mxu0 0.0
    %2698 = vmatpush1.msra.mxu0 %v2673
    %2699 = vmatprep.subr.mxu0 0.0
    %2700 = vmatpush1.msra.mxu0 %v2674
    %2701 = vmatprep.subr.mxu0 0.0
    %2702 = vmatpush1.msra.mxu0 %v2675
    %2703 = vmatprep.subr.mxu0 0.0
    %2704 = vmatpush1.msra.mxu0 %v2676
    %2705 = vmatprep.subr.mxu0 0.0
    %2706 = vmatpush1.msra.mxu0 %v2677
    %2707 = vmatprep.subr.mxu0 0.0
    %2708 = vmatpush1.msra.mxu0 %v2678
    %2709 = vmatprep.subr.mxu0 0.0
    %2710 = vmatpush1.msra.mxu0 %v2679
    %2711 = vmatprep.subr.mxu0 0.0
    %2712 = vmatpush1.msra.mxu0 %v2680
    %2713 = vmatprep.subr.mxu0 0.0
    %2714 = vmatpush1.msra.mxu0 %v2681
    %2715 = vmatprep.subr.mxu0 0.0
    %2716 = vmatpush1.msra.mxu0 %v2682
    %2717 = vmatprep.subr.mxu0 0.0
    %2718 = vmatpush1.msra.mxu0 %v2683
    %2719 = vmatprep.subr.mxu0 0.0
    %2720 = vmatpush1.msra.mxu0 %v2684
    %2721 = vmatprep.subr.mxu0 0.0
    %2722 = vmatpush1.msra.mxu0 %v2685
    %2723 = vmatprep.subr.mxu0 0.0
    %2724 = vmatpush1.msra.mxu0 %v2686
    %2725 = vmatprep.subr.mxu0 0.0
    %2726 = vmatpush1.msra.mxu0 %v2687
    %2727 = vmatprep.subr.mxu0 0.0
    %2728 = vmatpush1.msra.mxu0 0.0
    %2729 = vmatprep.subr.mxu0 0.0
    %2730 = vmatpush1.msra.mxu0 0.0
    %2731 = vmatprep.subr.mxu0 0.0
    %2732 = vmatpush1.msra.mxu0 0.0
    %2733 = vmatprep.subr.mxu0 0.0
    %2734 = vmatpush1.msra.mxu0 0.0
    %2735 = vmatprep.subr.mxu0 0.0
    %2736 = vmatpush1.msra.mxu0 0.0
    %2737 = vmatprep.subr.mxu0 0.0
    %2738 = vmatpush1.msra.mxu0 0.0
    %2739 = vmatprep.subr.mxu0 0.0
    %2740 = vmatpush1.msra.mxu0 0.0
    %2741 = vmatprep.subr.mxu0 0.0
    %2742 = vmatpush1.msra.mxu0 0.0
    %2743 = vmatprep.subr.mxu0 0.0
    %2744 = vmatpush1.msra.mxu0 0.0
    %2745 = vmatprep.subr.mxu0 0.0
    %2746 = vmatpush1.msra.mxu0 0.0
    %2747 = vmatprep.subr.mxu0 0.0
    %2748 = vmatpush1.msra.mxu0 0.0
    %2749 = vmatprep.subr.mxu0 0.0
    %2750 = vmatpush1.msra.mxu0 0.0
    %2751 = vmatprep.subr.mxu0 0.0
    %2752 = vmatpush1.msra.mxu0 0.0
    %2753 = vmatprep.subr.mxu0 0.0
    %2754 = vmatpush1.msra.mxu0 0.0
    %2755 = vmatprep.subr.mxu0 0.0
    %2756 = vmatpush1.msra.mxu0 0.0
    %2757 = vmatprep.subr.mxu0 0.0
    %2758 = vmatpush1.msra.mxu0 0.0
    %2759 = vmatprep.mubr.f32.mxu0 0.0
    %2760 = vmatmul.mubr.f32.gmra.mrb[0].mxu0 %v2668
    %v2761 = vpop.f32.mrb[0].mxu0
    %v2762 = vadd.f32 %v2693, %v2761
    %v2763 = vpop.f32.mrb[0].mxu0
    %2764 = vmatprep.mubr.f32.mxu0 0.0
    %2765 = vmatmul.mubr.f32.gmra.mrb[0].mxu0 %v2669
    %v2766 = vpop.f32.mrb[0].mxu0
    %v2767 = vadd.f32 %v2693, %v2766
    %v2768 = vpop.f32.mrb[0].mxu0
    %2769 = vmatprep.mubr.f32.mxu0 0.0
    %2770 = vmatmul.mubr.f32.gmra.mrb[0].mxu0 %v2670
    %v2771 = vpop.f32.mrb[0].mxu0
    %v2772 = vadd.f32 %v2693, %v2771
    %v2773 = vpop.f32.mrb[0].mxu0
    %2774 = vmatprep.mubr.f32.mxu0 0.0
    %2775 = vmatmul.mubr.f32.gmra.mrb[0].mxu0 %v2671
    %v2776 = vpop.f32.mrb[0].mxu0
    %v2777 = vadd.f32 %v2693, %v2776
    %v2778 = vpop.f32.mrb[0].mxu0
    %2779 = vdwg.mxu0
    %v2780 = vadd.f32 %v2378, %v2762
    %v2781 = vadd.f32 %v2379, %v2767
    %v2782 = vadd.f32 %v2380, %v2772
    %v2783 = vadd.f32 %v2381, %v2777
    %s2784 = scalar_lea.vmem [#allocation7], 1
    %v2785 = vld [vmem:[%s2784] sm:$0x1]
    %s2786 = scalar_lea.vmem [#allocation8], 1
    %v2787 = vld [vmem:[%s2786] sm:$0x1]
    %v2788 = vsel %vm403, %v2780, 0.0
    %2789 = vadd.xlane.f32.xlu0 %v2788
    %v2790 = vpop.xlane.xlu0 %2789
    %v2791 = vsel %vm403, %v2781, 0.0
    %2792 = vadd.xlane.f32.xlu0 %v2791
    %v2793 = vpop.xlane.xlu0 %2792
    %v2794 = vsel %vm403, %v2782, 0.0
    %2795 = vadd.xlane.f32.xlu0 %v2794
    %v2796 = vpop.xlane.xlu0 %2795
    %v2797 = vsel %vm403, %v2783, 0.0
    %2798 = vadd.xlane.f32.xlu0 %v2797
    %v2799 = vpop.xlane.xlu0 %2798
    %v2800 = vmul.f32 %v2790, %v416
    %v2801 = vmul.f32 %v2793, %v416
    %v2802 = vmul.f32 %v2796, %v416
    %v2803 = vmul.f32 %v2799, %v416
    %v2804 = vsub.f32 %v2780, %v2800
    %v2805 = vsub.f32 %v2781, %v2801
    %v2806 = vsub.f32 %v2782, %v2802
    %v2807 = vsub.f32 %v2783, %v2803
    %v2808 = vmul.f32 %v2804, %v2804
    %v2809 = vmul.f32 %v2805, %v2805
    %v2810 = vmul.f32 %v2806, %v2806
    %v2811 = vmul.f32 %v2807, %v2807
    %v2812 = vsel %vm403, %v2808, 0.0
    %2813 = vadd.xlane.f32.xlu0 %v2812
    %v2814 = vpop.xlane.xlu0 %2813
    %v2815 = vsel %vm403, %v2809, 0.0
    %2816 = vadd.xlane.f32.xlu0 %v2815
    %v2817 = vpop.xlane.xlu0 %2816
    %v2818 = vsel %vm403, %v2810, 0.0
    %2819 = vadd.xlane.f32.xlu0 %v2818
    %v2820 = vpop.xlane.xlu0 %2819
    %v2821 = vsel %vm403, %v2811, 0.0
    %2822 = vadd.xlane.f32.xlu0 %v2821
    %v2823 = vpop.xlane.xlu0 %2822
    %v2824 = vmul.f32 %v2814, %v416
    %v2825 = vmul.f32 %v2817, %v416
    %v2826 = vmul.f32 %v2820, %v416
    %v2827 = vmul.f32 %v2823, %v416
    %v2828 = vadd.f32 %v2824, 1e-06
    %v2829 = vadd.f32 %v2825, 1e-06
    %v2830 = vadd.f32 %v2826, 1e-06
    %v2831 = vadd.f32 %v2827, 1e-06
    %v2832 = vrsqrt.pop %v2828
    %v2833 = vrsqrt.pop %v2829
    %v2834 = vrsqrt.pop %v2830
    %v2835 = vrsqrt.pop %v2831
    %v2836 = vmul.f32 %v2804, %v2832
    %v2837 = vmul.f32 %v2805, %v2833
    %v2838 = vmul.f32 %v2806, %v2834
    %v2839 = vmul.f32 %v2807, %v2835
    %v2841 = vlaneseq
    %v2842 = vshrl.u32 %v2841, 7
    %v2843 = vsub.s32 0, %v2842
    %v2844 = vrot.slane %v2785, %v2843
    %v2846 = vmul.f32 %v2836, %v2844
    %v2847 = vmul.f32 %v2837, %v2844
    %v2848 = vmul.f32 %v2838, %v2844
    %v2849 = vmul.f32 %v2839, %v2844
    %v2851 = vlaneseq
    %v2852 = vshrl.u32 %v2851, 7
    %v2853 = vsub.s32 0, %v2852
    %v2854 = vrot.slane %v2787, %v2853
    %v2856 = vadd.f32 %v2846, %v2854
    %v2857 = vadd.f32 %v2847, %v2854
    %v2858 = vadd.f32 %v2848, %v2854
    %v2859 = vadd.f32 %v2849, %v2854
    %s2860 = scalar_lea.vmem [#allocation10], 32
    %v2861 = vld [vmem:[%s2860] sm:$0xff]
    %v2862 = vld [vmem:[%s2860 + $0x8] sm:$0xff]
    %v2863 = vld [vmem:[%s2860 + $0x10] sm:$0xff]
    %v2864 = vld [vmem:[%s2860 + $0x18] sm:$0xff]
    %s2865 = scalar_lea.vmem [#allocation11], 1
    %v2866 = vld [vmem:[%s2865] sm:$0x1]
    %v2868 = vlaneseq
    %v2869 = vshrl.u32 %v2868, 7
    %v2870 = vsub.s32 0, %v2869
    %v2871 = vrot.slane %v2866, %v2870
    %v2874 = vsel %vm403, %v2856, 0
    %v2877 = vsel %vm403, %v2857, 0
    %v2880 = vsel %vm403, %v2858, 0
    %v2883 = vsel %vm403, %v2859, 0
    %2885 = vmatprep.subr.mxu0 0.0
    %2886 = vmatpush1.msra.mxu0 %v2861
    %2887 = vmatprep.subr.mxu0 0.0
    %2888 = vmatpush1.msra.mxu0 %v2862
    %2889 = vmatprep.subr.mxu0 0.0
    %2890 = vmatpush1.msra.mxu0 %v2863
    %2891 = vmatprep.subr.mxu0 0.0
    %2892 = vmatpush1.msra.mxu0 %v2864
    %2893 = vmatprep.subr.mxu0 0.0
    %2894 = vmatpush1.msra.mxu0 0.0
    %2895 = vmatprep.subr.mxu0 0.0
    %2896 = vmatpush1.msra.mxu0 0.0
    %2897 = vmatprep.subr.mxu0 0.0
    %2898 = vmatpush1.msra.mxu0 0.0
    %2899 = vmatprep.subr.mxu0 0.0
    %2900 = vmatpush1.msra.mxu0 0.0
    %2901 = vmatprep.subr.mxu0 0.0
    %2902 = vmatpush1.msra.mxu0 0.0
    %2903 = vmatprep.subr.mxu0 0.0
    %2904 = vmatpush1.msra.mxu0 0.0
    %2905 = vmatprep.subr.mxu0 0.0
    %2906 = vmatpush1.msra.mxu0 0.0
    %2907 = vmatprep.subr.mxu0 0.0
    %2908 = vmatpush1.msra.mxu0 0.0
    %2909 = vmatprep.subr.mxu0 0.0
    %2910 = vmatpush1.msra.mxu0 0.0
    %2911 = vmatprep.subr.mxu0 0.0
    %2912 = vmatpush1.msra.mxu0 0.0
    %2913 = vmatprep.subr.mxu0 0.0
    %2914 = vmatpush1.msra.mxu0 0.0
    %2915 = vmatprep.subr.mxu0 0.0
    %2916 = vmatpush1.msra.mxu0 0.0
    %2917 = vmatprep.subr.mxu0 0.0
    %2918 = vmatpush1.msra.mxu0 0.0
    %2919 = vmatprep.subr.mxu0 0.0
    %2920 = vmatpush1.msra.mxu0 0.0
    %2921 = vmatprep.subr.mxu0 0.0
    %2922 = vmatpush1.msra.mxu0 0.0
    %2923 = vmatprep.subr.mxu0 0.0
    %2924 = vmatpush1.msra.mxu0 0.0
    %2925 = vmatprep.subr.mxu0 0.0
    %2926 = vmatpush1.msra.mxu0 0.0
    %2927 = vmatprep.subr.mxu0 0.0
    %2928 = vmatpush1.msra.mxu0 0.0
    %2929 = vmatprep.subr.mxu0 0.0
    %2930 = vmatpush1.msra.mxu0 0.0
    %2931 = vmatprep.subr.mxu0 0.0
    %2932 = vmatpush1.msra.mxu0 0.0
    %2933 = vmatprep.subr.mxu0 0.0
    %2934 = vmatpush1.msra.mxu0 0.0
    %2935 = vmatprep.subr.mxu0 0.0
    %2936 = vmatpush1.msra.mxu0 0.0
    %2937 = vmatprep.subr.mxu0 0.0
    %2938 = vmatpush1.msra.mxu0 0.0
    %2939 = vmatprep.subr.mxu0 0.0
    %2940 = vmatpush1.msra.mxu0 0.0
    %2941 = vmatprep.subr.mxu0 0.0
    %2942 = vmatpush1.msra.mxu0 0.0
    %2943 = vmatprep.subr.mxu0 0.0
    %2944 = vmatpush1.msra.mxu0 0.0
    %2945 = vmatprep.subr.mxu0 0.0
    %2946 = vmatpush1.msra.mxu0 0.0
    %2947 = vmatprep.subr.mxu0 0.0
    %2948 = vmatpush1.msra.mxu0 0.0
    %2949 = vmatprep.mubr.f32.mxu0 0.0
    %2950 = vmatmul.mubr.f32.gmra.mrb[0].mxu0 %v2874
    %v2951 = vpop.f32.mrb[0].mxu0
    %v2952 = vadd.f32 %v2871, %v2951
    %v2953 = vpop.f32.mrb[0].mxu0
    %2954 = vmatprep.mubr.f32.mxu0 0.0
    %2955 = vmatmul.mubr.f32.gmra.mrb[0].mxu0 %v2877
    %v2956 = vpop.f32.mrb[0].mxu0
    %v2957 = vadd.f32 %v2871, %v2956
    %v2958 = vpop.f32.mrb[0].mxu0
    %2959 = vmatprep.mubr.f32.mxu0 0.0
    %2960 = vmatmul.mubr.f32.gmra.mrb[0].mxu0 %v2880
    %v2961 = vpop.f32.mrb[0].mxu0
    %v2962 = vadd.f32 %v2871, %v2961
    %v2963 = vpop.f32.mrb[0].mxu0
    %2964 = vmatprep.mubr.f32.mxu0 0.0
    %2965 = vmatmul.mubr.f32.gmra.mrb[0].mxu0 %v2883
    %v2966 = vpop.f32.mrb[0].mxu0
    %v2967 = vadd.f32 %v2871, %v2966
    %v2968 = vpop.f32.mrb[0].mxu0
    %2969 = vdwg.mxu0
    %2972 = vrot.lane.b32.xlu0 %v2952, 96
    %v2973 = vpop.permute.xlu0 %2972
    %2974 = vrot.lane.b32.xlu0 %v2957, 96
    %v2975 = vpop.permute.xlu0 %2974
    %v2976 = vsel %vm591, %v2952, 0
    %v2978 = vsel %vm591, %v2957, 0
    %v2980 = vsel %vm591, %v2973, 0
    %v2982 = vsel %vm591, %v2975, 0
    %2984 = vmatprep.subr.mxu0 0.0
    %2985 = vmatpush1.xpose.msra.mxu0 %v2980
    %2986 = vmatprep.subr.mxu0 0.0
    %2987 = vmatpush1.xpose.msra.mxu0 %v2982
    %2988 = vmatprep.subr.mxu0 0.0
    %2989 = vmatpush1.xpose.msra.mxu0 0.0
    %2990 = vmatprep.subr.mxu0 0.0
    %2991 = vmatpush1.xpose.msra.mxu0 0.0
    %2992 = vmatprep.subr.mxu0 0.0
    %2993 = vmatpush1.xpose.msra.mxu0 0.0
    %2994 = vmatprep.subr.mxu0 0.0
    %2995 = vmatpush1.xpose.msra.mxu0 0.0
    %2996 = vmatprep.subr.mxu0 0.0
    %2997 = vmatpush1.xpose.msra.mxu0 0.0
    %2998 = vmatprep.subr.mxu0 0.0
    %2999 = vmatpush1.xpose.msra.mxu0 0.0
    %3000 = vmatprep.subr.mxu0 0.0
    %3001 = vmatpush1.xpose.msra.mxu0 0.0
    %3002 = vmatprep.subr.mxu0 0.0
    %3003 = vmatpush1.xpose.msra.mxu0 0.0
    %3004 = vmatprep.subr.mxu0 0.0
    %3005 = vmatpush1.xpose.msra.mxu0 0.0
    %3006 = vmatprep.subr.mxu0 0.0
    %3007 = vmatpush1.xpose.msra.mxu0 0.0
    %3008 = vmatprep.subr.mxu0 0.0
    %3009 = vmatpush1.xpose.msra.mxu0 0.0
    %3010 = vmatprep.subr.mxu0 0.0
    %3011 = vmatpush1.xpose.msra.mxu0 0.0
    %3012 = vmatprep.subr.mxu0 0.0
    %3013 = vmatpush1.xpose.msra.mxu0 0.0
    %3014 = vmatprep.subr.mxu0 0.0
    %3015 = vmatpush1.xpose.msra.mxu0 0.0
    %3016 = vmatprep.subr.mxu0 0.0
    %3017 = vmatpush1.xpose.msra.mxu0 0.0
    %3018 = vmatprep.subr.mxu0 0.0
    %3019 = vmatpush1.xpose.msra.mxu0 0.0
    %3020 = vmatprep.subr.mxu0 0.0
    %3021 = vmatpush1.xpose.msra.mxu0 0.0
    %3022 = vmatprep.subr.mxu0 0.0
    %3023 = vmatpush1.xpose.msra.mxu0 0.0
    %3024 = vmatprep.subr.mxu0 0.0
    %3025 = vmatpush1.xpose.msra.mxu0 0.0
    %3026 = vmatprep.subr.mxu0 0.0
    %3027 = vmatpush1.xpose.msra.mxu0 0.0
    %3028 = vmatprep.subr.mxu0 0.0
    %3029 = vmatpush1.xpose.msra.mxu0 0.0
    %3030 = vmatprep.subr.mxu0 0.0
    %3031 = vmatpush1.xpose.msra.mxu0 0.0
    %3032 = vmatprep.subr.mxu0 0.0
    %3033 = vmatpush1.xpose.msra.mxu0 0.0
    %3034 = vmatprep.subr.mxu0 0.0
    %3035 = vmatpush1.xpose.msra.mxu0 0.0
    %3036 = vmatprep.subr.mxu0 0.0
    %3037 = vmatpush1.xpose.msra.mxu0 0.0
    %3038 = vmatprep.subr.mxu0 0.0
    %3039 = vmatpush1.xpose.msra.mxu0 0.0
    %3040 = vmatprep.subr.mxu0 0.0
    %3041 = vmatpush1.xpose.msra.mxu0 0.0
    %3042 = vmatprep.subr.mxu0 0.0
    %3043 = vmatpush1.xpose.msra.mxu0 0.0
    %3044 = vmatprep.subr.mxu0 0.0
    %3045 = vmatpush1.xpose.msra.mxu0 0.0
    %3046 = vmatprep.subr.mxu0 0.0
    %3047 = vmatpush1.xpose.msra.mxu0 0.0
    %3048 = vmatprep.mubr.f32.mxu0 0.0
    %3049 = vmatmul.mubr.f32.gmra.mrb[0].mxu0 %v2976
    %v3050 = vpop.f32.mrb[0].mxu0
    %v3051 = vadd.f32 0.0, %v3050
    %v3052 = vpop.f32.mrb[0].mxu0
    %3053 = vmatprep.mubr.f32.mxu0 0.0
    %3054 = vmatmul.mubr.f32.gmra.mrb[0].mxu0 %v2978
    %v3055 = vpop.f32.mrb[0].mxu0
    %v3056 = vadd.f32 0.0, %v3055
    %v3057 = vpop.f32.mrb[0].mxu0
    %3058 = vdwg.mxu0
    %v3059 = vmul.f32 %v3051, 0.35355338
    %v3060 = vmul.f32 %v3056, 0.35355338
    %v3061 = vsel %vm677, %v3059, -inf
    %3062 = vmax.xlane.f32.xlu0 %v3061
    %v3063 = vpop.xlane.xlu0 %3062
    %v3064 = vsel %vm677, %v3060, -inf
    %3065 = vmax.xlane.f32.xlu0 %v3064
    %v3066 = vpop.xlane.xlu0 %3065
    %v3067 = vsub.f32 %v3059, %v3063
    %v3068 = vsub.f32 %v3060, %v3066
    %v3069 = vmul.f32 %v3067, 1.442695
    %v3070 = vpow.pop %v3069
    %v3071 = vmul.f32 %v3068, 1.442695
    %v3072 = vpow.pop %v3071
    %v3073 = vsel %vm677, %v3070, 0.0
    %3074 = vadd.xlane.f32.xlu0 %v3073
    %v3075 = vpop.xlane.xlu0 %3074
    %v3076 = vsel %vm677, %v3072, 0.0
    %3077 = vadd.xlane.f32.xlu0 %v3076
    %v3078 = vpop.xlane.xlu0 %3077
    %v3079 = vrcp.pop %v3075
    %v3080 = vrcp.pop %v3078
    %v3081 = vmul.f32 %v3070, %v3079
    %v3082 = vmul.f32 %v3072, %v3080
    %3083 = vrot.lane.b32.xlu0 %v2952, 64
    %v3084 = vpop.permute.xlu0 %3083
    %3085 = vrot.lane.b32.xlu0 %v2957, 64
    %v3086 = vpop.permute.xlu0 %3085
    %v3090 = vsel %vm677, %v3081, 0
    %v3093 = vsel %vm677, %v3082, 0
    %3095 = vmatprep.subr.mxu0 0.0
    %3096 = vmatpush1.msra.mxu0 %v3084
    %3097 = vmatprep.subr.mxu0 0.0
    %3098 = vmatpush1.msra.mxu0 %v3086
    %3099 = vmatprep.subr.mxu0 0.0
    %3100 = vmatpush1.msra.mxu0 0.0
    %3101 = vmatprep.subr.mxu0 0.0
    %3102 = vmatpush1.msra.mxu0 0.0
    %3103 = vmatprep.subr.mxu0 0.0
    %3104 = vmatpush1.msra.mxu0 0.0
    %3105 = vmatprep.subr.mxu0 0.0
    %3106 = vmatpush1.msra.mxu0 0.0
    %3107 = vmatprep.subr.mxu0 0.0
    %3108 = vmatpush1.msra.mxu0 0.0
    %3109 = vmatprep.subr.mxu0 0.0
    %3110 = vmatpush1.msra.mxu0 0.0
    %3111 = vmatprep.subr.mxu0 0.0
    %3112 = vmatpush1.msra.mxu0 0.0
    %3113 = vmatprep.subr.mxu0 0.0
    %3114 = vmatpush1.msra.mxu0 0.0
    %3115 = vmatprep.subr.mxu0 0.0
    %3116 = vmatpush1.msra.mxu0 0.0
    %3117 = vmatprep.subr.mxu0 0.0
    %3118 = vmatpush1.msra.mxu0 0.0
    %3119 = vmatprep.subr.mxu0 0.0
    %3120 = vmatpush1.msra.mxu0 0.0
    %3121 = vmatprep.subr.mxu0 0.0
    %3122 = vmatpush1.msra.mxu0 0.0
    %3123 = vmatprep.subr.mxu0 0.0
    %3124 = vmatpush1.msra.mxu0 0.0
    %3125 = vmatprep.subr.mxu0 0.0
    %3126 = vmatpush1.msra.mxu0 0.0
    %3127 = vmatprep.subr.mxu0 0.0
    %3128 = vmatpush1.msra.mxu0 0.0
    %3129 = vmatprep.subr.mxu0 0.0
    %3130 = vmatpush1.msra.mxu0 0.0
    %3131 = vmatprep.subr.mxu0 0.0
    %3132 = vmatpush1.msra.mxu0 0.0
    %3133 = vmatprep.subr.mxu0 0.0
    %3134 = vmatpush1.msra.mxu0 0.0
    %3135 = vmatprep.subr.mxu0 0.0
    %3136 = vmatpush1.msra.mxu0 0.0
    %3137 = vmatprep.subr.mxu0 0.0
    %3138 = vmatpush1.msra.mxu0 0.0
    %3139 = vmatprep.subr.mxu0 0.0
    %3140 = vmatpush1.msra.mxu0 0.0
    %3141 = vmatprep.subr.mxu0 0.0
    %3142 = vmatpush1.msra.mxu0 0.0
    %3143 = vmatprep.subr.mxu0 0.0
    %3144 = vmatpush1.msra.mxu0 0.0
    %3145 = vmatprep.subr.mxu0 0.0
    %3146 = vmatpush1.msra.mxu0 0.0
    %3147 = vmatprep.subr.mxu0 0.0
    %3148 = vmatpush1.msra.mxu0 0.0
    %3149 = vmatprep.subr.mxu0 0.0
    %3150 = vmatpush1.msra.mxu0 0.0
    %3151 = vmatprep.subr.mxu0 0.0
    %3152 = vmatpush1.msra.mxu0 0.0
    %3153 = vmatprep.subr.mxu0 0.0
    %3154 = vmatpush1.msra.mxu0 0.0
    %3155 = vmatprep.subr.mxu0 0.0
    %3156 = vmatpush1.msra.mxu0 0.0
    %3157 = vmatprep.subr.mxu0 0.0
    %3158 = vmatpush1.msra.mxu0 0.0
    %3159 = vmatprep.mubr.f32.mxu0 0.0
    %3160 = vmatmul.mubr.f32.gmra.mrb[0].mxu0 %v3090
    %v3161 = vpop.f32.mrb[0].mxu0
    %v3162 = vadd.f32 0.0, %v3161
    %v3163 = vpop.f32.mrb[0].mxu0
    %3164 = vmatprep.mubr.f32.mxu0 0.0
    %3165 = vmatmul.mubr.f32.gmra.mrb[0].mxu0 %v3093
    %v3166 = vpop.f32.mrb[0].mxu0
    %v3167 = vadd.f32 0.0, %v3166
    %v3168 = vpop.f32.mrb[0].mxu0
    %3169 = vdwg.mxu0
    %3170 = vst.msk [vmem:[#allocation2] sm:$0xff] %vm591, %v3162
    %3171 = vst.msk [vmem:[#allocation2 + $0x8] sm:$0xff] %vm591, %v3167
    %3172 = vrot.lane.b32.xlu0 %v2952, 120
    %v3173 = vpop.permute.xlu0 %3172
    %3174 = vrot.lane.b32.xlu0 %v2957, 120
    %v3175 = vpop.permute.xlu0 %3174
    %3176 = vrot.lane.b32.xlu0 %v2952, 88
    %v3177 = vpop.permute.xlu0 %3176
    %3178 = vrot.lane.b32.xlu0 %v2957, 88
    %v3179 = vpop.permute.xlu0 %3178
    %v3180 = vsel %vm591, %v3173, 0
    %v3182 = vsel %vm591, %v3175, 0
    %v3184 = vsel %vm591, %v3177, 0
    %v3186 = vsel %vm591, %v3179, 0
    %3188 = vmatprep.subr.mxu0 0.0
    %3189 = vmatpush1.xpose.msra.mxu0 %v3184
    %3190 = vmatprep.subr.mxu0 0.0
    %3191 = vmatpush1.xpose.msra.mxu0 %v3186
    %3192 = vmatprep.subr.mxu0 0.0
    %3193 = vmatpush1.xpose.msra.mxu0 0.0
    %3194 = vmatprep.subr.mxu0 0.0
    %3195 = vmatpush1.xpose.msra.mxu0 0.0
    %3196 = vmatprep.subr.mxu0 0.0
    %3197 = vmatpush1.xpose.msra.mxu0 0.0
    %3198 = vmatprep.subr.mxu0 0.0
    %3199 = vmatpush1.xpose.msra.mxu0 0.0
    %3200 = vmatprep.subr.mxu0 0.0
    %3201 = vmatpush1.xpose.msra.mxu0 0.0
    %3202 = vmatprep.subr.mxu0 0.0
    %3203 = vmatpush1.xpose.msra.mxu0 0.0
    %3204 = vmatprep.subr.mxu0 0.0
    %3205 = vmatpush1.xpose.msra.mxu0 0.0
    %3206 = vmatprep.subr.mxu0 0.0
    %3207 = vmatpush1.xpose.msra.mxu0 0.0
    %3208 = vmatprep.subr.mxu0 0.0
    %3209 = vmatpush1.xpose.msra.mxu0 0.0
    %3210 = vmatprep.subr.mxu0 0.0
    %3211 = vmatpush1.xpose.msra.mxu0 0.0
    %3212 = vmatprep.subr.mxu0 0.0
    %3213 = vmatpush1.xpose.msra.mxu0 0.0
    %3214 = vmatprep.subr.mxu0 0.0
    %3215 = vmatpush1.xpose.msra.mxu0 0.0
    %3216 = vmatprep.subr.mxu0 0.0
    %3217 = vmatpush1.xpose.msra.mxu0 0.0
    %3218 = vmatprep.subr.mxu0 0.0
    %3219 = vmatpush1.xpose.msra.mxu0 0.0
    %3220 = vmatprep.subr.mxu0 0.0
    %3221 = vmatpush1.xpose.msra.mxu0 0.0
    %3222 = vmatprep.subr.mxu0 0.0
    %3223 = vmatpush1.xpose.msra.mxu0 0.0
    %3224 = vmatprep.subr.mxu0 0.0
    %3225 = vmatpush1.xpose.msra.mxu0 0.0
    %3226 = vmatprep.subr.mxu0 0.0
    %3227 = vmatpush1.xpose.msra.mxu0 0.0
    %3228 = vmatprep.subr.mxu0 0.0
    %3229 = vmatpush1.xpose.msra.mxu0 0.0
    %3230 = vmatprep.subr.mxu0 0.0
    %3231 = vmatpush1.xpose.msra.mxu0 0.0
    %3232 = vmatprep.subr.mxu0 0.0
    %3233 = vmatpush1.xpose.msra.mxu0 0.0
    %3234 = vmatprep.subr.mxu0 0.0
    %3235 = vmatpush1.xpose.msra.mxu0 0.0
    %3236 = vmatprep.subr.mxu0 0.0
    %3237 = vmatpush1.xpose.msra.mxu0 0.0
    %3238 = vmatprep.subr.mxu0 0.0
    %3239 = vmatpush1.xpose.msra.mxu0 0.0
    %3240 = vmatprep.subr.mxu0 0.0
    %3241 = vmatpush1.xpose.msra.mxu0 0.0
    %3242 = vmatprep.subr.mxu0 0.0
    %3243 = vmatpush1.xpose.msra.mxu0 0.0
    %3244 = vmatprep.subr.mxu0 0.0
    %3245 = vmatpush1.xpose.msra.mxu0 0.0
    %3246 = vmatprep.subr.mxu0 0.0
    %3247 = vmatpush1.xpose.msra.mxu0 0.0
    %3248 = vmatprep.subr.mxu0 0.0
    %3249 = vmatpush1.xpose.msra.mxu0 0.0
    %3250 = vmatprep.subr.mxu0 0.0
    %3251 = vmatpush1.xpose.msra.mxu0 0.0
    %3252 = vmatprep.mubr.f32.mxu0 0.0
    %3253 = vmatmul.mubr.f32.gmra.mrb[0].mxu0 %v3180
    %v3254 = vpop.f32.mrb[0].mxu0
    %v3255 = vadd.f32 0.0, %v3254
    %v3256 = vpop.f32.mrb[0].mxu0
    %3257 = vmatprep.mubr.f32.mxu0 0.0
    %3258 = vmatmul.mubr.f32.gmra.mrb[0].mxu0 %v3182
    %v3259 = vpop.f32.mrb[0].mxu0
    %v3260 = vadd.f32 0.0, %v3259
    %v3261 = vpop.f32.mrb[0].mxu0
    %3262 = vdwg.mxu0
    %v3263 = vmul.f32 %v3255, 0.35355338
    %v3264 = vmul.f32 %v3260, 0.35355338
    %v3265 = vsel %vm677, %v3263, -inf
    %3266 = vmax.xlane.f32.xlu0 %v3265
    %v3267 = vpop.xlane.xlu0 %3266
    %v3268 = vsel %vm677, %v3264, -inf
    %3269 = vmax.xlane.f32.xlu0 %v3268
    %v3270 = vpop.xlane.xlu0 %3269
    %v3271 = vsub.f32 %v3263, %v3267
    %v3272 = vsub.f32 %v3264, %v3270
    %v3273 = vmul.f32 %v3271, 1.442695
    %v3274 = vpow.pop %v3273
    %v3275 = vmul.f32 %v3272, 1.442695
    %v3276 = vpow.pop %v3275
    %v3277 = vsel %vm677, %v3274, 0.0
    %3278 = vadd.xlane.f32.xlu0 %v3277
    %v3279 = vpop.xlane.xlu0 %3278
    %v3280 = vsel %vm677, %v3276, 0.0
    %3281 = vadd.xlane.f32.xlu0 %v3280
    %v3282 = vpop.xlane.xlu0 %3281
    %v3283 = vrcp.pop %v3279
    %v3284 = vrcp.pop %v3282
    %v3285 = vmul.f32 %v3274, %v3283
    %v3286 = vmul.f32 %v3276, %v3284
    %3287 = vrot.lane.b32.xlu0 %v2952, 56
    %v3288 = vpop.permute.xlu0 %3287
    %3289 = vrot.lane.b32.xlu0 %v2957, 56
    %v3290 = vpop.permute.xlu0 %3289
    %v3294 = vsel %vm677, %v3285, 0
    %v3297 = vsel %vm677, %v3286, 0
    %3299 = vmatprep.subr.mxu0 0.0
    %3300 = vmatpush1.msra.mxu0 %v3288
    %3301 = vmatprep.subr.mxu0 0.0
    %3302 = vmatpush1.msra.mxu0 %v3290
    %3303 = vmatprep.subr.mxu0 0.0
    %3304 = vmatpush1.msra.mxu0 0.0
    %3305 = vmatprep.subr.mxu0 0.0
    %3306 = vmatpush1.msra.mxu0 0.0
    %3307 = vmatprep.subr.mxu0 0.0
    %3308 = vmatpush1.msra.mxu0 0.0
    %3309 = vmatprep.subr.mxu0 0.0
    %3310 = vmatpush1.msra.mxu0 0.0
    %3311 = vmatprep.subr.mxu0 0.0
    %3312 = vmatpush1.msra.mxu0 0.0
    %3313 = vmatprep.subr.mxu0 0.0
    %3314 = vmatpush1.msra.mxu0 0.0
    %3315 = vmatprep.subr.mxu0 0.0
    %3316 = vmatpush1.msra.mxu0 0.0
    %3317 = vmatprep.subr.mxu0 0.0
    %3318 = vmatpush1.msra.mxu0 0.0
    %3319 = vmatprep.subr.mxu0 0.0
    %3320 = vmatpush1.msra.mxu0 0.0
    %3321 = vmatprep.subr.mxu0 0.0
    %3322 = vmatpush1.msra.mxu0 0.0
    %3323 = vmatprep.subr.mxu0 0.0
    %3324 = vmatpush1.msra.mxu0 0.0
    %3325 = vmatprep.subr.mxu0 0.0
    %3326 = vmatpush1.msra.mxu0 0.0
    %3327 = vmatprep.subr.mxu0 0.0
    %3328 = vmatpush1.msra.mxu0 0.0
    %3329 = vmatprep.subr.mxu0 0.0
    %3330 = vmatpush1.msra.mxu0 0.0
    %3331 = vmatprep.subr.mxu0 0.0
    %3332 = vmatpush1.msra.mxu0 0.0
    %3333 = vmatprep.subr.mxu0 0.0
    %3334 = vmatpush1.msra.mxu0 0.0
    %3335 = vmatprep.subr.mxu0 0.0
    %3336 = vmatpush1.msra.mxu0 0.0
    %3337 = vmatprep.subr.mxu0 0.0
    %3338 = vmatpush1.msra.mxu0 0.0
    %3339 = vmatprep.subr.mxu0 0.0
    %3340 = vmatpush1.msra.mxu0 0.0
    %3341 = vmatprep.subr.mxu0 0.0
    %3342 = vmatpush1.msra.mxu0 0.0
    %3343 = vmatprep.subr.mxu0 0.0
    %3344 = vmatpush1.msra.mxu0 0.0
    %3345 = vmatprep.subr.mxu0 0.0
    %3346 = vmatpush1.msra.mxu0 0.0
    %3347 = vmatprep.subr.mxu0 0.0
    %3348 = vmatpush1.msra.mxu0 0.0
    %3349 = vmatprep.subr.mxu0 0.0
    %3350 = vmatpush1.msra.mxu0 0.0
    %3351 = vmatprep.subr.mxu0 0.0
    %3352 = vmatpush1.msra.mxu0 0.0
    %3353 = vmatprep.subr.mxu0 0.0
    %3354 = vmatpush1.msra.mxu0 0.0
    %3355 = vmatprep.subr.mxu0 0.0
    %3356 = vmatpush1.msra.mxu0 0.0
    %3357 = vmatprep.subr.mxu0 0.0
    %3358 = vmatpush1.msra.mxu0 0.0
    %3359 = vmatprep.subr.mxu0 0.0
    %3360 = vmatpush1.msra.mxu0 0.0
    %3361 = vmatprep.subr.mxu0 0.0
    %3362 = vmatpush1.msra.mxu0 0.0
    %3363 = vmatprep.mubr.f32.mxu0 0.0
    %3364 = vmatmul.mubr.f32.gmra.mrb[0].mxu0 %v3294
    %v3365 = vpop.f32.mrb[0].mxu0
    %v3366 = vadd.f32 0.0, %v3365
    %v3367 = vpop.f32.mrb[0].mxu0
    %3368 = vmatprep.mubr.f32.mxu0 0.0
    %3369 = vmatmul.mubr.f32.gmra.mrb[0].mxu0 %v3297
    %v3370 = vpop.f32.mrb[0].mxu0
    %v3371 = vadd.f32 0.0, %v3370
    %v3372 = vpop.f32.mrb[0].mxu0
    %3373 = vdwg.mxu0
    %3376 = vrot.lane.b32.xlu0 %v3366, 8
    %v3377 = vpop.permute.xlu0 %3376
    %3378 = vrot.lane.b32.xlu0 %v3371, 8
    %v3379 = vpop.permute.xlu0 %3378
    %3382 = vst.msk [vmem:[#allocation2] sm:$0xff] %vm999, %v3377
    %3383 = vst.msk [vmem:[#allocation2 + $0x8] sm:$0xff] %vm999, %v3379
    %3384 = vrot.lane.b32.xlu0 %v2952, 112
    %v3385 = vpop.permute.xlu0 %3384
    %3386 = vrot.lane.b32.xlu0 %v2957, 112
    %v3387 = vpop.permute.xlu0 %3386
    %3388 = vrot.lane.b32.xlu0 %v2952, 80
    %v3389 = vpop.permute.xlu0 %3388
    %3390 = vrot.lane.b32.xlu0 %v2957, 80
    %v3391 = vpop.permute.xlu0 %3390
    %v3392 = vsel %vm591, %v3385, 0
    %v3394 = vsel %vm591, %v3387, 0
    %v3396 = vsel %vm591, %v3389, 0
    %v3398 = vsel %vm591, %v3391, 0
    %3400 = vmatprep.subr.mxu0 0.0
    %3401 = vmatpush1.xpose.msra.mxu0 %v3396
    %3402 = vmatprep.subr.mxu0 0.0
    %3403 = vmatpush1.xpose.msra.mxu0 %v3398
    %3404 = vmatprep.subr.mxu0 0.0
    %3405 = vmatpush1.xpose.msra.mxu0 0.0
    %3406 = vmatprep.subr.mxu0 0.0
    %3407 = vmatpush1.xpose.msra.mxu0 0.0
    %3408 = vmatprep.subr.mxu0 0.0
    %3409 = vmatpush1.xpose.msra.mxu0 0.0
    %3410 = vmatprep.subr.mxu0 0.0
    %3411 = vmatpush1.xpose.msra.mxu0 0.0
    %3412 = vmatprep.subr.mxu0 0.0
    %3413 = vmatpush1.xpose.msra.mxu0 0.0
    %3414 = vmatprep.subr.mxu0 0.0
    %3415 = vmatpush1.xpose.msra.mxu0 0.0
    %3416 = vmatprep.subr.mxu0 0.0
    %3417 = vmatpush1.xpose.msra.mxu0 0.0
    %3418 = vmatprep.subr.mxu0 0.0
    %3419 = vmatpush1.xpose.msra.mxu0 0.0
    %3420 = vmatprep.subr.mxu0 0.0
    %3421 = vmatpush1.xpose.msra.mxu0 0.0
    %3422 = vmatprep.subr.mxu0 0.0
    %3423 = vmatpush1.xpose.msra.mxu0 0.0
    %3424 = vmatprep.subr.mxu0 0.0
    %3425 = vmatpush1.xpose.msra.mxu0 0.0
    %3426 = vmatprep.subr.mxu0 0.0
    %3427 = vmatpush1.xpose.msra.mxu0 0.0
    %3428 = vmatprep.subr.mxu0 0.0
    %3429 = vmatpush1.xpose.msra.mxu0 0.0
    %3430 = vmatprep.subr.mxu0 0.0
    %3431 = vmatpush1.xpose.msra.mxu0 0.0
    %3432 = vmatprep.subr.mxu0 0.0
    %3433 = vmatpush1.xpose.msra.mxu0 0.0
    %3434 = vmatprep.subr.mxu0 0.0
    %3435 = vmatpush1.xpose.msra.mxu0 0.0
    %3436 = vmatprep.subr.mxu0 0.0
    %3437 = vmatpush1.xpose.msra.mxu0 0.0
    %3438 = vmatprep.subr.mxu0 0.0
    %3439 = vmatpush1.xpose.msra.mxu0 0.0
    %3440 = vmatprep.subr.mxu0 0.0
    %3441 = vmatpush1.xpose.msra.mxu0 0.0
    %3442 = vmatprep.subr.mxu0 0.0
    %3443 = vmatpush1.xpose.msra.mxu0 0.0
    %3444 = vmatprep.subr.mxu0 0.0
    %3445 = vmatpush1.xpose.msra.mxu0 0.0
    %3446 = vmatprep.subr.mxu0 0.0
    %3447 = vmatpush1.xpose.msra.mxu0 0.0
    %3448 = vmatprep.subr.mxu0 0.0
    %3449 = vmatpush1.xpose.msra.mxu0 0.0
    %3450 = vmatprep.subr.mxu0 0.0
    %3451 = vmatpush1.xpose.msra.mxu0 0.0
    %3452 = vmatprep.subr.mxu0 0.0
    %3453 = vmatpush1.xpose.msra.mxu0 0.0
    %3454 = vmatprep.subr.mxu0 0.0
    %3455 = vmatpush1.xpose.msra.mxu0 0.0
    %3456 = vmatprep.subr.mxu0 0.0
    %3457 = vmatpush1.xpose.msra.mxu0 0.0
    %3458 = vmatprep.subr.mxu0 0.0
    %3459 = vmatpush1.xpose.msra.mxu0 0.0
    %3460 = vmatprep.subr.mxu0 0.0
    %3461 = vmatpush1.xpose.msra.mxu0 0.0
    %3462 = vmatprep.subr.mxu0 0.0
    %3463 = vmatpush1.xpose.msra.mxu0 0.0
    %3464 = vmatprep.mubr.f32.mxu0 0.0
    %3465 = vmatmul.mubr.f32.gmra.mrb[0].mxu0 %v3392
    %v3466 = vpop.f32.mrb[0].mxu0
    %v3467 = vadd.f32 0.0, %v3466
    %v3468 = vpop.f32.mrb[0].mxu0
    %3469 = vmatprep.mubr.f32.mxu0 0.0
    %3470 = vmatmul.mubr.f32.gmra.mrb[0].mxu0 %v3394
    %v3471 = vpop.f32.mrb[0].mxu0
    %v3472 = vadd.f32 0.0, %v3471
    %v3473 = vpop.f32.mrb[0].mxu0
    %3474 = vdwg.mxu0
    %v3475 = vmul.f32 %v3467, 0.35355338
    %v3476 = vmul.f32 %v3472, 0.35355338
    %v3477 = vsel %vm677, %v3475, -inf
    %3478 = vmax.xlane.f32.xlu0 %v3477
    %v3479 = vpop.xlane.xlu0 %3478
    %v3480 = vsel %vm677, %v3476, -inf
    %3481 = vmax.xlane.f32.xlu0 %v3480
    %v3482 = vpop.xlane.xlu0 %3481
    %v3483 = vsub.f32 %v3475, %v3479
    %v3484 = vsub.f32 %v3476, %v3482
    %v3485 = vmul.f32 %v3483, 1.442695
    %v3486 = vpow.pop %v3485
    %v3487 = vmul.f32 %v3484, 1.442695
    %v3488 = vpow.pop %v3487
    %v3489 = vsel %vm677, %v3486, 0.0
    %3490 = vadd.xlane.f32.xlu0 %v3489
    %v3491 = vpop.xlane.xlu0 %3490
    %v3492 = vsel %vm677, %v3488, 0.0
    %3493 = vadd.xlane.f32.xlu0 %v3492
    %v3494 = vpop.xlane.xlu0 %3493
    %v3495 = vrcp.pop %v3491
    %v3496 = vrcp.pop %v3494
    %v3497 = vmul.f32 %v3486, %v3495
    %v3498 = vmul.f32 %v3488, %v3496
    %3499 = vrot.lane.b32.xlu0 %v2952, 48
    %v3500 = vpop.permute.xlu0 %3499
    %3501 = vrot.lane.b32.xlu0 %v2957, 48
    %v3502 = vpop.permute.xlu0 %3501
    %v3506 = vsel %vm677, %v3497, 0
    %v3509 = vsel %vm677, %v3498, 0
    %3511 = vmatprep.subr.mxu0 0.0
    %3512 = vmatpush1.msra.mxu0 %v3500
    %3513 = vmatprep.subr.mxu0 0.0
    %3514 = vmatpush1.msra.mxu0 %v3502
    %3515 = vmatprep.subr.mxu0 0.0
    %3516 = vmatpush1.msra.mxu0 0.0
    %3517 = vmatprep.subr.mxu0 0.0
    %3518 = vmatpush1.msra.mxu0 0.0
    %3519 = vmatprep.subr.mxu0 0.0
    %3520 = vmatpush1.msra.mxu0 0.0
    %3521 = vmatprep.subr.mxu0 0.0
    %3522 = vmatpush1.msra.mxu0 0.0
    %3523 = vmatprep.subr.mxu0 0.0
    %3524 = vmatpush1.msra.mxu0 0.0
    %3525 = vmatprep.subr.mxu0 0.0
    %3526 = vmatpush1.msra.mxu0 0.0
    %3527 = vmatprep.subr.mxu0 0.0
    %3528 = vmatpush1.msra.mxu0 0.0
    %3529 = vmatprep.subr.mxu0 0.0
    %3530 = vmatpush1.msra.mxu0 0.0
    %3531 = vmatprep.subr.mxu0 0.0
    %3532 = vmatpush1.msra.mxu0 0.0
    %3533 = vmatprep.subr.mxu0 0.0
    %3534 = vmatpush1.msra.mxu0 0.0
    %3535 = vmatprep.subr.mxu0 0.0
    %3536 = vmatpush1.msra.mxu0 0.0
    %3537 = vmatprep.subr.mxu0 0.0
    %3538 = vmatpush1.msra.mxu0 0.0
    %3539 = vmatprep.subr.mxu0 0.0
    %3540 = vmatpush1.msra.mxu0 0.0
    %3541 = vmatprep.subr.mxu0 0.0
    %3542 = vmatpush1.msra.mxu0 0.0
    %3543 = vmatprep.subr.mxu0 0.0
    %3544 = vmatpush1.msra.mxu0 0.0
    %3545 = vmatprep.subr.mxu0 0.0
    %3546 = vmatpush1.msra.mxu0 0.0
    %3547 = vmatprep.subr.mxu0 0.0
    %3548 = vmatpush1.msra.mxu0 0.0
    %3549 = vmatprep.subr.mxu0 0.0
    %3550 = vmatpush1.msra.mxu0 0.0
    %3551 = vmatprep.subr.mxu0 0.0
    %3552 = vmatpush1.msra.mxu0 0.0
    %3553 = vmatprep.subr.mxu0 0.0
    %3554 = vmatpush1.msra.mxu0 0.0
    %3555 = vmatprep.subr.mxu0 0.0
    %3556 = vmatpush1.msra.mxu0 0.0
    %3557 = vmatprep.subr.mxu0 0.0
    %3558 = vmatpush1.msra.mxu0 0.0
    %3559 = vmatprep.subr.mxu0 0.0
    %3560 = vmatpush1.msra.mxu0 0.0
    %3561 = vmatprep.subr.mxu0 0.0
    %3562 = vmatpush1.msra.mxu0 0.0
    %3563 = vmatprep.subr.mxu0 0.0
    %3564 = vmatpush1.msra.mxu0 0.0
    %3565 = vmatprep.subr.mxu0 0.0
    %3566 = vmatpush1.msra.mxu0 0.0
    %3567 = vmatprep.subr.mxu0 0.0
    %3568 = vmatpush1.msra.mxu0 0.0
    %3569 = vmatprep.subr.mxu0 0.0
    %3570 = vmatpush1.msra.mxu0 0.0
    %3571 = vmatprep.subr.mxu0 0.0
    %3572 = vmatpush1.msra.mxu0 0.0
    %3573 = vmatprep.subr.mxu0 0.0
    %3574 = vmatpush1.msra.mxu0 0.0
    %3575 = vmatprep.mubr.f32.mxu0 0.0
    %3576 = vmatmul.mubr.f32.gmra.mrb[0].mxu0 %v3506
    %v3577 = vpop.f32.mrb[0].mxu0
    %v3578 = vadd.f32 0.0, %v3577
    %v3579 = vpop.f32.mrb[0].mxu0
    %3580 = vmatprep.mubr.f32.mxu0 0.0
    %3581 = vmatmul.mubr.f32.gmra.mrb[0].mxu0 %v3509
    %v3582 = vpop.f32.mrb[0].mxu0
    %v3583 = vadd.f32 0.0, %v3582
    %v3584 = vpop.f32.mrb[0].mxu0
    %3585 = vdwg.mxu0
    %3588 = vrot.lane.b32.xlu0 %v3578, 16
    %v3589 = vpop.permute.xlu0 %3588
    %3590 = vrot.lane.b32.xlu0 %v3583, 16
    %v3591 = vpop.permute.xlu0 %3590
    %3594 = vst.msk [vmem:[#allocation2] sm:$0xff] %vm1212, %v3589
    %3595 = vst.msk [vmem:[#allocation2 + $0x8] sm:$0xff] %vm1212, %v3591
    %3596 = vrot.lane.b32.xlu0 %v2952, 104
    %v3597 = vpop.permute.xlu0 %3596
    %3598 = vrot.lane.b32.xlu0 %v2957, 104
    %v3599 = vpop.permute.xlu0 %3598
    %3600 = vrot.lane.b32.xlu0 %v2952, 72
    %v3601 = vpop.permute.xlu0 %3600
    %3602 = vrot.lane.b32.xlu0 %v2957, 72
    %v3603 = vpop.permute.xlu0 %3602
    %v3604 = vsel %vm591, %v3597, 0
    %v3606 = vsel %vm591, %v3599, 0
    %v3608 = vsel %vm591, %v3601, 0
    %v3610 = vsel %vm591, %v3603, 0
    %3612 = vmatprep.subr.mxu0 0.0
    %3613 = vmatpush1.xpose.msra.mxu0 %v3608
    %3614 = vmatprep.subr.mxu0 0.0
    %3615 = vmatpush1.xpose.msra.mxu0 %v3610
    %3616 = vmatprep.subr.mxu0 0.0
    %3617 = vmatpush1.xpose.msra.mxu0 0.0
    %3618 = vmatprep.subr.mxu0 0.0
    %3619 = vmatpush1.xpose.msra.mxu0 0.0
    %3620 = vmatprep.subr.mxu0 0.0
    %3621 = vmatpush1.xpose.msra.mxu0 0.0
    %3622 = vmatprep.subr.mxu0 0.0
    %3623 = vmatpush1.xpose.msra.mxu0 0.0
    %3624 = vmatprep.subr.mxu0 0.0
    %3625 = vmatpush1.xpose.msra.mxu0 0.0
    %3626 = vmatprep.subr.mxu0 0.0
    %3627 = vmatpush1.xpose.msra.mxu0 0.0
    %3628 = vmatprep.subr.mxu0 0.0
    %3629 = vmatpush1.xpose.msra.mxu0 0.0
    %3630 = vmatprep.subr.mxu0 0.0
    %3631 = vmatpush1.xpose.msra.mxu0 0.0
    %3632 = vmatprep.subr.mxu0 0.0
    %3633 = vmatpush1.xpose.msra.mxu0 0.0
    %3634 = vmatprep.subr.mxu0 0.0
    %3635 = vmatpush1.xpose.msra.mxu0 0.0
    %3636 = vmatprep.subr.mxu0 0.0
    %3637 = vmatpush1.xpose.msra.mxu0 0.0
    %3638 = vmatprep.subr.mxu0 0.0
    %3639 = vmatpush1.xpose.msra.mxu0 0.0
    %3640 = vmatprep.subr.mxu0 0.0
    %3641 = vmatpush1.xpose.msra.mxu0 0.0
    %3642 = vmatprep.subr.mxu0 0.0
    %3643 = vmatpush1.xpose.msra.mxu0 0.0
    %3644 = vmatprep.subr.mxu0 0.0
    %3645 = vmatpush1.xpose.msra.mxu0 0.0
    %3646 = vmatprep.subr.mxu0 0.0
    %3647 = vmatpush1.xpose.msra.mxu0 0.0
    %3648 = vmatprep.subr.mxu0 0.0
    %3649 = vmatpush1.xpose.msra.mxu0 0.0
    %3650 = vmatprep.subr.mxu0 0.0
    %3651 = vmatpush1.xpose.msra.mxu0 0.0
    %3652 = vmatprep.subr.mxu0 0.0
    %3653 = vmatpush1.xpose.msra.mxu0 0.0
    %3654 = vmatprep.subr.mxu0 0.0
    %3655 = vmatpush1.xpose.msra.mxu0 0.0
    %3656 = vmatprep.subr.mxu0 0.0
    %3657 = vmatpush1.xpose.msra.mxu0 0.0
    %3658 = vmatprep.subr.mxu0 0.0
    %3659 = vmatpush1.xpose.msra.mxu0 0.0
    %3660 = vmatprep.subr.mxu0 0.0
    %3661 = vmatpush1.xpose.msra.mxu0 0.0
    %3662 = vmatprep.subr.mxu0 0.0
    %3663 = vmatpush1.xpose.msra.mxu0 0.0
    %3664 = vmatprep.subr.mxu0 0.0
    %3665 = vmatpush1.xpose.msra.mxu0 0.0
    %3666 = vmatprep.subr.mxu0 0.0
    %3667 = vmatpush1.xpose.msra.mxu0 0.0
    %3668 = vmatprep.subr.mxu0 0.0
    %3669 = vmatpush1.xpose.msra.mxu0 0.0
    %3670 = vmatprep.subr.mxu0 0.0
    %3671 = vmatpush1.xpose.msra.mxu0 0.0
    %3672 = vmatprep.subr.mxu0 0.0
    %3673 = vmatpush1.xpose.msra.mxu0 0.0
    %3674 = vmatprep.subr.mxu0 0.0
    %3675 = vmatpush1.xpose.msra.mxu0 0.0
    %3676 = vmatprep.mubr.f32.mxu0 0.0
    %3677 = vmatmul.mubr.f32.gmra.mrb[0].mxu0 %v3604
    %v3678 = vpop.f32.mrb[0].mxu0
    %v3679 = vadd.f32 0.0, %v3678
    %v3680 = vpop.f32.mrb[0].mxu0
    %3681 = vmatprep.mubr.f32.mxu0 0.0
    %3682 = vmatmul.mubr.f32.gmra.mrb[0].mxu0 %v3606
    %v3683 = vpop.f32.mrb[0].mxu0
    %v3684 = vadd.f32 0.0, %v3683
    %v3685 = vpop.f32.mrb[0].mxu0
    %3686 = vdwg.mxu0
    %v3687 = vmul.f32 %v3679, 0.35355338
    %v3688 = vmul.f32 %v3684, 0.35355338
    %v3689 = vsel %vm677, %v3687, -inf
    %3690 = vmax.xlane.f32.xlu0 %v3689
    %v3691 = vpop.xlane.xlu0 %3690
    %v3692 = vsel %vm677, %v3688, -inf
    %3693 = vmax.xlane.f32.xlu0 %v3692
    %v3694 = vpop.xlane.xlu0 %3693
    %v3695 = vsub.f32 %v3687, %v3691
    %v3696 = vsub.f32 %v3688, %v3694
    %v3697 = vmul.f32 %v3695, 1.442695
    %v3698 = vpow.pop %v3697
    %v3699 = vmul.f32 %v3696, 1.442695
    %v3700 = vpow.pop %v3699
    %v3701 = vsel %vm677, %v3698, 0.0
    %3702 = vadd.xlane.f32.xlu0 %v3701
    %v3703 = vpop.xlane.xlu0 %3702
    %v3704 = vsel %vm677, %v3700, 0.0
    %3705 = vadd.xlane.f32.xlu0 %v3704
    %v3706 = vpop.xlane.xlu0 %3705
    %v3707 = vrcp.pop %v3703
    %v3708 = vrcp.pop %v3706
    %v3709 = vmul.f32 %v3698, %v3707
    %v3710 = vmul.f32 %v3700, %v3708
    %3711 = vrot.lane.b32.xlu0 %v2952, 40
    %v3712 = vpop.permute.xlu0 %3711
    %3713 = vrot.lane.b32.xlu0 %v2957, 40
    %v3714 = vpop.permute.xlu0 %3713
    %v3718 = vsel %vm677, %v3709, 0
    %v3721 = vsel %vm677, %v3710, 0
    %3723 = vmatprep.subr.mxu0 0.0
    %3724 = vmatpush1.msra.mxu0 %v3712
    %3725 = vmatprep.subr.mxu0 0.0
    %3726 = vmatpush1.msra.mxu0 %v3714
    %3727 = vmatprep.subr.mxu0 0.0
    %3728 = vmatpush1.msra.mxu0 0.0
    %3729 = vmatprep.subr.mxu0 0.0
    %3730 = vmatpush1.msra.mxu0 0.0
    %3731 = vmatprep.subr.mxu0 0.0
    %3732 = vmatpush1.msra.mxu0 0.0
    %3733 = vmatprep.subr.mxu0 0.0
    %3734 = vmatpush1.msra.mxu0 0.0
    %3735 = vmatprep.subr.mxu0 0.0
    %3736 = vmatpush1.msra.mxu0 0.0
    %3737 = vmatprep.subr.mxu0 0.0
    %3738 = vmatpush1.msra.mxu0 0.0
    %3739 = vmatprep.subr.mxu0 0.0
    %3740 = vmatpush1.msra.mxu0 0.0
    %3741 = vmatprep.subr.mxu0 0.0
    %3742 = vmatpush1.msra.mxu0 0.0
    %3743 = vmatprep.subr.mxu0 0.0
    %3744 = vmatpush1.msra.mxu0 0.0
    %3745 = vmatprep.subr.mxu0 0.0
    %3746 = vmatpush1.msra.mxu0 0.0
    %3747 = vmatprep.subr.mxu0 0.0
    %3748 = vmatpush1.msra.mxu0 0.0
    %3749 = vmatprep.subr.mxu0 0.0
    %3750 = vmatpush1.msra.mxu0 0.0
    %3751 = vmatprep.subr.mxu0 0.0
    %3752 = vmatpush1.msra.mxu0 0.0
    %3753 = vmatprep.subr.mxu0 0.0
    %3754 = vmatpush1.msra.mxu0 0.0
    %3755 = vmatprep.subr.mxu0 0.0
    %3756 = vmatpush1.msra.mxu0 0.0
    %3757 = vmatprep.subr.mxu0 0.0
    %3758 = vmatpush1.msra.mxu0 0.0
    %3759 = vmatprep.subr.mxu0 0.0
    %3760 = vmatpush1.msra.mxu0 0.0
    %3761 = vmatprep.subr.mxu0 0.0
    %3762 = vmatpush1.msra.mxu0 0.0
    %3763 = vmatprep.subr.mxu0 0.0
    %3764 = vmatpush1.msra.mxu0 0.0
    %3765 = vmatprep.subr.mxu0 0.0
    %3766 = vmatpush1.msra.mxu0 0.0
    %3767 = vmatprep.subr.mxu0 0.0
    %3768 = vmatpush1.msra.mxu0 0.0
    %3769 = vmatprep.subr.mxu0 0.0
    %3770 = vmatpush1.msra.mxu0 0.0
    %3771 = vmatprep.subr.mxu0 0.0
    %3772 = vmatpush1.msra.mxu0 0.0
    %3773 = vmatprep.subr.mxu0 0.0
    %3774 = vmatpush1.msra.mxu0 0.0
    %3775 = vmatprep.subr.mxu0 0.0
    %3776 = vmatpush1.msra.mxu0 0.0
    %3777 = vmatprep.subr.mxu0 0.0
    %3778 = vmatpush1.msra.mxu0 0.0
    %3779 = vmatprep.subr.mxu0 0.0
    %3780 = vmatpush1.msra.mxu0 0.0
    %3781 = vmatprep.subr.mxu0 0.0
    %3782 = vmatpush1.msra.mxu0 0.0
    %3783 = vmatprep.subr.mxu0 0.0
    %3784 = vmatpush1.msra.mxu0 0.0
    %3785 = vmatprep.subr.mxu0 0.0
    %3786 = vmatpush1.msra.mxu0 0.0
    %3787 = vmatprep.mubr.f32.mxu0 0.0
    %3788 = vmatmul.mubr.f32.gmra.mrb[0].mxu0 %v3718
    %v3789 = vpop.f32.mrb[0].mxu0
    %v3790 = vadd.f32 0.0, %v3789
    %v3791 = vpop.f32.mrb[0].mxu0
    %3792 = vmatprep.mubr.f32.mxu0 0.0
    %3793 = vmatmul.mubr.f32.gmra.mrb[0].mxu0 %v3721
    %v3794 = vpop.f32.mrb[0].mxu0
    %v3795 = vadd.f32 0.0, %v3794
    %v3796 = vpop.f32.mrb[0].mxu0
    %3797 = vdwg.mxu0
    %3800 = vrot.lane.b32.xlu0 %v3790, 24
    %v3801 = vpop.permute.xlu0 %3800
    %3802 = vrot.lane.b32.xlu0 %v3795, 24
    %v3803 = vpop.permute.xlu0 %3802
    %3806 = vst.msk [vmem:[#allocation2] sm:$0xff] %vm1425, %v3801
    %3807 = vst.msk [vmem:[#allocation2 + $0x8] sm:$0xff] %vm1425, %v3803
    %3810 = vrot.lane.b32.xlu0 %v2962, 96
    %v3811 = vpop.permute.xlu0 %3810
    %3812 = vrot.lane.b32.xlu0 %v2967, 96
    %v3813 = vpop.permute.xlu0 %3812
    %v3814 = vsel %vm591, %v2962, 0
    %v3816 = vsel %vm591, %v2967, 0
    %v3818 = vsel %vm591, %v3811, 0
    %v3820 = vsel %vm591, %v3813, 0
    %3822 = vmatprep.subr.mxu0 0.0
    %3823 = vmatpush1.xpose.msra.mxu0 %v3818
    %3824 = vmatprep.subr.mxu0 0.0
    %3825 = vmatpush1.xpose.msra.mxu0 %v3820
    %3826 = vmatprep.subr.mxu0 0.0
    %3827 = vmatpush1.xpose.msra.mxu0 0.0
    %3828 = vmatprep.subr.mxu0 0.0
    %3829 = vmatpush1.xpose.msra.mxu0 0.0
    %3830 = vmatprep.subr.mxu0 0.0
    %3831 = vmatpush1.xpose.msra.mxu0 0.0
    %3832 = vmatprep.subr.mxu0 0.0
    %3833 = vmatpush1.xpose.msra.mxu0 0.0
    %3834 = vmatprep.subr.mxu0 0.0
    %3835 = vmatpush1.xpose.msra.mxu0 0.0
    %3836 = vmatprep.subr.mxu0 0.0
    %3837 = vmatpush1.xpose.msra.mxu0 0.0
    %3838 = vmatprep.subr.mxu0 0.0
    %3839 = vmatpush1.xpose.msra.mxu0 0.0
    %3840 = vmatprep.subr.mxu0 0.0
    %3841 = vmatpush1.xpose.msra.mxu0 0.0
    %3842 = vmatprep.subr.mxu0 0.0
    %3843 = vmatpush1.xpose.msra.mxu0 0.0
    %3844 = vmatprep.subr.mxu0 0.0
    %3845 = vmatpush1.xpose.msra.mxu0 0.0
    %3846 = vmatprep.subr.mxu0 0.0
    %3847 = vmatpush1.xpose.msra.mxu0 0.0
    %3848 = vmatprep.subr.mxu0 0.0
    %3849 = vmatpush1.xpose.msra.mxu0 0.0
    %3850 = vmatprep.subr.mxu0 0.0
    %3851 = vmatpush1.xpose.msra.mxu0 0.0
    %3852 = vmatprep.subr.mxu0 0.0
    %3853 = vmatpush1.xpose.msra.mxu0 0.0
    %3854 = vmatprep.subr.mxu0 0.0
    %3855 = vmatpush1.xpose.msra.mxu0 0.0
    %3856 = vmatprep.subr.mxu0 0.0
    %3857 = vmatpush1.xpose.msra.mxu0 0.0
    %3858 = vmatprep.subr.mxu0 0.0
    %3859 = vmatpush1.xpose.msra.mxu0 0.0
    %3860 = vmatprep.subr.mxu0 0.0
    %3861 = vmatpush1.xpose.msra.mxu0 0.0
    %3862 = vmatprep.subr.mxu0 0.0
    %3863 = vmatpush1.xpose.msra.mxu0 0.0
    %3864 = vmatprep.subr.mxu0 0.0
    %3865 = vmatpush1.xpose.msra.mxu0 0.0
    %3866 = vmatprep.subr.mxu0 0.0
    %3867 = vmatpush1.xpose.msra.mxu0 0.0
    %3868 = vmatprep.subr.mxu0 0.0
    %3869 = vmatpush1.xpose.msra.mxu0 0.0
    %3870 = vmatprep.subr.mxu0 0.0
    %3871 = vmatpush1.xpose.msra.mxu0 0.0
    %3872 = vmatprep.subr.mxu0 0.0
    %3873 = vmatpush1.xpose.msra.mxu0 0.0
    %3874 = vmatprep.subr.mxu0 0.0
    %3875 = vmatpush1.xpose.msra.mxu0 0.0
    %3876 = vmatprep.subr.mxu0 0.0
    %3877 = vmatpush1.xpose.msra.mxu0 0.0
    %3878 = vmatprep.subr.mxu0 0.0
    %3879 = vmatpush1.xpose.msra.mxu0 0.0
    %3880 = vmatprep.subr.mxu0 0.0
    %3881 = vmatpush1.xpose.msra.mxu0 0.0
    %3882 = vmatprep.subr.mxu0 0.0
    %3883 = vmatpush1.xpose.msra.mxu0 0.0
    %3884 = vmatprep.subr.mxu0 0.0
    %3885 = vmatpush1.xpose.msra.mxu0 0.0
    %3886 = vmatprep.mubr.f32.mxu0 0.0
    %3887 = vmatmul.mubr.f32.gmra.mrb[0].mxu0 %v3814
    %v3888 = vpop.f32.mrb[0].mxu0
    %v3889 = vadd.f32 0.0, %v3888
    %v3890 = vpop.f32.mrb[0].mxu0
    %3891 = vmatprep.mubr.f32.mxu0 0.0
    %3892 = vmatmul.mubr.f32.gmra.mrb[0].mxu0 %v3816
    %v3893 = vpop.f32.mrb[0].mxu0
    %v3894 = vadd.f32 0.0, %v3893
    %v3895 = vpop.f32.mrb[0].mxu0
    %3896 = vdwg.mxu0
    %v3897 = vmul.f32 %v3889, 0.35355338
    %v3898 = vmul.f32 %v3894, 0.35355338
    %v3899 = vsel %vm677, %v3897, -inf
    %3900 = vmax.xlane.f32.xlu0 %v3899
    %v3901 = vpop.xlane.xlu0 %3900
    %v3902 = vsel %vm677, %v3898, -inf
    %3903 = vmax.xlane.f32.xlu0 %v3902
    %v3904 = vpop.xlane.xlu0 %3903
    %v3905 = vsub.f32 %v3897, %v3901
    %v3906 = vsub.f32 %v3898, %v3904
    %v3907 = vmul.f32 %v3905, 1.442695
    %v3908 = vpow.pop %v3907
    %v3909 = vmul.f32 %v3906, 1.442695
    %v3910 = vpow.pop %v3909
    %v3911 = vsel %vm677, %v3908, 0.0
    %3912 = vadd.xlane.f32.xlu0 %v3911
    %v3913 = vpop.xlane.xlu0 %3912
    %v3914 = vsel %vm677, %v3910, 0.0
    %3915 = vadd.xlane.f32.xlu0 %v3914
    %v3916 = vpop.xlane.xlu0 %3915
    %v3917 = vrcp.pop %v3913
    %v3918 = vrcp.pop %v3916
    %v3919 = vmul.f32 %v3908, %v3917
    %v3920 = vmul.f32 %v3910, %v3918
    %3921 = vrot.lane.b32.xlu0 %v2962, 64
    %v3922 = vpop.permute.xlu0 %3921
    %3923 = vrot.lane.b32.xlu0 %v2967, 64
    %v3924 = vpop.permute.xlu0 %3923
    %v3928 = vsel %vm677, %v3919, 0
    %v3931 = vsel %vm677, %v3920, 0
    %3933 = vmatprep.subr.mxu0 0.0
    %3934 = vmatpush1.msra.mxu0 %v3922
    %3935 = vmatprep.subr.mxu0 0.0
    %3936 = vmatpush1.msra.mxu0 %v3924
    %3937 = vmatprep.subr.mxu0 0.0
    %3938 = vmatpush1.msra.mxu0 0.0
    %3939 = vmatprep.subr.mxu0 0.0
    %3940 = vmatpush1.msra.mxu0 0.0
    %3941 = vmatprep.subr.mxu0 0.0
    %3942 = vmatpush1.msra.mxu0 0.0
    %3943 = vmatprep.subr.mxu0 0.0
    %3944 = vmatpush1.msra.mxu0 0.0
    %3945 = vmatprep.subr.mxu0 0.0
    %3946 = vmatpush1.msra.mxu0 0.0
    %3947 = vmatprep.subr.mxu0 0.0
    %3948 = vmatpush1.msra.mxu0 0.0
    %3949 = vmatprep.subr.mxu0 0.0
    %3950 = vmatpush1.msra.mxu0 0.0
    %3951 = vmatprep.subr.mxu0 0.0
    %3952 = vmatpush1.msra.mxu0 0.0
    %3953 = vmatprep.subr.mxu0 0.0
    %3954 = vmatpush1.msra.mxu0 0.0
    %3955 = vmatprep.subr.mxu0 0.0
    %3956 = vmatpush1.msra.mxu0 0.0
    %3957 = vmatprep.subr.mxu0 0.0
    %3958 = vmatpush1.msra.mxu0 0.0
    %3959 = vmatprep.subr.mxu0 0.0
    %3960 = vmatpush1.msra.mxu0 0.0
    %3961 = vmatprep.subr.mxu0 0.0
    %3962 = vmatpush1.msra.mxu0 0.0
    %3963 = vmatprep.subr.mxu0 0.0
    %3964 = vmatpush1.msra.mxu0 0.0
    %3965 = vmatprep.subr.mxu0 0.0
    %3966 = vmatpush1.msra.mxu0 0.0
    %3967 = vmatprep.subr.mxu0 0.0
    %3968 = vmatpush1.msra.mxu0 0.0
    %3969 = vmatprep.subr.mxu0 0.0
    %3970 = vmatpush1.msra.mxu0 0.0
    %3971 = vmatprep.subr.mxu0 0.0
    %3972 = vmatpush1.msra.mxu0 0.0
    %3973 = vmatprep.subr.mxu0 0.0
    %3974 = vmatpush1.msra.mxu0 0.0
    %3975 = vmatprep.subr.mxu0 0.0
    %3976 = vmatpush1.msra.mxu0 0.0
    %3977 = vmatprep.subr.mxu0 0.0
    %3978 = vmatpush1.msra.mxu0 0.0
    %3979 = vmatprep.subr.mxu0 0.0
    %3980 = vmatpush1.msra.mxu0 0.0
    %3981 = vmatprep.subr.mxu0 0.0
    %3982 = vmatpush1.msra.mxu0 0.0
    %3983 = vmatprep.subr.mxu0 0.0
    %3984 = vmatpush1.msra.mxu0 0.0
    %3985 = vmatprep.subr.mxu0 0.0
    %3986 = vmatpush1.msra.mxu0 0.0
    %3987 = vmatprep.subr.mxu0 0.0
    %3988 = vmatpush1.msra.mxu0 0.0
    %3989 = vmatprep.subr.mxu0 0.0
    %3990 = vmatpush1.msra.mxu0 0.0
    %3991 = vmatprep.subr.mxu0 0.0
    %3992 = vmatpush1.msra.mxu0 0.0
    %3993 = vmatprep.subr.mxu0 0.0
    %3994 = vmatpush1.msra.mxu0 0.0
    %3995 = vmatprep.subr.mxu0 0.0
    %3996 = vmatpush1.msra.mxu0 0.0
    %3997 = vmatprep.mubr.f32.mxu0 0.0
    %3998 = vmatmul.mubr.f32.gmra.mrb[0].mxu0 %v3928
    %v3999 = vpop.f32.mrb[0].mxu0
    %v4000 = vadd.f32 0.0, %v3999
    %v4001 = vpop.f32.mrb[0].mxu0
    %4002 = vmatprep.mubr.f32.mxu0 0.0
    %4003 = vmatmul.mubr.f32.gmra.mrb[0].mxu0 %v3931
    %v4004 = vpop.f32.mrb[0].mxu0
    %v4005 = vadd.f32 0.0, %v4004
    %v4006 = vpop.f32.mrb[0].mxu0
    %4007 = vdwg.mxu0
    %4008 = vst.msk [vmem:[#allocation2 + $0x10] sm:$0xff] %vm591, %v4000
    %4009 = vst.msk [vmem:[#allocation2 + $0x18] sm:$0xff] %vm591, %v4005
    %4010 = vrot.lane.b32.xlu0 %v2962, 120
    %v4011 = vpop.permute.xlu0 %4010
    %4012 = vrot.lane.b32.xlu0 %v2967, 120
    %v4013 = vpop.permute.xlu0 %4012
    %4014 = vrot.lane.b32.xlu0 %v2962, 88
    %v4015 = vpop.permute.xlu0 %4014
    %4016 = vrot.lane.b32.xlu0 %v2967, 88
    %v4017 = vpop.permute.xlu0 %4016
    %v4018 = vsel %vm591, %v4011, 0
    %v4020 = vsel %vm591, %v4013, 0
    %v4022 = vsel %vm591, %v4015, 0
    %v4024 = vsel %vm591, %v4017, 0
    %4026 = vmatprep.subr.mxu0 0.0
    %4027 = vmatpush1.xpose.msra.mxu0 %v4022
    %4028 = vmatprep.subr.mxu0 0.0
    %4029 = vmatpush1.xpose.msra.mxu0 %v4024
    %4030 = vmatprep.subr.mxu0 0.0
    %4031 = vmatpush1.xpose.msra.mxu0 0.0
    %4032 = vmatprep.subr.mxu0 0.0
    %4033 = vmatpush1.xpose.msra.mxu0 0.0
    %4034 = vmatprep.subr.mxu0 0.0
    %4035 = vmatpush1.xpose.msra.mxu0 0.0
    %4036 = vmatprep.subr.mxu0 0.0
    %4037 = vmatpush1.xpose.msra.mxu0 0.0
    %4038 = vmatprep.subr.mxu0 0.0
    %4039 = vmatpush1.xpose.msra.mxu0 0.0
    %4040 = vmatprep.subr.mxu0 0.0
    %4041 = vmatpush1.xpose.msra.mxu0 0.0
    %4042 = vmatprep.subr.mxu0 0.0
    %4043 = vmatpush1.xpose.msra.mxu0 0.0
    %4044 = vmatprep.subr.mxu0 0.0
    %4045 = vmatpush1.xpose.msra.mxu0 0.0
    %4046 = vmatprep.subr.mxu0 0.0
    %4047 = vmatpush1.xpose.msra.mxu0 0.0
    %4048 = vmatprep.subr.mxu0 0.0
    %4049 = vmatpush1.xpose.msra.mxu0 0.0
    %4050 = vmatprep.subr.mxu0 0.0
    %4051 = vmatpush1.xpose.msra.mxu0 0.0
    %4052 = vmatprep.subr.mxu0 0.0
    %4053 = vmatpush1.xpose.msra.mxu0 0.0
    %4054 = vmatprep.subr.mxu0 0.0
    %4055 = vmatpush1.xpose.msra.mxu0 0.0
    %4056 = vmatprep.subr.mxu0 0.0
    %4057 = vmatpush1.xpose.msra.mxu0 0.0
    %4058 = vmatprep.subr.mxu0 0.0
    %4059 = vmatpush1.xpose.msra.mxu0 0.0
    %4060 = vmatprep.subr.mxu0 0.0
    %4061 = vmatpush1.xpose.msra.mxu0 0.0
    %4062 = vmatprep.subr.mxu0 0.0
    %4063 = vmatpush1.xpose.msra.mxu0 0.0
    %4064 = vmatprep.subr.mxu0 0.0
    %4065 = vmatpush1.xpose.msra.mxu0 0.0
    %4066 = vmatprep.subr.mxu0 0.0
    %4067 = vmatpush1.xpose.msra.mxu0 0.0
    %4068 = vmatprep.subr.mxu0 0.0
    %4069 = vmatpush1.xpose.msra.mxu0 0.0
    %4070 = vmatprep.subr.mxu0 0.0
    %4071 = vmatpush1.xpose.msra.mxu0 0.0
    %4072 = vmatprep.subr.mxu0 0.0
    %4073 = vmatpush1.xpose.msra.mxu0 0.0
    %4074 = vmatprep.subr.mxu0 0.0
    %4075 = vmatpush1.xpose.msra.mxu0 0.0
    %4076 = vmatprep.subr.mxu0 0.0
    %4077 = vmatpush1.xpose.msra.mxu0 0.0
    %4078 = vmatprep.subr.mxu0 0.0
    %4079 = vmatpush1.xpose.msra.mxu0 0.0
    %4080 = vmatprep.subr.mxu0 0.0
    %4081 = vmatpush1.xpose.msra.mxu0 0.0
    %4082 = vmatprep.subr.mxu0 0.0
    %4083 = vmatpush1.xpose.msra.mxu0 0.0
    %4084 = vmatprep.subr.mxu0 0.0
    %4085 = vmatpush1.xpose.msra.mxu0 0.0
    %4086 = vmatprep.subr.mxu0 0.0
    %4087 = vmatpush1.xpose.msra.mxu0 0.0
    %4088 = vmatprep.subr.mxu0 0.0
    %4089 = vmatpush1.xpose.msra.mxu0 0.0
    %4090 = vmatprep.mubr.f32.mxu0 0.0
    %4091 = vmatmul.mubr.f32.gmra.mrb[0].mxu0 %v4018
    %v4092 = vpop.f32.mrb[0].mxu0
    %v4093 = vadd.f32 0.0, %v4092
    %v4094 = vpop.f32.mrb[0].mxu0
    %4095 = vmatprep.mubr.f32.mxu0 0.0
    %4096 = vmatmul.mubr.f32.gmra.mrb[0].mxu0 %v4020
    %v4097 = vpop.f32.mrb[0].mxu0
    %v4098 = vadd.f32 0.0, %v4097
    %v4099 = vpop.f32.mrb[0].mxu0
    %4100 = vdwg.mxu0
    %v4101 = vmul.f32 %v4093, 0.35355338
    %v4102 = vmul.f32 %v4098, 0.35355338
    %v4103 = vsel %vm677, %v4101, -inf
    %4104 = vmax.xlane.f32.xlu0 %v4103
    %v4105 = vpop.xlane.xlu0 %4104
    %v4106 = vsel %vm677, %v4102, -inf
    %4107 = vmax.xlane.f32.xlu0 %v4106
    %v4108 = vpop.xlane.xlu0 %4107
    %v4109 = vsub.f32 %v4101, %v4105
    %v4110 = vsub.f32 %v4102, %v4108
    %v4111 = vmul.f32 %v4109, 1.442695
    %v4112 = vpow.pop %v4111
    %v4113 = vmul.f32 %v4110, 1.442695
    %v4114 = vpow.pop %v4113
    %v4115 = vsel %vm677, %v4112, 0.0
    %4116 = vadd.xlane.f32.xlu0 %v4115
    %v4117 = vpop.xlane.xlu0 %4116
    %v4118 = vsel %vm677, %v4114, 0.0
    %4119 = vadd.xlane.f32.xlu0 %v4118
    %v4120 = vpop.xlane.xlu0 %4119
    %v4121 = vrcp.pop %v4117
    %v4122 = vrcp.pop %v4120
    %v4123 = vmul.f32 %v4112, %v4121
    %v4124 = vmul.f32 %v4114, %v4122
    %4125 = vrot.lane.b32.xlu0 %v2962, 56
    %v4126 = vpop.permute.xlu0 %4125
    %4127 = vrot.lane.b32.xlu0 %v2967, 56
    %v4128 = vpop.permute.xlu0 %4127
    %v4132 = vsel %vm677, %v4123, 0
    %v4135 = vsel %vm677, %v4124, 0
    %4137 = vmatprep.subr.mxu0 0.0
    %4138 = vmatpush1.msra.mxu0 %v4126
    %4139 = vmatprep.subr.mxu0 0.0
    %4140 = vmatpush1.msra.mxu0 %v4128
    %4141 = vmatprep.subr.mxu0 0.0
    %4142 = vmatpush1.msra.mxu0 0.0
    %4143 = vmatprep.subr.mxu0 0.0
    %4144 = vmatpush1.msra.mxu0 0.0
    %4145 = vmatprep.subr.mxu0 0.0
    %4146 = vmatpush1.msra.mxu0 0.0
    %4147 = vmatprep.subr.mxu0 0.0
    %4148 = vmatpush1.msra.mxu0 0.0
    %4149 = vmatprep.subr.mxu0 0.0
    %4150 = vmatpush1.msra.mxu0 0.0
    %4151 = vmatprep.subr.mxu0 0.0
    %4152 = vmatpush1.msra.mxu0 0.0
    %4153 = vmatprep.subr.mxu0 0.0
    %4154 = vmatpush1.msra.mxu0 0.0
    %4155 = vmatprep.subr.mxu0 0.0
    %4156 = vmatpush1.msra.mxu0 0.0
    %4157 = vmatprep.subr.mxu0 0.0
    %4158 = vmatpush1.msra.mxu0 0.0
    %4159 = vmatprep.subr.mxu0 0.0
    %4160 = vmatpush1.msra.mxu0 0.0
    %4161 = vmatprep.subr.mxu0 0.0
    %4162 = vmatpush1.msra.mxu0 0.0
    %4163 = vmatprep.subr.mxu0 0.0
    %4164 = vmatpush1.msra.mxu0 0.0
    %4165 = vmatprep.subr.mxu0 0.0
    %4166 = vmatpush1.msra.mxu0 0.0
    %4167 = vmatprep.subr.mxu0 0.0
    %4168 = vmatpush1.msra.mxu0 0.0
    %4169 = vmatprep.subr.mxu0 0.0
    %4170 = vmatpush1.msra.mxu0 0.0
    %4171 = vmatprep.subr.mxu0 0.0
    %4172 = vmatpush1.msra.mxu0 0.0
    %4173 = vmatprep.subr.mxu0 0.0
    %4174 = vmatpush1.msra.mxu0 0.0
    %4175 = vmatprep.subr.mxu0 0.0
    %4176 = vmatpush1.msra.mxu0 0.0
    %4177 = vmatprep.subr.mxu0 0.0
    %4178 = vmatpush1.msra.mxu0 0.0
    %4179 = vmatprep.subr.mxu0 0.0
    %4180 = vmatpush1.msra.mxu0 0.0
    %4181 = vmatprep.subr.mxu0 0.0
    %4182 = vmatpush1.msra.mxu0 0.0
    %4183 = vmatprep.subr.mxu0 0.0
    %4184 = vmatpush1.msra.mxu0 0.0
    %4185 = vmatprep.subr.mxu0 0.0
    %4186 = vmatpush1.msra.mxu0 0.0
    %4187 = vmatprep.subr.mxu0 0.0
    %4188 = vmatpush1.msra.mxu0 0.0
    %4189 = vmatprep.subr.mxu0 0.0
    %4190 = vmatpush1.msra.mxu0 0.0
    %4191 = vmatprep.subr.mxu0 0.0
    %4192 = vmatpush1.msra.mxu0 0.0
    %4193 = vmatprep.subr.mxu0 0.0
    %4194 = vmatpush1.msra.mxu0 0.0
    %4195 = vmatprep.subr.mxu0 0.0
    %4196 = vmatpush1.msra.mxu0 0.0
    %4197 = vmatprep.subr.mxu0 0.0
    %4198 = vmatpush1.msra.mxu0 0.0
    %4199 = vmatprep.subr.mxu0 0.0
    %4200 = vmatpush1.msra.mxu0 0.0
    %4201 = vmatprep.mubr.f32.mxu0 0.0
    %4202 = vmatmul.mubr.f32.gmra.mrb[0].mxu0 %v4132
    %v4203 = vpop.f32.mrb[0].mxu0
    %v4204 = vadd.f32 0.0, %v4203
    %v4205 = vpop.f32.mrb[0].mxu0
    %4206 = vmatprep.mubr.f32.mxu0 0.0
    %4207 = vmatmul.mubr.f32.gmra.mrb[0].mxu0 %v4135
    %v4208 = vpop.f32.mrb[0].mxu0
    %v4209 = vadd.f32 0.0, %v4208
    %v4210 = vpop.f32.mrb[0].mxu0
    %4211 = vdwg.mxu0
    %4214 = vrot.lane.b32.xlu0 %v4204, 8
    %v4215 = vpop.permute.xlu0 %4214
    %4216 = vrot.lane.b32.xlu0 %v4209, 8
    %v4217 = vpop.permute.xlu0 %4216
    %4220 = vst.msk [vmem:[#allocation2 + $0x10] sm:$0xff] %vm999, %v4215
    %4221 = vst.msk [vmem:[#allocation2 + $0x18] sm:$0xff] %vm999, %v4217
    %4222 = vrot.lane.b32.xlu0 %v2962, 112
    %v4223 = vpop.permute.xlu0 %4222
    %4224 = vrot.lane.b32.xlu0 %v2967, 112
    %v4225 = vpop.permute.xlu0 %4224
    %4226 = vrot.lane.b32.xlu0 %v2962, 80
    %v4227 = vpop.permute.xlu0 %4226
    %4228 = vrot.lane.b32.xlu0 %v2967, 80
    %v4229 = vpop.permute.xlu0 %4228
    %v4230 = vsel %vm591, %v4223, 0
    %v4232 = vsel %vm591, %v4225, 0
    %v4234 = vsel %vm591, %v4227, 0
    %v4236 = vsel %vm591, %v4229, 0
    %4238 = vmatprep.subr.mxu0 0.0
    %4239 = vmatpush1.xpose.msra.mxu0 %v4234
    %4240 = vmatprep.subr.mxu0 0.0
    %4241 = vmatpush1.xpose.msra.mxu0 %v4236
    %4242 = vmatprep.subr.mxu0 0.0
    %4243 = vmatpush1.xpose.msra.mxu0 0.0
    %4244 = vmatprep.subr.mxu0 0.0
    %4245 = vmatpush1.xpose.msra.mxu0 0.0
    %4246 = vmatprep.subr.mxu0 0.0
    %4247 = vmatpush1.xpose.msra.mxu0 0.0
    %4248 = vmatprep.subr.mxu0 0.0
    %4249 = vmatpush1.xpose.msra.mxu0 0.0
    %4250 = vmatprep.subr.mxu0 0.0
    %4251 = vmatpush1.xpose.msra.mxu0 0.0
    %4252 = vmatprep.subr.mxu0 0.0
    %4253 = vmatpush1.xpose.msra.mxu0 0.0
    %4254 = vmatprep.subr.mxu0 0.0
    %4255 = vmatpush1.xpose.msra.mxu0 0.0
    %4256 = vmatprep.subr.mxu0 0.0
    %4257 = vmatpush1.xpose.msra.mxu0 0.0
    %4258 = vmatprep.subr.mxu0 0.0
    %4259 = vmatpush1.xpose.msra.mxu0 0.0
    %4260 = vmatprep.subr.mxu0 0.0
    %4261 = vmatpush1.xpose.msra.mxu0 0.0
    %4262 = vmatprep.subr.mxu0 0.0
    %4263 = vmatpush1.xpose.msra.mxu0 0.0
    %4264 = vmatprep.subr.mxu0 0.0
    %4265 = vmatpush1.xpose.msra.mxu0 0.0
    %4266 = vmatprep.subr.mxu0 0.0
    %4267 = vmatpush1.xpose.msra.mxu0 0.0
    %4268 = vmatprep.subr.mxu0 0.0
    %4269 = vmatpush1.xpose.msra.mxu0 0.0
    %4270 = vmatprep.subr.mxu0 0.0
    %4271 = vmatpush1.xpose.msra.mxu0 0.0
    %4272 = vmatprep.subr.mxu0 0.0
    %4273 = vmatpush1.xpose.msra.mxu0 0.0
    %4274 = vmatprep.subr.mxu0 0.0
    %4275 = vmatpush1.xpose.msra.mxu0 0.0
    %4276 = vmatprep.subr.mxu0 0.0
    %4277 = vmatpush1.xpose.msra.mxu0 0.0
    %4278 = vmatprep.subr.mxu0 0.0
    %4279 = vmatpush1.xpose.msra.mxu0 0.0
    %4280 = vmatprep.subr.mxu0 0.0
    %4281 = vmatpush1.xpose.msra.mxu0 0.0
    %4282 = vmatprep.subr.mxu0 0.0
    %4283 = vmatpush1.xpose.msra.mxu0 0.0
    %4284 = vmatprep.subr.mxu0 0.0
    %4285 = vmatpush1.xpose.msra.mxu0 0.0
    %4286 = vmatprep.subr.mxu0 0.0
    %4287 = vmatpush1.xpose.msra.mxu0 0.0
    %4288 = vmatprep.subr.mxu0 0.0
    %4289 = vmatpush1.xpose.msra.mxu0 0.0
    %4290 = vmatprep.subr.mxu0 0.0
    %4291 = vmatpush1.xpose.msra.mxu0 0.0
    %4292 = vmatprep.subr.mxu0 0.0
    %4293 = vmatpush1.xpose.msra.mxu0 0.0
    %4294 = vmatprep.subr.mxu0 0.0
    %4295 = vmatpush1.xpose.msra.mxu0 0.0
    %4296 = vmatprep.subr.mxu0 0.0
    %4297 = vmatpush1.xpose.msra.mxu0 0.0
    %4298 = vmatprep.subr.mxu0 0.0
    %4299 = vmatpush1.xpose.msra.mxu0 0.0
    %4300 = vmatprep.subr.mxu0 0.0
    %4301 = vmatpush1.xpose.msra.mxu0 0.0
    %4302 = vmatprep.mubr.f32.mxu0 0.0
    %4303 = vmatmul.mubr.f32.gmra.mrb[0].mxu0 %v4230
    %v4304 = vpop.f32.mrb[0].mxu0
    %v4305 = vadd.f32 0.0, %v4304
    %v4306 = vpop.f32.mrb[0].mxu0
    %4307 = vmatprep.mubr.f32.mxu0 0.0
    %4308 = vmatmul.mubr.f32.gmra.mrb[0].mxu0 %v4232
    %v4309 = vpop.f32.mrb[0].mxu0
    %v4310 = vadd.f32 0.0, %v4309
    %v4311 = vpop.f32.mrb[0].mxu0
    %4312 = vdwg.mxu0
    %v4313 = vmul.f32 %v4305, 0.35355338
    %v4314 = vmul.f32 %v4310, 0.35355338
    %v4315 = vsel %vm677, %v4313, -inf
    %4316 = vmax.xlane.f32.xlu0 %v4315
    %v4317 = vpop.xlane.xlu0 %4316
    %v4318 = vsel %vm677, %v4314, -inf
    %4319 = vmax.xlane.f32.xlu0 %v4318
    %v4320 = vpop.xlane.xlu0 %4319
    %v4321 = vsub.f32 %v4313, %v4317
    %v4322 = vsub.f32 %v4314, %v4320
    %v4323 = vmul.f32 %v4321, 1.442695
    %v4324 = vpow.pop %v4323
    %v4325 = vmul.f32 %v4322, 1.442695
    %v4326 = vpow.pop %v4325
    %v4327 = vsel %vm677, %v4324, 0.0
    %4328 = vadd.xlane.f32.xlu0 %v4327
    %v4329 = vpop.xlane.xlu0 %4328
    %v4330 = vsel %vm677, %v4326, 0.0
    %4331 = vadd.xlane.f32.xlu0 %v4330
    %v4332 = vpop.xlane.xlu0 %4331
    %v4333 = vrcp.pop %v4329
    %v4334 = vrcp.pop %v4332
    %v4335 = vmul.f32 %v4324, %v4333
    %v4336 = vmul.f32 %v4326, %v4334
    %4337 = vrot.lane.b32.xlu0 %v2962, 48
    %v4338 = vpop.permute.xlu0 %4337
    %4339 = vrot.lane.b32.xlu0 %v2967, 48
    %v4340 = vpop.permute.xlu0 %4339
    %v4344 = vsel %vm677, %v4335, 0
    %v4347 = vsel %vm677, %v4336, 0
    %4349 = vmatprep.subr.mxu0 0.0
    %4350 = vmatpush1.msra.mxu0 %v4338
    %4351 = vmatprep.subr.mxu0 0.0
    %4352 = vmatpush1.msra.mxu0 %v4340
    %4353 = vmatprep.subr.mxu0 0.0
    %4354 = vmatpush1.msra.mxu0 0.0
    %4355 = vmatprep.subr.mxu0 0.0
    %4356 = vmatpush1.msra.mxu0 0.0
    %4357 = vmatprep.subr.mxu0 0.0
    %4358 = vmatpush1.msra.mxu0 0.0
    %4359 = vmatprep.subr.mxu0 0.0
    %4360 = vmatpush1.msra.mxu0 0.0
    %4361 = vmatprep.subr.mxu0 0.0
    %4362 = vmatpush1.msra.mxu0 0.0
    %4363 = vmatprep.subr.mxu0 0.0
    %4364 = vmatpush1.msra.mxu0 0.0
    %4365 = vmatprep.subr.mxu0 0.0
    %4366 = vmatpush1.msra.mxu0 0.0
    %4367 = vmatprep.subr.mxu0 0.0
    %4368 = vmatpush1.msra.mxu0 0.0
    %4369 = vmatprep.subr.mxu0 0.0
    %4370 = vmatpush1.msra.mxu0 0.0
    %4371 = vmatprep.subr.mxu0 0.0
    %4372 = vmatpush1.msra.mxu0 0.0
    %4373 = vmatprep.subr.mxu0 0.0
    %4374 = vmatpush1.msra.mxu0 0.0
    %4375 = vmatprep.subr.mxu0 0.0
    %4376 = vmatpush1.msra.mxu0 0.0
    %4377 = vmatprep.subr.mxu0 0.0
    %4378 = vmatpush1.msra.mxu0 0.0
    %4379 = vmatprep.subr.mxu0 0.0
    %4380 = vmatpush1.msra.mxu0 0.0
    %4381 = vmatprep.subr.mxu0 0.0
    %4382 = vmatpush1.msra.mxu0 0.0
    %4383 = vmatprep.subr.mxu0 0.0
    %4384 = vmatpush1.msra.mxu0 0.0
    %4385 = vmatprep.subr.mxu0 0.0
    %4386 = vmatpush1.msra.mxu0 0.0
    %4387 = vmatprep.subr.mxu0 0.0
    %4388 = vmatpush1.msra.mxu0 0.0
    %4389 = vmatprep.subr.mxu0 0.0
    %4390 = vmatpush1.msra.mxu0 0.0
    %4391 = vmatprep.subr.mxu0 0.0
    %4392 = vmatpush1.msra.mxu0 0.0
    %4393 = vmatprep.subr.mxu0 0.0
    %4394 = vmatpush1.msra.mxu0 0.0
    %4395 = vmatprep.subr.mxu0 0.0
    %4396 = vmatpush1.msra.mxu0 0.0
    %4397 = vmatprep.subr.mxu0 0.0
    %4398 = vmatpush1.msra.mxu0 0.0
    %4399 = vmatprep.subr.mxu0 0.0
    %4400 = vmatpush1.msra.mxu0 0.0
    %4401 = vmatprep.subr.mxu0 0.0
    %4402 = vmatpush1.msra.mxu0 0.0
    %4403 = vmatprep.subr.mxu0 0.0
    %4404 = vmatpush1.msra.mxu0 0.0
    %4405 = vmatprep.subr.mxu0 0.0
    %4406 = vmatpush1.msra.mxu0 0.0
    %4407 = vmatprep.subr.mxu0 0.0
    %4408 = vmatpush1.msra.mxu0 0.0
    %4409 = vmatprep.subr.mxu0 0.0
    %4410 = vmatpush1.msra.mxu0 0.0
    %4411 = vmatprep.subr.mxu0 0.0
    %4412 = vmatpush1.msra.mxu0 0.0
    %4413 = vmatprep.mubr.f32.mxu0 0.0
    %4414 = vmatmul.mubr.f32.gmra.mrb[0].mxu0 %v4344
    %v4415 = vpop.f32.mrb[0].mxu0
    %v4416 = vadd.f32 0.0, %v4415
    %v4417 = vpop.f32.mrb[0].mxu0
    %4418 = vmatprep.mubr.f32.mxu0 0.0
    %4419 = vmatmul.mubr.f32.gmra.mrb[0].mxu0 %v4347
    %v4420 = vpop.f32.mrb[0].mxu0
    %v4421 = vadd.f32 0.0, %v4420
    %v4422 = vpop.f32.mrb[0].mxu0
    %4423 = vdwg.mxu0
    %4426 = vrot.lane.b32.xlu0 %v4416, 16
    %v4427 = vpop.permute.xlu0 %4426
    %4428 = vrot.lane.b32.xlu0 %v4421, 16
    %v4429 = vpop.permute.xlu0 %4428
    %4432 = vst.msk [vmem:[#allocation2 + $0x10] sm:$0xff] %vm1212, %v4427
    %4433 = vst.msk [vmem:[#allocation2 + $0x18] sm:$0xff] %vm1212, %v4429
    %4434 = vrot.lane.b32.xlu0 %v2962, 104
    %v4435 = vpop.permute.xlu0 %4434
    %4436 = vrot.lane.b32.xlu0 %v2967, 104
    %v4437 = vpop.permute.xlu0 %4436
    %4438 = vrot.lane.b32.xlu0 %v2962, 72
    %v4439 = vpop.permute.xlu0 %4438
    %4440 = vrot.lane.b32.xlu0 %v2967, 72
    %v4441 = vpop.permute.xlu0 %4440
    %v4442 = vsel %vm591, %v4435, 0
    %v4444 = vsel %vm591, %v4437, 0
    %v4446 = vsel %vm591, %v4439, 0
    %v4448 = vsel %vm591, %v4441, 0
    %4450 = vmatprep.subr.mxu0 0.0
    %4451 = vmatpush1.xpose.msra.mxu0 %v4446
    %4452 = vmatprep.subr.mxu0 0.0
    %4453 = vmatpush1.xpose.msra.mxu0 %v4448
    %4454 = vmatprep.subr.mxu0 0.0
    %4455 = vmatpush1.xpose.msra.mxu0 0.0
    %4456 = vmatprep.subr.mxu0 0.0
    %4457 = vmatpush1.xpose.msra.mxu0 0.0
    %4458 = vmatprep.subr.mxu0 0.0
    %4459 = vmatpush1.xpose.msra.mxu0 0.0
    %4460 = vmatprep.subr.mxu0 0.0
    %4461 = vmatpush1.xpose.msra.mxu0 0.0
    %4462 = vmatprep.subr.mxu0 0.0
    %4463 = vmatpush1.xpose.msra.mxu0 0.0
    %4464 = vmatprep.subr.mxu0 0.0
    %4465 = vmatpush1.xpose.msra.mxu0 0.0
    %4466 = vmatprep.subr.mxu0 0.0
    %4467 = vmatpush1.xpose.msra.mxu0 0.0
    %4468 = vmatprep.subr.mxu0 0.0
    %4469 = vmatpush1.xpose.msra.mxu0 0.0
    %4470 = vmatprep.subr.mxu0 0.0
    %4471 = vmatpush1.xpose.msra.mxu0 0.0
    %4472 = vmatprep.subr.mxu0 0.0
    %4473 = vmatpush1.xpose.msra.mxu0 0.0
    %4474 = vmatprep.subr.mxu0 0.0
    %4475 = vmatpush1.xpose.msra.mxu0 0.0
    %4476 = vmatprep.subr.mxu0 0.0
    %4477 = vmatpush1.xpose.msra.mxu0 0.0
    %4478 = vmatprep.subr.mxu0 0.0
    %4479 = vmatpush1.xpose.msra.mxu0 0.0
    %4480 = vmatprep.subr.mxu0 0.0
    %4481 = vmatpush1.xpose.msra.mxu0 0.0
    %4482 = vmatprep.subr.mxu0 0.0
    %4483 = vmatpush1.xpose.msra.mxu0 0.0
    %4484 = vmatprep.subr.mxu0 0.0
    %4485 = vmatpush1.xpose.msra.mxu0 0.0
    %4486 = vmatprep.subr.mxu0 0.0
    %4487 = vmatpush1.xpose.msra.mxu0 0.0
    %4488 = vmatprep.subr.mxu0 0.0
    %4489 = vmatpush1.xpose.msra.mxu0 0.0
    %4490 = vmatprep.subr.mxu0 0.0
    %4491 = vmatpush1.xpose.msra.mxu0 0.0
    %4492 = vmatprep.subr.mxu0 0.0
    %4493 = vmatpush1.xpose.msra.mxu0 0.0
    %4494 = vmatprep.subr.mxu0 0.0
    %4495 = vmatpush1.xpose.msra.mxu0 0.0
    %4496 = vmatprep.subr.mxu0 0.0
    %4497 = vmatpush1.xpose.msra.mxu0 0.0
    %4498 = vmatprep.subr.mxu0 0.0
    %4499 = vmatpush1.xpose.msra.mxu0 0.0
    %4500 = vmatprep.subr.mxu0 0.0
    %4501 = vmatpush1.xpose.msra.mxu0 0.0
    %4502 = vmatprep.subr.mxu0 0.0
    %4503 = vmatpush1.xpose.msra.mxu0 0.0
    %4504 = vmatprep.subr.mxu0 0.0
    %4505 = vmatpush1.xpose.msra.mxu0 0.0
    %4506 = vmatprep.subr.mxu0 0.0
    %4507 = vmatpush1.xpose.msra.mxu0 0.0
    %4508 = vmatprep.subr.mxu0 0.0
    %4509 = vmatpush1.xpose.msra.mxu0 0.0
    %4510 = vmatprep.subr.mxu0 0.0
    %4511 = vmatpush1.xpose.msra.mxu0 0.0
    %4512 = vmatprep.subr.mxu0 0.0
    %4513 = vmatpush1.xpose.msra.mxu0 0.0
    %4514 = vmatprep.mubr.f32.mxu0 0.0
    %4515 = vmatmul.mubr.f32.gmra.mrb[0].mxu0 %v4442
    %v4516 = vpop.f32.mrb[0].mxu0
    %v4517 = vadd.f32 0.0, %v4516
    %v4518 = vpop.f32.mrb[0].mxu0
    %4519 = vmatprep.mubr.f32.mxu0 0.0
    %4520 = vmatmul.mubr.f32.gmra.mrb[0].mxu0 %v4444
    %v4521 = vpop.f32.mrb[0].mxu0
    %v4522 = vadd.f32 0.0, %v4521
    %v4523 = vpop.f32.mrb[0].mxu0
    %4524 = vdwg.mxu0
    %v4525 = vmul.f32 %v4517, 0.35355338
    %v4526 = vmul.f32 %v4522, 0.35355338
    %v4527 = vsel %vm677, %v4525, -inf
    %4528 = vmax.xlane.f32.xlu0 %v4527
    %v4529 = vpop.xlane.xlu0 %4528
    %v4530 = vsel %vm677, %v4526, -inf
    %4531 = vmax.xlane.f32.xlu0 %v4530
    %v4532 = vpop.xlane.xlu0 %4531
    %v4533 = vsub.f32 %v4525, %v4529
    %v4534 = vsub.f32 %v4526, %v4532
    %v4535 = vmul.f32 %v4533, 1.442695
    %v4536 = vpow.pop %v4535
    %v4537 = vmul.f32 %v4534, 1.442695
    %v4538 = vpow.pop %v4537
    %v4539 = vsel %vm677, %v4536, 0.0
    %4540 = vadd.xlane.f32.xlu0 %v4539
    %v4541 = vpop.xlane.xlu0 %4540
    %v4542 = vsel %vm677, %v4538, 0.0
    %4543 = vadd.xlane.f32.xlu0 %v4542
    %v4544 = vpop.xlane.xlu0 %4543
    %v4545 = vrcp.pop %v4541
    %v4546 = vrcp.pop %v4544
    %v4547 = vmul.f32 %v4536, %v4545
    %v4548 = vmul.f32 %v4538, %v4546
    %4549 = vrot.lane.b32.xlu0 %v2962, 40
    %v4550 = vpop.permute.xlu0 %4549
    %4551 = vrot.lane.b32.xlu0 %v2967, 40
    %v4552 = vpop.permute.xlu0 %4551
    %v4556 = vsel %vm677, %v4547, 0
    %v4559 = vsel %vm677, %v4548, 0
    %4561 = vmatprep.subr.mxu0 0.0
    %4562 = vmatpush1.msra.mxu0 %v4550
    %4563 = vmatprep.subr.mxu0 0.0
    %4564 = vmatpush1.msra.mxu0 %v4552
    %4565 = vmatprep.subr.mxu0 0.0
    %4566 = vmatpush1.msra.mxu0 0.0
    %4567 = vmatprep.subr.mxu0 0.0
    %4568 = vmatpush1.msra.mxu0 0.0
    %4569 = vmatprep.subr.mxu0 0.0
    %4570 = vmatpush1.msra.mxu0 0.0
    %4571 = vmatprep.subr.mxu0 0.0
    %4572 = vmatpush1.msra.mxu0 0.0
    %4573 = vmatprep.subr.mxu0 0.0
    %4574 = vmatpush1.msra.mxu0 0.0
    %4575 = vmatprep.subr.mxu0 0.0
    %4576 = vmatpush1.msra.mxu0 0.0
    %4577 = vmatprep.subr.mxu0 0.0
    %4578 = vmatpush1.msra.mxu0 0.0
    %4579 = vmatprep.subr.mxu0 0.0
    %4580 = vmatpush1.msra.mxu0 0.0
    %4581 = vmatprep.subr.mxu0 0.0
    %4582 = vmatpush1.msra.mxu0 0.0
    %4583 = vmatprep.subr.mxu0 0.0
    %4584 = vmatpush1.msra.mxu0 0.0
    %4585 = vmatprep.subr.mxu0 0.0
    %4586 = vmatpush1.msra.mxu0 0.0
    %4587 = vmatprep.subr.mxu0 0.0
    %4588 = vmatpush1.msra.mxu0 0.0
    %4589 = vmatprep.subr.mxu0 0.0
    %4590 = vmatpush1.msra.mxu0 0.0
    %4591 = vmatprep.subr.mxu0 0.0
    %4592 = vmatpush1.msra.mxu0 0.0
    %4593 = vmatprep.subr.mxu0 0.0
    %4594 = vmatpush1.msra.mxu0 0.0
    %4595 = vmatprep.subr.mxu0 0.0
    %4596 = vmatpush1.msra.mxu0 0.0
    %4597 = vmatprep.subr.mxu0 0.0
    %4598 = vmatpush1.msra.mxu0 0.0
    %4599 = vmatprep.subr.mxu0 0.0
    %4600 = vmatpush1.msra.mxu0 0.0
    %4601 = vmatprep.subr.mxu0 0.0
    %4602 = vmatpush1.msra.mxu0 0.0
    %4603 = vmatprep.subr.mxu0 0.0
    %4604 = vmatpush1.msra.mxu0 0.0
    %4605 = vmatprep.subr.mxu0 0.0
    %4606 = vmatpush1.msra.mxu0 0.0
    %4607 = vmatprep.subr.mxu0 0.0
    %4608 = vmatpush1.msra.mxu0 0.0
    %4609 = vmatprep.subr.mxu0 0.0
    %4610 = vmatpush1.msra.mxu0 0.0
    %4611 = vmatprep.subr.mxu0 0.0
    %4612 = vmatpush1.msra.mxu0 0.0
    %4613 = vmatprep.subr.mxu0 0.0
    %4614 = vmatpush1.msra.mxu0 0.0
    %4615 = vmatprep.subr.mxu0 0.0
    %4616 = vmatpush1.msra.mxu0 0.0
    %4617 = vmatprep.subr.mxu0 0.0
    %4618 = vmatpush1.msra.mxu0 0.0
    %4619 = vmatprep.subr.mxu0 0.0
    %4620 = vmatpush1.msra.mxu0 0.0
    %4621 = vmatprep.subr.mxu0 0.0
    %4622 = vmatpush1.msra.mxu0 0.0
    %4623 = vmatprep.subr.mxu0 0.0
    %4624 = vmatpush1.msra.mxu0 0.0
    %4625 = vmatprep.mubr.f32.mxu0 0.0
    %4626 = vmatmul.mubr.f32.gmra.mrb[0].mxu0 %v4556
    %v4627 = vpop.f32.mrb[0].mxu0
    %v4628 = vadd.f32 0.0, %v4627
    %v4629 = vpop.f32.mrb[0].mxu0
    %4630 = vmatprep.mubr.f32.mxu0 0.0
    %4631 = vmatmul.mubr.f32.gmra.mrb[0].mxu0 %v4559
    %v4632 = vpop.f32.mrb[0].mxu0
    %v4633 = vadd.f32 0.0, %v4632
    %v4634 = vpop.f32.mrb[0].mxu0
    %4635 = vdwg.mxu0
    %4638 = vrot.lane.b32.xlu0 %v4628, 24
    %v4639 = vpop.permute.xlu0 %4638
    %4640 = vrot.lane.b32.xlu0 %v4633, 24
    %v4641 = vpop.permute.xlu0 %4640
    %4644 = vst.msk [vmem:[#allocation2 + $0x10] sm:$0xff] %vm1425, %v4639
    %4645 = vst.msk [vmem:[#allocation2 + $0x18] sm:$0xff] %vm1425, %v4641
    %v4646 = vld [vmem:[#allocation2] sm:$0xff]
    %v4647 = vld [vmem:[#allocation2 + $0x8] sm:$0xff]
    %v4648 = vld [vmem:[#allocation2 + $0x10] sm:$0xff]
    %v4649 = vld [vmem:[#allocation2 + $0x18] sm:$0xff]
    %s4650 = scalar_lea.vmem [#allocation13], 32
    %v4651 = vld [vmem:[%s4650] sm:$0xff]
    %v4652 = vld [vmem:[%s4650 + $0x8] sm:$0xff]
    %v4653 = vld [vmem:[%s4650 + $0x10] sm:$0xff]
    %v4654 = vld [vmem:[%s4650 + $0x18] sm:$0xff]
    %s4655 = scalar_lea.vmem [#allocation14], 1
    %v4656 = vld [vmem:[%s4655] sm:$0x1]
    %v4658 = vlaneseq
    %v4659 = vshrl.u32 %v4658, 7
    %v4660 = vsub.s32 0, %v4659
    %v4661 = vrot.slane %v4656, %v4660
    %v4664 = vsel %vm403, %v4646, 0
    %v4667 = vsel %vm403, %v4647, 0
    %v4670 = vsel %vm403, %v4648, 0
    %v4673 = vsel %vm403, %v4649, 0
    %4675 = vmatprep.subr.mxu0 0.0
    %4676 = vmatpush1.msra.mxu0 %v4651
    %4677 = vmatprep.subr.mxu0 0.0
    %4678 = vmatpush1.msra.mxu0 %v4652
    %4679 = vmatprep.subr.mxu0 0.0
    %4680 = vmatpush1.msra.mxu0 %v4653
    %4681 = vmatprep.subr.mxu0 0.0
    %4682 = vmatpush1.msra.mxu0 %v4654
    %4683 = vmatprep.subr.mxu0 0.0
    %4684 = vmatpush1.msra.mxu0 0.0
    %4685 = vmatprep.subr.mxu0 0.0
    %4686 = vmatpush1.msra.mxu0 0.0
    %4687 = vmatprep.subr.mxu0 0.0
    %4688 = vmatpush1.msra.mxu0 0.0
    %4689 = vmatprep.subr.mxu0 0.0
    %4690 = vmatpush1.msra.mxu0 0.0
    %4691 = vmatprep.subr.mxu0 0.0
    %4692 = vmatpush1.msra.mxu0 0.0
    %4693 = vmatprep.subr.mxu0 0.0
    %4694 = vmatpush1.msra.mxu0 0.0
    %4695 = vmatprep.subr.mxu0 0.0
    %4696 = vmatpush1.msra.mxu0 0.0
    %4697 = vmatprep.subr.mxu0 0.0
    %4698 = vmatpush1.msra.mxu0 0.0
    %4699 = vmatprep.subr.mxu0 0.0
    %4700 = vmatpush1.msra.mxu0 0.0
    %4701 = vmatprep.subr.mxu0 0.0
    %4702 = vmatpush1.msra.mxu0 0.0
    %4703 = vmatprep.subr.mxu0 0.0
    %4704 = vmatpush1.msra.mxu0 0.0
    %4705 = vmatprep.subr.mxu0 0.0
    %4706 = vmatpush1.msra.mxu0 0.0
    %4707 = vmatprep.subr.mxu0 0.0
    %4708 = vmatpush1.msra.mxu0 0.0
    %4709 = vmatprep.subr.mxu0 0.0
    %4710 = vmatpush1.msra.mxu0 0.0
    %4711 = vmatprep.subr.mxu0 0.0
    %4712 = vmatpush1.msra.mxu0 0.0
    %4713 = vmatprep.subr.mxu0 0.0
    %4714 = vmatpush1.msra.mxu0 0.0
    %4715 = vmatprep.subr.mxu0 0.0
    %4716 = vmatpush1.msra.mxu0 0.0
    %4717 = vmatprep.subr.mxu0 0.0
    %4718 = vmatpush1.msra.mxu0 0.0
    %4719 = vmatprep.subr.mxu0 0.0
    %4720 = vmatpush1.msra.mxu0 0.0
    %4721 = vmatprep.subr.mxu0 0.0
    %4722 = vmatpush1.msra.mxu0 0.0
    %4723 = vmatprep.subr.mxu0 0.0
    %4724 = vmatpush1.msra.mxu0 0.0
    %4725 = vmatprep.subr.mxu0 0.0
    %4726 = vmatpush1.msra.mxu0 0.0
    %4727 = vmatprep.subr.mxu0 0.0
    %4728 = vmatpush1.msra.mxu0 0.0
    %4729 = vmatprep.subr.mxu0 0.0
    %4730 = vmatpush1.msra.mxu0 0.0
    %4731 = vmatprep.subr.mxu0 0.0
    %4732 = vmatpush1.msra.mxu0 0.0
    %4733 = vmatprep.subr.mxu0 0.0
    %4734 = vmatpush1.msra.mxu0 0.0
    %4735 = vmatprep.subr.mxu0 0.0
    %4736 = vmatpush1.msra.mxu0 0.0
    %4737 = vmatprep.subr.mxu0 0.0
    %4738 = vmatpush1.msra.mxu0 0.0
    %4739 = vmatprep.mubr.f32.mxu0 0.0
    %4740 = vmatmul.mubr.f32.gmra.mrb[0].mxu0 %v4664
    %v4741 = vpop.f32.mrb[0].mxu0
    %v4742 = vadd.f32 %v4661, %v4741
    %v4743 = vpop.f32.mrb[0].mxu0
    %4744 = vmatprep.mubr.f32.mxu0 0.0
    %4745 = vmatmul.mubr.f32.gmra.mrb[0].mxu0 %v4667
    %v4746 = vpop.f32.mrb[0].mxu0
    %v4747 = vadd.f32 %v4661, %v4746
    %v4748 = vpop.f32.mrb[0].mxu0
    %4749 = vmatprep.mubr.f32.mxu0 0.0
    %4750 = vmatmul.mubr.f32.gmra.mrb[0].mxu0 %v4670
    %v4751 = vpop.f32.mrb[0].mxu0
    %v4752 = vadd.f32 %v4661, %v4751
    %v4753 = vpop.f32.mrb[0].mxu0
    %4754 = vmatprep.mubr.f32.mxu0 0.0
    %4755 = vmatmul.mubr.f32.gmra.mrb[0].mxu0 %v4673
    %v4756 = vpop.f32.mrb[0].mxu0
    %v4757 = vadd.f32 %v4661, %v4756
    %v4758 = vpop.f32.mrb[0].mxu0
    %4759 = vdwg.mxu0
    %v4760 = vadd.f32 %v2780, %v4742
    %v4761 = vadd.f32 %v2781, %v4747
    %v4762 = vadd.f32 %v2782, %v4752
    %v4763 = vadd.f32 %v2783, %v4757
    %s4764 = scalar_lea.vmem [#allocation16], 1
    %v4765 = vld [vmem:[%s4764] sm:$0x1]
    %s4766 = scalar_lea.vmem [#allocation17], 1
    %v4767 = vld [vmem:[%s4766] sm:$0x1]
    %v4768 = vsel %vm403, %v4760, 0.0
    %4769 = vadd.xlane.f32.xlu0 %v4768
    %v4770 = vpop.xlane.xlu0 %4769
    %v4771 = vsel %vm403, %v4761, 0.0
    %4772 = vadd.xlane.f32.xlu0 %v4771
    %v4773 = vpop.xlane.xlu0 %4772
    %v4774 = vsel %vm403, %v4762, 0.0
    %4775 = vadd.xlane.f32.xlu0 %v4774
    %v4776 = vpop.xlane.xlu0 %4775
    %v4777 = vsel %vm403, %v4763, 0.0
    %4778 = vadd.xlane.f32.xlu0 %v4777
    %v4779 = vpop.xlane.xlu0 %4778
    %v4780 = vmul.f32 %v4770, %v416
    %v4781 = vmul.f32 %v4773, %v416
    %v4782 = vmul.f32 %v4776, %v416
    %v4783 = vmul.f32 %v4779, %v416
    %v4784 = vsub.f32 %v4760, %v4780
    %v4785 = vsub.f32 %v4761, %v4781
    %v4786 = vsub.f32 %v4762, %v4782
    %v4787 = vsub.f32 %v4763, %v4783
    %v4788 = vmul.f32 %v4784, %v4784
    %v4789 = vmul.f32 %v4785, %v4785
    %v4790 = vmul.f32 %v4786, %v4786
    %v4791 = vmul.f32 %v4787, %v4787
    %v4792 = vsel %vm403, %v4788, 0.0
    %4793 = vadd.xlane.f32.xlu0 %v4792
    %v4794 = vpop.xlane.xlu0 %4793
    %v4795 = vsel %vm403, %v4789, 0.0
    %4796 = vadd.xlane.f32.xlu0 %v4795
    %v4797 = vpop.xlane.xlu0 %4796
    %v4798 = vsel %vm403, %v4790, 0.0
    %4799 = vadd.xlane.f32.xlu0 %v4798
    %v4800 = vpop.xlane.xlu0 %4799
    %v4801 = vsel %vm403, %v4791, 0.0
    %4802 = vadd.xlane.f32.xlu0 %v4801
    %v4803 = vpop.xlane.xlu0 %4802
    %v4804 = vmul.f32 %v4794, %v416
    %v4805 = vmul.f32 %v4797, %v416
    %v4806 = vmul.f32 %v4800, %v416
    %v4807 = vmul.f32 %v4803, %v416
    %v4808 = vadd.f32 %v4804, 1e-06
    %v4809 = vadd.f32 %v4805, 1e-06
    %v4810 = vadd.f32 %v4806, 1e-06
    %v4811 = vadd.f32 %v4807, 1e-06
    %v4812 = vrsqrt.pop %v4808
    %v4813 = vrsqrt.pop %v4809
    %v4814 = vrsqrt.pop %v4810
    %v4815 = vrsqrt.pop %v4811
    %v4816 = vmul.f32 %v4784, %v4812
    %v4817 = vmul.f32 %v4785, %v4813
    %v4818 = vmul.f32 %v4786, %v4814
    %v4819 = vmul.f32 %v4787, %v4815
    %v4821 = vlaneseq
    %v4822 = vshrl.u32 %v4821, 7
    %v4823 = vsub.s32 0, %v4822
    %v4824 = vrot.slane %v4765, %v4823
    %v4826 = vmul.f32 %v4816, %v4824
    %v4827 = vmul.f32 %v4817, %v4824
    %v4828 = vmul.f32 %v4818, %v4824
    %v4829 = vmul.f32 %v4819, %v4824
    %v4831 = vlaneseq
    %v4832 = vshrl.u32 %v4831, 7
    %v4833 = vsub.s32 0, %v4832
    %v4834 = vrot.slane %v4767, %v4833
    %v4836 = vadd.f32 %v4826, %v4834
    %v4837 = vadd.f32 %v4827, %v4834
    %v4838 = vadd.f32 %v4828, %v4834
    %v4839 = vadd.f32 %v4829, %v4834
    %s4840 = scalar_lea.vmem [#allocation19], 32
    %v4841 = vld [vmem:[%s4840] sm:$0xff]
    %v4842 = vld [vmem:[%s4840 + $0x8] sm:$0xff]
    %v4843 = vld [vmem:[%s4840 + $0x10] sm:$0xff]
    %v4844 = vld [vmem:[%s4840 + $0x18] sm:$0xff]
    %s4845 = scalar_lea.vmem [#allocation20], 1
    %v4846 = vld [vmem:[%s4845] sm:$0x1]
    %v4848 = vlaneseq
    %v4849 = vshrl.u32 %v4848, 7
    %v4850 = vsub.s32 0, %v4849
    %v4851 = vrot.slane %v4846, %v4850
    %v4854 = vsel %vm403, %v4836, 0
    %v4857 = vsel %vm403, %v4837, 0
    %v4860 = vsel %vm403, %v4838, 0
    %v4863 = vsel %vm403, %v4839, 0
    %4865 = vmatprep.subr.mxu0 0.0
    %4866 = vmatpush1.msra.mxu0 %v4841
    %4867 = vmatprep.subr.mxu0 0.0
    %4868 = vmatpush1.msra.mxu0 %v4842
    %4869 = vmatprep.subr.mxu0 0.0
    %4870 = vmatpush1.msra.mxu0 %v4843
    %4871 = vmatprep.subr.mxu0 0.0
    %4872 = vmatpush1.msra.mxu0 %v4844
    %4873 = vmatprep.subr.mxu0 0.0
    %4874 = vmatpush1.msra.mxu0 0.0
    %4875 = vmatprep.subr.mxu0 0.0
    %4876 = vmatpush1.msra.mxu0 0.0
    %4877 = vmatprep.subr.mxu0 0.0
    %4878 = vmatpush1.msra.mxu0 0.0
    %4879 = vmatprep.subr.mxu0 0.0
    %4880 = vmatpush1.msra.mxu0 0.0
    %4881 = vmatprep.subr.mxu0 0.0
    %4882 = vmatpush1.msra.mxu0 0.0
    %4883 = vmatprep.subr.mxu0 0.0
    %4884 = vmatpush1.msra.mxu0 0.0
    %4885 = vmatprep.subr.mxu0 0.0
    %4886 = vmatpush1.msra.mxu0 0.0
    %4887 = vmatprep.subr.mxu0 0.0
    %4888 = vmatpush1.msra.mxu0 0.0
    %4889 = vmatprep.subr.mxu0 0.0
    %4890 = vmatpush1.msra.mxu0 0.0
    %4891 = vmatprep.subr.mxu0 0.0
    %4892 = vmatpush1.msra.mxu0 0.0
    %4893 = vmatprep.subr.mxu0 0.0
    %4894 = vmatpush1.msra.mxu0 0.0
    %4895 = vmatprep.subr.mxu0 0.0
    %4896 = vmatpush1.msra.mxu0 0.0
    %4897 = vmatprep.subr.mxu0 0.0
    %4898 = vmatpush1.msra.mxu0 0.0
    %4899 = vmatprep.subr.mxu0 0.0
    %4900 = vmatpush1.msra.mxu0 0.0
    %4901 = vmatprep.subr.mxu0 0.0
    %4902 = vmatpush1.msra.mxu0 0.0
    %4903 = vmatprep.subr.mxu0 0.0
    %4904 = vmatpush1.msra.mxu0 0.0
    %4905 = vmatprep.subr.mxu0 0.0
    %4906 = vmatpush1.msra.mxu0 0.0
    %4907 = vmatprep.subr.mxu0 0.0
    %4908 = vmatpush1.msra.mxu0 0.0
    %4909 = vmatprep.subr.mxu0 0.0
    %4910 = vmatpush1.msra.mxu0 0.0
    %4911 = vmatprep.subr.mxu0 0.0
    %4912 = vmatpush1.msra.mxu0 0.0
    %4913 = vmatprep.subr.mxu0 0.0
    %4914 = vmatpush1.msra.mxu0 0.0
    %4915 = vmatprep.subr.mxu0 0.0
    %4916 = vmatpush1.msra.mxu0 0.0
    %4917 = vmatprep.subr.mxu0 0.0
    %4918 = vmatpush1.msra.mxu0 0.0
    %4919 = vmatprep.subr.mxu0 0.0
    %4920 = vmatpush1.msra.mxu0 0.0
    %4921 = vmatprep.subr.mxu0 0.0
    %4922 = vmatpush1.msra.mxu0 0.0
    %4923 = vmatprep.subr.mxu0 0.0
    %4924 = vmatpush1.msra.mxu0 0.0
    %4925 = vmatprep.subr.mxu0 0.0
    %4926 = vmatpush1.msra.mxu0 0.0
    %4927 = vmatprep.subr.mxu0 0.0
    %4928 = vmatpush1.msra.mxu0 0.0
    %4929 = vmatprep.mubr.f32.mxu0 0.0
    %4930 = vmatmul.mubr.f32.gmra.mrb[0].mxu0 %v4854
    %v4931 = vpop.f32.mrb[0].mxu0
    %v4932 = vadd.f32 %v4851, %v4931
    %v4933 = vpop.f32.mrb[0].mxu0
    %4934 = vmatprep.mubr.f32.mxu0 0.0
    %4935 = vmatmul.mubr.f32.gmra.mrb[0].mxu0 %v4857
    %v4936 = vpop.f32.mrb[0].mxu0
    %v4937 = vadd.f32 %v4851, %v4936
    %v4938 = vpop.f32.mrb[0].mxu0
    %4939 = vmatprep.mubr.f32.mxu0 0.0
    %4940 = vmatmul.mubr.f32.gmra.mrb[0].mxu0 %v4860
    %v4941 = vpop.f32.mrb[0].mxu0
    %v4942 = vadd.f32 %v4851, %v4941
    %v4943 = vpop.f32.mrb[0].mxu0
    %4944 = vmatprep.mubr.f32.mxu0 0.0
    %4945 = vmatmul.mubr.f32.gmra.mrb[0].mxu0 %v4863
    %v4946 = vpop.f32.mrb[0].mxu0
    %v4947 = vadd.f32 %v4851, %v4946
    %v4948 = vpop.f32.mrb[0].mxu0
    %4949 = vdwg.mxu0
    %v4950 = vmul.f32 %v4932, 0.5
    %v4951 = vmul.f32 %v4937, 0.5
    %v4952 = vmul.f32 %v4942, 0.5
    %v4953 = vmul.f32 %v4947, 0.5
    %v4954 = vmul.f32 %v4932, 0.70710677
    %v4955 = vmul.f32 %v4937, 0.70710677
    %v4956 = vmul.f32 %v4942, 0.70710677
    %v4957 = vmul.f32 %v4947, 0.70710677
    %v4958 = vand.u32 2147483647, %v4954
    %v4959 = vand.u32 2147483647, %v4955
    %v4960 = vand.u32 2147483647, %v4956
    %v4961 = vand.u32 2147483647, %v4957
    %v4962 = vmul.f32 %v4958, 0.3275911
    %v4963 = vmul.f32 %v4959, 0.3275911
    %v4964 = vmul.f32 %v4960, 0.3275911
    %v4965 = vmul.f32 %v4961, 0.3275911
    %v4966 = vadd.f32 %v4962, 1.0
    %v4967 = vadd.f32 %v4963, 1.0
    %v4968 = vadd.f32 %v4964, 1.0
    %v4969 = vadd.f32 %v4965, 1.0
    %v4970 = vrcp.pop %v4966
    %v4971 = vmul.f32 1.0, %v4970
    %v4972 = vrcp.pop %v4967
    %v4973 = vmul.f32 1.0, %v4972
    %v4974 = vrcp.pop %v4968
    %v4975 = vmul.f32 1.0, %v4974
    %v4976 = vrcp.pop %v4969
    %v4977 = vmul.f32 1.0, %v4976
    %v4978 = vmul.f32 %v4971, 1.0614054
    %v4979 = vmul.f32 %v4973, 1.0614054
    %v4980 = vmul.f32 %v4975, 1.0614054
    %v4981 = vmul.f32 %v4977, 1.0614054
    %v4982 = vadd.f32 %v4978, -1.4531521
    %v4983 = vadd.f32 %v4979, -1.4531521
    %v4984 = vadd.f32 %v4980, -1.4531521
    %v4985 = vadd.f32 %v4981, -1.4531521
    %v4986 = vmul.f32 %v4982, %v4971
    %v4987 = vmul.f32 %v4983, %v4973
    %v4988 = vmul.f32 %v4984, %v4975
    %v4989 = vmul.f32 %v4985, %v4977
    %v4990 = vadd.f32 %v4986, 1.4214138
    %v4991 = vadd.f32 %v4987, 1.4214138
    %v4992 = vadd.f32 %v4988, 1.4214138
    %v4993 = vadd.f32 %v4989, 1.4214138
    %v4994 = vmul.f32 %v4990, %v4971
    %v4995 = vmul.f32 %v4991, %v4973
    %v4996 = vmul.f32 %v4992, %v4975
    %v4997 = vmul.f32 %v4993, %v4977
    %v4998 = vadd.f32 %v4994, -0.28449672
    %v4999 = vadd.f32 %v4995, -0.28449672
    %v5000 = vadd.f32 %v4996, -0.28449672
    %v5001 = vadd.f32 %v4997, -0.28449672
    %v5002 = vmul.f32 %v4998, %v4971
    %v5003 = vmul.f32 %v4999, %v4973
    %v5004 = vmul.f32 %v5000, %v4975
    %v5005 = vmul.f32 %v5001, %v4977
    %v5006 = vadd.f32 %v5002, 0.2548296
    %v5007 = vadd.f32 %v5003, 0.2548296
    %v5008 = vadd.f32 %v5004, 0.2548296
    %v5009 = vadd.f32 %v5005, 0.2548296
    %v5010 = vmul.f32 %v5006, %v4971
    %v5011 = vmul.f32 %v5007, %v4973
    %v5012 = vmul.f32 %v5008, %v4975
    %v5013 = vmul.f32 %v5009, %v4977
    %v5014 = vsub.f32 0.0, %v4958
    %v5015 = vsub.f32 0.0, %v4959
    %v5016 = vsub.f32 0.0, %v4960
    %v5017 = vsub.f32 0.0, %v4961
    %v5018 = vmul.f32 %v5014, %v4958
    %v5019 = vmul.f32 %v5015, %v4959
    %v5020 = vmul.f32 %v5016, %v4960
    %v5021 = vmul.f32 %v5017, %v4961
    %v5022 = vmul.f32 %v5018, 1.442695
    %v5023 = vpow.pop %v5022
    %v5024 = vmul.f32 %v5019, 1.442695
    %v5025 = vpow.pop %v5024
    %v5026 = vmul.f32 %v5020, 1.442695
    %v5027 = vpow.pop %v5026
    %v5028 = vmul.f32 %v5021, 1.442695
    %v5029 = vpow.pop %v5028
    %v5030 = vmul.f32 %v5010, %v5023
    %v5031 = vmul.f32 %v5011, %v5025
    %v5032 = vmul.f32 %v5012, %v5027
    %v5033 = vmul.f32 %v5013, %v5029
    %v5034 = vsub.f32 1.0, %v5030
    %v5035 = vsub.f32 1.0, %v5031
    %v5036 = vsub.f32 1.0, %v5032
    %v5037 = vsub.f32 1.0, %v5033
    %vm5038 = vcmp.ge.f32.partialorder %v4954, 0.0
    %vm5039 = vcmp.ge.f32.partialorder %v4955, 0.0
    %vm5040 = vcmp.ge.f32.partialorder %v4956, 0.0
    %vm5041 = vcmp.ge.f32.partialorder %v4957, 0.0
    %v5042 = vsub.f32 0.0, %v5034
    %v5043 = vsub.f32 0.0, %v5035
    %v5044 = vsub.f32 0.0, %v5036
    %v5045 = vsub.f32 0.0, %v5037
    %v5046 = vsel %vm5038, %v5034, %v5042
    %v5047 = vsel %vm5039, %v5035, %v5043
    %v5048 = vsel %vm5040, %v5036, %v5044
    %v5049 = vsel %vm5041, %v5037, %v5045
    %v5050 = vadd.f32 %v5046, 1.0
    %v5051 = vadd.f32 %v5047, 1.0
    %v5052 = vadd.f32 %v5048, 1.0
    %v5053 = vadd.f32 %v5049, 1.0
    %v5054 = vmul.f32 %v4950, %v5050
    %v5055 = vmul.f32 %v4951, %v5051
    %v5056 = vmul.f32 %v4952, %v5052
    %v5057 = vmul.f32 %v4953, %v5053
    %s5058 = scalar_lea.vmem %s14, 128
    %v5059 = vld [vmem:[%s5058] sm:$0xff]
    %v5060 = vld [vmem:[%s5058 + $0x8] sm:$0xff]
    %v5061 = vld [vmem:[%s5058 + $0x10] sm:$0xff]
    %v5062 = vld [vmem:[%s5058 + $0x18] sm:$0xff]
    %v5063 = vld [vmem:[%s5058 + $0x20] sm:$0xff]
    %v5064 = vld [vmem:[%s5058 + $0x28] sm:$0xff]
    %v5065 = vld [vmem:[%s5058 + $0x30] sm:$0xff]
    %v5066 = vld [vmem:[%s5058 + $0x38] sm:$0xff]
    %v5067 = vld [vmem:[%s5058 + $0x40] sm:$0xff]
    %v5068 = vld [vmem:[%s5058 + $0x48] sm:$0xff]
    %v5069 = vld [vmem:[%s5058 + $0x50] sm:$0xff]
    %v5070 = vld [vmem:[%s5058 + $0x58] sm:$0xff]
    %v5071 = vld [vmem:[%s5058 + $0x60] sm:$0xff]
    %v5072 = vld [vmem:[%s5058 + $0x68] sm:$0xff]
    %v5073 = vld [vmem:[%s5058 + $0x70] sm:$0xff]
    %v5074 = vld [vmem:[%s5058 + $0x78] sm:$0xff]
    %s5075 = scalar_lea.vmem [#allocation22], 1
    %v5076 = vld [vmem:[%s5075] sm:$0x1]
    %v5078 = vlaneseq
    %v5079 = vshrl.u32 %v5078, 7
    %v5080 = vsub.s32 0, %v5079
    %v5081 = vrot.slane %v5076, %v5080
    %5083 = vmatprep.subr.mxu0 0.0
    %5084 = vmatpush1.msra.mxu0 %v5059
    %5085 = vmatprep.subr.mxu0 0.0
    %5086 = vmatpush1.msra.mxu0 %v5060
    %5087 = vmatprep.subr.mxu0 0.0
    %5088 = vmatpush1.msra.mxu0 %v5061
    %5089 = vmatprep.subr.mxu0 0.0
    %5090 = vmatpush1.msra.mxu0 %v5062
    %5091 = vmatprep.subr.mxu0 0.0
    %5092 = vmatpush1.msra.mxu0 %v5063
    %5093 = vmatprep.subr.mxu0 0.0
    %5094 = vmatpush1.msra.mxu0 %v5064
    %5095 = vmatprep.subr.mxu0 0.0
    %5096 = vmatpush1.msra.mxu0 %v5065
    %5097 = vmatprep.subr.mxu0 0.0
    %5098 = vmatpush1.msra.mxu0 %v5066
    %5099 = vmatprep.subr.mxu0 0.0
    %5100 = vmatpush1.msra.mxu0 %v5067
    %5101 = vmatprep.subr.mxu0 0.0
    %5102 = vmatpush1.msra.mxu0 %v5068
    %5103 = vmatprep.subr.mxu0 0.0
    %5104 = vmatpush1.msra.mxu0 %v5069
    %5105 = vmatprep.subr.mxu0 0.0
    %5106 = vmatpush1.msra.mxu0 %v5070
    %5107 = vmatprep.subr.mxu0 0.0
    %5108 = vmatpush1.msra.mxu0 %v5071
    %5109 = vmatprep.subr.mxu0 0.0
    %5110 = vmatpush1.msra.mxu0 %v5072
    %5111 = vmatprep.subr.mxu0 0.0
    %5112 = vmatpush1.msra.mxu0 %v5073
    %5113 = vmatprep.subr.mxu0 0.0
    %5114 = vmatpush1.msra.mxu0 %v5074
    %5115 = vmatprep.subr.mxu0 0.0
    %5116 = vmatpush1.msra.mxu0 0.0
    %5117 = vmatprep.subr.mxu0 0.0
    %5118 = vmatpush1.msra.mxu0 0.0
    %5119 = vmatprep.subr.mxu0 0.0
    %5120 = vmatpush1.msra.mxu0 0.0
    %5121 = vmatprep.subr.mxu0 0.0
    %5122 = vmatpush1.msra.mxu0 0.0
    %5123 = vmatprep.subr.mxu0 0.0
    %5124 = vmatpush1.msra.mxu0 0.0
    %5125 = vmatprep.subr.mxu0 0.0
    %5126 = vmatpush1.msra.mxu0 0.0
    %5127 = vmatprep.subr.mxu0 0.0
    %5128 = vmatpush1.msra.mxu0 0.0
    %5129 = vmatprep.subr.mxu0 0.0
    %5130 = vmatpush1.msra.mxu0 0.0
    %5131 = vmatprep.subr.mxu0 0.0
    %5132 = vmatpush1.msra.mxu0 0.0
    %5133 = vmatprep.subr.mxu0 0.0
    %5134 = vmatpush1.msra.mxu0 0.0
    %5135 = vmatprep.subr.mxu0 0.0
    %5136 = vmatpush1.msra.mxu0 0.0
    %5137 = vmatprep.subr.mxu0 0.0
    %5138 = vmatpush1.msra.mxu0 0.0
    %5139 = vmatprep.subr.mxu0 0.0
    %5140 = vmatpush1.msra.mxu0 0.0
    %5141 = vmatprep.subr.mxu0 0.0
    %5142 = vmatpush1.msra.mxu0 0.0
    %5143 = vmatprep.subr.mxu0 0.0
    %5144 = vmatpush1.msra.mxu0 0.0
    %5145 = vmatprep.subr.mxu0 0.0
    %5146 = vmatpush1.msra.mxu0 0.0
    %5147 = vmatprep.mubr.f32.mxu0 0.0
    %5148 = vmatmul.mubr.f32.gmra.mrb[0].mxu0 %v5054
    %v5149 = vpop.f32.mrb[0].mxu0
    %v5150 = vadd.f32 %v5081, %v5149
    %v5151 = vpop.f32.mrb[0].mxu0
    %5152 = vmatprep.mubr.f32.mxu0 0.0
    %5153 = vmatmul.mubr.f32.gmra.mrb[0].mxu0 %v5055
    %v5154 = vpop.f32.mrb[0].mxu0
    %v5155 = vadd.f32 %v5081, %v5154
    %v5156 = vpop.f32.mrb[0].mxu0
    %5157 = vmatprep.mubr.f32.mxu0 0.0
    %5158 = vmatmul.mubr.f32.gmra.mrb[0].mxu0 %v5056
    %v5159 = vpop.f32.mrb[0].mxu0
    %v5160 = vadd.f32 %v5081, %v5159
    %v5161 = vpop.f32.mrb[0].mxu0
    %5162 = vmatprep.mubr.f32.mxu0 0.0
    %5163 = vmatmul.mubr.f32.gmra.mrb[0].mxu0 %v5057
    %v5164 = vpop.f32.mrb[0].mxu0
    %v5165 = vadd.f32 %v5081, %v5164
    %v5166 = vpop.f32.mrb[0].mxu0
    %5167 = vdwg.mxu0
    %v5168 = vadd.f32 %v4760, %v5150
    %v5169 = vadd.f32 %v4761, %v5155
    %v5170 = vadd.f32 %v4762, %v5160
    %v5171 = vadd.f32 %v4763, %v5165
    %v5172 = vld [vmem:[#allocation23] sm:$0x1]
    %v5173 = vld [vmem:[#allocation25] sm:$0x1]
    %v5174 = vsel %vm403, %v5168, 0.0
    %5175 = vadd.xlane.f32.xlu0 %v5174
    %v5176 = vpop.xlane.xlu0 %5175
    %v5177 = vsel %vm403, %v5169, 0.0
    %5178 = vadd.xlane.f32.xlu0 %v5177
    %v5179 = vpop.xlane.xlu0 %5178
    %v5180 = vsel %vm403, %v5170, 0.0
    %5181 = vadd.xlane.f32.xlu0 %v5180
    %v5182 = vpop.xlane.xlu0 %5181
    %v5183 = vsel %vm403, %v5171, 0.0
    %5184 = vadd.xlane.f32.xlu0 %v5183
    %v5185 = vpop.xlane.xlu0 %5184
    %v5186 = vmul.f32 %v5176, %v416
    %v5187 = vmul.f32 %v5179, %v416
    %v5188 = vmul.f32 %v5182, %v416
    %v5189 = vmul.f32 %v5185, %v416
    %v5190 = vsub.f32 %v5168, %v5186
    %v5191 = vsub.f32 %v5169, %v5187
    %v5192 = vsub.f32 %v5170, %v5188
    %v5193 = vsub.f32 %v5171, %v5189
    %v5194 = vmul.f32 %v5190, %v5190
    %v5195 = vmul.f32 %v5191, %v5191
    %v5196 = vmul.f32 %v5192, %v5192
    %v5197 = vmul.f32 %v5193, %v5193
    %v5198 = vsel %vm403, %v5194, 0.0
    %5199 = vadd.xlane.f32.xlu0 %v5198
    %v5200 = vpop.xlane.xlu0 %5199
    %v5201 = vsel %vm403, %v5195, 0.0
    %5202 = vadd.xlane.f32.xlu0 %v5201
    %v5203 = vpop.xlane.xlu0 %5202
    %v5204 = vsel %vm403, %v5196, 0.0
    %5205 = vadd.xlane.f32.xlu0 %v5204
    %v5206 = vpop.xlane.xlu0 %5205
    %v5207 = vsel %vm403, %v5197, 0.0
    %5208 = vadd.xlane.f32.xlu0 %v5207
    %v5209 = vpop.xlane.xlu0 %5208
    %v5210 = vmul.f32 %v5200, %v416
    %v5211 = vmul.f32 %v5203, %v416
    %v5212 = vmul.f32 %v5206, %v416
    %v5213 = vmul.f32 %v5209, %v416
    %v5214 = vadd.f32 %v5210, 1e-06
    %v5215 = vadd.f32 %v5211, 1e-06
    %v5216 = vadd.f32 %v5212, 1e-06
    %v5217 = vadd.f32 %v5213, 1e-06
    %v5218 = vrsqrt.pop %v5214
    %v5219 = vrsqrt.pop %v5215
    %v5220 = vrsqrt.pop %v5216
    %v5221 = vrsqrt.pop %v5217
    %v5222 = vmul.f32 %v5190, %v5218
    %v5223 = vmul.f32 %v5191, %v5219
    %v5224 = vmul.f32 %v5192, %v5220
    %v5225 = vmul.f32 %v5193, %v5221
    %v5227 = vlaneseq
    %v5228 = vshrl.u32 %v5227, 7
    %v5229 = vsub.s32 0, %v5228
    %v5230 = vrot.slane %v5172, %v5229
    %v5232 = vmul.f32 %v5222, %v5230
    %v5233 = vmul.f32 %v5223, %v5230
    %v5234 = vmul.f32 %v5224, %v5230
    %v5235 = vmul.f32 %v5225, %v5230
    %v5237 = vlaneseq
    %v5238 = vshrl.u32 %v5237, 7
    %v5239 = vsub.s32 0, %v5238
    %v5240 = vrot.slane %v5173, %v5239
    %v5242 = vadd.f32 %v5232, %v5240
    %v5243 = vadd.f32 %v5233, %v5240
    %v5244 = vadd.f32 %v5234, %v5240
    %v5245 = vadd.f32 %v5235, %v5240
    %5246 = vst.msk [vmem:[%s18] sm:$0xff] %vm403, %v5242
    %5247 = vst.msk [vmem:[%s18 + $0x8] sm:$0xff] %vm403, %v5243
    %5248 = vst.msk [vmem:[%s18 + $0x10] sm:$0xff] %vm403, %v5244
    %5249 = vst.msk [vmem:[%s18 + $0x18] sm:$0xff] %vm403, %v5245
    // Predicated region
    $region134: #{vitpose_forward.3} parent=1 // pred_check
      _
    $region135: #{vitpose_forward.3} parent=1 // pred_check_branch
      %5251 = sbr.rel (0) target = $region137
    $region136: #{vitpose_forward.3} parent=1 // pred_region
      _
    $region137: #{vitpose_forward.3} parent=1 // pred_fallthru
      _
    // Predicated region
    $region138: #{vitpose_forward.3} parent=1 // pred_check
      _
    $region139: #{vitpose_forward.3} parent=1 // pred_check_branch
      %5253 = sbr.rel (0) target = $region141
    $region140: #{vitpose_forward.3} parent=1 // pred_region
      _
    $region141: #{vitpose_forward.3} parent=1 // pred_fallthru
      _
    %5254 = vsyncpa [#allocation4], 1
    %5255 = vsyncpa [#allocation6], 1
    %5256 = vsyncpa [#allocation9], 1
    %5257 = vsyncpa [#allocation12], 1
    %5258 = vsyncpa [#allocation15], 1
    %5259 = vsyncpa [#allocation18], 1
    %5260 = vsyncpa [#allocation21], 1
    %5261 = vsyncpa [#allocation24], 1

// kernel: vitpose_forward.4
$region0: #{vitpose_forward.4}
  #allocation0 [shape = 'u32[]', space=smem, size = 0x4, offset = 0x4, fixed_abs, tag = 'smem constant byte address 0x4 - core index']
  #allocation1 [shape = 'u32[144,128]{1,0:T(1,128)}', space=vmem, size = 0x12000, scoped, tag = 'internal scratch']
  %s0 = inlined_call_operand.vmem [shape: f32[16,512], index: 0, kind: input, shape index: {}]
  %s1 = inlined_call_operand.vmem [shape: f32[512,128], index: 1, kind: input, shape index: {}]
  %s2 = inlined_call_operand.vmem [shape: f32[16,1], index: 2, kind: input, shape index: {}]
  %s3 = inlined_call_operand.vmem [shape: f32[16,1], index: 3, kind: input, shape index: {}]
  %s4 = inlined_call_operand.vmem [shape: f32[16,1], index: 4, kind: input, shape index: {}]
  %s5 = inlined_call_operand.vmem [shape: f32[16,1], index: 5, kind: input, shape index: {}]
  %s6 = inlined_call_operand.vmem [shape: f32[16,128], index: 6, kind: output, shape index: {}]
  %s7 = sld [smem:[#allocation0]]
  $region34: #{vitpose_forward.4} parent=0
    _
  %s9 = ssub.s32 1, %s7
  %s10 = scalar_select 0, %s9, %s7
  // Predicated region
  $region2: #{vitpose_forward.4} parent=0 // pred_check
    _
  $region3: #{vitpose_forward.4} parent=0 // pred_check_branch
    %12 = sbr.rel (0) target = $region5
  $region4: #{vitpose_forward.4} parent=0 // pred_region
    _
  $region5: #{vitpose_forward.4} parent=0 // pred_fallthru
    _
  // Predicated region
  $region6: #{vitpose_forward.4} parent=0 // pred_check
    _
  $region7: #{vitpose_forward.4} parent=0 // pred_check_branch
    %14 = sbr.rel (0) target = $region9
  $region8: #{vitpose_forward.4} parent=0 // pred_region
    _
  $region9: #{vitpose_forward.4} parent=0 // pred_fallthru
    _
  // Predicated region
  $region10: #{vitpose_forward.4} parent=0 // pred_check
    _
  $region11: #{vitpose_forward.4} parent=0 // pred_check_branch
    %16 = sbr.rel (0) target = $region13
  $region12: #{vitpose_forward.4} parent=0 // pred_region
    _
  $region13: #{vitpose_forward.4} parent=0 // pred_fallthru
    _
  // Predicated region
  $region14: #{vitpose_forward.4} parent=0 // pred_check
    _
  $region15: #{vitpose_forward.4} parent=0 // pred_check_branch
    %18 = sbr.rel (0) target = $region17
  $region16: #{vitpose_forward.4} parent=0 // pred_region
    _
  $region17: #{vitpose_forward.4} parent=0 // pred_fallthru
    _
  // Predicated region
  $region18: #{vitpose_forward.4} parent=0 // pred_check
    _
  $region19: #{vitpose_forward.4} parent=0 // pred_check_branch
    %20 = sbr.rel (0) target = $region21
  $region20: #{vitpose_forward.4} parent=0 // pred_region
    _
  $region21: #{vitpose_forward.4} parent=0 // pred_fallthru
    _
  // Predicated region
  $region22: #{vitpose_forward.4} parent=0 // pred_check
    _
  $region23: #{vitpose_forward.4} parent=0 // pred_check_branch
    %22 = sbr.rel (0) target = $region25
  $region24: #{vitpose_forward.4} parent=0 // pred_region
    _
  $region25: #{vitpose_forward.4} parent=0 // pred_fallthru
    _
  %v23 = vld [vmem:[%s0] sm:$0xff]
  %v24 = vld [vmem:[%s0 + $0x8] sm:$0xff]
  %v25 = vld [vmem:[%s0 + $0x10] sm:$0xff]
  %v26 = vld [vmem:[%s0 + $0x18] sm:$0xff]
  %v27 = vld [vmem:[%s0 + $0x20] sm:$0xff]
  %v28 = vld [vmem:[%s0 + $0x28] sm:$0xff]
  %v29 = vld [vmem:[%s0 + $0x30] sm:$0xff]
  %v30 = vld [vmem:[%s0 + $0x38] sm:$0xff]
  %v31 = vld [vmem:[%s1] sm:$0xff]
  %v32 = vld [vmem:[%s1 + $0x8] sm:$0xff]
  %v33 = vld [vmem:[%s1 + $0x10] sm:$0xff]
  %v34 = vld [vmem:[%s1 + $0x18] sm:$0xff]
  %v35 = vld [vmem:[%s1 + $0x20] sm:$0xff]
  %v36 = vld [vmem:[%s1 + $0x28] sm:$0xff]
  %v37 = vld [vmem:[%s1 + $0x30] sm:$0xff]
  %v38 = vld [vmem:[%s1 + $0x38] sm:$0xff]
  %v39 = vld [vmem:[%s1 + $0x40] sm:$0xff]
  %v40 = vld [vmem:[%s1 + $0x48] sm:$0xff]
  %v41 = vld [vmem:[%s1 + $0x50] sm:$0xff]
  %v42 = vld [vmem:[%s1 + $0x58] sm:$0xff]
  %v43 = vld [vmem:[%s1 + $0x60] sm:$0xff]
  %v44 = vld [vmem:[%s1 + $0x68] sm:$0xff]
  %v45 = vld [vmem:[%s1 + $0x70] sm:$0xff]
  %v46 = vld [vmem:[%s1 + $0x78] sm:$0xff]
  %v47 = vld [vmem:[%s1 + $0x80] sm:$0xff]
  %v48 = vld [vmem:[%s1 + $0x88] sm:$0xff]
  %v49 = vld [vmem:[%s1 + $0x90] sm:$0xff]
  %v50 = vld [vmem:[%s1 + $0x98] sm:$0xff]
  %v51 = vld [vmem:[%s1 + $0xa0] sm:$0xff]
  %v52 = vld [vmem:[%s1 + $0xa8] sm:$0xff]
  %v53 = vld [vmem:[%s1 + $0xb0] sm:$0xff]
  %v54 = vld [vmem:[%s1 + $0xb8] sm:$0xff]
  %v55 = vld [vmem:[%s1 + $0xc0] sm:$0xff]
  %v56 = vld [vmem:[%s1 + $0xc8] sm:$0xff]
  %v57 = vld [vmem:[%s1 + $0xd0] sm:$0xff]
  %v58 = vld [vmem:[%s1 + $0xd8] sm:$0xff]
  %v59 = vld [vmem:[%s1 + $0xe0] sm:$0xff]
  %v60 = vld [vmem:[%s1 + $0xe8] sm:$0xff]
  %v61 = vld [vmem:[%s1 + $0xf0] sm:$0xff]
  %v62 = vld [vmem:[%s1 + $0xf8] sm:$0xff]
  %v63 = vld [vmem:[%s1 + $0x100] sm:$0xff]
  %v64 = vld [vmem:[%s1 + $0x108] sm:$0xff]
  %v65 = vld [vmem:[%s1 + $0x110] sm:$0xff]
  %v66 = vld [vmem:[%s1 + $0x118] sm:$0xff]
  %v67 = vld [vmem:[%s1 + $0x120] sm:$0xff]
  %v68 = vld [vmem:[%s1 + $0x128] sm:$0xff]
  %v69 = vld [vmem:[%s1 + $0x130] sm:$0xff]
  %v70 = vld [vmem:[%s1 + $0x138] sm:$0xff]
  %v71 = vld [vmem:[%s1 + $0x140] sm:$0xff]
  %v72 = vld [vmem:[%s1 + $0x148] sm:$0xff]
  %v73 = vld [vmem:[%s1 + $0x150] sm:$0xff]
  %v74 = vld [vmem:[%s1 + $0x158] sm:$0xff]
  %v75 = vld [vmem:[%s1 + $0x160] sm:$0xff]
  %v76 = vld [vmem:[%s1 + $0x168] sm:$0xff]
  %v77 = vld [vmem:[%s1 + $0x170] sm:$0xff]
  %v78 = vld [vmem:[%s1 + $0x178] sm:$0xff]
  %v79 = vld [vmem:[%s1 + $0x180] sm:$0xff]
  %v80 = vld [vmem:[%s1 + $0x188] sm:$0xff]
  %v81 = vld [vmem:[%s1 + $0x190] sm:$0xff]
  %v82 = vld [vmem:[%s1 + $0x198] sm:$0xff]
  %v83 = vld [vmem:[%s1 + $0x1a0] sm:$0xff]
  %v84 = vld [vmem:[%s1 + $0x1a8] sm:$0xff]
  %v85 = vld [vmem:[%s1 + $0x1b0] sm:$0xff]
  %v86 = vld [vmem:[%s1 + $0x1b8] sm:$0xff]
  %v87 = vld [vmem:[%s1 + $0x1c0] sm:$0xff]
  %v88 = vld [vmem:[%s1 + $0x1c8] sm:$0xff]
  %v89 = vld [vmem:[%s1 + $0x1d0] sm:$0xff]
  %v90 = vld [vmem:[%s1 + $0x1d8] sm:$0xff]
  %v91 = vld [vmem:[%s1 + $0x1e0] sm:$0xff]
  %v92 = vld [vmem:[%s1 + $0x1e8] sm:$0xff]
  %v93 = vld [vmem:[%s1 + $0x1f0] sm:$0xff]
  %v94 = vld [vmem:[%s1 + $0x1f8] sm:$0xff]
  %95 = vmatprep.subr.mxu0 0.0
  %96 = vmatpush1.msra.mxu0 %v31
  %97 = vmatprep.subr.mxu0 0.0
  %98 = vmatpush1.msra.mxu0 %v32
  %99 = vmatprep.subr.mxu0 0.0
  %100 = vmatpush1.msra.mxu0 %v33
  %101 = vmatprep.subr.mxu0 0.0
  %102 = vmatpush1.msra.mxu0 %v34
  %103 = vmatprep.subr.mxu0 0.0
  %104 = vmatpush1.msra.mxu0 %v35
  %105 = vmatprep.subr.mxu0 0.0
  %106 = vmatpush1.msra.mxu0 %v36
  %107 = vmatprep.subr.mxu0 0.0
  %108 = vmatpush1.msra.mxu0 %v37
  %109 = vmatprep.subr.mxu0 0.0
  %110 = vmatpush1.msra.mxu0 %v38
  %111 = vmatprep.subr.mxu0 0.0
  %112 = vmatpush1.msra.mxu0 %v39
  %113 = vmatprep.subr.mxu0 0.0
  %114 = vmatpush1.msra.mxu0 %v40
  %115 = vmatprep.subr.mxu0 0.0
  %116 = vmatpush1.msra.mxu0 %v41
  %117 = vmatprep.subr.mxu0 0.0
  %118 = vmatpush1.msra.mxu0 %v42
  %119 = vmatprep.subr.mxu0 0.0
  %120 = vmatpush1.msra.mxu0 %v43
  %121 = vmatprep.subr.mxu0 0.0
  %122 = vmatpush1.msra.mxu0 %v44
  %123 = vmatprep.subr.mxu0 0.0
  %124 = vmatpush1.msra.mxu0 %v45
  %125 = vmatprep.subr.mxu0 0.0
  %126 = vmatpush1.msra.mxu0 %v46
  %127 = vmatprep.subr.mxu0 0.0
  %128 = vmatpush1.msra.mxu0 %v47
  %129 = vmatprep.subr.mxu0 0.0
  %130 = vmatpush1.msra.mxu0 %v48
  %131 = vmatprep.subr.mxu0 0.0
  %132 = vmatpush1.msra.mxu0 %v49
  %133 = vmatprep.subr.mxu0 0.0
  %134 = vmatpush1.msra.mxu0 %v50
  %135 = vmatprep.subr.mxu0 0.0
  %136 = vmatpush1.msra.mxu0 %v51
  %137 = vmatprep.subr.mxu0 0.0
  %138 = vmatpush1.msra.mxu0 %v52
  %139 = vmatprep.subr.mxu0 0.0
  %140 = vmatpush1.msra.mxu0 %v53
  %141 = vmatprep.subr.mxu0 0.0
  %142 = vmatpush1.msra.mxu0 %v54
  %143 = vmatprep.subr.mxu0 0.0
  %144 = vmatpush1.msra.mxu0 %v55
  %145 = vmatprep.subr.mxu0 0.0
  %146 = vmatpush1.msra.mxu0 %v56
  %147 = vmatprep.subr.mxu0 0.0
  %148 = vmatpush1.msra.mxu0 %v57
  %149 = vmatprep.subr.mxu0 0.0
  %150 = vmatpush1.msra.mxu0 %v58
  %151 = vmatprep.subr.mxu0 0.0
  %152 = vmatpush1.msra.mxu0 %v59
  %153 = vmatprep.subr.mxu0 0.0
  %154 = vmatpush1.msra.mxu0 %v60
  %155 = vmatprep.subr.mxu0 0.0
  %156 = vmatpush1.msra.mxu0 %v61
  %157 = vmatprep.subr.mxu0 0.0
  %158 = vmatpush1.msra.mxu0 %v62
  %159 = vmatprep.mubr.f32.mxu0 %v24
  %160 = vmatmul.mubr.f32.gmra.mrb[0].mxu0 %v23
  %v161 = vpop.f32.mrb[0].mxu0
  %v162 = vadd.f32 0.0, %v161
  %v163 = vpop.f32.mrb[0].mxu0
  %164 = vmatprep.mubr.f32.mxu0 %v28
  %165 = vmatmul.mubr.f32.gmra.mrb[0].mxu0 %v27
  %v166 = vpop.f32.mrb[0].mxu0
  %v167 = vadd.f32 0.0, %v166
  %v168 = vpop.f32.mrb[0].mxu0
  %169 = vdwg.mxu0
  %170 = vmatprep.subr.mxu0 0.0
  %171 = vmatpush1.msra.mxu0 %v63
  %172 = vmatprep.subr.mxu0 0.0
  %173 = vmatpush1.msra.mxu0 %v64
  %174 = vmatprep.subr.mxu0 0.0
  %175 = vmatpush1.msra.mxu0 %v65
  %176 = vmatprep.subr.mxu0 0.0
  %177 = vmatpush1.msra.mxu0 %v66
  %178 = vmatprep.subr.mxu0 0.0
  %179 = vmatpush1.msra.mxu0 %v67
  %180 = vmatprep.subr.mxu0 0.0
  %181 = vmatpush1.msra.mxu0 %v68
  %182 = vmatprep.subr.mxu0 0.0
  %183 = vmatpush1.msra.mxu0 %v69
  %184 = vmatprep.subr.mxu0 0.0
  %185 = vmatpush1.msra.mxu0 %v70
  %186 = vmatprep.subr.mxu0 0.0
  %187 = vmatpush1.msra.mxu0 %v71
  %188 = vmatprep.subr.mxu0 0.0
  %189 = vmatpush1.msra.mxu0 %v72
  %190 = vmatprep.subr.mxu0 0.0
  %191 = vmatpush1.msra.mxu0 %v73
  %192 = vmatprep.subr.mxu0 0.0
  %193 = vmatpush1.msra.mxu0 %v74
  %194 = vmatprep.subr.mxu0 0.0
  %195 = vmatpush1.msra.mxu0 %v75
  %196 = vmatprep.subr.mxu0 0.0
  %197 = vmatpush1.msra.mxu0 %v76
  %198 = vmatprep.subr.mxu0 0.0
  %199 = vmatpush1.msra.mxu0 %v77
  %200 = vmatprep.subr.mxu0 0.0
  %201 = vmatpush1.msra.mxu0 %v78
  %202 = vmatprep.subr.mxu0 0.0
  %203 = vmatpush1.msra.mxu0 %v79
  %204 = vmatprep.subr.mxu0 0.0
  %205 = vmatpush1.msra.mxu0 %v80
  %206 = vmatprep.subr.mxu0 0.0
  %207 = vmatpush1.msra.mxu0 %v81
  %208 = vmatprep.subr.mxu0 0.0
  %209 = vmatpush1.msra.mxu0 %v82
  %210 = vmatprep.subr.mxu0 0.0
  %211 = vmatpush1.msra.mxu0 %v83
  %212 = vmatprep.subr.mxu0 0.0
  %213 = vmatpush1.msra.mxu0 %v84
  %214 = vmatprep.subr.mxu0 0.0
  %215 = vmatpush1.msra.mxu0 %v85
  %216 = vmatprep.subr.mxu0 0.0
  %217 = vmatpush1.msra.mxu0 %v86
  %218 = vmatprep.subr.mxu0 0.0
  %219 = vmatpush1.msra.mxu0 %v87
  %220 = vmatprep.subr.mxu0 0.0
  %221 = vmatpush1.msra.mxu0 %v88
  %222 = vmatprep.subr.mxu0 0.0
  %223 = vmatpush1.msra.mxu0 %v89
  %224 = vmatprep.subr.mxu0 0.0
  %225 = vmatpush1.msra.mxu0 %v90
  %226 = vmatprep.subr.mxu0 0.0
  %227 = vmatpush1.msra.mxu0 %v91
  %228 = vmatprep.subr.mxu0 0.0
  %229 = vmatpush1.msra.mxu0 %v92
  %230 = vmatprep.subr.mxu0 0.0
  %231 = vmatpush1.msra.mxu0 %v93
  %232 = vmatprep.subr.mxu0 0.0
  %233 = vmatpush1.msra.mxu0 %v94
  %234 = vmatprep.mubr.f32.mxu0 %v26
  %235 = vmatmul.mubr.f32.gmra.mrb[0].mxu0 %v25
  %v236 = vpop.f32.mrb[0].mxu0
  %v237 = vadd.f32 %v162, %v236
  %v238 = vpop.f32.mrb[0].mxu0
  %239 = vmatprep.mubr.f32.mxu0 %v30
  %240 = vmatmul.mubr.f32.gmra.mrb[0].mxu0 %v29
  %v241 = vpop.f32.mrb[0].mxu0
  %v242 = vadd.f32 %v167, %v241
  %v243 = vpop.f32.mrb[0].mxu0
  %244 = vdwg.mxu0
  %v245 = vld [vmem:[%s2] sm:$0xff]
  %v246 = vld [vmem:[%s2 + $0x8] sm:$0xff]
  %v247 = vld [vmem:[%s5] sm:$0xff]
  %v248 = vld [vmem:[%s5 + $0x8] sm:$0xff]
  %v249 = vadd.f32 %v247, 1e-05
  %v250 = vadd.f32 %v248, 1e-05
  %v251 = vrsqrt.pop %v249
  %v252 = vrsqrt.pop %v250
  %v253 = vmul.f32 %v245, %v251
  %v254 = vmul.f32 %v246, %v252
  %v255 = vld [vmem:[%s4] sm:$0xff]
  %v256 = vld [vmem:[%s4 + $0x8] sm:$0xff]
  %258 = vset.pattern.permute.xlu0 0
  %259 = vperm.xlu0 %258, %v255
  %v260 = vpop.permute.xlu0 %259
  %263 = vset.pattern.permute.xlu0 0
  %264 = vperm.xlu0 %263, %v256
  %v265 = vpop.permute.xlu0 %264
  %v267 = vsub.f32 %v237, %v260
  %v268 = vsub.f32 %v242, %v265
  %270 = vset.pattern.permute.xlu0 0
  %271 = vperm.xlu0 %270, %v253
  %v272 = vpop.permute.xlu0 %271
  %275 = vset.pattern.permute.xlu0 0
  %276 = vperm.xlu0 %275, %v254
  %v277 = vpop.permute.xlu0 %276
  %v279 = vmul.f32 %v267, %v272
  %v280 = vmul.f32 %v268, %v277
  %v281 = vld [vmem:[%s3] sm:$0xff]
  %v282 = vld [vmem:[%s3 + $0x8] sm:$0xff]
  %284 = vset.pattern.permute.xlu0 0
  %285 = vperm.xlu0 %284, %v281
  %v286 = vpop.permute.xlu0 %285
  %289 = vset.pattern.permute.xlu0 0
  %290 = vperm.xlu0 %289, %v282
  %v291 = vpop.permute.xlu0 %290
  %v293 = vadd.f32 %v279, %v286
  %v294 = vadd.f32 %v280, %v291
  %v295 = vmax.f32 %v293, 0.0
  %v296 = vmax.f32 %v294, 0.0
  %297 = vst [vmem:[%s6] sm:$0xff] %v295
  %298 = vst [vmem:[%s6 + $0x8] sm:$0xff] %v296
  // Predicated region
  $region26: #{vitpose_forward.4} parent=0 // pred_check
    _
  $region27: #{vitpose_forward.4} parent=0 // pred_check_branch
    %300 = sbr.rel (0) target = $region29
  $region28: #{vitpose_forward.4} parent=0 // pred_region
    _
  $region29: #{vitpose_forward.4} parent=0 // pred_fallthru
    _
  // Predicated region
  $region30: #{vitpose_forward.4} parent=0 // pred_check
    _
  $region31: #{vitpose_forward.4} parent=0 // pred_check_branch
    %302 = sbr.rel (0) target = $region33
  $region32: #{vitpose_forward.4} parent=0 // pred_region
    _
  $region33: #{vitpose_forward.4} parent=0 // pred_fallthru
    _

// kernel: vitpose_forward.5
$region0: #{vitpose_forward.5}
  #allocation0 [shape = 'u32[]', space=smem, size = 0x4, offset = 0x4, fixed_abs, tag = 'smem constant byte address 0x4 - core index']
  #allocation1 [shape = 'u32[144,128]{1,0:T(1,128)}', space=vmem, size = 0x12000, scoped, tag = 'internal scratch']
  %s0 = inlined_call_operand.vmem [shape: f32[16,256], index: 0, kind: input, shape index: {}]
  %s1 = inlined_call_operand.vmem [shape: f32[256,512], index: 1, kind: input, shape index: {}]
  %s2 = inlined_call_operand.vmem [shape: f32[16,1], index: 2, kind: input, shape index: {}]
  %s3 = inlined_call_operand.vmem [shape: f32[16,1], index: 3, kind: input, shape index: {}]
  %s4 = inlined_call_operand.vmem [shape: f32[16,1], index: 4, kind: input, shape index: {}]
  %s5 = inlined_call_operand.vmem [shape: f32[16,1], index: 5, kind: input, shape index: {}]
  %s6 = inlined_call_operand.vmem [shape: f32[5,16], index: 6, kind: input, shape index: {}]
  %s7 = inlined_call_operand.vmem [shape: f32[5,1], index: 7, kind: input, shape index: {}]
  %s8 = inlined_call_operand.vmem [shape: f32[5,512], index: 8, kind: output, shape index: {}]
  %s9 = sld [smem:[#allocation0]]
  $region42: #{vitpose_forward.5} parent=0
    _
  %s11 = ssub.s32 1, %s9
  %s12 = scalar_select 0, %s11, %s9
  // Predicated region
  $region2: #{vitpose_forward.5} parent=0 // pred_check
    _
  $region3: #{vitpose_forward.5} parent=0 // pred_check_branch
    %14 = sbr.rel (0) target = $region5
  $region4: #{vitpose_forward.5} parent=0 // pred_region
    _
  $region5: #{vitpose_forward.5} parent=0 // pred_fallthru
    _
  // Predicated region
  $region6: #{vitpose_forward.5} parent=0 // pred_check
    _
  $region7: #{vitpose_forward.5} parent=0 // pred_check_branch
    %16 = sbr.rel (0) target = $region9
  $region8: #{vitpose_forward.5} parent=0 // pred_region
    _
  $region9: #{vitpose_forward.5} parent=0 // pred_fallthru
    _
  // Predicated region
  $region10: #{vitpose_forward.5} parent=0 // pred_check
    _
  $region11: #{vitpose_forward.5} parent=0 // pred_check_branch
    %18 = sbr.rel (0) target = $region13
  $region12: #{vitpose_forward.5} parent=0 // pred_region
    _
  $region13: #{vitpose_forward.5} parent=0 // pred_fallthru
    _
  // Predicated region
  $region14: #{vitpose_forward.5} parent=0 // pred_check
    _
  $region15: #{vitpose_forward.5} parent=0 // pred_check_branch
    %20 = sbr.rel (0) target = $region17
  $region16: #{vitpose_forward.5} parent=0 // pred_region
    _
  $region17: #{vitpose_forward.5} parent=0 // pred_fallthru
    _
  // Predicated region
  $region18: #{vitpose_forward.5} parent=0 // pred_check
    _
  $region19: #{vitpose_forward.5} parent=0 // pred_check_branch
    %22 = sbr.rel (0) target = $region21
  $region20: #{vitpose_forward.5} parent=0 // pred_region
    _
  $region21: #{vitpose_forward.5} parent=0 // pred_fallthru
    _
  // Predicated region
  $region22: #{vitpose_forward.5} parent=0 // pred_check
    _
  $region23: #{vitpose_forward.5} parent=0 // pred_check_branch
    %24 = sbr.rel (0) target = $region25
  $region24: #{vitpose_forward.5} parent=0 // pred_region
    _
  $region25: #{vitpose_forward.5} parent=0 // pred_fallthru
    _
  // Predicated region
  $region26: #{vitpose_forward.5} parent=0 // pred_check
    _
  $region27: #{vitpose_forward.5} parent=0 // pred_check_branch
    %26 = sbr.rel (0) target = $region29
  $region28: #{vitpose_forward.5} parent=0 // pred_region
    _
  $region29: #{vitpose_forward.5} parent=0 // pred_fallthru
    _
  // Predicated region
  $region30: #{vitpose_forward.5} parent=0 // pred_check
    _
  $region31: #{vitpose_forward.5} parent=0 // pred_check_branch
    %28 = sbr.rel (0) target = $region33
  $region32: #{vitpose_forward.5} parent=0 // pred_region
    _
  $region33: #{vitpose_forward.5} parent=0 // pred_fallthru
    _
  %v29 = vld [vmem:[%s0] sm:$0xff]
  %v30 = vld [vmem:[%s0 + $0x8] sm:$0xff]
  %v31 = vld [vmem:[%s0 + $0x10] sm:$0xff]
  %v32 = vld [vmem:[%s0 + $0x18] sm:$0xff]
  %v33 = vld [vmem:[%s1] sm:$0xff]
  %v34 = vld [vmem:[%s1 + $0x8] sm:$0xff]
  %v35 = vld [vmem:[%s1 + $0x10] sm:$0xff]
  %v36 = vld [vmem:[%s1 + $0x18] sm:$0xff]
  %v37 = vld [vmem:[%s1 + $0x20] sm:$0xff]
  %v38 = vld [vmem:[%s1 + $0x28] sm:$0xff]
  %v39 = vld [vmem:[%s1 + $0x30] sm:$0xff]
  %v40 = vld [vmem:[%s1 + $0x38] sm:$0xff]
  %v41 = vld [vmem:[%s1 + $0x40] sm:$0xff]
  %v42 = vld [vmem:[%s1 + $0x48] sm:$0xff]
  %v43 = vld [vmem:[%s1 + $0x50] sm:$0xff]
  %v44 = vld [vmem:[%s1 + $0x58] sm:$0xff]
  %v45 = vld [vmem:[%s1 + $0x60] sm:$0xff]
  %v46 = vld [vmem:[%s1 + $0x68] sm:$0xff]
  %v47 = vld [vmem:[%s1 + $0x70] sm:$0xff]
  %v48 = vld [vmem:[%s1 + $0x78] sm:$0xff]
  %v49 = vld [vmem:[%s1 + $0x80] sm:$0xff]
  %v50 = vld [vmem:[%s1 + $0x88] sm:$0xff]
  %v51 = vld [vmem:[%s1 + $0x90] sm:$0xff]
  %v52 = vld [vmem:[%s1 + $0x98] sm:$0xff]
  %v53 = vld [vmem:[%s1 + $0xa0] sm:$0xff]
  %v54 = vld [vmem:[%s1 + $0xa8] sm:$0xff]
  %v55 = vld [vmem:[%s1 + $0xb0] sm:$0xff]
  %v56 = vld [vmem:[%s1 + $0xb8] sm:$0xff]
  %v57 = vld [vmem:[%s1 + $0xc0] sm:$0xff]
  %v58 = vld [vmem:[%s1 + $0xc8] sm:$0xff]
  %v59 = vld [vmem:[%s1 + $0xd0] sm:$0xff]
  %v60 = vld [vmem:[%s1 + $0xd8] sm:$0xff]
  %v61 = vld [vmem:[%s1 + $0xe0] sm:$0xff]
  %v62 = vld [vmem:[%s1 + $0xe8] sm:$0xff]
  %v63 = vld [vmem:[%s1 + $0xf0] sm:$0xff]
  %v64 = vld [vmem:[%s1 + $0xf8] sm:$0xff]
  %v65 = vld [vmem:[%s1 + $0x100] sm:$0xff]
  %v66 = vld [vmem:[%s1 + $0x108] sm:$0xff]
  %v67 = vld [vmem:[%s1 + $0x110] sm:$0xff]
  %v68 = vld [vmem:[%s1 + $0x118] sm:$0xff]
  %v69 = vld [vmem:[%s1 + $0x120] sm:$0xff]
  %v70 = vld [vmem:[%s1 + $0x128] sm:$0xff]
  %v71 = vld [vmem:[%s1 + $0x130] sm:$0xff]
  %v72 = vld [vmem:[%s1 + $0x138] sm:$0xff]
  %v73 = vld [vmem:[%s1 + $0x140] sm:$0xff]
  %v74 = vld [vmem:[%s1 + $0x148] sm:$0xff]
  %v75 = vld [vmem:[%s1 + $0x150] sm:$0xff]
  %v76 = vld [vmem:[%s1 + $0x158] sm:$0xff]
  %v77 = vld [vmem:[%s1 + $0x160] sm:$0xff]
  %v78 = vld [vmem:[%s1 + $0x168] sm:$0xff]
  %v79 = vld [vmem:[%s1 + $0x170] sm:$0xff]
  %v80 = vld [vmem:[%s1 + $0x178] sm:$0xff]
  %v81 = vld [vmem:[%s1 + $0x180] sm:$0xff]
  %v82 = vld [vmem:[%s1 + $0x188] sm:$0xff]
  %v83 = vld [vmem:[%s1 + $0x190] sm:$0xff]
  %v84 = vld [vmem:[%s1 + $0x198] sm:$0xff]
  %v85 = vld [vmem:[%s1 + $0x1a0] sm:$0xff]
  %v86 = vld [vmem:[%s1 + $0x1a8] sm:$0xff]
  %v87 = vld [vmem:[%s1 + $0x1b0] sm:$0xff]
  %v88 = vld [vmem:[%s1 + $0x1b8] sm:$0xff]
  %v89 = vld [vmem:[%s1 + $0x1c0] sm:$0xff]
  %v90 = vld [vmem:[%s1 + $0x1c8] sm:$0xff]
  %v91 = vld [vmem:[%s1 + $0x1d0] sm:$0xff]
  %v92 = vld [vmem:[%s1 + $0x1d8] sm:$0xff]
  %v93 = vld [vmem:[%s1 + $0x1e0] sm:$0xff]
  %v94 = vld [vmem:[%s1 + $0x1e8] sm:$0xff]
  %v95 = vld [vmem:[%s1 + $0x1f0] sm:$0xff]
  %v96 = vld [vmem:[%s1 + $0x1f8] sm:$0xff]
  %v97 = vld [vmem:[%s1 + $0x200] sm:$0xff]
  %v98 = vld [vmem:[%s1 + $0x208] sm:$0xff]
  %v99 = vld [vmem:[%s1 + $0x210] sm:$0xff]
  %v100 = vld [vmem:[%s1 + $0x218] sm:$0xff]
  %v101 = vld [vmem:[%s1 + $0x220] sm:$0xff]
  %v102 = vld [vmem:[%s1 + $0x228] sm:$0xff]
  %v103 = vld [vmem:[%s1 + $0x230] sm:$0xff]
  %v104 = vld [vmem:[%s1 + $0x238] sm:$0xff]
  %v105 = vld [vmem:[%s1 + $0x240] sm:$0xff]
  %v106 = vld [vmem:[%s1 + $0x248] sm:$0xff]
  %v107 = vld [vmem:[%s1 + $0x250] sm:$0xff]
  %v108 = vld [vmem:[%s1 + $0x258] sm:$0xff]
  %v109 = vld [vmem:[%s1 + $0x260] sm:$0xff]
  %v110 = vld [vmem:[%s1 + $0x268] sm:$0xff]
  %v111 = vld [vmem:[%s1 + $0x270] sm:$0xff]
  %v112 = vld [vmem:[%s1 + $0x278] sm:$0xff]
  %v113 = vld [vmem:[%s1 + $0x280] sm:$0xff]
  %v114 = vld [vmem:[%s1 + $0x288] sm:$0xff]
  %v115 = vld [vmem:[%s1 + $0x290] sm:$0xff]
  %v116 = vld [vmem:[%s1 + $0x298] sm:$0xff]
  %v117 = vld [vmem:[%s1 + $0x2a0] sm:$0xff]
  %v118 = vld [vmem:[%s1 + $0x2a8] sm:$0xff]
  %v119 = vld [vmem:[%s1 + $0x2b0] sm:$0xff]
  %v120 = vld [vmem:[%s1 + $0x2b8] sm:$0xff]
  %v121 = vld [vmem:[%s1 + $0x2c0] sm:$0xff]
  %v122 = vld [vmem:[%s1 + $0x2c8] sm:$0xff]
  %v123 = vld [vmem:[%s1 + $0x2d0] sm:$0xff]
  %v124 = vld [vmem:[%s1 + $0x2d8] sm:$0xff]
  %v125 = vld [vmem:[%s1 + $0x2e0] sm:$0xff]
  %v126 = vld [vmem:[%s1 + $0x2e8] sm:$0xff]
  %v127 = vld [vmem:[%s1 + $0x2f0] sm:$0xff]
  %v128 = vld [vmem:[%s1 + $0x2f8] sm:$0xff]
  %v129 = vld [vmem:[%s1 + $0x300] sm:$0xff]
  %v130 = vld [vmem:[%s1 + $0x308] sm:$0xff]
  %v131 = vld [vmem:[%s1 + $0x310] sm:$0xff]
  %v132 = vld [vmem:[%s1 + $0x318] sm:$0xff]
  %v133 = vld [vmem:[%s1 + $0x320] sm:$0xff]
  %v134 = vld [vmem:[%s1 + $0x328] sm:$0xff]
  %v135 = vld [vmem:[%s1 + $0x330] sm:$0xff]
  %v136 = vld [vmem:[%s1 + $0x338] sm:$0xff]
  %v137 = vld [vmem:[%s1 + $0x340] sm:$0xff]
  %v138 = vld [vmem:[%s1 + $0x348] sm:$0xff]
  %v139 = vld [vmem:[%s1 + $0x350] sm:$0xff]
  %v140 = vld [vmem:[%s1 + $0x358] sm:$0xff]
  %v141 = vld [vmem:[%s1 + $0x360] sm:$0xff]
  %v142 = vld [vmem:[%s1 + $0x368] sm:$0xff]
  %v143 = vld [vmem:[%s1 + $0x370] sm:$0xff]
  %v144 = vld [vmem:[%s1 + $0x378] sm:$0xff]
  %v145 = vld [vmem:[%s1 + $0x380] sm:$0xff]
  %v146 = vld [vmem:[%s1 + $0x388] sm:$0xff]
  %v147 = vld [vmem:[%s1 + $0x390] sm:$0xff]
  %v148 = vld [vmem:[%s1 + $0x398] sm:$0xff]
  %v149 = vld [vmem:[%s1 + $0x3a0] sm:$0xff]
  %v150 = vld [vmem:[%s1 + $0x3a8] sm:$0xff]
  %v151 = vld [vmem:[%s1 + $0x3b0] sm:$0xff]
  %v152 = vld [vmem:[%s1 + $0x3b8] sm:$0xff]
  %v153 = vld [vmem:[%s1 + $0x3c0] sm:$0xff]
  %v154 = vld [vmem:[%s1 + $0x3c8] sm:$0xff]
  %v155 = vld [vmem:[%s1 + $0x3d0] sm:$0xff]
  %v156 = vld [vmem:[%s1 + $0x3d8] sm:$0xff]
  %v157 = vld [vmem:[%s1 + $0x3e0] sm:$0xff]
  %v158 = vld [vmem:[%s1 + $0x3e8] sm:$0xff]
  %v159 = vld [vmem:[%s1 + $0x3f0] sm:$0xff]
  %v160 = vld [vmem:[%s1 + $0x3f8] sm:$0xff]
  %161 = vmatprep.subr.mxu0 %v34
  %162 = vmatpush1.msra.mxu0 %v33
  %163 = vmatprep.subr.mxu0 %v38
  %164 = vmatpush1.msra.mxu0 %v37
  %165 = vmatprep.subr.mxu0 %v42
  %166 = vmatpush1.msra.mxu0 %v41
  %167 = vmatprep.subr.mxu0 %v46
  %168 = vmatpush1.msra.mxu0 %v45
  %169 = vmatprep.subr.mxu0 %v50
  %170 = vmatpush1.msra.mxu0 %v49
  %171 = vmatprep.subr.mxu0 %v54
  %172 = vmatpush1.msra.mxu0 %v53
  %173 = vmatprep.subr.mxu0 %v58
  %174 = vmatpush1.msra.mxu0 %v57
  %175 = vmatprep.subr.mxu0 %v62
  %176 = vmatpush1.msra.mxu0 %v61
  %177 = vmatprep.subr.mxu0 %v66
  %178 = vmatpush1.msra.mxu0 %v65
  %179 = vmatprep.subr.mxu0 %v70
  %180 = vmatpush1.msra.mxu0 %v69
  %181 = vmatprep.subr.mxu0 %v74
  %182 = vmatpush1.msra.mxu0 %v73
  %183 = vmatprep.subr.mxu0 %v78
  %184 = vmatpush1.msra.mxu0 %v77
  %185 = vmatprep.subr.mxu0 %v82
  %186 = vmatpush1.msra.mxu0 %v81
  %187 = vmatprep.subr.mxu0 %v86
  %188 = vmatpush1.msra.mxu0 %v85
  %189 = vmatprep.subr.mxu0 %v90
  %190 = vmatpush1.msra.mxu0 %v89
  %191 = vmatprep.subr.mxu0 %v94
  %192 = vmatpush1.msra.mxu0 %v93
  %193 = vmatprep.subr.mxu0 %v98
  %194 = vmatpush1.msra.mxu0 %v97
  %195 = vmatprep.subr.mxu0 %v102
  %196 = vmatpush1.msra.mxu0 %v101
  %197 = vmatprep.subr.mxu0 %v106
  %198 = vmatpush1.msra.mxu0 %v105
  %199 = vmatprep.subr.mxu0 %v110
  %200 = vmatpush1.msra.mxu0 %v109
  %201 = vmatprep.subr.mxu0 %v114
  %202 = vmatpush1.msra.mxu0 %v113
  %203 = vmatprep.subr.mxu0 %v118
  %204 = vmatpush1.msra.mxu0 %v117
  %205 = vmatprep.subr.mxu0 %v122
  %206 = vmatpush1.msra.mxu0 %v121
  %207 = vmatprep.subr.mxu0 %v126
  %208 = vmatpush1.msra.mxu0 %v125
  %209 = vmatprep.subr.mxu0 %v130
  %210 = vmatpush1.msra.mxu0 %v129
  %211 = vmatprep.subr.mxu0 %v134
  %212 = vmatpush1.msra.mxu0 %v133
  %213 = vmatprep.subr.mxu0 %v138
  %214 = vmatpush1.msra.mxu0 %v137
  %215 = vmatprep.subr.mxu0 %v142
  %216 = vmatpush1.msra.mxu0 %v141
  %217 = vmatprep.subr.mxu0 %v146
  %218 = vmatpush1.msra.mxu0 %v145
  %219 = vmatprep.subr.mxu0 %v150
  %220 = vmatpush1.msra.mxu0 %v149
  %221 = vmatprep.subr.mxu0 %v154
  %222 = vmatpush1.msra.mxu0 %v153
  %223 = vmatprep.subr.mxu0 %v158
  %224 = vmatpush1.msra.mxu0 %v157
  %225 = vmatprep.mubr.f32.mxu0 %v30
  %226 = vmatmul.mubr.f32.gmra.mrb[0].mxu0 %v29
  %v227 = vpop.f32.mrb[0].mxu0
  %v228 = vadd.f32 0.0, %v227
  %v229 = vpop.f32.mrb[0].mxu0
  %v230 = vadd.f32 0.0, %v229
  %231 = vmatprep.mubr.f32.mxu0 %v32
  %232 = vmatmul.mubr.f32.gmra.mrb[0].mxu0 %v31
  %v233 = vpop.f32.mrb[0].mxu0
  %v234 = vadd.f32 0.0, %v233
  %v235 = vpop.f32.mrb[0].mxu0
  %v236 = vadd.f32 0.0, %v235
  %237 = vdwg.mxu0
  %238 = vmatprep.subr.mxu0 %v36
  %239 = vmatpush1.msra.mxu0 %v35
  %240 = vmatprep.subr.mxu0 %v40
  %241 = vmatpush1.msra.mxu0 %v39
  %242 = vmatprep.subr.mxu0 %v44
  %243 = vmatpush1.msra.mxu0 %v43
  %244 = vmatprep.subr.mxu0 %v48
  %245 = vmatpush1.msra.mxu0 %v47
  %246 = vmatprep.subr.mxu0 %v52
  %247 = vmatpush1.msra.mxu0 %v51
  %248 = vmatprep.subr.mxu0 %v56
  %249 = vmatpush1.msra.mxu0 %v55
  %250 = vmatprep.subr.mxu0 %v60
  %251 = vmatpush1.msra.mxu0 %v59
  %252 = vmatprep.subr.mxu0 %v64
  %253 = vmatpush1.msra.mxu0 %v63
  %254 = vmatprep.subr.mxu0 %v68
  %255 = vmatpush1.msra.mxu0 %v67
  %256 = vmatprep.subr.mxu0 %v72
  %257 = vmatpush1.msra.mxu0 %v71
  %258 = vmatprep.subr.mxu0 %v76
  %259 = vmatpush1.msra.mxu0 %v75
  %260 = vmatprep.subr.mxu0 %v80
  %261 = vmatpush1.msra.mxu0 %v79
  %262 = vmatprep.subr.mxu0 %v84
  %263 = vmatpush1.msra.mxu0 %v83
  %264 = vmatprep.subr.mxu0 %v88
  %265 = vmatpush1.msra.mxu0 %v87
  %266 = vmatprep.subr.mxu0 %v92
  %267 = vmatpush1.msra.mxu0 %v91
  %268 = vmatprep.subr.mxu0 %v96
  %269 = vmatpush1.msra.mxu0 %v95
  %270 = vmatprep.subr.mxu0 %v100
  %271 = vmatpush1.msra.mxu0 %v99
  %272 = vmatprep.subr.mxu0 %v104
  %273 = vmatpush1.msra.mxu0 %v103
  %274 = vmatprep.subr.mxu0 %v108
  %275 = vmatpush1.msra.mxu0 %v107
  %276 = vmatprep.subr.mxu0 %v112
  %277 = vmatpush1.msra.mxu0 %v111
  %278 = vmatprep.subr.mxu0 %v116
  %279 = vmatpush1.msra.mxu0 %v115
  %280 = vmatprep.subr.mxu0 %v120
  %281 = vmatpush1.msra.mxu0 %v119
  %282 = vmatprep.subr.mxu0 %v124
  %283 = vmatpush1.msra.mxu0 %v123
  %284 = vmatprep.subr.mxu0 %v128
  %285 = vmatpush1.msra.mxu0 %v127
  %286 = vmatprep.subr.mxu0 %v132
  %287 = vmatpush1.msra.mxu0 %v131
  %288 = vmatprep.subr.mxu0 %v136
  %289 = vmatpush1.msra.mxu0 %v135
  %290 = vmatprep.subr.mxu0 %v140
  %291 = vmatpush1.msra.mxu0 %v139
  %292 = vmatprep.subr.mxu0 %v144
  %293 = vmatpush1.msra.mxu0 %v143
  %294 = vmatprep.subr.mxu0 %v148
  %295 = vmatpush1.msra.mxu0 %v147
  %296 = vmatprep.subr.mxu0 %v152
  %297 = vmatpush1.msra.mxu0 %v151
  %298 = vmatprep.subr.mxu0 %v156
  %299 = vmatpush1.msra.mxu0 %v155
  %300 = vmatprep.subr.mxu0 %v160
  %301 = vmatpush1.msra.mxu0 %v159
  %302 = vmatprep.mubr.f32.mxu0 %v30
  %303 = vmatmul.mubr.f32.gmra.mrb[0].mxu0 %v29
  %v304 = vpop.f32.mrb[0].mxu0
  %v305 = vadd.f32 0.0, %v304
  %v306 = vpop.f32.mrb[0].mxu0
  %v307 = vadd.f32 0.0, %v306
  %308 = vmatprep.mubr.f32.mxu0 %v32
  %309 = vmatmul.mubr.f32.gmra.mrb[0].mxu0 %v31
  %v310 = vpop.f32.mrb[0].mxu0
  %v311 = vadd.f32 0.0, %v310
  %v312 = vpop.f32.mrb[0].mxu0
  %v313 = vadd.f32 0.0, %v312
  %314 = vdwg.mxu0
  %v315 = vld [vmem:[%s2] sm:$0xff]
  %v316 = vld [vmem:[%s2 + $0x8] sm:$0xff]
  %v317 = vld [vmem:[%s5] sm:$0xff]
  %v318 = vld [vmem:[%s5 + $0x8] sm:$0xff]
  %v319 = vadd.f32 %v317, 1e-05
  %v320 = vadd.f32 %v318, 1e-05
  %v321 = vrsqrt.pop %v319
  %v322 = vrsqrt.pop %v320
  %v323 = vmul.f32 %v315, %v321
  %v324 = vmul.f32 %v316, %v322
  %v325 = vld [vmem:[%s4] sm:$0xff]
  %v326 = vld [vmem:[%s4 + $0x8] sm:$0xff]
  %328 = vset.pattern.permute.xlu0 0
  %329 = vperm.xlu0 %328, %v325
  %v330 = vpop.permute.xlu0 %329
  %333 = vset.pattern.permute.xlu0 0
  %334 = vperm.xlu0 %333, %v326
  %v335 = vpop.permute.xlu0 %334
  %v337 = vsub.f32 %v228, %v330
  %v338 = vsub.f32 %v230, %v330
  %v339 = vsub.f32 %v305, %v330
  %v340 = vsub.f32 %v307, %v330
  %v341 = vsub.f32 %v234, %v335
  %v342 = vsub.f32 %v236, %v335
  %v343 = vsub.f32 %v311, %v335
  %v344 = vsub.f32 %v313, %v335
  %346 = vset.pattern.permute.xlu0 0
  %347 = vperm.xlu0 %346, %v323
  %v348 = vpop.permute.xlu0 %347
  %351 = vset.pattern.permute.xlu0 0
  %352 = vperm.xlu0 %351, %v324
  %v353 = vpop.permute.xlu0 %352
  %v355 = vmul.f32 %v337, %v348
  %v356 = vmul.f32 %v338, %v348
  %v357 = vmul.f32 %v339, %v348
  %v358 = vmul.f32 %v340, %v348
  %v359 = vmul.f32 %v341, %v353
  %v360 = vmul.f32 %v342, %v353
  %v361 = vmul.f32 %v343, %v353
  %v362 = vmul.f32 %v344, %v353
  %v363 = vld [vmem:[%s3] sm:$0xff]
  %v364 = vld [vmem:[%s3 + $0x8] sm:$0xff]
  %366 = vset.pattern.permute.xlu0 0
  %367 = vperm.xlu0 %366, %v363
  %v368 = vpop.permute.xlu0 %367
  %371 = vset.pattern.permute.xlu0 0
  %372 = vperm.xlu0 %371, %v364
  %v373 = vpop.permute.xlu0 %372
  %v375 = vadd.f32 %v355, %v368
  %v376 = vadd.f32 %v356, %v368
  %v377 = vadd.f32 %v357, %v368
  %v378 = vadd.f32 %v358, %v368
  %v379 = vadd.f32 %v359, %v373
  %v380 = vadd.f32 %v360, %v373
  %v381 = vadd.f32 %v361, %v373
  %v382 = vadd.f32 %v362, %v373
  %v383 = vmax.f32 %v375, 0.0
  %v384 = vmax.f32 %v376, 0.0
  %v385 = vmax.f32 %v377, 0.0
  %v386 = vmax.f32 %v378, 0.0
  %v387 = vmax.f32 %v379, 0.0
  %v388 = vmax.f32 %v380, 0.0
  %v389 = vmax.f32 %v381, 0.0
  %v390 = vmax.f32 %v382, 0.0
  %v391 = vld [vmem:[%s6] sm:$0x1f]
  %v392 = vld [vmem:[%s7] sm:$0x1f]
  %394 = vset.pattern.permute.xlu0 0
  %395 = vperm.xlu0 %394, %v392
  %v396 = vpop.permute.xlu0 %395
  %vm398 = vcmask 130048
  %v400 = vsel %vm398, %v391, 0
  %402 = vmatprep.subr.mxu0 %v384
  %403 = vmatpush1.msra.mxu0 %v383
  %404 = vmatprep.subr.mxu0 %v388
  %405 = vmatpush1.msra.mxu0 %v387
  %406 = vmatprep.subr.mxu0 0.0
  %407 = vmatpush1.msra.mxu0 0.0
  %408 = vmatprep.subr.mxu0 0.0
  %409 = vmatpush1.msra.mxu0 0.0
  %410 = vmatprep.subr.mxu0 0.0
  %411 = vmatpush1.msra.mxu0 0.0
  %412 = vmatprep.subr.mxu0 0.0
  %413 = vmatpush1.msra.mxu0 0.0
  %414 = vmatprep.subr.mxu0 0.0
  %415 = vmatpush1.msra.mxu0 0.0
  %416 = vmatprep.subr.mxu0 0.0
  %417 = vmatpush1.msra.mxu0 0.0
  %418 = vmatprep.subr.mxu0 0.0
  %419 = vmatpush1.msra.mxu0 0.0
  %420 = vmatprep.subr.mxu0 0.0
  %421 = vmatpush1.msra.mxu0 0.0
  %422 = vmatprep.subr.mxu0 0.0
  %423 = vmatpush1.msra.mxu0 0.0
  %424 = vmatprep.subr.mxu0 0.0
  %425 = vmatpush1.msra.mxu0 0.0
  %426 = vmatprep.subr.mxu0 0.0
  %427 = vmatpush1.msra.mxu0 0.0
  %428 = vmatprep.subr.mxu0 0.0
  %429 = vmatpush1.msra.mxu0 0.0
  %430 = vmatprep.subr.mxu0 0.0
  %431 = vmatpush1.msra.mxu0 0.0
  %432 = vmatprep.subr.mxu0 0.0
  %433 = vmatpush1.msra.mxu0 0.0
  %434 = vmatprep.subr.mxu0 0.0
  %435 = vmatpush1.msra.mxu0 0.0
  %436 = vmatprep.subr.mxu0 0.0
  %437 = vmatpush1.msra.mxu0 0.0
  %438 = vmatprep.subr.mxu0 0.0
  %439 = vmatpush1.msra.mxu0 0.0
  %440 = vmatprep.subr.mxu0 0.0
  %441 = vmatpush1.msra.mxu0 0.0
  %442 = vmatprep.subr.mxu0 0.0
  %443 = vmatpush1.msra.mxu0 0.0
  %444 = vmatprep.subr.mxu0 0.0
  %445 = vmatpush1.msra.mxu0 0.0
  %446 = vmatprep.subr.mxu0 0.0
  %447 = vmatpush1.msra.mxu0 0.0
  %448 = vmatprep.subr.mxu0 0.0
  %449 = vmatpush1.msra.mxu0 0.0
  %450 = vmatprep.subr.mxu0 0.0
  %451 = vmatpush1.msra.mxu0 0.0
  %452 = vmatprep.subr.mxu0 0.0
  %453 = vmatpush1.msra.mxu0 0.0
  %454 = vmatprep.subr.mxu0 0.0
  %455 = vmatpush1.msra.mxu0 0.0
  %456 = vmatprep.subr.mxu0 0.0
  %457 = vmatpush1.msra.mxu0 0.0
  %458 = vmatprep.subr.mxu0 0.0
  %459 = vmatpush1.msra.mxu0 0.0
  %460 = vmatprep.subr.mxu0 0.0
  %461 = vmatpush1.msra.mxu0 0.0
  %462 = vmatprep.subr.mxu0 0.0
  %463 = vmatpush1.msra.mxu0 0.0
  %464 = vmatprep.subr.mxu0 0.0
  %465 = vmatpush1.msra.mxu0 0.0
  %466 = vmatprep.mubr.f32.mxu0 0.0
  %467 = vmatmul.mubr.f32.gmra.mrb[0].mxu0 %v400
  %v468 = vpop.f32.mrb[0].mxu0
  %v469 = vadd.f32 %v396, %v468
  %v470 = vpop.f32.mrb[0].mxu0
  %v471 = vadd.f32 %v396, %v470
  %472 = vdwg.mxu0
  %473 = vmatprep.subr.mxu0 %v386
  %474 = vmatpush1.msra.mxu0 %v385
  %475 = vmatprep.subr.mxu0 %v390
  %476 = vmatpush1.msra.mxu0 %v389
  %477 = vmatprep.subr.mxu0 0.0
  %478 = vmatpush1.msra.mxu0 0.0
  %479 = vmatprep.subr.mxu0 0.0
  %480 = vmatpush1.msra.mxu0 0.0
  %481 = vmatprep.subr.mxu0 0.0
  %482 = vmatpush1.msra.mxu0 0.0
  %483 = vmatprep.subr.mxu0 0.0
  %484 = vmatpush1.msra.mxu0 0.0
  %485 = vmatprep.subr.mxu0 0.0
  %486 = vmatpush1.msra.mxu0 0.0
  %487 = vmatprep.subr.mxu0 0.0
  %488 = vmatpush1.msra.mxu0 0.0
  %489 = vmatprep.subr.mxu0 0.0
  %490 = vmatpush1.msra.mxu0 0.0
  %491 = vmatprep.subr.mxu0 0.0
  %492 = vmatpush1.msra.mxu0 0.0
  %493 = vmatprep.subr.mxu0 0.0
  %494 = vmatpush1.msra.mxu0 0.0
  %495 = vmatprep.subr.mxu0 0.0
  %496 = vmatpush1.msra.mxu0 0.0
  %497 = vmatprep.subr.mxu0 0.0
  %498 = vmatpush1.msra.mxu0 0.0
  %499 = vmatprep.subr.mxu0 0.0
  %500 = vmatpush1.msra.mxu0 0.0
  %501 = vmatprep.subr.mxu0 0.0
  %502 = vmatpush1.msra.mxu0 0.0
  %503 = vmatprep.subr.mxu0 0.0
  %504 = vmatpush1.msra.mxu0 0.0
  %505 = vmatprep.subr.mxu0 0.0
  %506 = vmatpush1.msra.mxu0 0.0
  %507 = vmatprep.subr.mxu0 0.0
  %508 = vmatpush1.msra.mxu0 0.0
  %509 = vmatprep.subr.mxu0 0.0
  %510 = vmatpush1.msra.mxu0 0.0
  %511 = vmatprep.subr.mxu0 0.0
  %512 = vmatpush1.msra.mxu0 0.0
  %513 = vmatprep.subr.mxu0 0.0
  %514 = vmatpush1.msra.mxu0 0.0
  %515 = vmatprep.subr.mxu0 0.0
  %516 = vmatpush1.msra.mxu0 0.0
  %517 = vmatprep.subr.mxu0 0.0
  %518 = vmatpush1.msra.mxu0 0.0
  %519 = vmatprep.subr.mxu0 0.0
  %520 = vmatpush1.msra.mxu0 0.0
  %521 = vmatprep.subr.mxu0 0.0
  %522 = vmatpush1.msra.mxu0 0.0
  %523 = vmatprep.subr.mxu0 0.0
  %524 = vmatpush1.msra.mxu0 0.0
  %525 = vmatprep.subr.mxu0 0.0
  %526 = vmatpush1.msra.mxu0 0.0
  %527 = vmatprep.subr.mxu0 0.0
  %528 = vmatpush1.msra.mxu0 0.0
  %529 = vmatprep.subr.mxu0 0.0
  %530 = vmatpush1.msra.mxu0 0.0
  %531 = vmatprep.subr.mxu0 0.0
  %532 = vmatpush1.msra.mxu0 0.0
  %533 = vmatprep.subr.mxu0 0.0
  %534 = vmatpush1.msra.mxu0 0.0
  %535 = vmatprep.subr.mxu0 0.0
  %536 = vmatpush1.msra.mxu0 0.0
  %537 = vmatprep.mubr.f32.mxu0 0.0
  %538 = vmatmul.mubr.f32.gmra.mrb[0].mxu0 %v400
  %v539 = vpop.f32.mrb[0].mxu0
  %v540 = vadd.f32 %v396, %v539
  %v541 = vpop.f32.mrb[0].mxu0
  %v542 = vadd.f32 %v396, %v541
  %543 = vdwg.mxu0
  %544 = vst [vmem:[%s8] sm:$0x1f] %v469
  %545 = vst [vmem:[%s8 + $0x8] sm:$0x1f] %v471
  %546 = vst [vmem:[%s8 + $0x10] sm:$0x1f] %v540
  %547 = vst [vmem:[%s8 + $0x18] sm:$0x1f] %v542
  // Predicated region
  $region34: #{vitpose_forward.5} parent=0 // pred_check
    _
  $region35: #{vitpose_forward.5} parent=0 // pred_check_branch
    %549 = sbr.rel (0) target = $region37
  $region36: #{vitpose_forward.5} parent=0 // pred_region
    _
  $region37: #{vitpose_forward.5} parent=0 // pred_fallthru
    _
  // Predicated region
  $region38: #{vitpose_forward.5} parent=0 // pred_check
    _
  $region39: #{vitpose_forward.5} parent=0 // pred_check_branch
    %551 = sbr.rel (0) target = $region41
  $region40: #{vitpose_forward.5} parent=0 // pred_region
    _
  $region41: #{vitpose_forward.5} parent=0 // pred_fallthru
    _

</llo_original>
